<compile_context>
chip_gen: v6e
topology: v6e:2x2x1
jax: 0.10.0
libtpu: 0.0.40
codegen_flags: <defaults>
</compile_context>

<pallas_src>
import functools

import jax
import jax.numpy as jnp
from jax.experimental import pallas as pl
from jax.experimental.pallas import tpu as pltpu


WEIGHT_DTYPE = jnp.bfloat16   # matmul weights in bf16, f32 accumulation on MXU


# ----------------------------------------------------------------------------
# VMEM-aware tiling helpers
# ----------------------------------------------------------------------------
@functools.lru_cache(maxsize=None)
def _vmem_capacity_bytes():
    try:
        cap = int(getattr(pltpu.get_tpu_info(), "vmem_capacity_bytes", 0))
        if cap > 0:
            return cap
    except Exception:
        pass
    return 64 * 1024 * 1024        # conservative fallback (v7x per-core VMEM)


def _vmem_budget():
    return int(_vmem_capacity_bytes() * 0.5)


def _compiler_params(dimension_semantics):
    cap = _vmem_capacity_bytes()
    return pltpu.CompilerParams(
        dimension_semantics=dimension_semantics,
        vmem_limit_bytes=int(min(cap * 0.9, 128 * 1024 * 1024)))


def _pick_row_tile(m, bytes_per_row, budget):
    for t in (1024, 512, 256, 128, 64, 32, 16, 8):
        if m % t == 0 and t * bytes_per_row <= budget:
            return t
    return m      # single full-extent block (still legal: block == full dim)


def _pick_col_tile(n, bytes_per_col, budget):
    if n * bytes_per_col <= budget:
        return n  # keep the whole weight slab resident -> DMA'd once per call
    for t in (2048, 1024, 512, 256, 128):
        if n % t == 0 and t * bytes_per_col <= budget:
            return t
    return n


def _pick_q_tile(n):
    for t in (256, 128, 64, 32):
        if t < n and n % t == 0:
            return t
    return n


def _round8(n):
    return -(-n // 8) * 8


# ----------------------------------------------------------------------------
# Pallas kernels
# ----------------------------------------------------------------------------
def _ln_linear_kernel(x_ref, g_ref, b_ref, w_ref, wb_ref, o_ref, xn_scr, *, eps):
    """Fused LayerNorm + Linear.  LN done once per row tile (j==0), cached in VMEM."""
    @pl.when(pl.program_id(1) == 0)
    def _():
        x = x_ref[...].astype(jnp.float32)
        mean = jnp.mean(x, axis=-1, keepdims=True)
        var = jnp.mean(jnp.square(x - mean), axis=-1, keepdims=True)
        xn = (x - mean) * jax.lax.rsqrt(var + eps)
        xn = xn * g_ref[...].astype(jnp.float32) + b_ref[...].astype(jnp.float32)
        xn_scr[...] = xn.astype(xn_scr.dtype)

    acc = jnp.dot(xn_scr[...], w_ref[...], preferred_element_type=jnp.float32)
    o_ref[...] = (acc + wb_ref[...].astype(jnp.float32)).astype(o_ref.dtype)


def _attn_proj_kernel(q_ref, k_ref, v_ref, relh_ref, relw_ref, eh_ref, ew_ref,
                      pw_ref, pb_ref, o_ref, heads_scr, *, num_heads, head_dim):
    """One (window, query-tile) per grid step: all heads, decomposed rel-pos bias,
    softmax, P@V into a concat-heads scratch, then ONE fused output projection."""
    hd = head_dim
    eh = eh_ref[...]                      # (Hk8, N) 0/1 column-expansion matrix
    ew = ew_ref[...]                      # (Wk8, N)
    for h in range(num_heads):
        q = q_ref[0, h]                   # (tq, hd)  softmax scale folded into K
        k = k_ref[0, h]                   # (N, hd)
        v = v_ref[0, h]                   # (N, hd)
        s = jax.lax.dot_general(q, k, (((1,), (1,)), ((), ())),
                                preferred_element_type=jnp.float32)   # (tq, N)
        # decomposed rel-pos bias: expand (tq,H)/(tq,W) factors to (tq,N) on MXU
        s = s + jnp.dot(relh_ref[0, h], eh, preferred_element_type=jnp.float32)
        s = s + jnp.dot(relw_ref[0, h], ew, preferred_element_type=jnp.float32)
        # softmax (approx reciprocal on the EUP)
        s = s - jnp.max(s, axis=-1, keepdims=True)
        p = jnp.exp(s)
        l = jnp.sum(p, axis=-1, keepdims=True)
        o_h = jnp.dot(p.astype(v.dtype), v, preferred_element_type=jnp.float32)
        heads_scr[:, h * hd:(h + 1) * hd] = o_h * pl.reciprocal(l, approx=True)
    # single output projection across concatenated heads (full K = C MXU depth)
    o = jnp.dot(heads_scr[...].astype(pw_ref.dtype), pw_ref[...],
                preferred_element_type=jnp.float32)
    o_ref[0] = (o + pb_ref[...].astype(jnp.float32)).astype(o_ref.dtype)


def _mlp_block_kernel(short_ref, xa_ref, g_ref, b_ref, w1_ref, b1_ref,
                      w2_ref, b2_ref, o_ref, x_scr, h_scr, acc_scr, *, eps):
    """Fused: x = shortcut + attn; y = x + W2(gelu(W1(LN2(x)))). Hidden-dim tiled."""
    k = pl.program_id(1)

    @pl.when(k == 0)
    def _():
        x = short_ref[...].astype(jnp.float32) + xa_ref[...].astype(jnp.float32)
        mean = jnp.mean(x, axis=-1, keepdims=True)
        var = jnp.mean(jnp.square(x - mean), axis=-1, keepdims=True)
        xn = (x - mean) * jax.lax.rsqrt(var + eps)
        x_scr[...] = x
        h_scr[...] = (xn * g_ref[...].astype(jnp.float32)
                      + b_ref[...].astype(jnp.float32)).astype(h_scr.dtype)
        acc_scr[...] = jnp.zeros_like(acc_scr)

    t = jnp.dot(h_scr[...], w1_ref[...], preferred_element_type=jnp.float32)
    t = t + b1_ref[...].astype(jnp.float32)
    # TODO(synk): tanh-approx GELU used in-kernel (PyTorch nn.GELU default is erf).
    t = jax.nn.gelu(t, approximate=True)
    acc_scr[...] += jnp.dot(t.astype(w2_ref.dtype), w2_ref[...],
                            preferred_element_type=jnp.float32)

    @pl.when(k == pl.num_programs(1) - 1)
    def _():
        y = x_scr[...] + acc_scr[...] + b2_ref[...].astype(jnp.float32)
        o_ref[...] = y.astype(o_ref.dtype)


# ----------------------------------------------------------------------------
# Pallas wrappers
# ----------------------------------------------------------------------------
def pallas_ln_linear(x, g, b, w, wb, eps=1e-6):
    M, K = x.shape
    NO = w.shape[1]
    wbytes = jnp.dtype(w.dtype).itemsize
    xbytes = jnp.dtype(x.dtype).itemsize
    budget = _vmem_budget()
    tn = _pick_col_tile(NO, 2 * K * wbytes, budget // 3)
    row_bytes = 2 * K * xbytes + K * wbytes + 2 * tn * xbytes
    tm = _pick_row_tile(M, row_bytes, budget - budget // 3)
    return pl.pallas_call(
        functools.partial(_ln_linear_kernel, eps=eps),
        out_shape=jax.ShapeDtypeStruct((M, NO), x.dtype),
        grid=(M // tm, NO // tn),
        in_specs=[
            pl.BlockSpec((tm, K), lambda i, j: (i, 0)),
            pl.BlockSpec((1, K), lambda i, j: (0, 0)),
            pl.BlockSpec((1, K), lambda i, j: (0, 0)),
            pl.BlockSpec((K, tn), lambda i, j: (0, j)),
            pl.BlockSpec((1, tn), lambda i, j: (0, j)),
        ],
        out_specs=pl.BlockSpec((tm, tn), lambda i, j: (i, j)),
        scratch_shapes=[pltpu.VMEM((tm, K), w.dtype)],     # cached LN(x) tile
        compiler_params=_compiler_params(("parallel", "arbitrary")),
    )(x, g.reshape(1, K), b.reshape(1, K), w, wb.reshape(1, NO))


def pallas_attention_proj(q, k, v, rel_h, rel_w, eh, ew, proj_w, proj_b):
    Bn, nh, N, hd = q.shape
    C = nh * hd
    hk8 = rel_h.shape[-1]
    wk8 = rel_w.shape[-1]
    tq = _pick_q_tile(N)
    kernel = functools.partial(_attn_proj_kernel, num_heads=nh, head_dim=hd)
    return pl.pallas_call(
        kernel,
        out_shape=jax.ShapeDtypeStruct((Bn, N, C), q.dtype),
        grid=(Bn, N // tq),
        in_specs=[
            pl.BlockSpec((1, nh, tq, hd), lambda w, qi: (w, 0, qi, 0)),   # q tile
            pl.BlockSpec((1, nh, N, hd), lambda w, qi: (w, 0, 0, 0)),     # full K
            pl.BlockSpec((1, nh, N, hd), lambda w, qi: (w, 0, 0, 0)),     # full V
            pl.BlockSpec((1, nh, tq, hk8), lambda w, qi: (w, 0, qi, 0)),
            pl.BlockSpec((1, nh, tq, wk8), lambda w, qi: (w, 0, qi, 0)),
            pl.BlockSpec((hk8, N), lambda w, qi: (0, 0)),
            pl.BlockSpec((wk8, N), lambda w, qi: (0, 0)),
            pl.BlockSpec((C, C), lambda w, qi: (0, 0)),
            pl.BlockSpec((1, C), lambda w, qi: (0, 0)),
        ],
        out_specs=pl.BlockSpec((1, tq, C), lambda w, qi: (w, qi, 0)),
        scratch_shapes=[pltpu.VMEM((tq, C), jnp.float32)],  # concat-heads buffer
        compiler_params=_compiler_params(("parallel", "parallel")),
    )(q, k, v, rel_h, rel_w, eh, ew, proj_w, proj_b.reshape(1, C))


def pallas_mlp_block(shortcut, xa, g, b, w1, b1, w2, b2, eps=1e-6):
    M, C = shortcut.shape
    hidden = w1.shape[1]
    wbytes = jnp.dtype(w1.dtype).itemsize
    xbytes = jnp.dtype(shortcut.dtype).itemsize
    budget = _vmem_budget()
    # keep the W1 column + W2 row slabs within ~1/3 of the budget (resident if small)
    tk = _pick_col_tile(hidden, 2 * 2 * C * wbytes, budget // 3)
    row_bytes = (2 * 2 * C * xbytes          # shortcut + attn, double buffered
                 + 2 * C * xbytes            # output, double buffered
                 + 2 * C * 4 + C * wbytes    # x/acc f32 scratch + LN2 scratch
                 + 2 * tk * 4)               # hidden activation temporary
    tm = _pick_row_tile(M, row_bytes, budget - budget // 3)
    return pl.pallas_call(
        functools.partial(_mlp_block_kernel, eps=eps),
        out_shape=jax.ShapeDtypeStruct((M, C), shortcut.dtype),
        grid=(M // tm, hidden // tk),
        in_specs=[
            pl.BlockSpec((tm, C), lambda i, k: (i, 0)),
            pl.BlockSpec((tm, C), lambda i, k: (i, 0)),
            pl.BlockSpec((1, C), lambda i, k: (0, 0)),
            pl.BlockSpec((1, C), lambda i, k: (0, 0)),
            pl.BlockSpec((C, tk), lambda i, k: (0, k)),
            pl.BlockSpec((1, tk), lambda i, k: (0, k)),
            pl.BlockSpec((tk, C), lambda i, k: (k, 0)),
            pl.BlockSpec((1, C), lambda i, k: (0, 0)),
        ],
        out_specs=pl.BlockSpec((tm, C), lambda i, k: (i, 0)),
        scratch_shapes=[pltpu.VMEM((tm, C), jnp.float32),   # x (residual)
                        pltpu.VMEM((tm, C), w1.dtype),      # LN2(x), matmul input
                        pltpu.VMEM((tm, C), jnp.float32)],  # MLP accumulator
        compiler_params=_compiler_params(("parallel", "arbitrary")),
    )(shortcut, xa, g.reshape(1, C), b.reshape(1, C),
      w1, b1.reshape(1, hidden), w2, b2.reshape(1, C))


# ----------------------------------------------------------------------------
# JAX glue: windowing, rel-pos factors, block / stage composition
# ----------------------------------------------------------------------------
def _window_partition(x, ws, pad_value=None):
    """(B, H, W, C) -> (num_windows*B, ws*ws, C); pads with `pad_value` per channel."""
    B, H, W, C = x.shape
    pad_h = (-H) % ws
    pad_w = (-W) % ws
    if pad_h or pad_w:
        Hp, Wp = H + pad_h, W + pad_w
        if pad_value is None:
            x = jnp.pad(x, ((0, 0), (0, pad_h), (0, pad_w), (0, 0)))
        else:
            full = jnp.broadcast_to(pad_value.astype(x.dtype), (B, Hp, Wp, C))
            x = full.at[:, :H, :W, :].set(x)
    else:
        Hp, Wp = H, W
    x = x.reshape(B, Hp // ws, ws, Wp // ws, ws, C)
    wins = x.transpose(0, 1, 3, 2, 4, 5).reshape(-1, ws * ws, C)
    return wins, (Hp, Wp)


def _window_unpartition(wins, ws, hw_pad, hw, B):
    Hp, Wp = hw_pad
    H, W = hw
    C = wins.shape[-1]
    x = wins.reshape(B, Hp // ws, Wp // ws, ws, ws, C)
    x = x.transpose(0, 1, 3, 2, 4, 5).reshape(B, Hp, Wp, C)
    return x[:, :H, :W, :]


def _get_rel_pos(q_size, k_size, rel_pos):
    coords = (jnp.arange(q_size)[:, None] - jnp.arange(k_size)[None, :]) + (k_size - 1)
    return rel_pos[coords]  # (q_size, k_size, head_dim)


def _rel_bias_factors(q_heads, Rh, Rw, H, W):
    """Small per-head rel-pos factors (Bn, nh, N, Hk8) / (Bn, nh, N, Wk8)."""
    Bn, nh, N, hd = q_heads.shape
    q5 = q_heads.reshape(Bn, nh, H, W, hd)
    rel_h = jnp.einsum("bnijc,ikc->bnijk", q5, Rh).reshape(Bn, nh, N, H)
    rel_w = jnp.einsum("bnijc,jkc->bnijk", q5, Rw).reshape(Bn, nh, N, W)
    rel_h = jnp.pad(rel_h, ((0, 0), (0, 0), (0, 0), (0, _round8(H) - H)))
    rel_w = jnp.pad(rel_w, ((0, 0), (0, 0), (0, 0), (0, _round8(W) - W)))
    return rel_h, rel_w


def _expansion_mats(H, W, dtype):
    """0/1 matrices expanding (tq,H)/(tq,W) bias factors to (tq,N) inside the kernel."""
    N = H * W
    n2 = jnp.arange(N)
    eh = (n2[None, :] // W == jnp.arange(_round8(H))[:, None]).astype(dtype)
    ew = (n2[None, :] % W == jnp.arange(_round8(W))[:, None]).astype(dtype)
    return eh, ew


def _block(x, p, num_heads, window_size, eps=1e-6):
    """One SAM ViT block: x + attn(LN1(x)) ; then + MLP(LN2(.))."""
    B, H, W, C = x.shape
    nh = num_heads
    hd = C // nh
    M = B * H * W
    wdt = WEIGHT_DTYPE

    # fold softmax scale into the K projection (rel-pos bias keeps unscaled q)
    scale = hd ** -0.5
    qkv_w = p["attn"]["qkv_w"].at[:, C:2 * C].multiply(scale).astype(wdt)
    qkv_b = p["attn"]["qkv_b"].at[C:2 * C].multiply(scale)

    # (1) fused LN1 + QKV projection
    qkv = pallas_ln_linear(x.reshape(M, C), p["ln1_g"], p["ln1_b"], qkv_w, qkv_b, eps)
    qkv = qkv.reshape(B, H, W, 3 * C)

    if window_size > 0:
        qkv_wins, hw_pad = _window_partition(qkv, window_size, pad_value=qkv_b)
        Hw = Ww = window_size
    else:
        qkv_wins = qkv.reshape(B, H * W, 3 * C)
        hw_pad = (H, W)
        Hw, Ww = H, W
    Bn, N, _ = qkv_wins.shape

    # head-major re-layout: (Bn, N, 3C) -> (3, Bn, nh, N, hd) so every per-head
    # slice in the kernel is a leading-axis index (no misaligned lane slicing)
    qkv5 = qkv_wins.reshape(Bn, N, 3, nh, hd).transpose(2, 0, 3, 1, 4)
    q_h, k_h, v_h = qkv5[0], qkv5[1], qkv5[2]

    Rh = _get_rel_pos(Hw, Hw, p["attn"]["rel_pos_h"])
    Rw = _get_rel_pos(Ww, Ww, p["attn"]["rel_pos_w"])
    rel_h, rel_w = _rel_bias_factors(q_h, Rh, Rw, Hw, Ww)
    eh, ew = _expansion_mats(Hw, Ww, jnp.float32)

    # (2) fused multi-head attention + single output projection
    attn = pallas_attention_proj(q_h, k_h, v_h, rel_h, rel_w, eh, ew,
                                 p["attn"]["proj_w"].astype(wdt),
                                 p["attn"]["proj_b"])

    if window_size > 0:
        xa = _window_unpartition(attn.reshape(Bn, Hw, Ww, C),
                                 window_size, hw_pad, (H, W), B)
    else:
        xa = attn.reshape(B, H, W, C)

    # (3) fused: residual add + LN2 + MLP + residual add
    y = pallas_mlp_block(x.reshape(M, C), xa.reshape(M, C),
                         p["ln2_g"], p["ln2_b"],
                         p["mlp_w1"].astype(wdt), p["mlp_b1"],
                         p["mlp_w2"].astype(wdt), p["mlp_b2"], eps)
    return y.reshape(B, H, W, C)


def transformer_stage_forward(params, patch_tokens_bhwc, *, num_heads, window_size):
    x = patch_tokens_bhwc
    for bp in params["windowed"]:
        x = _block(x, bp, num_heads, window_size)
    return _block(x, params["global_"], num_heads, 0)


# ----------------------------------------------------------------------------
# Deterministic parameter initialization (synthetic, no checkpoint)
# ----------------------------------------------------------------------------
def _init_attn_params(key, C, head_dim, rel_h_size, rel_w_size):
    ks = jax.random.split(key, 4)
    return dict(
        qkv_w=jax.random.normal(ks[0], (C, 3 * C), jnp.float32) * 0.02,
        qkv_b=jnp.zeros((3 * C,), jnp.float32),
        proj_w=jax.random.normal(ks[1], (C, C), jnp.float32) * 0.02,
        proj_b=jnp.zeros((C,), jnp.float32),
        rel_pos_h=jax.random.normal(ks[2], (2 * rel_h_size - 1, head_dim), jnp.float32) * 0.02,
        rel_pos_w=jax.random.normal(ks[3], (2 * rel_w_size - 1, head_dim), jnp.float32) * 0.02,
    )


def _init_block_params(key, C, num_heads, rel_h_size, rel_w_size, mlp_ratio=4):
    ka, k1, k2 = jax.random.split(key, 3)
    hidden = C * mlp_ratio
    return dict(
        ln1_g=jnp.ones((C,), jnp.float32), ln1_b=jnp.zeros((C,), jnp.float32),
        ln2_g=jnp.ones((C,), jnp.float32), ln2_b=jnp.zeros((C,), jnp.float32),
        attn=_init_attn_params(ka, C, C // num_heads, rel_h_size, rel_w_size),
        mlp_w1=jax.random.normal(k1, (C, hidden), jnp.float32) * 0.02,
        mlp_b1=jnp.zeros((hidden,), jnp.float32),
        mlp_w2=jax.random.normal(k2, (hidden, C), jnp.float32) * 0.02,
        mlp_b2=jnp.zeros((C,), jnp.float32),
    )


def init_transformer_stage_params(key, C, num_blocks, num_heads,
                                  base_window_size, base_patch_grid_hw):
    num_win = max(0, num_blocks - 1)
    keys = jax.random.split(key, num_win + 1)
    windowed = [
        _init_block_params(keys[i], C, num_heads, base_window_size, base_window_size)
        for i in range(num_win)
    ]
    global_ = _init_block_params(keys[-1], C, num_heads,
                                 base_patch_grid_hw[0], base_patch_grid_hw[1])
    return dict(windowed=windowed, global_=global_)


# ----------------------------------------------------------------------------
if __name__ == "__main__":
    FEATURES_PER_TOKEN = 32
    NUM_BLOCKS = 2          # 1 windowed block + 1 global block
    NUM_HEADS = 2
    BASE_WINDOW_SIZE = 4
    BASE_PATCH_GRID_HW = (8, 8)
    BATCH = 2

    key = jax.random.PRNGKey(0)
    kp, kx = jax.random.split(key)
    params = init_transformer_stage_params(
        kp, FEATURES_PER_TOKEN, NUM_BLOCKS, NUM_HEADS,
        BASE_WINDOW_SIZE, BASE_PATCH_GRID_HW)

    # input: patch_tokens_bhwc
    x = jax.random.normal(
        kx, (BATCH, BASE_PATCH_GRID_HW[0], BASE_PATCH_GRID_HW[1], FEATURES_PER_TOKEN),
        jnp.float32)

    fwd = jax.jit(functools.partial(
        transformer_stage_forward,
        num_heads=NUM_HEADS,
        window_size=BASE_WINDOW_SIZE))

    out = fwd(params, x)
    out = jax.block_until_ready(out)
    assert out.shape == x.shape
    assert bool(jnp.isfinite(out).all())
    print("KERNEL_OK")
</pallas_src>

<mosaic_0001>
module attributes {stable_mosaic.version = 11 : i64} {
  func.func @_ln_linear_kernel(%arg0: i32, %arg1: i32, %arg2: memref<128x32xf32, #tpu.memory_space<vmem>>, %arg3: memref<1x32xf32, #tpu.memory_space<vmem>>, %arg4: memref<1x32xf32, #tpu.memory_space<vmem>>, %arg5: memref<32x96xbf16, #tpu.memory_space<vmem>>, %arg6: memref<1x96xf32, #tpu.memory_space<vmem>>, %arg7: memref<128x96xf32, #tpu.memory_space<vmem>>, %arg8: memref<128x32xbf16, #tpu.memory_space<vmem>>) attributes {dimension_semantics = [#tpu.dimension_semantics<parallel>, #tpu.dimension_semantics<arbitrary>], iteration_bounds = array<i64: 1, 1>, scalar_prefetch = 0 : i64, scratch_operands = 1 : i64, tpu.core_type = #tpu.core_type<tc>, window_params = [{transform_indices = @transform_0, window_bounds = array<i64: 128, 32>}, {pipeline_mode = #tpu.pipeline_mode<synchronous>, transform_indices = @transform_1, window_bounds = array<i64: 1, 32>}, {pipeline_mode = #tpu.pipeline_mode<synchronous>, transform_indices = @transform_2, window_bounds = array<i64: 1, 32>}, {transform_indices = @transform_3, window_bounds = array<i64: 32, 96>}, {transform_indices = @transform_4, window_bounds = array<i64: 1, 96>}, {transform_indices = @transform_5, window_bounds = array<i64: 128, 96>}]} {
    %c0_i32 = arith.constant 0 : i32
    %0 = arith.cmpi eq, %arg1, %c0_i32 : i32
    %1 = arith.extui %0 : i1 to i32
    %c0_i32_0 = arith.constant 0 : i32
    %2 = arith.cmpi ne, %1, %c0_i32_0 : i32
    scf.if %2 {
      %c0_8 = arith.constant 0 : index
      %c0_9 = arith.constant 0 : index
      %10 = vector.load %arg2[%c0_8, %c0_9] : memref<128x32xf32, #tpu.memory_space<vmem>>, vector<128x32xf32>
      %cst_10 = arith.constant dense<0.000000e+00> : vector<128xf32>
      %11 = vector.multi_reduction <add>, %10, %cst_10 [1] : vector<128x32xf32> to vector<128xf32>
      %12 = vector.shape_cast %11 : vector<128xf32> to vector<128x1xf32>
      %cst_11 = arith.constant 3.200000e+01 : f32
      %13 = vector.broadcast %cst_11 : f32 to vector<128x1xf32>
      %14 = arith.divf %12, %13 : vector<128x1xf32>
      %15 = vector.broadcast %14 : vector<128x1xf32> to vector<128x32xf32>
      %16 = arith.subf %10, %15 : vector<128x32xf32>
      %17 = arith.mulf %16, %16 : vector<128x32xf32>
      %cst_12 = arith.constant dense<0.000000e+00> : vector<128xf32>
      %18 = vector.multi_reduction <add>, %17, %cst_12 [1] : vector<128x32xf32> to vector<128xf32>
      %19 = vector.shape_cast %18 : vector<128xf32> to vector<128x1xf32>
      %cst_13 = arith.constant 3.200000e+01 : f32
      %20 = vector.broadcast %cst_13 : f32 to vector<128x1xf32>
      %21 = arith.divf %19, %20 : vector<128x1xf32>
      %22 = vector.broadcast %14 : vector<128x1xf32> to vector<128x32xf32>
      %23 = arith.subf %10, %22 : vector<128x32xf32>
      %cst_14 = arith.constant 9.99999997E-7 : f32
      %24 = vector.broadcast %cst_14 : f32 to vector<128x1xf32>
      %25 = arith.addf %21, %24 : vector<128x1xf32>
      %26 = math.rsqrt %25 : vector<128x1xf32>
      %27 = vector.broadcast %26 : vector<128x1xf32> to vector<128x32xf32>
      %28 = arith.mulf %23, %27 : vector<128x32xf32>
      %c0_15 = arith.constant 0 : index
      %c0_16 = arith.constant 0 : index
      %29 = vector.load %arg3[%c0_15, %c0_16] : memref<1x32xf32, #tpu.memory_space<vmem>>, vector<1x32xf32>
      %30 = vector.broadcast %29 : vector<1x32xf32> to vector<128x32xf32>
      %31 = arith.mulf %28, %30 : vector<128x32xf32>
      %c0_17 = arith.constant 0 : index
      %c0_18 = arith.constant 0 : index
      %32 = vector.load %arg4[%c0_17, %c0_18] : memref<1x32xf32, #tpu.memory_space<vmem>>, vector<1x32xf32>
      %33 = vector.broadcast %32 : vector<1x32xf32> to vector<128x32xf32>
      %34 = arith.addf %31, %33 : vector<128x32xf32>
      %35 = arith.truncf %34 : vector<128x32xf32> to vector<128x32xbf16>
      %c0_19 = arith.constant 0 : index
      %c0_20 = arith.constant 0 : index
      %36 = vector.load %arg8[%c0_19, %c0_20] : memref<128x32xbf16, #tpu.memory_space<vmem>>, vector<128x32xbf16>
      tpu.vector_store %arg8[%c0_19, %c0_20], %35 {strides = array<i32>} : memref<128x32xbf16, #tpu.memory_space<vmem>>, vector<128x32xbf16>,
    } else {
    }
    %c0 = arith.constant 0 : index
    %c0_1 = arith.constant 0 : index
    %3 = vector.load %arg8[%c0, %c0_1] : memref<128x32xbf16, #tpu.memory_space<vmem>>, vector<128x32xbf16>
    %c0_2 = arith.constant 0 : index
    %c0_3 = arith.constant 0 : index
    %4 = vector.load %arg5[%c0_2, %c0_3] : memref<32x96xbf16, #tpu.memory_space<vmem>>, vector<32x96xbf16>
    %cst = arith.constant dense<0.000000e+00> : vector<128x96xf32>
    %5 = tpu.matmul %3, %4, %cst {dimension_numbers = #tpu.dot_dimension_numbers<[1], [0], [0], [1], [0, 0, 1, 1], [], []>} : vector<128x32xbf16>, vector<32x96xbf16>, vector<128x96xf32> -> vector<128x96xf32>
    %c0_4 = arith.constant 0 : index
    %c0_5 = arith.constant 0 : index
    %6 = vector.load %arg6[%c0_4, %c0_5] : memref<1x96xf32, #tpu.memory_space<vmem>>, vector<1x96xf32>
    %7 = vector.broadcast %6 : vector<1x96xf32> to vector<128x96xf32>
    %8 = arith.addf %5, %7 : vector<128x96xf32>
    %c0_6 = arith.constant 0 : index
    %c0_7 = arith.constant 0 : index
    %9 = vector.load %arg7[%c0_6, %c0_7] : memref<128x96xf32, #tpu.memory_space<vmem>>, vector<128x96xf32>
    tpu.vector_store %arg7[%c0_6, %c0_7], %8 {strides = array<i32>} : memref<128x96xf32, #tpu.memory_space<vmem>>, vector<128x96xf32>,
    return
  }
  func.func @transform_0(%arg0: i32, %arg1: i32) -> (i32, i32) {
    %c0_i32 = arith.constant 0 : i32
    %c0_i32_0 = arith.constant 0 : i32
    return %arg0, %c0_i32 : i32, i32
  }
  func.func @transform_1(%arg0: i32, %arg1: i32) -> (i32, i32) {
    %c0_i32 = arith.constant 0 : i32
    %c0_i32_0 = arith.constant 0 : i32
    %c0_i32_1 = arith.constant 0 : i32
    return %c0_i32, %c0_i32_0 : i32, i32
  }
  func.func @transform_2(%arg0: i32, %arg1: i32) -> (i32, i32) {
    %c0_i32 = arith.constant 0 : i32
    %c0_i32_0 = arith.constant 0 : i32
    %c0_i32_1 = arith.constant 0 : i32
    return %c0_i32, %c0_i32_0 : i32, i32
  }
  func.func @transform_3(%arg0: i32, %arg1: i32) -> (i32, i32) {
    %c0_i32 = arith.constant 0 : i32
    %c0_i32_0 = arith.constant 0 : i32
    return %c0_i32, %arg1 : i32, i32
  }
  func.func @transform_4(%arg0: i32, %arg1: i32) -> (i32, i32) {
    %c0_i32 = arith.constant 0 : i32
    %c0_i32_0 = arith.constant 0 : i32
    return %c0_i32, %arg1 : i32, i32
  }
  func.func @transform_5(%arg0: i32, %arg1: i32) -> (i32, i32) {
    %c0_i32 = arith.constant 0 : i32
    return %arg0, %arg1 : i32, i32
  }
}

module attributes {stable_mosaic.version = 11 : i64} {
  func.func @_attn_proj_kernel(%arg0: i32, %arg1: i32, %arg2: memref<1x2x16x16xf32, #tpu.memory_space<vmem>>, %arg3: memref<1x2x16x16xf32, #tpu.memory_space<vmem>>, %arg4: memref<1x2x16x16xf32, #tpu.memory_space<vmem>>, %arg5: memref<1x2x16x8xf32, #tpu.memory_space<vmem>>, %arg6: memref<1x2x16x8xf32, #tpu.memory_space<vmem>>, %arg7: memref<8x16xf32, #tpu.memory_space<vmem>>, %arg8: memref<8x16xf32, #tpu.memory_space<vmem>>, %arg9: memref<32x32xbf16, #tpu.memory_space<vmem>>, %arg10: memref<1x32xf32, #tpu.memory_space<vmem>>, %arg11: memref<1x16x32xf32, #tpu.memory_space<vmem>>, %arg12: memref<16x32xf32, #tpu.memory_space<vmem>>) attributes {dimension_semantics = [#tpu.dimension_semantics<parallel>, #tpu.dimension_semantics<parallel>], iteration_bounds = array<i64: 8, 1>, scalar_prefetch = 0 : i64, scratch_operands = 1 : i64, tpu.core_type = #tpu.core_type<tc>, window_params = [{transform_indices = @transform_0, window_bounds = array<i64: 1, 2, 16, 16>}, {transform_indices = @transform_1, window_bounds = array<i64: 1, 2, 16, 16>}, {transform_indices = @transform_2, window_bounds = array<i64: 1, 2, 16, 16>}, {transform_indices = @transform_3, window_bounds = array<i64: 1, 2, 16, 8>}, {transform_indices = @transform_4, window_bounds = array<i64: 1, 2, 16, 8>}, {pipeline_mode = #tpu.pipeline_mode<synchronous>, transform_indices = @transform_5, window_bounds = array<i64: 8, 16>}, {pipeline_mode = #tpu.pipeline_mode<synchronous>, transform_indices = @transform_6, window_bounds = array<i64: 8, 16>}, {pipeline_mode = #tpu.pipeline_mode<synchronous>, transform_indices = @transform_7, window_bounds = array<i64: 32, 32>}, {pipeline_mode = #tpu.pipeline_mode<synchronous>, transform_indices = @transform_8, window_bounds = array<i64: 1, 32>}, {transform_indices = @transform_9, window_bounds = array<i64: 1, 16, 32>}]} {
    %c0 = arith.constant 0 : index
    %c0_0 = arith.constant 0 : index
    %0 = vector.load %arg7[%c0, %c0_0] : memref<8x16xf32, #tpu.memory_space<vmem>>, vector<8x16xf32>
    %c0_1 = arith.constant 0 : index
    %c0_2 = arith.constant 0 : index
    %1 = vector.load %arg8[%c0_1, %c0_2] : memref<8x16xf32, #tpu.memory_space<vmem>>, vector<8x16xf32>
    %c0_3 = arith.constant 0 : index
    %c0_4 = arith.constant 0 : index
    %c0_5 = arith.constant 0 : index
    %c0_6 = arith.constant 0 : index
    %2 = vector.load %arg2[%c0_3, %c0_4, %c0_5, %c0_6] : memref<1x2x16x16xf32, #tpu.memory_space<vmem>>, vector<1x1x16x16xf32>
    %3 = vector.shape_cast %2 : vector<1x1x16x16xf32> to vector<16x16xf32>
    %c0_7 = arith.constant 0 : index
    %c0_8 = arith.constant 0 : index
    %c0_9 = arith.constant 0 : index
    %c0_10 = arith.constant 0 : index
    %4 = vector.load %arg3[%c0_7, %c0_8, %c0_9, %c0_10] : memref<1x2x16x16xf32, #tpu.memory_space<vmem>>, vector<1x1x16x16xf32>
    %5 = vector.shape_cast %4 : vector<1x1x16x16xf32> to vector<16x16xf32>
    %c0_11 = arith.constant 0 : index
    %c0_12 = arith.constant 0 : index
    %c0_13 = arith.constant 0 : index
    %c0_14 = arith.constant 0 : index
    %6 = vector.load %arg4[%c0_11, %c0_12, %c0_13, %c0_14] : memref<1x2x16x16xf32, #tpu.memory_space<vmem>>, vector<1x1x16x16xf32>
    %7 = vector.shape_cast %6 : vector<1x1x16x16xf32> to vector<16x16xf32>
    %cst = arith.constant dense<0.000000e+00> : vector<16x16xf32>
    %8 = tpu.matmul %3, %5, %cst {dimension_numbers = #tpu.dot_dimension_numbers<[1], [1], [0], [0], [0, 0, 1, 0], [], []>} : vector<16x16xf32>, vector<16x16xf32>, vector<16x16xf32> -> vector<16x16xf32>
    %c0_15 = arith.constant 0 : index
    %c0_16 = arith.constant 0 : index
    %c0_17 = arith.constant 0 : index
    %c0_18 = arith.constant 0 : index
    %9 = vector.load %arg5[%c0_15, %c0_16, %c0_17, %c0_18] : memref<1x2x16x8xf32, #tpu.memory_space<vmem>>, vector<1x1x16x8xf32>
    %10 = vector.shape_cast %9 : vector<1x1x16x8xf32> to vector<16x8xf32>
    %cst_19 = arith.constant dense<0.000000e+00> : vector<16x16xf32>
    %11 = tpu.matmul %10, %0, %cst_19 {dimension_numbers = #tpu.dot_dimension_numbers<[1], [0], [0], [1], [0, 0, 1, 1], [], []>} : vector<16x8xf32>, vector<8x16xf32>, vector<16x16xf32> -> vector<16x16xf32>
    %12 = arith.addf %8, %11 : vector<16x16xf32>
    %c0_20 = arith.constant 0 : index
    %c0_21 = arith.constant 0 : index
    %c0_22 = arith.constant 0 : index
    %c0_23 = arith.constant 0 : index
    %13 = vector.load %arg6[%c0_20, %c0_21, %c0_22, %c0_23] : memref<1x2x16x8xf32, #tpu.memory_space<vmem>>, vector<1x1x16x8xf32>
    %14 = vector.shape_cast %13 : vector<1x1x16x8xf32> to vector<16x8xf32>
    %cst_24 = arith.constant dense<0.000000e+00> : vector<16x16xf32>
    %15 = tpu.matmul %14, %1, %cst_24 {dimension_numbers = #tpu.dot_dimension_numbers<[1], [0], [0], [1], [0, 0, 1, 1], [], []>} : vector<16x8xf32>, vector<8x16xf32>, vector<16x16xf32> -> vector<16x16xf32>
    %16 = arith.addf %12, %15 : vector<16x16xf32>
    %cst_25 = arith.constant dense<0xFF800000> : vector<16xf32>
    %17 = vector.multi_reduction <maximumf>, %16, %cst_25 [1] : vector<16x16xf32> to vector<16xf32>
    %18 = vector.shape_cast %17 : vector<16xf32> to vector<16x1xf32>
    %19 = vector.broadcast %18 : vector<16x1xf32> to vector<16x16xf32>
    %20 = arith.subf %16, %19 : vector<16x16xf32>
    %21 = math.exp %20 : vector<16x16xf32>
    %cst_26 = arith.constant dense<0.000000e+00> : vector<16xf32>
    %22 = vector.multi_reduction <add>, %21, %cst_26 [1] : vector<16x16xf32> to vector<16xf32>
    %23 = vector.shape_cast %22 : vector<16xf32> to vector<16x1xf32>
    %cst_27 = arith.constant dense<0.000000e+00> : vector<16x16xf32>
    %24 = tpu.matmul %21, %7, %cst_27 {dimension_numbers = #tpu.dot_dimension_numbers<[1], [0], [0], [1], [0, 0, 1, 1], [], []>} : vector<16x16xf32>, vector<16x16xf32>, vector<16x16xf32> -> vector<16x16xf32>
    %25 = tpu.reciprocal %23 {approx = true} : vector<16x1xf32> -> vector<16x1xf32>
    %26 = vector.broadcast %25 : vector<16x1xf32> to vector<16x16xf32>
    %27 = arith.mulf %24, %26 : vector<16x16xf32>
    %c0_28 = arith.constant 0 : index
    %c0_29 = arith.constant 0 : index
    %28 = vector.load %arg12[%c0_28, %c0_29] : memref<16x32xf32, #tpu.memory_space<vmem>>, vector<16x16xf32>
    tpu.vector_store %arg12[%c0_28, %c0_29], %27 {strides = array<i32>} : memref<16x32xf32, #tpu.memory_space<vmem>>, vector<16x16xf32>,
    %c0_30 = arith.constant 0 : index
    %c1 = arith.constant 1 : index
    %c0_31 = arith.constant 0 : index
    %c0_32 = arith.constant 0 : index
    %29 = vector.load %arg2[%c0_30, %c1, %c0_31, %c0_32] : memref<1x2x16x16xf32, #tpu.memory_space<vmem>>, vector<1x1x16x16xf32>
    %30 = vector.shape_cast %29 : vector<1x1x16x16xf32> to vector<16x16xf32>
    %c0_33 = arith.constant 0 : index
    %c1_34 = arith.constant 1 : index
    %c0_35 = arith.constant 0 : index
    %c0_36 = arith.constant 0 : index
    %31 = vector.load %arg3[%c0_33, %c1_34, %c0_35, %c0_36] : memref<1x2x16x16xf32, #tpu.memory_space<vmem>>, vector<1x1x16x16xf32>
    %32 = vector.shape_cast %31 : vector<1x1x16x16xf32> to vector<16x16xf32>
    %c0_37 = arith.constant 0 : index
    %c1_38 = arith.constant 1 : index
    %c0_39 = arith.constant 0 : index
    %c0_40 = arith.constant 0 : index
    %33 = vector.load %arg4[%c0_37, %c1_38, %c0_39, %c0_40] : memref<1x2x16x16xf32, #tpu.memory_space<vmem>>, vector<1x1x16x16xf32>
    %34 = vector.shape_cast %33 : vector<1x1x16x16xf32> to vector<16x16xf32>
    %cst_41 = arith.constant dense<0.000000e+00> : vector<16x16xf32>
    %35 = tpu.matmul %30, %32, %cst_41 {dimension_numbers = #tpu.dot_dimension_numbers<[1], [1], [0], [0], [0, 0, 1, 0], [], []>} : vector<16x16xf32>, vector<16x16xf32>, vector<16x16xf32> -> vector<16x16xf32>
    %c0_42 = arith.constant 0 : index
    %c1_43 = arith.constant 1 : index
    %c0_44 = arith.constant 0 : index
    %c0_45 = arith.constant 0 : index
    %36 = vector.load %arg5[%c0_42, %c1_43, %c0_44, %c0_45] : memref<1x2x16x8xf32, #tpu.memory_space<vmem>>, vector<1x1x16x8xf32>
    %37 = vector.shape_cast %36 : vector<1x1x16x8xf32> to vector<16x8xf32>
    %cst_46 = arith.constant dense<0.000000e+00> : vector<16x16xf32>
    %38 = tpu.matmul %37, %0, %cst_46 {dimension_numbers = #tpu.dot_dimension_numbers<[1], [0], [0], [1], [0, 0, 1, 1], [], []>} : vector<16x8xf32>, vector<8x16xf32>, vector<16x16xf32> -> vector<16x16xf32>
    %39 = arith.addf %35, %38 : vector<16x16xf32>
    %c0_47 = arith.constant 0 : index
    %c1_48 = arith.constant 1 : index
    %c0_49 = arith.constant 0 : index
    %c0_50 = arith.constant 0 : index
    %40 = vector.load %arg6[%c0_47, %c1_48, %c0_49, %c0_50] : memref<1x2x16x8xf32, #tpu.memory_space<vmem>>, vector<1x1x16x8xf32>
    %41 = vector.shape_cast %40 : vector<1x1x16x8xf32> to vector<16x8xf32>
    %cst_51 = arith.constant dense<0.000000e+00> : vector<16x16xf32>
    %42 = tpu.matmul %41, %1, %cst_51 {dimension_numbers = #tpu.dot_dimension_numbers<[1], [0], [0], [1], [0, 0, 1, 1], [], []>} : vector<16x8xf32>, vector<8x16xf32>, vector<16x16xf32> -> vector<16x16xf32>
    %43 = arith.addf %39, %42 : vector<16x16xf32>
    %cst_52 = arith.constant dense<0xFF800000> : vector<16xf32>
    %44 = vector.multi_reduction <maximumf>, %43, %cst_52 [1] : vector<16x16xf32> to vector<16xf32>
    %45 = vector.shape_cast %44 : vector<16xf32> to vector<16x1xf32>
    %46 = vector.broadcast %45 : vector<16x1xf32> to vector<16x16xf32>
    %47 = arith.subf %43, %46 : vector<16x16xf32>
    %48 = math.exp %47 : vector<16x16xf32>
    %cst_53 = arith.constant dense<0.000000e+00> : vector<16xf32>
    %49 = vector.multi_reduction <add>, %48, %cst_53 [1] : vector<16x16xf32> to vector<16xf32>
    %50 = vector.shape_cast %49 : vector<16xf32> to vector<16x1xf32>
    %cst_54 = arith.constant dense<0.000000e+00> : vector<16x16xf32>
    %51 = tpu.matmul %48, %34, %cst_54 {dimension_numbers = #tpu.dot_dimension_numbers<[1], [0], [0], [1], [0, 0, 1, 1], [], []>} : vector<16x16xf32>, vector<16x16xf32>, vector<16x16xf32> -> vector<16x16xf32>
    %52 = tpu.reciprocal %50 {approx = true} : vector<16x1xf32> -> vector<16x1xf32>
    %53 = vector.broadcast %52 : vector<16x1xf32> to vector<16x16xf32>
    %54 = arith.mulf %51, %53 : vector<16x16xf32>
    %c0_55 = arith.constant 0 : index
    %c16 = arith.constant 16 : index
    %55 = vector.load %arg12[%c0_55, %c16] : memref<16x32xf32, #tpu.memory_space<vmem>>, vector<16x16xf32>
    tpu.vector_store %arg12[%c0_55, %c16], %54 {strides = array<i32>} : memref<16x32xf32, #tpu.memory_space<vmem>>, vector<16x16xf32>,
    %c0_56 = arith.constant 0 : index
    %c0_57 = arith.constant 0 : index
    %56 = vector.load %arg12[%c0_56, %c0_57] : memref<16x32xf32, #tpu.memory_space<vmem>>, vector<16x32xf32>
    %57 = arith.truncf %56 : vector<16x32xf32> to vector<16x32xbf16>
    %c0_58 = arith.constant 0 : index
    %c0_59 = arith.constant 0 : index
    %58 = vector.load %arg9[%c0_58, %c0_59] : memref<32x32xbf16, #tpu.memory_space<vmem>>, vector<32x32xbf16>
    %cst_60 = arith.constant dense<0.000000e+00> : vector<16x32xf32>
    %59 = tpu.matmul %57, %58, %cst_60 {dimension_numbers = #tpu.dot_dimension_numbers<[1], [0], [0], [1], [0, 0, 1, 1], [], []>} : vector<16x32xbf16>, vector<32x32xbf16>, vector<16x32xf32> -> vector<16x32xf32>
    %c0_61 = arith.constant 0 : index
    %c0_62 = arith.constant 0 : index
    %60 = vector.load %arg10[%c0_61, %c0_62] : memref<1x32xf32, #tpu.memory_space<vmem>>, vector<1x32xf32>
    %61 = vector.broadcast %60 : vector<1x32xf32> to vector<16x32xf32>
    %62 = arith.addf %59, %61 : vector<16x32xf32>
    %c0_63 = arith.constant 0 : index
    %c0_64 = arith.constant 0 : index
    %c0_65 = arith.constant 0 : index
    %63 = vector.load %arg11[%c0_63, %c0_64, %c0_65] : memref<1x16x32xf32, #tpu.memory_space<vmem>>, vector<1x16x32xf32>
    %64 = vector.shape_cast %63 : vector<1x16x32xf32> to vector<16x32xf32>
    %65 = vector.shape_cast %62 : vector<16x32xf32> to vector<1x16x32xf32>
    tpu.vector_store %arg11[%c0_63, %c0_64, %c0_65], %65 {strides = array<i32>} : memref<1x16x32xf32, #tpu.memory_space<vmem>>, vector<1x16x32xf32>,
    return
  }
  func.func @transform_0(%arg0: i32, %arg1: i32) -> (i32, i32, i32, i32) {
    %c0_i32 = arith.constant 0 : i32
    %c0_i32_0 = arith.constant 0 : i32
    %c0_i32_1 = arith.constant 0 : i32
    return %arg0, %c0_i32, %arg1, %c0_i32_0 : i32, i32, i32, i32
  }
  func.func @transform_1(%arg0: i32, %arg1: i32) -> (i32, i32, i32, i32) {
    %c0_i32 = arith.constant 0 : i32
    %c0_i32_0 = arith.constant 0 : i32
    %c0_i32_1 = arith.constant 0 : i32
    %c0_i32_2 = arith.constant 0 : i32
    return %arg0, %c0_i32, %c0_i32_0, %c0_i32_1 : i32, i32, i32, i32
  }
  func.func @transform_2(%arg0: i32, %arg1: i32) -> (i32, i32, i32, i32) {
    %c0_i32 = arith.constant 0 : i32
    %c0_i32_0 = arith.constant 0 : i32
    %c0_i32_1 = arith.constant 0 : i32
    %c0_i32_2 = arith.constant 0 : i32
    return %arg0, %c0_i32, %c0_i32_0, %c0_i32_1 : i32, i32, i32, i32
  }
  func.func @transform_3(%arg0: i32, %arg1: i32) -> (i32, i32, i32, i32) {
    %c0_i32 = arith.constant 0 : i32
    %c0_i32_0 = arith.constant 0 : i32
    %c0_i32_1 = arith.constant 0 : i32
    return %arg0, %c0_i32, %arg1, %c0_i32_0 : i32, i32, i32, i32
  }
  func.func @transform_4(%arg0: i32, %arg1: i32) -> (i32, i32, i32, i32) {
    %c0_i32 = arith.constant 0 : i32
    %c0_i32_0 = arith.constant 0 : i32
    %c0_i32_1 = arith.constant 0 : i32
    return %arg0, %c0_i32, %arg1, %c0_i32_0 : i32, i32, i32, i32
  }
  func.func @transform_5(%arg0: i32, %arg1: i32) -> (i32, i32) {
    %c0_i32 = arith.constant 0 : i32
    %c0_i32_0 = arith.constant 0 : i32
    %c0_i32_1 = arith.constant 0 : i32
    return %c0_i32, %c0_i32_0 : i32, i32
  }
  func.func @transform_6(%arg0: i32, %arg1: i32) -> (i32, i32) {
    %c0_i32 = arith.constant 0 : i32
    %c0_i32_0 = arith.constant 0 : i32
    %c0_i32_1 = arith.constant 0 : i32
    return %c0_i32, %c0_i32_0 : i32, i32
  }
  func.func @transform_7(%arg0: i32, %arg1: i32) -> (i32, i32) {
    %c0_i32 = arith.constant 0 : i32
    %c0_i32_0 = arith.constant 0 : i32
    %c0_i32_1 = arith.constant 0 : i32
    return %c0_i32, %c0_i32_0 : i32, i32
  }
  func.func @transform_8(%arg0: i32, %arg1: i32) -> (i32, i32) {
    %c0_i32 = arith.constant 0 : i32
    %c0_i32_0 = arith.constant 0 : i32
    %c0_i32_1 = arith.constant 0 : i32
    return %c0_i32, %c0_i32_0 : i32, i32
  }
  func.func @transform_9(%arg0: i32, %arg1: i32) -> (i32, i32, i32) {
    %c0_i32 = arith.constant 0 : i32
    %c0_i32_0 = arith.constant 0 : i32
    return %arg0, %arg1, %c0_i32 : i32, i32, i32
  }
}

module attributes {stable_mosaic.version = 11 : i64} {
  func.func @_mlp_block_kernel(%arg0: i32, %arg1: i32, %arg2: memref<128x32xf32, #tpu.memory_space<vmem>>, %arg3: memref<128x32xf32, #tpu.memory_space<vmem>>, %arg4: memref<1x32xf32, #tpu.memory_space<vmem>>, %arg5: memref<1x32xf32, #tpu.memory_space<vmem>>, %arg6: memref<32x128xbf16, #tpu.memory_space<vmem>>, %arg7: memref<1x128xf32, #tpu.memory_space<vmem>>, %arg8: memref<128x32xbf16, #tpu.memory_space<vmem>>, %arg9: memref<1x32xf32, #tpu.memory_space<vmem>>, %arg10: memref<128x32xf32, #tpu.memory_space<vmem>>, %arg11: memref<128x32xf32, #tpu.memory_space<vmem>>, %arg12: memref<128x32xbf16, #tpu.memory_space<vmem>>, %arg13: memref<128x32xf32, #tpu.memory_space<vmem>>) attributes {dimension_semantics = [#tpu.dimension_semantics<parallel>, #tpu.dimension_semantics<arbitrary>], iteration_bounds = array<i64: 1, 1>, scalar_prefetch = 0 : i64, scratch_operands = 3 : i64, tpu.core_type = #tpu.core_type<tc>, window_params = [{transform_indices = @transform_0, window_bounds = array<i64: 128, 32>}, {transform_indices = @transform_1, window_bounds = array<i64: 128, 32>}, {pipeline_mode = #tpu.pipeline_mode<synchronous>, transform_indices = @transform_2, window_bounds = array<i64: 1, 32>}, {pipeline_mode = #tpu.pipeline_mode<synchronous>, transform_indices = @transform_3, window_bounds = array<i64: 1, 32>}, {transform_indices = @transform_4, window_bounds = array<i64: 32, 128>}, {transform_indices = @transform_5, window_bounds = array<i64: 1, 128>}, {transform_indices = @transform_6, window_bounds = array<i64: 128, 32>}, {pipeline_mode = #tpu.pipeline_mode<synchronous>, transform_indices = @transform_7, window_bounds = array<i64: 1, 32>}, {transform_indices = @transform_8, window_bounds = array<i64: 128, 32>}]} {
    %c0_i32 = arith.constant 0 : i32
    %0 = arith.cmpi eq, %arg1, %c0_i32 : i32
    %1 = arith.extui %0 : i1 to i32
    %c0_i32_0 = arith.constant 0 : i32
    %2 = arith.cmpi ne, %1, %c0_i32_0 : i32
    scf.if %2 {
      %c0_19 = arith.constant 0 : index
      %c0_20 = arith.constant 0 : index
      %31 = vector.load %arg2[%c0_19, %c0_20] : memref<128x32xf32, #tpu.memory_space<vmem>>, vector<128x32xf32>
      %c0_21 = arith.constant 0 : index
      %c0_22 = arith.constant 0 : index
      %32 = vector.load %arg3[%c0_21, %c0_22] : memref<128x32xf32, #tpu.memory_space<vmem>>, vector<128x32xf32>
      %33 = arith.addf %31, %32 : vector<128x32xf32>
      %cst_23 = arith.constant dense<0.000000e+00> : vector<128xf32>
      %34 = vector.multi_reduction <add>, %33, %cst_23 [1] : vector<128x32xf32> to vector<128xf32>
      %35 = vector.shape_cast %34 : vector<128xf32> to vector<128x1xf32>
      %cst_24 = arith.constant 3.200000e+01 : f32
      %36 = vector.broadcast %cst_24 : f32 to vector<128x1xf32>
      %37 = arith.divf %35, %36 : vector<128x1xf32>
      %38 = vector.broadcast %37 : vector<128x1xf32> to vector<128x32xf32>
      %39 = arith.subf %33, %38 : vector<128x32xf32>
      %40 = arith.mulf %39, %39 : vector<128x32xf32>
      %cst_25 = arith.constant dense<0.000000e+00> : vector<128xf32>
      %41 = vector.multi_reduction <add>, %40, %cst_25 [1] : vector<128x32xf32> to vector<128xf32>
      %42 = vector.shape_cast %41 : vector<128xf32> to vector<128x1xf32>
      %cst_26 = arith.constant 3.200000e+01 : f32
      %43 = vector.broadcast %cst_26 : f32 to vector<128x1xf32>
      %44 = arith.divf %42, %43 : vector<128x1xf32>
      %45 = vector.broadcast %37 : vector<128x1xf32> to vector<128x32xf32>
      %46 = arith.subf %33, %45 : vector<128x32xf32>
      %cst_27 = arith.constant 9.99999997E-7 : f32
      %47 = vector.broadcast %cst_27 : f32 to vector<128x1xf32>
      %48 = arith.addf %44, %47 : vector<128x1xf32>
      %49 = math.rsqrt %48 : vector<128x1xf32>
      %50 = vector.broadcast %49 : vector<128x1xf32> to vector<128x32xf32>
      %51 = arith.mulf %46, %50 : vector<128x32xf32>
      %c0_28 = arith.constant 0 : index
      %c0_29 = arith.constant 0 : index
      %52 = vector.load %arg11[%c0_28, %c0_29] : memref<128x32xf32, #tpu.memory_space<vmem>>, vector<128x32xf32>
      tpu.vector_store %arg11[%c0_28, %c0_29], %33 {strides = array<i32>} : memref<128x32xf32, #tpu.memory_space<vmem>>, vector<128x32xf32>,
      %c0_30 = arith.constant 0 : index
      %c0_31 = arith.constant 0 : index
      %53 = vector.load %arg4[%c0_30, %c0_31] : memref<1x32xf32, #tpu.memory_space<vmem>>, vector<1x32xf32>
      %54 = vector.broadcast %53 : vector<1x32xf32> to vector<128x32xf32>
      %55 = arith.mulf %51, %54 : vector<128x32xf32>
      %c0_32 = arith.constant 0 : index
      %c0_33 = arith.constant 0 : index
      %56 = vector.load %arg5[%c0_32, %c0_33] : memref<1x32xf32, #tpu.memory_space<vmem>>, vector<1x32xf32>
      %57 = vector.broadcast %56 : vector<1x32xf32> to vector<128x32xf32>
      %58 = arith.addf %55, %57 : vector<128x32xf32>
      %59 = arith.truncf %58 : vector<128x32xf32> to vector<128x32xbf16>
      %c0_34 = arith.constant 0 : index
      %c0_35 = arith.constant 0 : index
      %60 = vector.load %arg12[%c0_34, %c0_35] : memref<128x32xbf16, #tpu.memory_space<vmem>>, vector<128x32xbf16>
      tpu.vector_store %arg12[%c0_34, %c0_35], %59 {strides = array<i32>} : memref<128x32xbf16, #tpu.memory_space<vmem>>, vector<128x32xbf16>,
      %cst_36 = arith.constant 0.000000e+00 : f32
      %61 = vector.broadcast %cst_36 : f32 to vector<128x32xf32>
      %c0_37 = arith.constant 0 : index
      %c0_38 = arith.constant 0 : index
      %62 = vector.load %arg13[%c0_37, %c0_38] : memref<128x32xf32, #tpu.memory_space<vmem>>, vector<128x32xf32>
      tpu.vector_store %arg13[%c0_37, %c0_38], %61 {strides = array<i32>} : memref<128x32xf32, #tpu.memory_space<vmem>>, vector<128x32xf32>,
    } else {
    }
    %c0 = arith.constant 0 : index
    %c0_1 = arith.constant 0 : index
    %3 = vector.load %arg12[%c0, %c0_1] : memref<128x32xbf16, #tpu.memory_space<vmem>>, vector<128x32xbf16>
    %c0_2 = arith.constant 0 : index
    %c0_3 = arith.constant 0 : index
    %4 = vector.load %arg6[%c0_2, %c0_3] : memref<32x128xbf16, #tpu.memory_space<vmem>>, vector<32x128xbf16>
    %cst = arith.constant dense<0.000000e+00> : vector<128x128xf32>
    %5 = tpu.matmul %3, %4, %cst {dimension_numbers = #tpu.dot_dimension_numbers<[1], [0], [0], [1], [0, 0, 1, 1], [], []>} : vector<128x32xbf16>, vector<32x128xbf16>, vector<128x128xf32> -> vector<128x128xf32>
    %c0_4 = arith.constant 0 : index
    %c0_5 = arith.constant 0 : index
    %6 = vector.load %arg7[%c0_4, %c0_5] : memref<1x128xf32, #tpu.memory_space<vmem>>, vector<1x128xf32>
    %7 = vector.broadcast %6 : vector<1x128xf32> to vector<128x128xf32>
    %8 = arith.addf %5, %7 : vector<128x128xf32>
    %9 = arith.mulf %8, %8 : vector<128x128xf32>
    %10 = arith.mulf %8, %9 : vector<128x128xf32>
    %cst_6 = arith.constant 4.471500e-02 : f32
    %11 = vector.broadcast %cst_6 : f32 to vector<128x128xf32>
    %12 = arith.mulf %11, %10 : vector<128x128xf32>
    %13 = arith.addf %8, %12 : vector<128x128xf32>
    %cst_7 = arith.constant 0.797884583 : f32
    %14 = vector.broadcast %cst_7 : f32 to vector<128x128xf32>
    %15 = arith.mulf %14, %13 : vector<128x128xf32>
    %16 = math.tanh %15 : vector<128x128xf32>
    %cst_8 = arith.constant 1.000000e+00 : f32
    %17 = vector.broadcast %cst_8 : f32 to vector<128x128xf32>
    %18 = arith.addf %17, %16 : vector<128x128xf32>
    %cst_9 = arith.constant 5.000000e-01 : f32
    %19 = vector.broadcast %cst_9 : f32 to vector<128x128xf32>
    %20 = arith.mulf %19, %18 : vector<128x128xf32>
    %21 = arith.mulf %8, %20 : vector<128x128xf32>
    %c0_10 = arith.constant 0 : index
    %c0_11 = arith.constant 0 : index
    %22 = vector.load %arg13[%c0_10, %c0_11] : memref<128x32xf32, #tpu.memory_space<vmem>>, vector<128x32xf32>
    %23 = arith.truncf %21 : vector<128x128xf32> to vector<128x128xbf16>
    %c0_12 = arith.constant 0 : index
    %c0_13 = arith.constant 0 : index
    %24 = vector.load %arg8[%c0_12, %c0_13] : memref<128x32xbf16, #tpu.memory_space<vmem>>, vector<128x32xbf16>
    %cst_14 = arith.constant dense<0.000000e+00> : vector<128x32xf32>
    %25 = tpu.matmul %23, %24, %cst_14 {dimension_numbers = #tpu.dot_dimension_numbers<[1], [0], [0], [1], [0, 0, 1, 1], [], []>} : vector<128x128xbf16>, vector<128x32xbf16>, vector<128x32xf32> -> vector<128x32xf32>
    %26 = arith.addf %22, %25 : vector<128x32xf32>
    %c0_15 = arith.constant 0 : index
    %c0_16 = arith.constant 0 : index
    %27 = vector.load %arg13[%c0_15, %c0_16] : memref<128x32xf32, #tpu.memory_space<vmem>>, vector<128x32xf32>
    tpu.vector_store %arg13[%c0_15, %c0_16], %26 {strides = array<i32>} : memref<128x32xf32, #tpu.memory_space<vmem>>, vector<128x32xf32>,
    %c0_i32_17 = arith.constant 0 : i32
    %28 = arith.cmpi eq, %arg1, %c0_i32_17 : i32
    %29 = arith.extui %28 : i1 to i32
    %c0_i32_18 = arith.constant 0 : i32
    %30 = arith.cmpi ne, %29, %c0_i32_18 : i32
    scf.if %30 {
      %c0_19 = arith.constant 0 : index
      %c0_20 = arith.constant 0 : index
      %31 = vector.load %arg11[%c0_19, %c0_20] : memref<128x32xf32, #tpu.memory_space<vmem>>, vector<128x32xf32>
      %c0_21 = arith.constant 0 : index
      %c0_22 = arith.constant 0 : index
      %32 = vector.load %arg13[%c0_21, %c0_22] : memref<128x32xf32, #tpu.memory_space<vmem>>, vector<128x32xf32>
      %33 = arith.addf %31, %32 : vector<128x32xf32>
      %c0_23 = arith.constant 0 : index
      %c0_24 = arith.constant 0 : index
      %34 = vector.load %arg9[%c0_23, %c0_24] : memref<1x32xf32, #tpu.memory_space<vmem>>, vector<1x32xf32>
      %35 = vector.broadcast %34 : vector<1x32xf32> to vector<128x32xf32>
      %36 = arith.addf %33, %35 : vector<128x32xf32>
      %c0_25 = arith.constant 0 : index
      %c0_26 = arith.constant 0 : index
      %37 = vector.load %arg10[%c0_25, %c0_26] : memref<128x32xf32, #tpu.memory_space<vmem>>, vector<128x32xf32>
      tpu.vector_store %arg10[%c0_25, %c0_26], %36 {strides = array<i32>} : memref<128x32xf32, #tpu.memory_space<vmem>>, vector<128x32xf32>,
    } else {
    }
    return
  }
  func.func @transform_0(%arg0: i32, %arg1: i32) -> (i32, i32) {
    %c0_i32 = arith.constant 0 : i32
    %c0_i32_0 = arith.constant 0 : i32
    return %arg0, %c0_i32 : i32, i32
  }
  func.func @transform_1(%arg0: i32, %arg1: i32) -> (i32, i32) {
    %c0_i32 = arith.constant 0 : i32
    %c0_i32_0 = arith.constant 0 : i32
    return %arg0, %c0_i32 : i32, i32
  }
  func.func @transform_2(%arg0: i32, %arg1: i32) -> (i32, i32) {
    %c0_i32 = arith.constant 0 : i32
    %c0_i32_0 = arith.constant 0 : i32
    %c0_i32_1 = arith.constant 0 : i32
    return %c0_i32, %c0_i32_0 : i32, i32
  }
  func.func @transform_3(%arg0: i32, %arg1: i32) -> (i32, i32) {
    %c0_i32 = arith.constant 0 : i32
    %c0_i32_0 = arith.constant 0 : i32
    %c0_i32_1 = arith.constant 0 : i32
    return %c0_i32, %c0_i32_0 : i32, i32
  }
  func.func @transform_4(%arg0: i32, %arg1: i32) -> (i32, i32) {
    %c0_i32 = arith.constant 0 : i32
    %c0_i32_0 = arith.constant 0 : i32
    return %c0_i32, %arg1 : i32, i32
  }
  func.func @transform_5(%arg0: i32, %arg1: i32) -> (i32, i32) {
    %c0_i32 = arith.constant 0 : i32
    %c0_i32_0 = arith.constant 0 : i32
    return %c0_i32, %arg1 : i32, i32
  }
  func.func @transform_6(%arg0: i32, %arg1: i32) -> (i32, i32) {
    %c0_i32 = arith.constant 0 : i32
    %c0_i32_0 = arith.constant 0 : i32
    return %arg1, %c0_i32 : i32, i32
  }
  func.func @transform_7(%arg0: i32, %arg1: i32) -> (i32, i32) {
    %c0_i32 = arith.constant 0 : i32
    %c0_i32_0 = arith.constant 0 : i32
    %c0_i32_1 = arith.constant 0 : i32
    return %c0_i32, %c0_i32_0 : i32, i32
  }
  func.func @transform_8(%arg0: i32, %arg1: i32) -> (i32, i32) {
    %c0_i32 = arith.constant 0 : i32
    %c0_i32_0 = arith.constant 0 : i32
    return %arg0, %c0_i32 : i32, i32
  }
}

module attributes {stable_mosaic.version = 11 : i64} {
  func.func @_attn_proj_kernel(%arg0: i32, %arg1: i32, %arg2: memref<1x2x32x16xf32, #tpu.memory_space<vmem>>, %arg3: memref<1x2x64x16xf32, #tpu.memory_space<vmem>>, %arg4: memref<1x2x64x16xf32, #tpu.memory_space<vmem>>, %arg5: memref<1x2x32x8xf32, #tpu.memory_space<vmem>>, %arg6: memref<1x2x32x8xf32, #tpu.memory_space<vmem>>, %arg7: memref<8x64xf32, #tpu.memory_space<vmem>>, %arg8: memref<8x64xf32, #tpu.memory_space<vmem>>, %arg9: memref<32x32xbf16, #tpu.memory_space<vmem>>, %arg10: memref<1x32xf32, #tpu.memory_space<vmem>>, %arg11: memref<1x32x32xf32, #tpu.memory_space<vmem>>, %arg12: memref<32x32xf32, #tpu.memory_space<vmem>>) attributes {dimension_semantics = [#tpu.dimension_semantics<parallel>, #tpu.dimension_semantics<parallel>], iteration_bounds = array<i64: 2, 2>, scalar_prefetch = 0 : i64, scratch_operands = 1 : i64, tpu.core_type = #tpu.core_type<tc>, window_params = [{transform_indices = @transform_0, window_bounds = array<i64: 1, 2, 32, 16>}, {transform_indices = @transform_1, window_bounds = array<i64: 1, 2, 64, 16>}, {transform_indices = @transform_2, window_bounds = array<i64: 1, 2, 64, 16>}, {transform_indices = @transform_3, window_bounds = array<i64: 1, 2, 32, 8>}, {transform_indices = @transform_4, window_bounds = array<i64: 1, 2, 32, 8>}, {pipeline_mode = #tpu.pipeline_mode<synchronous>, transform_indices = @transform_5, window_bounds = array<i64: 8, 64>}, {pipeline_mode = #tpu.pipeline_mode<synchronous>, transform_indices = @transform_6, window_bounds = array<i64: 8, 64>}, {pipeline_mode = #tpu.pipeline_mode<synchronous>, transform_indices = @transform_7, window_bounds = array<i64: 32, 32>}, {pipeline_mode = #tpu.pipeline_mode<synchronous>, transform_indices = @transform_8, window_bounds = array<i64: 1, 32>}, {transform_indices = @transform_9, window_bounds = array<i64: 1, 32, 32>}]} {
    %c0 = arith.constant 0 : index
    %c0_0 = arith.constant 0 : index
    %0 = vector.load %arg7[%c0, %c0_0] : memref<8x64xf32, #tpu.memory_space<vmem>>, vector<8x64xf32>
    %c0_1 = arith.constant 0 : index
    %c0_2 = arith.constant 0 : index
    %1 = vector.load %arg8[%c0_1, %c0_2] : memref<8x64xf32, #tpu.memory_space<vmem>>, vector<8x64xf32>
    %c0_3 = arith.constant 0 : index
    %c0_4 = arith.constant 0 : index
    %c0_5 = arith.constant 0 : index
    %c0_6 = arith.constant 0 : index
    %2 = vector.load %arg2[%c0_3, %c0_4, %c0_5, %c0_6] : memref<1x2x32x16xf32, #tpu.memory_space<vmem>>, vector<1x1x32x16xf32>
    %3 = vector.shape_cast %2 : vector<1x1x32x16xf32> to vector<32x16xf32>
    %c0_7 = arith.constant 0 : index
    %c0_8 = arith.constant 0 : index
    %c0_9 = arith.constant 0 : index
    %c0_10 = arith.constant 0 : index
    %4 = vector.load %arg3[%c0_7, %c0_8, %c0_9, %c0_10] : memref<1x2x64x16xf32, #tpu.memory_space<vmem>>, vector<1x1x64x16xf32>
    %5 = vector.shape_cast %4 : vector<1x1x64x16xf32> to vector<64x16xf32>
    %c0_11 = arith.constant 0 : index
    %c0_12 = arith.constant 0 : index
    %c0_13 = arith.constant 0 : index
    %c0_14 = arith.constant 0 : index
    %6 = vector.load %arg4[%c0_11, %c0_12, %c0_13, %c0_14] : memref<1x2x64x16xf32, #tpu.memory_space<vmem>>, vector<1x1x64x16xf32>
    %7 = vector.shape_cast %6 : vector<1x1x64x16xf32> to vector<64x16xf32>
    %cst = arith.constant dense<0.000000e+00> : vector<32x64xf32>
    %8 = tpu.matmul %3, %5, %cst {dimension_numbers = #tpu.dot_dimension_numbers<[1], [1], [0], [0], [0, 0, 1, 0], [], []>} : vector<32x16xf32>, vector<64x16xf32>, vector<32x64xf32> -> vector<32x64xf32>
    %c0_15 = arith.constant 0 : index
    %c0_16 = arith.constant 0 : index
    %c0_17 = arith.constant 0 : index
    %c0_18 = arith.constant 0 : index
    %9 = vector.load %arg5[%c0_15, %c0_16, %c0_17, %c0_18] : memref<1x2x32x8xf32, #tpu.memory_space<vmem>>, vector<1x1x32x8xf32>
    %10 = vector.shape_cast %9 : vector<1x1x32x8xf32> to vector<32x8xf32>
    %cst_19 = arith.constant dense<0.000000e+00> : vector<32x64xf32>
    %11 = tpu.matmul %10, %0, %cst_19 {dimension_numbers = #tpu.dot_dimension_numbers<[1], [0], [0], [1], [0, 0, 1, 1], [], []>} : vector<32x8xf32>, vector<8x64xf32>, vector<32x64xf32> -> vector<32x64xf32>
    %12 = arith.addf %8, %11 : vector<32x64xf32>
    %c0_20 = arith.constant 0 : index
    %c0_21 = arith.constant 0 : index
    %c0_22 = arith.constant 0 : index
    %c0_23 = arith.constant 0 : index
    %13 = vector.load %arg6[%c0_20, %c0_21, %c0_22, %c0_23] : memref<1x2x32x8xf32, #tpu.memory_space<vmem>>, vector<1x1x32x8xf32>
    %14 = vector.shape_cast %13 : vector<1x1x32x8xf32> to vector<32x8xf32>
    %cst_24 = arith.constant dense<0.000000e+00> : vector<32x64xf32>
    %15 = tpu.matmul %14, %1, %cst_24 {dimension_numbers = #tpu.dot_dimension_numbers<[1], [0], [0], [1], [0, 0, 1, 1], [], []>} : vector<32x8xf32>, vector<8x64xf32>, vector<32x64xf32> -> vector<32x64xf32>
    %16 = arith.addf %12, %15 : vector<32x64xf32>
    %cst_25 = arith.constant dense<0xFF800000> : vector<32xf32>
    %17 = vector.multi_reduction <maximumf>, %16, %cst_25 [1] : vector<32x64xf32> to vector<32xf32>
    %18 = vector.shape_cast %17 : vector<32xf32> to vector<32x1xf32>
    %19 = vector.broadcast %18 : vector<32x1xf32> to vector<32x64xf32>
    %20 = arith.subf %16, %19 : vector<32x64xf32>
    %21 = math.exp %20 : vector<32x64xf32>
    %cst_26 = arith.constant dense<0.000000e+00> : vector<32xf32>
    %22 = vector.multi_reduction <add>, %21, %cst_26 [1] : vector<32x64xf32> to vector<32xf32>
    %23 = vector.shape_cast %22 : vector<32xf32> to vector<32x1xf32>
    %cst_27 = arith.constant dense<0.000000e+00> : vector<32x16xf32>
    %24 = tpu.matmul %21, %7, %cst_27 {dimension_numbers = #tpu.dot_dimension_numbers<[1], [0], [0], [1], [0, 0, 1, 1], [], []>} : vector<32x64xf32>, vector<64x16xf32>, vector<32x16xf32> -> vector<32x16xf32>
    %25 = tpu.reciprocal %23 {approx = true} : vector<32x1xf32> -> vector<32x1xf32>
    %26 = vector.broadcast %25 : vector<32x1xf32> to vector<32x16xf32>
    %27 = arith.mulf %24, %26 : vector<32x16xf32>
    %c0_28 = arith.constant 0 : index
    %c0_29 = arith.constant 0 : index
    %28 = vector.load %arg12[%c0_28, %c0_29] : memref<32x32xf32, #tpu.memory_space<vmem>>, vector<32x16xf32>
    tpu.vector_store %arg12[%c0_28, %c0_29], %27 {strides = array<i32>} : memref<32x32xf32, #tpu.memory_space<vmem>>, vector<32x16xf32>,
    %c0_30 = arith.constant 0 : index
    %c1 = arith.constant 1 : index
    %c0_31 = arith.constant 0 : index
    %c0_32 = arith.constant 0 : index
    %29 = vector.load %arg2[%c0_30, %c1, %c0_31, %c0_32] : memref<1x2x32x16xf32, #tpu.memory_space<vmem>>, vector<1x1x32x16xf32>
    %30 = vector.shape_cast %29 : vector<1x1x32x16xf32> to vector<32x16xf32>
    %c0_33 = arith.constant 0 : index
    %c1_34 = arith.constant 1 : index
    %c0_35 = arith.constant 0 : index
    %c0_36 = arith.constant 0 : index
    %31 = vector.load %arg3[%c0_33, %c1_34, %c0_35, %c0_36] : memref<1x2x64x16xf32, #tpu.memory_space<vmem>>, vector<1x1x64x16xf32>
    %32 = vector.shape_cast %31 : vector<1x1x64x16xf32> to vector<64x16xf32>
    %c0_37 = arith.constant 0 : index
    %c1_38 = arith.constant 1 : index
    %c0_39 = arith.constant 0 : index
    %c0_40 = arith.constant 0 : index
    %33 = vector.load %arg4[%c0_37, %c1_38, %c0_39, %c0_40] : memref<1x2x64x16xf32, #tpu.memory_space<vmem>>, vector<1x1x64x16xf32>
    %34 = vector.shape_cast %33 : vector<1x1x64x16xf32> to vector<64x16xf32>
    %cst_41 = arith.constant dense<0.000000e+00> : vector<32x64xf32>
    %35 = tpu.matmul %30, %32, %cst_41 {dimension_numbers = #tpu.dot_dimension_numbers<[1], [1], [0], [0], [0, 0, 1, 0], [], []>} : vector<32x16xf32>, vector<64x16xf32>, vector<32x64xf32> -> vector<32x64xf32>
    %c0_42 = arith.constant 0 : index
    %c1_43 = arith.constant 1 : index
    %c0_44 = arith.constant 0 : index
    %c0_45 = arith.constant 0 : index
    %36 = vector.load %arg5[%c0_42, %c1_43, %c0_44, %c0_45] : memref<1x2x32x8xf32, #tpu.memory_space<vmem>>, vector<1x1x32x8xf32>
    %37 = vector.shape_cast %36 : vector<1x1x32x8xf32> to vector<32x8xf32>
    %cst_46 = arith.constant dense<0.000000e+00> : vector<32x64xf32>
    %38 = tpu.matmul %37, %0, %cst_46 {dimension_numbers = #tpu.dot_dimension_numbers<[1], [0], [0], [1], [0, 0, 1, 1], [], []>} : vector<32x8xf32>, vector<8x64xf32>, vector<32x64xf32> -> vector<32x64xf32>
    %39 = arith.addf %35, %38 : vector<32x64xf32>
    %c0_47 = arith.constant 0 : index
    %c1_48 = arith.constant 1 : index
    %c0_49 = arith.constant 0 : index
    %c0_50 = arith.constant 0 : index
    %40 = vector.load %arg6[%c0_47, %c1_48, %c0_49, %c0_50] : memref<1x2x32x8xf32, #tpu.memory_space<vmem>>, vector<1x1x32x8xf32>
    %41 = vector.shape_cast %40 : vector<1x1x32x8xf32> to vector<32x8xf32>
    %cst_51 = arith.constant dense<0.000000e+00> : vector<32x64xf32>
    %42 = tpu.matmul %41, %1, %cst_51 {dimension_numbers = #tpu.dot_dimension_numbers<[1], [0], [0], [1], [0, 0, 1, 1], [], []>} : vector<32x8xf32>, vector<8x64xf32>, vector<32x64xf32> -> vector<32x64xf32>
    %43 = arith.addf %39, %42 : vector<32x64xf32>
    %cst_52 = arith.constant dense<0xFF800000> : vector<32xf32>
    %44 = vector.multi_reduction <maximumf>, %43, %cst_52 [1] : vector<32x64xf32> to vector<32xf32>
    %45 = vector.shape_cast %44 : vector<32xf32> to vector<32x1xf32>
    %46 = vector.broadcast %45 : vector<32x1xf32> to vector<32x64xf32>
    %47 = arith.subf %43, %46 : vector<32x64xf32>
    %48 = math.exp %47 : vector<32x64xf32>
    %cst_53 = arith.constant dense<0.000000e+00> : vector<32xf32>
    %49 = vector.multi_reduction <add>, %48, %cst_53 [1] : vector<32x64xf32> to vector<32xf32>
    %50 = vector.shape_cast %49 : vector<32xf32> to vector<32x1xf32>
    %cst_54 = arith.constant dense<0.000000e+00> : vector<32x16xf32>
    %51 = tpu.matmul %48, %34, %cst_54 {dimension_numbers = #tpu.dot_dimension_numbers<[1], [0], [0], [1], [0, 0, 1, 1], [], []>} : vector<32x64xf32>, vector<64x16xf32>, vector<32x16xf32> -> vector<32x16xf32>
    %52 = tpu.reciprocal %50 {approx = true} : vector<32x1xf32> -> vector<32x1xf32>
    %53 = vector.broadcast %52 : vector<32x1xf32> to vector<32x16xf32>
    %54 = arith.mulf %51, %53 : vector<32x16xf32>
    %c0_55 = arith.constant 0 : index
    %c16 = arith.constant 16 : index
    %55 = vector.load %arg12[%c0_55, %c16] : memref<32x32xf32, #tpu.memory_space<vmem>>, vector<32x16xf32>
    tpu.vector_store %arg12[%c0_55, %c16], %54 {strides = array<i32>} : memref<32x32xf32, #tpu.memory_space<vmem>>, vector<32x16xf32>,
    %c0_56 = arith.constant 0 : index
    %c0_57 = arith.constant 0 : index
    %56 = vector.load %arg12[%c0_56, %c0_57] : memref<32x32xf32, #tpu.memory_space<vmem>>, vector<32x32xf32>
    %57 = arith.truncf %56 : vector<32x32xf32> to vector<32x32xbf16>
    %c0_58 = arith.constant 0 : index
    %c0_59 = arith.constant 0 : index
    %58 = vector.load %arg9[%c0_58, %c0_59] : memref<32x32xbf16, #tpu.memory_space<vmem>>, vector<32x32xbf16>
    %cst_60 = arith.constant dense<0.000000e+00> : vector<32x32xf32>
    %59 = tpu.matmul %57, %58, %cst_60 {dimension_numbers = #tpu.dot_dimension_numbers<[1], [0], [0], [1], [0, 0, 1, 1], [], []>} : vector<32x32xbf16>, vector<32x32xbf16>, vector<32x32xf32> -> vector<32x32xf32>
    %c0_61 = arith.constant 0 : index
    %c0_62 = arith.constant 0 : index
    %60 = vector.load %arg10[%c0_61, %c0_62] : memref<1x32xf32, #tpu.memory_space<vmem>>, vector<1x32xf32>
    %61 = vector.broadcast %60 : vector<1x32xf32> to vector<32x32xf32>
    %62 = arith.addf %59, %61 : vector<32x32xf32>
    %c0_63 = arith.constant 0 : index
    %c0_64 = arith.constant 0 : index
    %c0_65 = arith.constant 0 : index
    %63 = vector.load %arg11[%c0_63, %c0_64, %c0_65] : memref<1x32x32xf32, #tpu.memory_space<vmem>>, vector<1x32x32xf32>
    %64 = vector.shape_cast %63 : vector<1x32x32xf32> to vector<32x32xf32>
    %65 = vector.shape_cast %62 : vector<32x32xf32> to vector<1x32x32xf32>
    tpu.vector_store %arg11[%c0_63, %c0_64, %c0_65], %65 {strides = array<i32>} : memref<1x32x32xf32, #tpu.memory_space<vmem>>, vector<1x32x32xf32>,
    return
  }
  func.func @transform_0(%arg0: i32, %arg1: i32) -> (i32, i32, i32, i32) {
    %c0_i32 = arith.constant 0 : i32
    %c0_i32_0 = arith.constant 0 : i32
    %c0_i32_1 = arith.constant 0 : i32
    return %arg0, %c0_i32, %arg1, %c0_i32_0 : i32, i32, i32, i32
  }
  func.func @transform_1(%arg0: i32, %arg1: i32) -> (i32, i32, i32, i32) {
    %c0_i32 = arith.constant 0 : i32
    %c0_i32_0 = arith.constant 0 : i32
    %c0_i32_1 = arith.constant 0 : i32
    %c0_i32_2 = arith.constant 0 : i32
    return %arg0, %c0_i32, %c0_i32_0, %c0_i32_1 : i32, i32, i32, i32
  }
  func.func @transform_2(%arg0: i32, %arg1: i32) -> (i32, i32, i32, i32) {
    %c0_i32 = arith.constant 0 : i32
    %c0_i32_0 = arith.constant 0 : i32
    %c0_i32_1 = arith.constant 0 : i32
    %c0_i32_2 = arith.constant 0 : i32
    return %arg0, %c0_i32, %c0_i32_0, %c0_i32_1 : i32, i32, i32, i32
  }
  func.func @transform_3(%arg0: i32, %arg1: i32) -> (i32, i32, i32, i32) {
    %c0_i32 = arith.constant 0 : i32
    %c0_i32_0 = arith.constant 0 : i32
    %c0_i32_1 = arith.constant 0 : i32
    return %arg0, %c0_i32, %arg1, %c0_i32_0 : i32, i32, i32, i32
  }
  func.func @transform_4(%arg0: i32, %arg1: i32) -> (i32, i32, i32, i32) {
    %c0_i32 = arith.constant 0 : i32
    %c0_i32_0 = arith.constant 0 : i32
    %c0_i32_1 = arith.constant 0 : i32
    return %arg0, %c0_i32, %arg1, %c0_i32_0 : i32, i32, i32, i32
  }
  func.func @transform_5(%arg0: i32, %arg1: i32) -> (i32, i32) {
    %c0_i32 = arith.constant 0 : i32
    %c0_i32_0 = arith.constant 0 : i32
    %c0_i32_1 = arith.constant 0 : i32
    return %c0_i32, %c0_i32_0 : i32, i32
  }
  func.func @transform_6(%arg0: i32, %arg1: i32) -> (i32, i32) {
    %c0_i32 = arith.constant 0 : i32
    %c0_i32_0 = arith.constant 0 : i32
    %c0_i32_1 = arith.constant 0 : i32
    return %c0_i32, %c0_i32_0 : i32, i32
  }
  func.func @transform_7(%arg0: i32, %arg1: i32) -> (i32, i32) {
    %c0_i32 = arith.constant 0 : i32
    %c0_i32_0 = arith.constant 0 : i32
    %c0_i32_1 = arith.constant 0 : i32
    return %c0_i32, %c0_i32_0 : i32, i32
  }
  func.func @transform_8(%arg0: i32, %arg1: i32) -> (i32, i32) {
    %c0_i32 = arith.constant 0 : i32
    %c0_i32_0 = arith.constant 0 : i32
    %c0_i32_1 = arith.constant 0 : i32
    return %c0_i32, %c0_i32_0 : i32, i32
  }
  func.func @transform_9(%arg0: i32, %arg1: i32) -> (i32, i32, i32) {
    %c0_i32 = arith.constant 0 : i32
    %c0_i32_0 = arith.constant 0 : i32
    return %arg0, %arg1, %c0_i32 : i32, i32, i32
  }
}

module attributes {stable_mosaic.version = 11 : i64} {
  func.func @_mlp_block_kernel(%arg0: i32, %arg1: i32, %arg2: memref<128x32xf32, #tpu.memory_space<vmem>>, %arg3: memref<128x32xf32, #tpu.memory_space<vmem>>, %arg4: memref<1x32xf32, #tpu.memory_space<vmem>>, %arg5: memref<1x32xf32, #tpu.memory_space<vmem>>, %arg6: memref<32x128xbf16, #tpu.memory_space<vmem>>, %arg7: memref<1x128xf32, #tpu.memory_space<vmem>>, %arg8: memref<128x32xbf16, #tpu.memory_space<vmem>>, %arg9: memref<1x32xf32, #tpu.memory_space<vmem>>, %arg10: memref<128x32xf32, #tpu.memory_space<vmem>>, %arg11: memref<128x32xf32, #tpu.memory_space<vmem>>, %arg12: memref<128x32xbf16, #tpu.memory_space<vmem>>, %arg13: memref<128x32xf32, #tpu.memory_space<vmem>>) attributes {dimension_semantics = [#tpu.dimension_semantics<parallel>, #tpu.dimension_semantics<arbitrary>], iteration_bounds = array<i64: 1, 1>, scalar_prefetch = 0 : i64, scratch_operands = 3 : i64, tpu.core_type = #tpu.core_type<tc>, window_params = [{transform_indices = @transform_0, window_bounds = array<i64: 128, 32>}, {transform_indices = @transform_1, window_bounds = array<i64: 128, 32>}, {pipeline_mode = #tpu.pipeline_mode<synchronous>, transform_indices = @transform_2, window_bounds = array<i64: 1, 32>}, {pipeline_mode = #tpu.pipeline_mode<synchronous>, transform_indices = @transform_3, window_bounds = array<i64: 1, 32>}, {transform_indices = @transform_4, window_bounds = array<i64: 32, 128>}, {transform_indices = @transform_5, window_bounds = array<i64: 1, 128>}, {transform_indices = @transform_6, window_bounds = array<i64: 128, 32>}, {pipeline_mode = #tpu.pipeline_mode<synchronous>, transform_indices = @transform_7, window_bounds = array<i64: 1, 32>}, {transform_indices = @transform_8, window_bounds = array<i64: 128, 32>}]} {
    %c0_i32 = arith.constant 0 : i32
    %0 = arith.cmpi eq, %arg1, %c0_i32 : i32
    %1 = arith.extui %0 : i1 to i32
    %c0_i32_0 = arith.constant 0 : i32
    %2 = arith.cmpi ne, %1, %c0_i32_0 : i32
    scf.if %2 {
      %c0_19 = arith.constant 0 : index
      %c0_20 = arith.constant 0 : index
      %31 = vector.load %arg2[%c0_19, %c0_20] : memref<128x32xf32, #tpu.memory_space<vmem>>, vector<128x32xf32>
      %c0_21 = arith.constant 0 : index
      %c0_22 = arith.constant 0 : index
      %32 = vector.load %arg3[%c0_21, %c0_22] : memref<128x32xf32, #tpu.memory_space<vmem>>, vector<128x32xf32>
      %33 = arith.addf %31, %32 : vector<128x32xf32>
      %cst_23 = arith.constant dense<0.000000e+00> : vector<128xf32>
      %34 = vector.multi_reduction <add>, %33, %cst_23 [1] : vector<128x32xf32> to vector<128xf32>
      %35 = vector.shape_cast %34 : vector<128xf32> to vector<128x1xf32>
      %cst_24 = arith.constant 3.200000e+01 : f32
      %36 = vector.broadcast %cst_24 : f32 to vector<128x1xf32>
      %37 = arith.divf %35, %36 : vector<128x1xf32>
      %38 = vector.broadcast %37 : vector<128x1xf32> to vector<128x32xf32>
      %39 = arith.subf %33, %38 : vector<128x32xf32>
      %40 = arith.mulf %39, %39 : vector<128x32xf32>
      %cst_25 = arith.constant dense<0.000000e+00> : vector<128xf32>
      %41 = vector.multi_reduction <add>, %40, %cst_25 [1] : vector<128x32xf32> to vector<128xf32>
      %42 = vector.shape_cast %41 : vector<128xf32> to vector<128x1xf32>
      %cst_26 = arith.constant 3.200000e+01 : f32
      %43 = vector.broadcast %cst_26 : f32 to vector<128x1xf32>
      %44 = arith.divf %42, %43 : vector<128x1xf32>
      %45 = vector.broadcast %37 : vector<128x1xf32> to vector<128x32xf32>
      %46 = arith.subf %33, %45 : vector<128x32xf32>
      %cst_27 = arith.constant 9.99999997E-7 : f32
      %47 = vector.broadcast %cst_27 : f32 to vector<128x1xf32>
      %48 = arith.addf %44, %47 : vector<128x1xf32>
      %49 = math.rsqrt %48 : vector<128x1xf32>
      %50 = vector.broadcast %49 : vector<128x1xf32> to vector<128x32xf32>
      %51 = arith.mulf %46, %50 : vector<128x32xf32>
      %c0_28 = arith.constant 0 : index
      %c0_29 = arith.constant 0 : index
      %52 = vector.load %arg11[%c0_28, %c0_29] : memref<128x32xf32, #tpu.memory_space<vmem>>, vector<128x32xf32>
      tpu.vector_store %arg11[%c0_28, %c0_29], %33 {strides = array<i32>} : memref<128x32xf32, #tpu.memory_space<vmem>>, vector<128x32xf32>,
      %c0_30 = arith.constant 0 : index
      %c0_31 = arith.constant 0 : index
      %53 = vector.load %arg4[%c0_30, %c0_31] : memref<1x32xf32, #tpu.memory_space<vmem>>, vector<1x32xf32>
      %54 = vector.broadcast %53 : vector<1x32xf32> to vector<128x32xf32>
      %55 = arith.mulf %51, %54 : vector<128x32xf32>
      %c0_32 = arith.constant 0 : index
      %c0_33 = arith.constant 0 : index
      %56 = vector.load %arg5[%c0_32, %c0_33] : memref<1x32xf32, #tpu.memory_space<vmem>>, vector<1x32xf32>
      %57 = vector.broadcast %56 : vector<1x32xf32> to vector<128x32xf32>
      %58 = arith.addf %55, %57 : vector<128x32xf32>
      %59 = arith.truncf %58 : vector<128x32xf32> to vector<128x32xbf16>
      %c0_34 = arith.constant 0 : index
      %c0_35 = arith.constant 0 : index
      %60 = vector.load %arg12[%c0_34, %c0_35] : memref<128x32xbf16, #tpu.memory_space<vmem>>, vector<128x32xbf16>
      tpu.vector_store %arg12[%c0_34, %c0_35], %59 {strides = array<i32>} : memref<128x32xbf16, #tpu.memory_space<vmem>>, vector<128x32xbf16>,
      %cst_36 = arith.constant 0.000000e+00 : f32
      %61 = vector.broadcast %cst_36 : f32 to vector<128x32xf32>
      %c0_37 = arith.constant 0 : index
      %c0_38 = arith.constant 0 : index
      %62 = vector.load %arg13[%c0_37, %c0_38] : memref<128x32xf32, #tpu.memory_space<vmem>>, vector<128x32xf32>
      tpu.vector_store %arg13[%c0_37, %c0_38], %61 {strides = array<i32>} : memref<128x32xf32, #tpu.memory_space<vmem>>, vector<128x32xf32>,
    } else {
    }
    %c0 = arith.constant 0 : index
    %c0_1 = arith.constant 0 : index
    %3 = vector.load %arg12[%c0, %c0_1] : memref<128x32xbf16, #tpu.memory_space<vmem>>, vector<128x32xbf16>
    %c0_2 = arith.constant 0 : index
    %c0_3 = arith.constant 0 : index
    %4 = vector.load %arg6[%c0_2, %c0_3] : memref<32x128xbf16, #tpu.memory_space<vmem>>, vector<32x128xbf16>
    %cst = arith.constant dense<0.000000e+00> : vector<128x128xf32>
    %5 = tpu.matmul %3, %4, %cst {dimension_numbers = #tpu.dot_dimension_numbers<[1], [0], [0], [1], [0, 0, 1, 1], [], []>} : vector<128x32xbf16>, vector<32x128xbf16>, vector<128x128xf32> -> vector<128x128xf32>
    %c0_4 = arith.constant 0 : index
    %c0_5 = arith.constant 0 : index
    %6 = vector.load %arg7[%c0_4, %c0_5] : memref<1x128xf32, #tpu.memory_space<vmem>>, vector<1x128xf32>
    %7 = vector.broadcast %6 : vector<1x128xf32> to vector<128x128xf32>
    %8 = arith.addf %5, %7 : vector<128x128xf32>
    %9 = arith.mulf %8, %8 : vector<128x128xf32>
    %10 = arith.mulf %8, %9 : vector<128x128xf32>
    %cst_6 = arith.constant 4.471500e-02 : f32
    %11 = vector.broadcast %cst_6 : f32 to vector<128x128xf32>
    %12 = arith.mulf %11, %10 : vector<128x128xf32>
    %13 = arith.addf %8, %12 : vector<128x128xf32>
    %cst_7 = arith.constant 0.797884583 : f32
    %14 = vector.broadcast %cst_7 : f32 to vector<128x128xf32>
    %15 = arith.mulf %14, %13 : vector<128x128xf32>
    %16 = math.tanh %15 : vector<128x128xf32>
    %cst_8 = arith.constant 1.000000e+00 : f32
    %17 = vector.broadcast %cst_8 : f32 to vector<128x128xf32>
    %18 = arith.addf %17, %16 : vector<128x128xf32>
    %cst_9 = arith.constant 5.000000e-01 : f32
    %19 = vector.broadcast %cst_9 : f32 to vector<128x128xf32>
    %20 = arith.mulf %19, %18 : vector<128x128xf32>
    %21 = arith.mulf %8, %20 : vector<128x128xf32>
    %c0_10 = arith.constant 0 : index
    %c0_11 = arith.constant 0 : index
    %22 = vector.load %arg13[%c0_10, %c0_11] : memref<128x32xf32, #tpu.memory_space<vmem>>, vector<128x32xf32>
    %23 = arith.truncf %21 : vector<128x128xf32> to vector<128x128xbf16>
    %c0_12 = arith.constant 0 : index
    %c0_13 = arith.constant 0 : index
    %24 = vector.load %arg8[%c0_12, %c0_13] : memref<128x32xbf16, #tpu.memory_space<vmem>>, vector<128x32xbf16>
    %cst_14 = arith.constant dense<0.000000e+00> : vector<128x32xf32>
    %25 = tpu.matmul %23, %24, %cst_14 {dimension_numbers = #tpu.dot_dimension_numbers<[1], [0], [0], [1], [0, 0, 1, 1], [], []>} : vector<128x128xbf16>, vector<128x32xbf16>, vector<128x32xf32> -> vector<128x32xf32>
    %26 = arith.addf %22, %25 : vector<128x32xf32>
    %c0_15 = arith.constant 0 : index
    %c0_16 = arith.constant 0 : index
    %27 = vector.load %arg13[%c0_15, %c0_16] : memref<128x32xf32, #tpu.memory_space<vmem>>, vector<128x32xf32>
    tpu.vector_store %arg13[%c0_15, %c0_16], %26 {strides = array<i32>} : memref<128x32xf32, #tpu.memory_space<vmem>>, vector<128x32xf32>,
    %c0_i32_17 = arith.constant 0 : i32
    %28 = arith.cmpi eq, %arg1, %c0_i32_17 : i32
    %29 = arith.extui %28 : i1 to i32
    %c0_i32_18 = arith.constant 0 : i32
    %30 = arith.cmpi ne, %29, %c0_i32_18 : i32
    scf.if %30 {
      %c0_19 = arith.constant 0 : index
      %c0_20 = arith.constant 0 : index
      %31 = vector.load %arg11[%c0_19, %c0_20] : memref<128x32xf32, #tpu.memory_space<vmem>>, vector<128x32xf32>
      %c0_21 = arith.constant 0 : index
      %c0_22 = arith.constant 0 : index
      %32 = vector.load %arg13[%c0_21, %c0_22] : memref<128x32xf32, #tpu.memory_space<vmem>>, vector<128x32xf32>
      %33 = arith.addf %31, %32 : vector<128x32xf32>
      %c0_23 = arith.constant 0 : index
      %c0_24 = arith.constant 0 : index
      %34 = vector.load %arg9[%c0_23, %c0_24] : memref<1x32xf32, #tpu.memory_space<vmem>>, vector<1x32xf32>
      %35 = vector.broadcast %34 : vector<1x32xf32> to vector<128x32xf32>
      %36 = arith.addf %33, %35 : vector<128x32xf32>
      %c0_25 = arith.constant 0 : index
      %c0_26 = arith.constant 0 : index
      %37 = vector.load %arg10[%c0_25, %c0_26] : memref<128x32xf32, #tpu.memory_space<vmem>>, vector<128x32xf32>
      tpu.vector_store %arg10[%c0_25, %c0_26], %36 {strides = array<i32>} : memref<128x32xf32, #tpu.memory_space<vmem>>, vector<128x32xf32>,
    } else {
    }
    return
  }
  func.func @transform_0(%arg0: i32, %arg1: i32) -> (i32, i32) {
    %c0_i32 = arith.constant 0 : i32
    %c0_i32_0 = arith.constant 0 : i32
    return %arg0, %c0_i32 : i32, i32
  }
  func.func @transform_1(%arg0: i32, %arg1: i32) -> (i32, i32) {
    %c0_i32 = arith.constant 0 : i32
    %c0_i32_0 = arith.constant 0 : i32
    return %arg0, %c0_i32 : i32, i32
  }
  func.func @transform_2(%arg0: i32, %arg1: i32) -> (i32, i32) {
    %c0_i32 = arith.constant 0 : i32
    %c0_i32_0 = arith.constant 0 : i32
    %c0_i32_1 = arith.constant 0 : i32
    return %c0_i32, %c0_i32_0 : i32, i32
  }
  func.func @transform_3(%arg0: i32, %arg1: i32) -> (i32, i32) {
    %c0_i32 = arith.constant 0 : i32
    %c0_i32_0 = arith.constant 0 : i32
    %c0_i32_1 = arith.constant 0 : i32
    return %c0_i32, %c0_i32_0 : i32, i32
  }
  func.func @transform_4(%arg0: i32, %arg1: i32) -> (i32, i32) {
    %c0_i32 = arith.constant 0 : i32
    %c0_i32_0 = arith.constant 0 : i32
    return %c0_i32, %arg1 : i32, i32
  }
  func.func @transform_5(%arg0: i32, %arg1: i32) -> (i32, i32) {
    %c0_i32 = arith.constant 0 : i32
    %c0_i32_0 = arith.constant 0 : i32
    return %c0_i32, %arg1 : i32, i32
  }
  func.func @transform_6(%arg0: i32, %arg1: i32) -> (i32, i32) {
    %c0_i32 = arith.constant 0 : i32
    %c0_i32_0 = arith.constant 0 : i32
    return %arg1, %c0_i32 : i32, i32
  }
  func.func @transform_7(%arg0: i32, %arg1: i32) -> (i32, i32) {
    %c0_i32 = arith.constant 0 : i32
    %c0_i32_0 = arith.constant 0 : i32
    %c0_i32_1 = arith.constant 0 : i32
    return %c0_i32, %c0_i32_0 : i32, i32
  }
  func.func @transform_8(%arg0: i32, %arg1: i32) -> (i32, i32) {
    %c0_i32 = arith.constant 0 : i32
    %c0_i32_0 = arith.constant 0 : i32
    return %arg0, %c0_i32 : i32, i32
  }
}

</mosaic_0001>

<llo_original>
// kernel: transformer_stage_forward.6
$region0: #{transformer_stage_forward.6}
  #allocation0 [shape = 'u32[]', space=smem, size = 0x4, offset = 0x4, fixed_abs, tag = 'smem constant byte address 0x4 - core index']
  #allocation1 [shape = 'u32[144,128]{1,0:T(1,128)}', space=vmem, size = 0x12000, scoped, tag = 'internal scratch']
  #allocation2 [shape = 'bf16[128,32]{1,0:T(8,128)(2,1)}', space=vmem, size = 0x8000, scoped, tag = 'scratch operand']
  %s0 = inlined_call_operand.vmem [shape: f32[128,32], index: 0, kind: input, shape index: {}]
  %s1 = inlined_call_operand.vmem [shape: f32[1,32], index: 1, kind: input, shape index: {}]
  %s2 = inlined_call_operand.vmem [shape: f32[1,32], index: 2, kind: input, shape index: {}]
  %s3 = inlined_call_operand.vmem [shape: bf16[32,96], index: 3, kind: input, shape index: {}]
  %s4 = inlined_call_operand.vmem [shape: f32[1,96], index: 4, kind: input, shape index: {}]
  %s5 = inlined_call_operand.vmem [shape: f32[128,96], index: 5, kind: output, shape index: {}]
  %s6 = sld [smem:[#allocation0]]
  $region34: #{transformer_stage_forward.6} parent=0
    _
  %s8 = ssub.s32 1, %s6
  %s9 = scalar_select 0, %s8, %s6
  // Predicated region
  $region2: #{transformer_stage_forward.6} parent=0 // pred_check
    _
  $region3: #{transformer_stage_forward.6} parent=0 // pred_check_branch
    %11 = sbr.rel (0) target = $region5
  $region4: #{transformer_stage_forward.6} parent=0 // pred_region
    _
  $region5: #{transformer_stage_forward.6} parent=0 // pred_fallthru
    _
  // Predicated region
  $region6: #{transformer_stage_forward.6} parent=0 // pred_check
    _
  $region7: #{transformer_stage_forward.6} parent=0 // pred_check_branch
    %13 = sbr.rel (0) target = $region9
  $region8: #{transformer_stage_forward.6} parent=0 // pred_region
    _
  $region9: #{transformer_stage_forward.6} parent=0 // pred_fallthru
    _
  // Predicated region
  $region10: #{transformer_stage_forward.6} parent=0 // pred_check
    _
  $region11: #{transformer_stage_forward.6} parent=0 // pred_check_branch
    %15 = sbr.rel (0) target = $region13
  $region12: #{transformer_stage_forward.6} parent=0 // pred_region
    _
  $region13: #{transformer_stage_forward.6} parent=0 // pred_fallthru
    _
  // Predicated region
  $region14: #{transformer_stage_forward.6} parent=0 // pred_check
    _
  $region15: #{transformer_stage_forward.6} parent=0 // pred_check_branch
    %17 = sbr.rel (0) target = $region17
  $region16: #{transformer_stage_forward.6} parent=0 // pred_region
    _
  $region17: #{transformer_stage_forward.6} parent=0 // pred_fallthru
    _
  // Predicated region
  $region18: #{transformer_stage_forward.6} parent=0 // pred_check
    _
  $region19: #{transformer_stage_forward.6} parent=0 // pred_check_branch
    %19 = sbr.rel (0) target = $region21
  $region20: #{transformer_stage_forward.6} parent=0 // pred_region
    _
  $region21: #{transformer_stage_forward.6} parent=0 // pred_fallthru
    _
  %p21 = scmp.eq.s32.totalorder 0, 0
  // Predicated region
  $region22: #{transformer_stage_forward.6} parent=0 // pred_check
    %p22 = pneg %p21
  $region23: #{transformer_stage_forward.6} parent=0 // pred_check_branch
    %24 = sbr.rel (%p22) target = $region25
  $region24: #{transformer_stage_forward.6} parent=0 // pred_region
    %v25 = vld [vmem:[%s0] sm:$0xff]
    %v26 = vld [vmem:[%s0 + $0x8] sm:$0xff]
    %v27 = vld [vmem:[%s0 + $0x10] sm:$0xff]
    %v28 = vld [vmem:[%s0 + $0x18] sm:$0xff]
    %v29 = vld [vmem:[%s0 + $0x20] sm:$0xff]
    %v30 = vld [vmem:[%s0 + $0x28] sm:$0xff]
    %v31 = vld [vmem:[%s0 + $0x30] sm:$0xff]
    %v32 = vld [vmem:[%s0 + $0x38] sm:$0xff]
    %v33 = vld [vmem:[%s0 + $0x40] sm:$0xff]
    %v34 = vld [vmem:[%s0 + $0x48] sm:$0xff]
    %v35 = vld [vmem:[%s0 + $0x50] sm:$0xff]
    %v36 = vld [vmem:[%s0 + $0x58] sm:$0xff]
    %v37 = vld [vmem:[%s0 + $0x60] sm:$0xff]
    %v38 = vld [vmem:[%s0 + $0x68] sm:$0xff]
    %v39 = vld [vmem:[%s0 + $0x70] sm:$0xff]
    %v40 = vld [vmem:[%s0 + $0x78] sm:$0xff]
    %vm41 = vcmask 261120
    %v42 = vsel %vm41, %v25, 0.0
    %43 = vadd.xlane.f32.xlu0 %v42
    %v44 = vpop.xlane.xlu0 %43
    %v45 = vsel %vm41, %v26, 0.0
    %46 = vadd.xlane.f32.xlu0 %v45
    %v47 = vpop.xlane.xlu0 %46
    %v48 = vsel %vm41, %v27, 0.0
    %49 = vadd.xlane.f32.xlu0 %v48
    %v50 = vpop.xlane.xlu0 %49
    %v51 = vsel %vm41, %v28, 0.0
    %52 = vadd.xlane.f32.xlu0 %v51
    %v53 = vpop.xlane.xlu0 %52
    %v54 = vsel %vm41, %v29, 0.0
    %55 = vadd.xlane.f32.xlu0 %v54
    %v56 = vpop.xlane.xlu0 %55
    %v57 = vsel %vm41, %v30, 0.0
    %58 = vadd.xlane.f32.xlu0 %v57
    %v59 = vpop.xlane.xlu0 %58
    %v60 = vsel %vm41, %v31, 0.0
    %61 = vadd.xlane.f32.xlu0 %v60
    %v62 = vpop.xlane.xlu0 %61
    %v63 = vsel %vm41, %v32, 0.0
    %64 = vadd.xlane.f32.xlu0 %v63
    %v65 = vpop.xlane.xlu0 %64
    %v66 = vsel %vm41, %v33, 0.0
    %67 = vadd.xlane.f32.xlu0 %v66
    %v68 = vpop.xlane.xlu0 %67
    %v69 = vsel %vm41, %v34, 0.0
    %70 = vadd.xlane.f32.xlu0 %v69
    %v71 = vpop.xlane.xlu0 %70
    %v72 = vsel %vm41, %v35, 0.0
    %73 = vadd.xlane.f32.xlu0 %v72
    %v74 = vpop.xlane.xlu0 %73
    %v75 = vsel %vm41, %v36, 0.0
    %76 = vadd.xlane.f32.xlu0 %v75
    %v77 = vpop.xlane.xlu0 %76
    %v78 = vsel %vm41, %v37, 0.0
    %79 = vadd.xlane.f32.xlu0 %v78
    %v80 = vpop.xlane.xlu0 %79
    %v81 = vsel %vm41, %v38, 0.0
    %82 = vadd.xlane.f32.xlu0 %v81
    %v83 = vpop.xlane.xlu0 %82
    %v84 = vsel %vm41, %v39, 0.0
    %85 = vadd.xlane.f32.xlu0 %v84
    %v86 = vpop.xlane.xlu0 %85
    %v87 = vsel %vm41, %v40, 0.0
    %88 = vadd.xlane.f32.xlu0 %v87
    %v89 = vpop.xlane.xlu0 %88
    %v90 = vrcp.pop 32.0
    %v91 = vmul.f32 %v44, %v90
    %v92 = vmul.f32 %v47, %v90
    %v93 = vmul.f32 %v50, %v90
    %v94 = vmul.f32 %v53, %v90
    %v95 = vmul.f32 %v56, %v90
    %v96 = vmul.f32 %v59, %v90
    %v97 = vmul.f32 %v62, %v90
    %v98 = vmul.f32 %v65, %v90
    %v99 = vmul.f32 %v68, %v90
    %v100 = vmul.f32 %v71, %v90
    %v101 = vmul.f32 %v74, %v90
    %v102 = vmul.f32 %v77, %v90
    %v103 = vmul.f32 %v80, %v90
    %v104 = vmul.f32 %v83, %v90
    %v105 = vmul.f32 %v86, %v90
    %v106 = vmul.f32 %v89, %v90
    %v107 = vsub.f32 %v25, %v91
    %v108 = vsub.f32 %v26, %v92
    %v109 = vsub.f32 %v27, %v93
    %v110 = vsub.f32 %v28, %v94
    %v111 = vsub.f32 %v29, %v95
    %v112 = vsub.f32 %v30, %v96
    %v113 = vsub.f32 %v31, %v97
    %v114 = vsub.f32 %v32, %v98
    %v115 = vsub.f32 %v33, %v99
    %v116 = vsub.f32 %v34, %v100
    %v117 = vsub.f32 %v35, %v101
    %v118 = vsub.f32 %v36, %v102
    %v119 = vsub.f32 %v37, %v103
    %v120 = vsub.f32 %v38, %v104
    %v121 = vsub.f32 %v39, %v105
    %v122 = vsub.f32 %v40, %v106
    %v123 = vmul.f32 %v107, %v107
    %v124 = vmul.f32 %v108, %v108
    %v125 = vmul.f32 %v109, %v109
    %v126 = vmul.f32 %v110, %v110
    %v127 = vmul.f32 %v111, %v111
    %v128 = vmul.f32 %v112, %v112
    %v129 = vmul.f32 %v113, %v113
    %v130 = vmul.f32 %v114, %v114
    %v131 = vmul.f32 %v115, %v115
    %v132 = vmul.f32 %v116, %v116
    %v133 = vmul.f32 %v117, %v117
    %v134 = vmul.f32 %v118, %v118
    %v135 = vmul.f32 %v119, %v119
    %v136 = vmul.f32 %v120, %v120
    %v137 = vmul.f32 %v121, %v121
    %v138 = vmul.f32 %v122, %v122
    %v139 = vsel %vm41, %v123, 0.0
    %140 = vadd.xlane.f32.xlu0 %v139
    %v141 = vpop.xlane.xlu0 %140
    %v142 = vsel %vm41, %v124, 0.0
    %143 = vadd.xlane.f32.xlu0 %v142
    %v144 = vpop.xlane.xlu0 %143
    %v145 = vsel %vm41, %v125, 0.0
    %146 = vadd.xlane.f32.xlu0 %v145
    %v147 = vpop.xlane.xlu0 %146
    %v148 = vsel %vm41, %v126, 0.0
    %149 = vadd.xlane.f32.xlu0 %v148
    %v150 = vpop.xlane.xlu0 %149
    %v151 = vsel %vm41, %v127, 0.0
    %152 = vadd.xlane.f32.xlu0 %v151
    %v153 = vpop.xlane.xlu0 %152
    %v154 = vsel %vm41, %v128, 0.0
    %155 = vadd.xlane.f32.xlu0 %v154
    %v156 = vpop.xlane.xlu0 %155
    %v157 = vsel %vm41, %v129, 0.0
    %158 = vadd.xlane.f32.xlu0 %v157
    %v159 = vpop.xlane.xlu0 %158
    %v160 = vsel %vm41, %v130, 0.0
    %161 = vadd.xlane.f32.xlu0 %v160
    %v162 = vpop.xlane.xlu0 %161
    %v163 = vsel %vm41, %v131, 0.0
    %164 = vadd.xlane.f32.xlu0 %v163
    %v165 = vpop.xlane.xlu0 %164
    %v166 = vsel %vm41, %v132, 0.0
    %167 = vadd.xlane.f32.xlu0 %v166
    %v168 = vpop.xlane.xlu0 %167
    %v169 = vsel %vm41, %v133, 0.0
    %170 = vadd.xlane.f32.xlu0 %v169
    %v171 = vpop.xlane.xlu0 %170
    %v172 = vsel %vm41, %v134, 0.0
    %173 = vadd.xlane.f32.xlu0 %v172
    %v174 = vpop.xlane.xlu0 %173
    %v175 = vsel %vm41, %v135, 0.0
    %176 = vadd.xlane.f32.xlu0 %v175
    %v177 = vpop.xlane.xlu0 %176
    %v178 = vsel %vm41, %v136, 0.0
    %179 = vadd.xlane.f32.xlu0 %v178
    %v180 = vpop.xlane.xlu0 %179
    %v181 = vsel %vm41, %v137, 0.0
    %182 = vadd.xlane.f32.xlu0 %v181
    %v183 = vpop.xlane.xlu0 %182
    %v184 = vsel %vm41, %v138, 0.0
    %185 = vadd.xlane.f32.xlu0 %v184
    %v186 = vpop.xlane.xlu0 %185
    %v187 = vmul.f32 %v141, %v90
    %v188 = vmul.f32 %v144, %v90
    %v189 = vmul.f32 %v147, %v90
    %v190 = vmul.f32 %v150, %v90
    %v191 = vmul.f32 %v153, %v90
    %v192 = vmul.f32 %v156, %v90
    %v193 = vmul.f32 %v159, %v90
    %v194 = vmul.f32 %v162, %v90
    %v195 = vmul.f32 %v165, %v90
    %v196 = vmul.f32 %v168, %v90
    %v197 = vmul.f32 %v171, %v90
    %v198 = vmul.f32 %v174, %v90
    %v199 = vmul.f32 %v177, %v90
    %v200 = vmul.f32 %v180, %v90
    %v201 = vmul.f32 %v183, %v90
    %v202 = vmul.f32 %v186, %v90
    %v203 = vadd.f32 %v187, 1e-06
    %v204 = vadd.f32 %v188, 1e-06
    %v205 = vadd.f32 %v189, 1e-06
    %v206 = vadd.f32 %v190, 1e-06
    %v207 = vadd.f32 %v191, 1e-06
    %v208 = vadd.f32 %v192, 1e-06
    %v209 = vadd.f32 %v193, 1e-06
    %v210 = vadd.f32 %v194, 1e-06
    %v211 = vadd.f32 %v195, 1e-06
    %v212 = vadd.f32 %v196, 1e-06
    %v213 = vadd.f32 %v197, 1e-06
    %v214 = vadd.f32 %v198, 1e-06
    %v215 = vadd.f32 %v199, 1e-06
    %v216 = vadd.f32 %v200, 1e-06
    %v217 = vadd.f32 %v201, 1e-06
    %v218 = vadd.f32 %v202, 1e-06
    %v219 = vrsqrt.pop %v203
    %v220 = vrsqrt.pop %v204
    %v221 = vrsqrt.pop %v205
    %v222 = vrsqrt.pop %v206
    %v223 = vrsqrt.pop %v207
    %v224 = vrsqrt.pop %v208
    %v225 = vrsqrt.pop %v209
    %v226 = vrsqrt.pop %v210
    %v227 = vrsqrt.pop %v211
    %v228 = vrsqrt.pop %v212
    %v229 = vrsqrt.pop %v213
    %v230 = vrsqrt.pop %v214
    %v231 = vrsqrt.pop %v215
    %v232 = vrsqrt.pop %v216
    %v233 = vrsqrt.pop %v217
    %v234 = vrsqrt.pop %v218
    %v235 = vmul.f32 %v107, %v219
    %v236 = vmul.f32 %v108, %v220
    %v237 = vmul.f32 %v109, %v221
    %v238 = vmul.f32 %v110, %v222
    %v239 = vmul.f32 %v111, %v223
    %v240 = vmul.f32 %v112, %v224
    %v241 = vmul.f32 %v113, %v225
    %v242 = vmul.f32 %v114, %v226
    %v243 = vmul.f32 %v115, %v227
    %v244 = vmul.f32 %v116, %v228
    %v245 = vmul.f32 %v117, %v229
    %v246 = vmul.f32 %v118, %v230
    %v247 = vmul.f32 %v119, %v231
    %v248 = vmul.f32 %v120, %v232
    %v249 = vmul.f32 %v121, %v233
    %v250 = vmul.f32 %v122, %v234
    %v251 = vld [vmem:[%s1] sm:$0x1]
    %v253 = vlaneseq
    %v254 = vshrl.u32 %v253, 7
    %v255 = vsub.s32 0, %v254
    %v256 = vrot.slane %v251, %v255
    %v258 = vmul.f32 %v235, %v256
    %v259 = vmul.f32 %v236, %v256
    %v260 = vmul.f32 %v237, %v256
    %v261 = vmul.f32 %v238, %v256
    %v262 = vmul.f32 %v239, %v256
    %v263 = vmul.f32 %v240, %v256
    %v264 = vmul.f32 %v241, %v256
    %v265 = vmul.f32 %v242, %v256
    %v266 = vmul.f32 %v243, %v256
    %v267 = vmul.f32 %v244, %v256
    %v268 = vmul.f32 %v245, %v256
    %v269 = vmul.f32 %v246, %v256
    %v270 = vmul.f32 %v247, %v256
    %v271 = vmul.f32 %v248, %v256
    %v272 = vmul.f32 %v249, %v256
    %v273 = vmul.f32 %v250, %v256
    %v274 = vld [vmem:[%s2] sm:$0x1]
    %v276 = vlaneseq
    %v277 = vshrl.u32 %v276, 7
    %v278 = vsub.s32 0, %v277
    %v279 = vrot.slane %v274, %v278
    %v281 = vadd.f32 %v258, %v279
    %v282 = vadd.f32 %v259, %v279
    %v283 = vadd.f32 %v260, %v279
    %v284 = vadd.f32 %v261, %v279
    %v285 = vadd.f32 %v262, %v279
    %v286 = vadd.f32 %v263, %v279
    %v287 = vadd.f32 %v264, %v279
    %v288 = vadd.f32 %v265, %v279
    %v289 = vadd.f32 %v266, %v279
    %v290 = vadd.f32 %v267, %v279
    %v291 = vadd.f32 %v268, %v279
    %v292 = vadd.f32 %v269, %v279
    %v293 = vadd.f32 %v270, %v279
    %v294 = vadd.f32 %v271, %v279
    %v295 = vadd.f32 %v272, %v279
    %v296 = vadd.f32 %v273, %v279
    %v297 = vpack.c.bf16 %v282, %v281
    %v298 = vpack.c.bf16 %v284, %v283
    %v299 = vpack.c.bf16 %v286, %v285
    %v300 = vpack.c.bf16 %v288, %v287
    %v301 = vpack.c.bf16 %v290, %v289
    %v302 = vpack.c.bf16 %v292, %v291
    %v303 = vpack.c.bf16 %v294, %v293
    %v304 = vpack.c.bf16 %v296, %v295
    %v313 = vunpack.c.l.b16 %v297
    %v314 = vunpack.c.h.b16 %v297
    %v315 = vunpack.c.l.b16 %v298
    %v316 = vunpack.c.h.b16 %v298
    %v317 = vunpack.c.l.b16 %v299
    %v318 = vunpack.c.h.b16 %v299
    %v319 = vunpack.c.l.b16 %v300
    %v320 = vunpack.c.h.b16 %v300
    %v321 = vunpack.c.l.b16 %v301
    %v322 = vunpack.c.h.b16 %v301
    %v323 = vunpack.c.l.b16 %v302
    %v324 = vunpack.c.h.b16 %v302
    %v325 = vunpack.c.l.b16 %v303
    %v326 = vunpack.c.h.b16 %v303
    %v327 = vunpack.c.l.b16 %v304
    %v328 = vunpack.c.h.b16 %v304
    %v329 = vpack.c.b16 %v313, %v313
    %v330 = vpack.c.b16 %v314, %v314
    %v331 = vpack.c.b16 %v315, %v315
    %v332 = vpack.c.b16 %v316, %v316
    %v333 = vpack.c.b16 %v317, %v317
    %v334 = vpack.c.b16 %v318, %v318
    %v335 = vpack.c.b16 %v319, %v319
    %v336 = vpack.c.b16 %v320, %v320
    %v337 = vpack.c.b16 %v321, %v321
    %v338 = vpack.c.b16 %v322, %v322
    %v339 = vpack.c.b16 %v323, %v323
    %v340 = vpack.c.b16 %v324, %v324
    %v341 = vpack.c.b16 %v325, %v325
    %v342 = vpack.c.b16 %v326, %v326
    %v343 = vpack.c.b16 %v327, %v327
    %v344 = vpack.c.b16 %v328, %v328
    %vm361 = vcmask 257024
    %362 = vst.msk [vmem:[#allocation2] sm:$0xf] %vm361, %v329
    %363 = vst.msk [vmem:[#allocation2 + $0x4] sm:$0xf] %vm361, %v330
    %364 = vst.msk [vmem:[#allocation2 + $0x8] sm:$0xf] %vm361, %v331
    %365 = vst.msk [vmem:[#allocation2 + $0xc] sm:$0xf] %vm361, %v332
    %366 = vst.msk [vmem:[#allocation2 + $0x10] sm:$0xf] %vm361, %v333
    %367 = vst.msk [vmem:[#allocation2 + $0x14] sm:$0xf] %vm361, %v334
    %368 = vst.msk [vmem:[#allocation2 + $0x18] sm:$0xf] %vm361, %v335
    %369 = vst.msk [vmem:[#allocation2 + $0x1c] sm:$0xf] %vm361, %v336
    %370 = vst.msk [vmem:[#allocation2 + $0x20] sm:$0xf] %vm361, %v337
    %371 = vst.msk [vmem:[#allocation2 + $0x24] sm:$0xf] %vm361, %v338
    %372 = vst.msk [vmem:[#allocation2 + $0x28] sm:$0xf] %vm361, %v339
    %373 = vst.msk [vmem:[#allocation2 + $0x2c] sm:$0xf] %vm361, %v340
    %374 = vst.msk [vmem:[#allocation2 + $0x30] sm:$0xf] %vm361, %v341
    %375 = vst.msk [vmem:[#allocation2 + $0x34] sm:$0xf] %vm361, %v342
    %376 = vst.msk [vmem:[#allocation2 + $0x38] sm:$0xf] %vm361, %v343
    %377 = vst.msk [vmem:[#allocation2 + $0x3c] sm:$0xf] %vm361, %v344
  $region25: #{transformer_stage_forward.6} parent=0 // pred_fallthru
    _
  %v378 = vld [vmem:[#allocation2] sm:$0xf]
  %v379 = vld [vmem:[#allocation2 + $0x4] sm:$0xf]
  %v380 = vld [vmem:[#allocation2 + $0x8] sm:$0xf]
  %v381 = vld [vmem:[#allocation2 + $0xc] sm:$0xf]
  %v382 = vld [vmem:[#allocation2 + $0x10] sm:$0xf]
  %v383 = vld [vmem:[#allocation2 + $0x14] sm:$0xf]
  %v384 = vld [vmem:[#allocation2 + $0x18] sm:$0xf]
  %v385 = vld [vmem:[#allocation2 + $0x1c] sm:$0xf]
  %v386 = vld [vmem:[#allocation2 + $0x20] sm:$0xf]
  %v387 = vld [vmem:[#allocation2 + $0x24] sm:$0xf]
  %v388 = vld [vmem:[#allocation2 + $0x28] sm:$0xf]
  %v389 = vld [vmem:[#allocation2 + $0x2c] sm:$0xf]
  %v390 = vld [vmem:[#allocation2 + $0x30] sm:$0xf]
  %v391 = vld [vmem:[#allocation2 + $0x34] sm:$0xf]
  %v392 = vld [vmem:[#allocation2 + $0x38] sm:$0xf]
  %v393 = vld [vmem:[#allocation2 + $0x3c] sm:$0xf]
  %v394 = vld [vmem:[%s3] sm:$0xf]
  %v395 = vld [vmem:[%s3 + $0x4] sm:$0xf]
  %v396 = vld [vmem:[%s3 + $0x8] sm:$0xf]
  %v397 = vld [vmem:[%s3 + $0xc] sm:$0xf]
  %v398 = vld [vmem:[%s4] sm:$0x1]
  %v400 = vlaneseq
  %v401 = vshrl.u32 %v400, 7
  %v402 = vsub.s32 0, %v401
  %v403 = vrot.slane %v398, %v402
  %v421 = vunpack.c.l.b16 %v378
  %v422 = vunpack.c.l.b16 %v379
  %v423 = vunpack.c.l.b16 %v380
  %v424 = vunpack.c.l.b16 %v381
  %v425 = vunpack.c.l.b16 %v382
  %v426 = vunpack.c.l.b16 %v383
  %v427 = vunpack.c.l.b16 %v384
  %v428 = vunpack.c.l.b16 %v385
  %v429 = vunpack.c.l.b16 %v386
  %v430 = vunpack.c.l.b16 %v387
  %v431 = vunpack.c.l.b16 %v388
  %v432 = vunpack.c.l.b16 %v389
  %v433 = vunpack.c.l.b16 %v390
  %v434 = vunpack.c.l.b16 %v391
  %v435 = vunpack.c.l.b16 %v392
  %v436 = vunpack.c.l.b16 %v393
  %v437 = vpack.c.b16 %v422, %v421
  %v438 = vpack.c.b16 %v424, %v423
  %v439 = vpack.c.b16 %v426, %v425
  %v440 = vpack.c.b16 %v428, %v427
  %v441 = vpack.c.b16 %v430, %v429
  %v442 = vpack.c.b16 %v432, %v431
  %v443 = vpack.c.b16 %v434, %v433
  %v444 = vpack.c.b16 %v436, %v435
  %v449 = vunpack.c.l.b16 %v394
  %v450 = vunpack.c.l.b16 %v395
  %v451 = vunpack.c.l.b16 %v396
  %v452 = vunpack.c.l.b16 %v397
  %v453 = vpack.c.b16 %v450, %v449
  %v454 = vpack.c.b16 %v452, %v451
  %vm457 = vcmask 261120
  %v459 = vsel %vm457, %v437, 0
  %v462 = vsel %vm457, %v438, 0
  %v465 = vsel %vm457, %v439, 0
  %v468 = vsel %vm457, %v440, 0
  %v471 = vsel %vm457, %v441, 0
  %v474 = vsel %vm457, %v442, 0
  %v477 = vsel %vm457, %v443, 0
  %v480 = vsel %vm457, %v444, 0
  %482 = vmatprep.subr.bf16.mxu0 0
  %483 = vmatpush1.bf16.msra.mxu0 0
  %484 = vmatprep.subr.bf16.mxu0 0
  %485 = vmatpush1.bf16.msra.mxu0 0
  %486 = vmatprep.subr.bf16.mxu0 0
  %487 = vmatpush1.bf16.msra.mxu0 0
  %488 = vmatprep.subr.bf16.mxu0 0
  %489 = vmatpush1.bf16.msra.mxu0 0
  %490 = vmatprep.subr.bf16.mxu0 0
  %491 = vmatpush1.bf16.msra.mxu0 0
  %492 = vmatprep.subr.bf16.mxu0 0
  %493 = vmatpush1.bf16.msra.mxu0 0
  %494 = vmatprep.subr.bf16.mxu0 0
  %495 = vmatpush1.bf16.msra.mxu0 %v454
  %496 = vmatprep.subr.bf16.mxu0 0
  %497 = vmatpush1.bf16.msra.mxu0 %v453
  %498 = vmatprep.subr.bf16.mxu0 0
  %499 = vmatpush2.bf16.msra.mxu0 0
  %500 = vmatprep.subr.bf16.mxu0 0
  %501 = vmatpush2.bf16.msra.mxu0 0
  %502 = vmatprep.subr.bf16.mxu0 0
  %503 = vmatpush2.bf16.msra.mxu0 0
  %504 = vmatprep.subr.bf16.mxu0 0
  %505 = vmatpush2.bf16.msra.mxu0 0
  %506 = vmatprep.subr.bf16.mxu0 0
  %507 = vmatpush2.bf16.msra.mxu0 0
  %508 = vmatprep.subr.bf16.mxu0 0
  %509 = vmatpush2.bf16.msra.mxu0 0
  %510 = vmatprep.subr.bf16.mxu0 0
  %511 = vmatpush2.bf16.msra.mxu0 0
  %512 = vmatprep.subr.bf16.mxu0 0
  %513 = vmatpush2.bf16.msra.mxu0 0
  %514 = vmatprep.mubr.bf16.mxu0 0
  %515 = vmatmul.mubr.bf16.gmra.mxu0 %v459
  %v516 = vpop.f32.mrf.mxu0
  %v517 = vadd.f32 %v403, %v516
  %v518 = vpop.f32.mrf.mxu0
  %v519 = vpop.f32.mrf.mxu0
  %v520 = vadd.f32 %v403, %v519
  %v521 = vpop.f32.mrf.mxu0
  %522 = vmatprep.mubr.bf16.mxu0 0
  %523 = vmatmul.mubr.bf16.gmra.mxu0 %v462
  %v524 = vpop.f32.mrf.mxu0
  %v525 = vadd.f32 %v403, %v524
  %v526 = vpop.f32.mrf.mxu0
  %v527 = vpop.f32.mrf.mxu0
  %v528 = vadd.f32 %v403, %v527
  %v529 = vpop.f32.mrf.mxu0
  %530 = vmatprep.mubr.bf16.mxu0 0
  %531 = vmatmul.mubr.bf16.gmra.mxu0 %v465
  %v532 = vpop.f32.mrf.mxu0
  %v533 = vadd.f32 %v403, %v532
  %v534 = vpop.f32.mrf.mxu0
  %v535 = vpop.f32.mrf.mxu0
  %v536 = vadd.f32 %v403, %v535
  %v537 = vpop.f32.mrf.mxu0
  %538 = vmatprep.mubr.bf16.mxu0 0
  %539 = vmatmul.mubr.bf16.gmra.mxu0 %v468
  %v540 = vpop.f32.mrf.mxu0
  %v541 = vadd.f32 %v403, %v540
  %v542 = vpop.f32.mrf.mxu0
  %v543 = vpop.f32.mrf.mxu0
  %v544 = vadd.f32 %v403, %v543
  %v545 = vpop.f32.mrf.mxu0
  %546 = vmatprep.mubr.bf16.mxu0 0
  %547 = vmatmul.mubr.bf16.gmra.mxu0 %v471
  %v548 = vpop.f32.mrf.mxu0
  %v549 = vadd.f32 %v403, %v548
  %v550 = vpop.f32.mrf.mxu0
  %v551 = vpop.f32.mrf.mxu0
  %v552 = vadd.f32 %v403, %v551
  %v553 = vpop.f32.mrf.mxu0
  %554 = vmatprep.mubr.bf16.mxu0 0
  %555 = vmatmul.mubr.bf16.gmra.mxu0 %v474
  %v556 = vpop.f32.mrf.mxu0
  %v557 = vadd.f32 %v403, %v556
  %v558 = vpop.f32.mrf.mxu0
  %v559 = vpop.f32.mrf.mxu0
  %v560 = vadd.f32 %v403, %v559
  %v561 = vpop.f32.mrf.mxu0
  %562 = vmatprep.mubr.bf16.mxu0 0
  %563 = vmatmul.mubr.bf16.gmra.mxu0 %v477
  %v564 = vpop.f32.mrf.mxu0
  %v565 = vadd.f32 %v403, %v564
  %v566 = vpop.f32.mrf.mxu0
  %v567 = vpop.f32.mrf.mxu0
  %v568 = vadd.f32 %v403, %v567
  %v569 = vpop.f32.mrf.mxu0
  %570 = vmatprep.mubr.bf16.mxu0 0
  %571 = vmatmul.mubr.bf16.gmra.mxu0 %v480
  %v572 = vpop.f32.mrf.mxu0
  %v573 = vadd.f32 %v403, %v572
  %v574 = vpop.f32.mrf.mxu0
  %v575 = vpop.f32.mrf.mxu0
  %v576 = vadd.f32 %v403, %v575
  %v577 = vpop.f32.mrf.mxu0
  %578 = vdwg.mxu0
  %vm579 = vcmask 785408
  %580 = vst.msk [vmem:[%s5] sm:$0xff] %vm579, %v517
  %581 = vst.msk [vmem:[%s5 + $0x8] sm:$0xff] %vm579, %v520
  %582 = vst.msk [vmem:[%s5 + $0x10] sm:$0xff] %vm579, %v525
  %583 = vst.msk [vmem:[%s5 + $0x18] sm:$0xff] %vm579, %v528
  %584 = vst.msk [vmem:[%s5 + $0x20] sm:$0xff] %vm579, %v533
  %585 = vst.msk [vmem:[%s5 + $0x28] sm:$0xff] %vm579, %v536
  %586 = vst.msk [vmem:[%s5 + $0x30] sm:$0xff] %vm579, %v541
  %587 = vst.msk [vmem:[%s5 + $0x38] sm:$0xff] %vm579, %v544
  %588 = vst.msk [vmem:[%s5 + $0x40] sm:$0xff] %vm579, %v549
  %589 = vst.msk [vmem:[%s5 + $0x48] sm:$0xff] %vm579, %v552
  %590 = vst.msk [vmem:[%s5 + $0x50] sm:$0xff] %vm579, %v557
  %591 = vst.msk [vmem:[%s5 + $0x58] sm:$0xff] %vm579, %v560
  %592 = vst.msk [vmem:[%s5 + $0x60] sm:$0xff] %vm579, %v565
  %593 = vst.msk [vmem:[%s5 + $0x68] sm:$0xff] %vm579, %v568
  %594 = vst.msk [vmem:[%s5 + $0x70] sm:$0xff] %vm579, %v573
  %595 = vst.msk [vmem:[%s5 + $0x78] sm:$0xff] %vm579, %v576
  // Predicated region
  $region26: #{transformer_stage_forward.6} parent=0 // pred_check
    _
  $region27: #{transformer_stage_forward.6} parent=0 // pred_check_branch
    %597 = sbr.rel (0) target = $region29
  $region28: #{transformer_stage_forward.6} parent=0 // pred_region
    _
  $region29: #{transformer_stage_forward.6} parent=0 // pred_fallthru
    _
  // Predicated region
  $region30: #{transformer_stage_forward.6} parent=0 // pred_check
    _
  $region31: #{transformer_stage_forward.6} parent=0 // pred_check_branch
    %599 = sbr.rel (0) target = $region33
  $region32: #{transformer_stage_forward.6} parent=0 // pred_region
    _
  $region33: #{transformer_stage_forward.6} parent=0 // pred_fallthru
    _

// kernel: transformer_stage_forward.7
$region0: #{transformer_stage_forward.7}
  #allocation0 [shape = 'u32[]', space=smem, size = 0x4, offset = 0x4, fixed_abs, tag = 'smem constant byte address 0x4 - core index']
  #allocation1 [shape = 'u32[144,128]{1,0:T(1,128)}', space=vmem, size = 0x12000, scoped, tag = 'internal scratch']
  #allocation2 [shape = 'f32[16,32]{1,0:T(8,128)}', space=vmem, size = 0x2000, scoped, tag = 'scratch operand']
  %s0 = inlined_call_operand.vmem [shape: f32[8,2,16,16], index: 0, kind: input, shape index: {}]
  %s1 = inlined_call_operand.vmem [shape: f32[8,2,16,16], index: 1, kind: input, shape index: {}]
  %s2 = inlined_call_operand.vmem [shape: f32[8,2,16,16], index: 2, kind: input, shape index: {}]
  %s3 = inlined_call_operand.vmem [shape: f32[8,2,16,8], index: 3, kind: input, shape index: {}]
  %s4 = inlined_call_operand.vmem [shape: f32[8,2,16,8], index: 4, kind: input, shape index: {}]
  %s5 = inlined_call_operand.vmem [shape: f32[8,16], index: 5, kind: input, shape index: {}]
  %s6 = inlined_call_operand.vmem [shape: f32[8,16], index: 6, kind: input, shape index: {}]
  %s7 = inlined_call_operand.vmem [shape: bf16[32,32], index: 7, kind: input, shape index: {}]
  %s8 = inlined_call_operand.vmem [shape: f32[1,32], index: 8, kind: input, shape index: {}]
  %s9 = inlined_call_operand.vmem [shape: f32[8,16,32], index: 9, kind: output, shape index: {}]
  %s10 = sld [smem:[#allocation0]]
  $region69: #{transformer_stage_forward.7} parent=0
    _
  %s12 = ssub.s32 1, %s10
  %s13 = scalar_select 0, %s12, %s10
  loop: start=0, step=1, limit=10
  $region2: #{transformer_stage_forward.7} parent=0 // loop_pre_header
    _
  $region3: #{transformer_stage_forward.7} parent=0 // loop_header
    %s15 = sphi 0, %s19
    %p16 = scmp.ge.s32.totalorder %s15, 10
    %s22 = sphi 0, %s34
    %s23 = sphi 0, %s30
    %s24 = sphi 0, %s22
    %s25 = sphi 0, %s23
    %s26 = sphi 0, %s24
    %s27 = sphi 0, %s25
    %s39 = sphi 0, %s41
    %s42 = sphi 0, %s39
    %s43 = sphi 0, %s42
    %s59 = sphi 0, %s43
    %s65 = sphi 0, %s67
    %s68 = sphi 0, %s65
    %s69 = sphi 0, %s68
    %s85 = sphi 0, %s69
    %s91 = sphi 0, %s93
    %s94 = sphi 0, %s91
    %s95 = sphi 0, %s94
    %s111 = sphi 0, %s95
    %s119 = sphi 0, %s121
    %s122 = sphi 0, %s119
    %s123 = sphi 0, %s122
    %s139 = sphi 0, %s123
    %s147 = sphi 0, %s149
    %s150 = sphi 0, %s147
    %s151 = sphi 0, %s150
    %s167 = sphi 0, %s151
    %s171 = sphi 0, %s171
    %s173 = sphi 0, %s171
    %s174 = sphi 0, %s173
    %s188 = sphi 0, %s174
    %s192 = sphi 0, %s192
    %s194 = sphi 0, %s192
    %s195 = sphi 0, %s194
    %s209 = sphi 0, %s195
    %s213 = sphi 0, %s213
    %s215 = sphi 0, %s213
    %s216 = sphi 0, %s215
    %s230 = sphi 0, %s216
    %s234 = sphi 0, %s234
    %s236 = sphi 0, %s234
    %s237 = sphi 0, %s236
    %s251 = sphi 0, %s237
    %s259 = sphi 0, %s261
    %s262 = sphi 0, %s259
    %s263 = sphi 0, %s262
    %s279 = sphi 0, %s263
  $region4: #{transformer_stage_forward.7} parent=0 // loop_header_branch
    %18 = sbr.rel (%p16) target = $region8
  $region5: #{transformer_stage_forward.7} parent=0 // loop_body
    %s20 = ssub.s32 %s15, 1
    %s21 = ssub.s32 %s15, 2
    %s28 = sadd.s32 1, %s23
    %p29 = scmp.ge.s32.totalorder %s28, 1
    %s30 = scalar_select %p29, 0, %s28
    %s31 = sadd.s32 1, %s22
    %s32 = scalar_select %p29, %s31, %s22
    %p33 = scmp.ge.s32.totalorder %s32, 8
    %s34 = scalar_select %p33, 0, %s32
    %s35 = ssub.s32 %s22, %s34
    %s36 = ssub.s32 %s23, %s30
    %s37 = sor.u32 %s35, %s36
    %p38 = scmp.eq.s32.totalorder %s37, 0
    %s40 = sadd.s32 %s39, 1
    %s41 = scalar_select %p38, %s39, %s40
    %p44 = pneg %p38
    %p45 = scmp.eq.s32.totalorder %s15, 7
    %p46 = por %p44, %p45
    %p47 = scmp.ne.s32.totalorder %s39, %s42
    %p48 = scmp.eq.s32.totalorder %s15, 0
    %p49 = por %p47, %p48
    %p50 = scmp.ne.s32.totalorder %s39, %s42
    %p51 = scmp.eq.s32.totalorder %s20, 7
    %p52 = por %p50, %p51
    %p53 = scmp.ne.s32.totalorder %s42, %s43
    %p54 = scmp.eq.s32.totalorder %s20, 0
    %p55 = por %p53, %p54
    %p56 = scmp.ne.s32.totalorder %s42, %s43
    %p57 = scmp.eq.s32.totalorder %s21, 7
    %p58 = por %p56, %p57
    %p60 = scmp.ne.s32.totalorder %s43, %s59
    %p61 = scmp.eq.s32.totalorder %s21, 0
    %p62 = por %p60, %p61
    %s63 = ssub.s32 %s22, %s34
    %p64 = scmp.eq.s32.totalorder %s63, 0
    %s66 = sadd.s32 %s65, 1
    %s67 = scalar_select %p64, %s65, %s66
    %p70 = pneg %p64
    %p71 = scmp.eq.s32.totalorder %s15, 7
    %p72 = por %p70, %p71
    %p73 = scmp.ne.s32.totalorder %s65, %s68
    %p74 = scmp.eq.s32.totalorder %s15, 0
    %p75 = por %p73, %p74
    %p76 = scmp.ne.s32.totalorder %s65, %s68
    %p77 = scmp.eq.s32.totalorder %s20, 7
    %p78 = por %p76, %p77
    %p79 = scmp.ne.s32.totalorder %s68, %s69
    %p80 = scmp.eq.s32.totalorder %s20, 0
    %p81 = por %p79, %p80
    %p82 = scmp.ne.s32.totalorder %s68, %s69
    %p83 = scmp.eq.s32.totalorder %s21, 7
    %p84 = por %p82, %p83
    %p86 = scmp.ne.s32.totalorder %s69, %s85
    %p87 = scmp.eq.s32.totalorder %s21, 0
    %p88 = por %p86, %p87
    %s89 = ssub.s32 %s22, %s34
    %p90 = scmp.eq.s32.totalorder %s89, 0
    %s92 = sadd.s32 %s91, 1
    %s93 = scalar_select %p90, %s91, %s92
    %p96 = pneg %p90
    %p97 = scmp.eq.s32.totalorder %s15, 7
    %p98 = por %p96, %p97
    %p99 = scmp.ne.s32.totalorder %s91, %s94
    %p100 = scmp.eq.s32.totalorder %s15, 0
    %p101 = por %p99, %p100
    %p102 = scmp.ne.s32.totalorder %s91, %s94
    %p103 = scmp.eq.s32.totalorder %s20, 7
    %p104 = por %p102, %p103
    %p105 = scmp.ne.s32.totalorder %s94, %s95
    %p106 = scmp.eq.s32.totalorder %s20, 0
    %p107 = por %p105, %p106
    %p108 = scmp.ne.s32.totalorder %s94, %s95
    %p109 = scmp.eq.s32.totalorder %s21, 7
    %p110 = por %p108, %p109
    %p112 = scmp.ne.s32.totalorder %s95, %s111
    %p113 = scmp.eq.s32.totalorder %s21, 0
    %p114 = por %p112, %p113
    %s115 = ssub.s32 %s22, %s34
    %s116 = ssub.s32 %s23, %s30
    %s117 = sor.u32 %s115, %s116
    %p118 = scmp.eq.s32.totalorder %s117, 0
    %s120 = sadd.s32 %s119, 1
    %s121 = scalar_select %p118, %s119, %s120
    %p124 = pneg %p118
    %p125 = scmp.eq.s32.totalorder %s15, 7
    %p126 = por %p124, %p125
    %p127 = scmp.ne.s32.totalorder %s119, %s122
    %p128 = scmp.eq.s32.totalorder %s15, 0
    %p129 = por %p127, %p128
    %p130 = scmp.ne.s32.totalorder %s119, %s122
    %p131 = scmp.eq.s32.totalorder %s20, 7
    %p132 = por %p130, %p131
    %p133 = scmp.ne.s32.totalorder %s122, %s123
    %p134 = scmp.eq.s32.totalorder %s20, 0
    %p135 = por %p133, %p134
    %p136 = scmp.ne.s32.totalorder %s122, %s123
    %p137 = scmp.eq.s32.totalorder %s21, 7
    %p138 = por %p136, %p137
    %p140 = scmp.ne.s32.totalorder %s123, %s139
    %p141 = scmp.eq.s32.totalorder %s21, 0
    %p142 = por %p140, %p141
    %s143 = ssub.s32 %s22, %s34
    %s144 = ssub.s32 %s23, %s30
    %s145 = sor.u32 %s143, %s144
    %p146 = scmp.eq.s32.totalorder %s145, 0
    %s148 = sadd.s32 %s147, 1
    %s149 = scalar_select %p146, %s147, %s148
    %p152 = pneg %p146
    %p153 = scmp.eq.s32.totalorder %s15, 7
    %p154 = por %p152, %p153
    %p155 = scmp.ne.s32.totalorder %s147, %s150
    %p156 = scmp.eq.s32.totalorder %s15, 0
    %p157 = por %p155, %p156
    %p158 = scmp.ne.s32.totalorder %s147, %s150
    %p159 = scmp.eq.s32.totalorder %s20, 7
    %p160 = por %p158, %p159
    %p161 = scmp.ne.s32.totalorder %s150, %s151
    %p162 = scmp.eq.s32.totalorder %s20, 0
    %p163 = por %p161, %p162
    %p164 = scmp.ne.s32.totalorder %s150, %s151
    %p165 = scmp.eq.s32.totalorder %s21, 7
    %p166 = por %p164, %p165
    %p168 = scmp.ne.s32.totalorder %s151, %s167
    %p169 = scmp.eq.s32.totalorder %s21, 0
    %p170 = por %p168, %p169
    %s172 = sadd.s32 %s171, 1
    %p175 = scmp.eq.s32.totalorder %s15, 7
    %p176 = scmp.ne.s32.totalorder %s171, %s173
    %p177 = scmp.eq.s32.totalorder %s15, 0
    %p178 = por %p176, %p177
    %p179 = scmp.ne.s32.totalorder %s171, %s173
    %p180 = scmp.eq.s32.totalorder %s20, 7
    %p181 = por %p179, %p180
    %p182 = scmp.ne.s32.totalorder %s173, %s174
    %p183 = scmp.eq.s32.totalorder %s20, 0
    %p184 = por %p182, %p183
    %p185 = scmp.ne.s32.totalorder %s173, %s174
    %p186 = scmp.eq.s32.totalorder %s21, 7
    %p187 = por %p185, %p186
    %p189 = scmp.ne.s32.totalorder %s174, %s188
    %p190 = scmp.eq.s32.totalorder %s21, 0
    %p191 = por %p189, %p190
    %s193 = sadd.s32 %s192, 1
    %p196 = scmp.eq.s32.totalorder %s15, 7
    %p197 = scmp.ne.s32.totalorder %s192, %s194
    %p198 = scmp.eq.s32.totalorder %s15, 0
    %p199 = por %p197, %p198
    %p200 = scmp.ne.s32.totalorder %s192, %s194
    %p201 = scmp.eq.s32.totalorder %s20, 7
    %p202 = por %p200, %p201
    %p203 = scmp.ne.s32.totalorder %s194, %s195
    %p204 = scmp.eq.s32.totalorder %s20, 0
    %p205 = por %p203, %p204
    %p206 = scmp.ne.s32.totalorder %s194, %s195
    %p207 = scmp.eq.s32.totalorder %s21, 7
    %p208 = por %p206, %p207
    %p210 = scmp.ne.s32.totalorder %s195, %s209
    %p211 = scmp.eq.s32.totalorder %s21, 0
    %p212 = por %p210, %p211
    %s214 = sadd.s32 %s213, 1
    %p217 = scmp.eq.s32.totalorder %s15, 7
    %p218 = scmp.ne.s32.totalorder %s213, %s215
    %p219 = scmp.eq.s32.totalorder %s15, 0
    %p220 = por %p218, %p219
    %p221 = scmp.ne.s32.totalorder %s213, %s215
    %p222 = scmp.eq.s32.totalorder %s20, 7
    %p223 = por %p221, %p222
    %p224 = scmp.ne.s32.totalorder %s215, %s216
    %p225 = scmp.eq.s32.totalorder %s20, 0
    %p226 = por %p224, %p225
    %p227 = scmp.ne.s32.totalorder %s215, %s216
    %p228 = scmp.eq.s32.totalorder %s21, 7
    %p229 = por %p227, %p228
    %p231 = scmp.ne.s32.totalorder %s216, %s230
    %p232 = scmp.eq.s32.totalorder %s21, 0
    %p233 = por %p231, %p232
    %s235 = sadd.s32 %s234, 1
    %p238 = scmp.eq.s32.totalorder %s15, 7
    %p239 = scmp.ne.s32.totalorder %s234, %s236
    %p240 = scmp.eq.s32.totalorder %s15, 0
    %p241 = por %p239, %p240
    %p242 = scmp.ne.s32.totalorder %s234, %s236
    %p243 = scmp.eq.s32.totalorder %s20, 7
    %p244 = por %p242, %p243
    %p245 = scmp.ne.s32.totalorder %s236, %s237
    %p246 = scmp.eq.s32.totalorder %s20, 0
    %p247 = por %p245, %p246
    %p248 = scmp.ne.s32.totalorder %s236, %s237
    %p249 = scmp.eq.s32.totalorder %s21, 7
    %p250 = por %p248, %p249
    %p252 = scmp.ne.s32.totalorder %s237, %s251
    %p253 = scmp.eq.s32.totalorder %s21, 0
    %p254 = por %p252, %p253
    %s255 = ssub.s32 %s22, %s34
    %s256 = ssub.s32 %s23, %s30
    %s257 = sor.u32 %s255, %s256
    %p258 = scmp.eq.s32.totalorder %s257, 0
    %s260 = sadd.s32 %s259, 1
    %s261 = scalar_select %p258, %s259, %s260
    %p264 = pneg %p258
    %p265 = scmp.eq.s32.totalorder %s15, 7
    %p266 = por %p264, %p265
    %p267 = scmp.ne.s32.totalorder %s259, %s262
    %p268 = scmp.eq.s32.totalorder %s15, 0
    %p269 = por %p267, %p268
    %p270 = scmp.ne.s32.totalorder %s259, %s262
    %p271 = scmp.eq.s32.totalorder %s20, 7
    %p272 = por %p270, %p271
    %p273 = scmp.ne.s32.totalorder %s262, %s263
    %p274 = scmp.eq.s32.totalorder %s20, 0
    %p275 = por %p273, %p274
    %p276 = scmp.ne.s32.totalorder %s262, %s263
    %p277 = scmp.eq.s32.totalorder %s21, 7
    %p278 = por %p276, %p277
    %p280 = scmp.ne.s32.totalorder %s263, %s279
    %p281 = scmp.eq.s32.totalorder %s21, 0
    %p282 = por %p280, %p281
    %p283 = scmp.le.s32.totalorder 1, %s15
    %p284 = scmp.lt.s32.totalorder %s15, 9
    %p285 = pnand %p283, %p284
    %p286 = pneg %p285
    // Predicated region
    $region9: #{transformer_stage_forward.7} parent=5 // pred_check
      _
    $region10: #{transformer_stage_forward.7} parent=5 // pred_check_branch
      %288 = sbr.rel (%p285) target = $region12
    $region11: #{transformer_stage_forward.7} parent=5 // pred_region
      %s289 = ssub.s32 %s15, 1
      // Predicated region
      $region13: #{transformer_stage_forward.7} parent=11 // pred_check
        %p290 = pneg %p184
      $region14: #{transformer_stage_forward.7} parent=11 // pred_check_branch
        %292 = sbr.rel (%p290) target = $region16
      $region15: #{transformer_stage_forward.7} parent=11 // pred_region
        _
      $region16: #{transformer_stage_forward.7} parent=11 // pred_fallthru
        _
      // Predicated region
      $region17: #{transformer_stage_forward.7} parent=11 // pred_check
        %p293 = pneg %p205
      $region18: #{transformer_stage_forward.7} parent=11 // pred_check_branch
        %295 = sbr.rel (%p293) target = $region20
      $region19: #{transformer_stage_forward.7} parent=11 // pred_region
        _
      $region20: #{transformer_stage_forward.7} parent=11 // pred_fallthru
        _
      // Predicated region
      $region21: #{transformer_stage_forward.7} parent=11 // pred_check
        %p296 = pneg %p226
      $region22: #{transformer_stage_forward.7} parent=11 // pred_check_branch
        %298 = sbr.rel (%p296) target = $region24
      $region23: #{transformer_stage_forward.7} parent=11 // pred_region
        _
      $region24: #{transformer_stage_forward.7} parent=11 // pred_fallthru
        _
      // Predicated region
      $region25: #{transformer_stage_forward.7} parent=11 // pred_check
        %p299 = pneg %p247
      $region26: #{transformer_stage_forward.7} parent=11 // pred_check_branch
        %301 = sbr.rel (%p299) target = $region28
      $region27: #{transformer_stage_forward.7} parent=11 // pred_region
        _
      $region28: #{transformer_stage_forward.7} parent=11 // pred_fallthru
        _
    $region12: #{transformer_stage_forward.7} parent=5 // pred_fallthru
      _
    %p302 = scmp.lt.s32.totalorder %s15, 8
    // Predicated region
    $region29: #{transformer_stage_forward.7} parent=5 // pred_check
      %p303 = pneg %p302
    $region30: #{transformer_stage_forward.7} parent=5 // pred_check_branch
      %305 = sbr.rel (%p303) target = $region32
    $region31: #{transformer_stage_forward.7} parent=5 // pred_region
      // Predicated region
      $region33: #{transformer_stage_forward.7} parent=31 // pred_check
        %p306 = pneg %p49
      $region34: #{transformer_stage_forward.7} parent=31 // pred_check_branch
        %308 = sbr.rel (%p306) target = $region36
      $region35: #{transformer_stage_forward.7} parent=31 // pred_region
        %s309 = smul.u32 2, %s23
        %p310 = scmp.lt.s32.totalorder %s22, 7
        %s311 = scalar_select %p310, %s22, 7
        %p312 = scmp.lt.s32.totalorder %s309, 1
        %s313 = scalar_select %p312, %s309, 1
        %s314 = smul.addr %s311, 4
        %s315 = sadd.s32 %s313, %s314
        %s316 = smul.addr %s315, 8
        %s317 = scalar_lea.vmem %s0, %s316
        %s318 = smul.u32 2, %s23
      $region36: #{transformer_stage_forward.7} parent=31 // pred_fallthru
        _
      // Predicated region
      $region37: #{transformer_stage_forward.7} parent=31 // pred_check
        %p319 = pneg %p75
      $region38: #{transformer_stage_forward.7} parent=31 // pred_check_branch
        %321 = sbr.rel (%p319) target = $region40
      $region39: #{transformer_stage_forward.7} parent=31 // pred_region
        %p322 = scmp.lt.s32.totalorder %s22, 7
        %s323 = scalar_select %p322, %s22, 7
        %s324 = smul.addr %s323, 4
        %s325 = smul.addr %s324, 8
        %s326 = scalar_lea.vmem %s1, %s325
      $region40: #{transformer_stage_forward.7} parent=31 // pred_fallthru
        _
      // Predicated region
      $region41: #{transformer_stage_forward.7} parent=31 // pred_check
        %p327 = pneg %p101
      $region42: #{transformer_stage_forward.7} parent=31 // pred_check_branch
        %329 = sbr.rel (%p327) target = $region44
      $region43: #{transformer_stage_forward.7} parent=31 // pred_region
        %p330 = scmp.lt.s32.totalorder %s22, 7
        %s331 = scalar_select %p330, %s22, 7
        %s332 = smul.addr %s331, 4
        %s333 = smul.addr %s332, 8
        %s334 = scalar_lea.vmem %s2, %s333
      $region44: #{transformer_stage_forward.7} parent=31 // pred_fallthru
        _
      // Predicated region
      $region45: #{transformer_stage_forward.7} parent=31 // pred_check
        %p335 = pneg %p129
      $region46: #{transformer_stage_forward.7} parent=31 // pred_check_branch
        %337 = sbr.rel (%p335) target = $region48
      $region47: #{transformer_stage_forward.7} parent=31 // pred_region
        %s338 = smul.u32 2, %s23
        %p339 = scmp.lt.s32.totalorder %s22, 7
        %s340 = scalar_select %p339, %s22, 7
        %p341 = scmp.lt.s32.totalorder %s338, 1
        %s342 = scalar_select %p341, %s338, 1
        %s343 = smul.addr %s340, 4
        %s344 = sadd.s32 %s342, %s343
        %s345 = smul.addr %s344, 8
        %s346 = scalar_lea.vmem %s3, %s345
        %s347 = smul.u32 2, %s23
      $region48: #{transformer_stage_forward.7} parent=31 // pred_fallthru
        _
      // Predicated region
      $region49: #{transformer_stage_forward.7} parent=31 // pred_check
        %p348 = pneg %p157
      $region50: #{transformer_stage_forward.7} parent=31 // pred_check_branch
        %350 = sbr.rel (%p348) target = $region52
      $region51: #{transformer_stage_forward.7} parent=31 // pred_region
        %s351 = smul.u32 2, %s23
        %p352 = scmp.lt.s32.totalorder %s22, 7
        %s353 = scalar_select %p352, %s22, 7
        %p354 = scmp.lt.s32.totalorder %s351, 1
        %s355 = scalar_select %p354, %s351, 1
        %s356 = smul.addr %s353, 4
        %s357 = sadd.s32 %s355, %s356
        %s358 = smul.addr %s357, 8
        %s359 = scalar_lea.vmem %s4, %s358
        %s360 = smul.u32 2, %s23
      $region52: #{transformer_stage_forward.7} parent=31 // pred_fallthru
        _
    $region32: #{transformer_stage_forward.7} parent=5 // pred_fallthru
      _
    %p361 = scmp.le.s32.totalorder 1, %s15
    %p362 = scmp.lt.s32.totalorder %s15, 9
    %p363 = pnand %p361, %p362
    %p364 = pneg %p363
    // Predicated region
    $region53: #{transformer_stage_forward.7} parent=5 // pred_check
      _
    $region54: #{transformer_stage_forward.7} parent=5 // pred_check_branch
      %366 = sbr.rel (%p363) target = $region56
    $region55: #{transformer_stage_forward.7} parent=5 // pred_region
      %s367 = ssub.s32 %s15, 1
      %s368 = smul.u32 2, %s25
      %p369 = scmp.lt.s32.totalorder %s24, 7
      %s370 = scalar_select %p369, %s24, 7
      %p371 = scmp.lt.s32.totalorder %s368, 1
      %s372 = scalar_select %p371, %s368, 1
      %s373 = smul.addr %s370, 4
      %s374 = sadd.s32 %s372, %s373
      %s375 = smul.addr %s374, 8
      %s376 = scalar_lea.vmem %s0, %s375
      %p377 = pneg %p55
      %p378 = pneg %p52
      %p379 = scmp.lt.s32.totalorder %s24, 7
      %s380 = scalar_select %p379, %s24, 7
      %s381 = smul.addr %s380, 4
      %s382 = smul.addr %s381, 8
      %s383 = scalar_lea.vmem %s1, %s382
      %p384 = pneg %p81
      %p385 = pneg %p78
      %p386 = scmp.lt.s32.totalorder %s24, 7
      %s387 = scalar_select %p386, %s24, 7
      %s388 = smul.addr %s387, 4
      %s389 = smul.addr %s388, 8
      %s390 = scalar_lea.vmem %s2, %s389
      %p391 = pneg %p107
      %p392 = pneg %p104
      %s393 = smul.u32 2, %s25
      %p394 = scmp.lt.s32.totalorder %s24, 7
      %s395 = scalar_select %p394, %s24, 7
      %p396 = scmp.lt.s32.totalorder %s393, 1
      %s397 = scalar_select %p396, %s393, 1
      %s398 = smul.addr %s395, 4
      %s399 = sadd.s32 %s397, %s398
      %s400 = smul.addr %s399, 8
      %s401 = scalar_lea.vmem %s3, %s400
      %p402 = pneg %p135
      %p403 = pneg %p132
      %s404 = smul.u32 2, %s25
      %p405 = scmp.lt.s32.totalorder %s24, 7
      %s406 = scalar_select %p405, %s24, 7
      %p407 = scmp.lt.s32.totalorder %s404, 1
      %s408 = scalar_select %p407, %s404, 1
      %s409 = smul.addr %s406, 4
      %s410 = sadd.s32 %s408, %s409
      %s411 = smul.addr %s410, 8
      %s412 = scalar_lea.vmem %s4, %s411
      %p413 = pneg %p163
      %p414 = pneg %p160
      %p415 = pneg %p184
      %p416 = pneg %p181
      %p417 = pneg %p205
      %p418 = pneg %p202
      %p419 = pneg %p226
      %p420 = pneg %p223
      %p421 = pneg %p247
      %p422 = pneg %p244
      %p423 = pneg %p275
      %p424 = pneg %p272
      %s425 = smul.u32 2, %s25
      %p426 = scmp.lt.s32.totalorder %s24, 7
      %s427 = scalar_select %p426, %s24, 7
      %p428 = scmp.lt.s32.totalorder %s425, 1
      %s429 = scalar_select %p428, %s425, 1
      %s430 = smul.addr %s427, 2
      %s431 = sadd.s32 %s429, %s430
      %s432 = smul.addr %s431, 8
      %s433 = scalar_lea.vmem %s9, %s432
      %s434 = smul.u32 2, %s25
      %p435 = scmp.lt.s32.totalorder %s24, 7
      %s436 = scalar_select %p435, %s24, 7
      %p437 = scmp.lt.s32.totalorder %s434, 1
      %s438 = scalar_select %p437, %s434, 1
      %s439 = smul.addr %s436, 4
      %s440 = sadd.s32 %s438, %s439
      %s441 = smul.addr %s440, 8
      %s442 = scalar_lea.vmem %s0, %s441
      %s443 = smul.u32 2, %s25
      %p444 = scmp.lt.s32.totalorder %s24, 7
      %s445 = scalar_select %p444, %s24, 7
      %s446 = smul.addr %s445, 4
      %s447 = smul.addr %s446, 8
      %s448 = scalar_lea.vmem %s1, %s447
      %p449 = scmp.lt.s32.totalorder %s24, 7
      %s450 = scalar_select %p449, %s24, 7
      %s451 = smul.addr %s450, 4
      %s452 = smul.addr %s451, 8
      %s453 = scalar_lea.vmem %s2, %s452
      %s454 = smul.u32 2, %s25
      %p455 = scmp.lt.s32.totalorder %s24, 7
      %s456 = scalar_select %p455, %s24, 7
      %p457 = scmp.lt.s32.totalorder %s454, 1
      %s458 = scalar_select %p457, %s454, 1
      %s459 = smul.addr %s456, 4
      %s460 = sadd.s32 %s458, %s459
      %s461 = smul.addr %s460, 8
      %s462 = scalar_lea.vmem %s3, %s461
      %s463 = smul.u32 2, %s25
      %s464 = smul.u32 2, %s25
      %p465 = scmp.lt.s32.totalorder %s24, 7
      %s466 = scalar_select %p465, %s24, 7
      %p467 = scmp.lt.s32.totalorder %s464, 1
      %s468 = scalar_select %p467, %s464, 1
      %s469 = smul.addr %s466, 4
      %s470 = sadd.s32 %s468, %s469
      %s471 = smul.addr %s470, 8
      %s472 = scalar_lea.vmem %s4, %s471
      %s473 = smul.u32 2, %s25
      %s474 = smul.u32 2, %s25
      %p475 = scmp.lt.s32.totalorder %s24, 7
      %s476 = scalar_select %p475, %s24, 7
      %p477 = scmp.lt.s32.totalorder %s474, 1
      %s478 = scalar_select %p477, %s474, 1
      %s479 = smul.addr %s476, 2
      %s480 = sadd.s32 %s478, %s479
      %s481 = smul.addr %s480, 8
      %s482 = scalar_lea.vmem %s9, %s481
      %s483 = smul.u32 2, %s25
      %v485 = vld [vmem:[%s5] sm:$0xff]
      %v486 = vld [vmem:[%s6] sm:$0xff]
      %v487 = vld [vmem:[%s442] sm:$0xff]
      %v488 = vld [vmem:[%s442 + $0x8] sm:$0xff]
      %v489 = vld [vmem:[%s448] sm:$0xff]
      %v490 = vld [vmem:[%s448 + $0x8] sm:$0xff]
      %v491 = vld [vmem:[%s453] sm:$0xff]
      %v492 = vld [vmem:[%s453 + $0x8] sm:$0xff]
      %v493 = vld [vmem:[%s462] sm:$0xff]
      %v494 = vld [vmem:[%s462 + $0x8] sm:$0xff]
      %vm495 = vcmask 64512
      %v497 = vsel %vm495, %v493, 0
      %v500 = vsel %vm495, %v494, 0
      %502 = vmatprep.subr.mxu0 0.0
      %503 = vmatpush1.msra.mxu0 0.0
      %504 = vmatprep.subr.mxu0 0.0
      %505 = vmatpush1.msra.mxu0 0.0
      %506 = vmatprep.subr.mxu0 0.0
      %507 = vmatpush1.msra.mxu0 0.0
      %508 = vmatprep.subr.mxu0 0.0
      %509 = vmatpush1.msra.mxu0 0.0
      %510 = vmatprep.subr.mxu0 0.0
      %511 = vmatpush1.msra.mxu0 0.0
      %512 = vmatprep.subr.mxu0 0.0
      %513 = vmatpush1.msra.mxu0 0.0
      %514 = vmatprep.subr.mxu0 0.0
      %515 = vmatpush1.msra.mxu0 0.0
      %516 = vmatprep.subr.mxu0 0.0
      %517 = vmatpush1.msra.mxu0 0.0
      %518 = vmatprep.subr.mxu0 0.0
      %519 = vmatpush1.msra.mxu0 0.0
      %520 = vmatprep.subr.mxu0 0.0
      %521 = vmatpush1.msra.mxu0 0.0
      %522 = vmatprep.subr.mxu0 0.0
      %523 = vmatpush1.msra.mxu0 0.0
      %524 = vmatprep.subr.mxu0 0.0
      %525 = vmatpush1.msra.mxu0 0.0
      %526 = vmatprep.subr.mxu0 0.0
      %527 = vmatpush1.msra.mxu0 0.0
      %528 = vmatprep.subr.mxu0 0.0
      %529 = vmatpush1.msra.mxu0 0.0
      %530 = vmatprep.subr.mxu0 0.0
      %531 = vmatpush1.msra.mxu0 0.0
      %532 = vmatprep.subr.mxu0 0.0
      %533 = vmatpush1.msra.mxu0 %v485
      %534 = vmatprep.subr.mxu0 0.0
      %535 = vmatpush2.msra.mxu0 0.0
      %536 = vmatprep.subr.mxu0 0.0
      %537 = vmatpush2.msra.mxu0 0.0
      %538 = vmatprep.subr.mxu0 0.0
      %539 = vmatpush2.msra.mxu0 0.0
      %540 = vmatprep.subr.mxu0 0.0
      %541 = vmatpush2.msra.mxu0 0.0
      %542 = vmatprep.subr.mxu0 0.0
      %543 = vmatpush2.msra.mxu0 0.0
      %544 = vmatprep.subr.mxu0 0.0
      %545 = vmatpush2.msra.mxu0 0.0
      %546 = vmatprep.subr.mxu0 0.0
      %547 = vmatpush2.msra.mxu0 0.0
      %548 = vmatprep.subr.mxu0 0.0
      %549 = vmatpush2.msra.mxu0 0.0
      %550 = vmatprep.subr.mxu0 0.0
      %551 = vmatpush2.msra.mxu0 0.0
      %552 = vmatprep.subr.mxu0 0.0
      %553 = vmatpush2.msra.mxu0 0.0
      %554 = vmatprep.subr.mxu0 0.0
      %555 = vmatpush2.msra.mxu0 0.0
      %556 = vmatprep.subr.mxu0 0.0
      %557 = vmatpush2.msra.mxu0 0.0
      %558 = vmatprep.subr.mxu0 0.0
      %559 = vmatpush2.msra.mxu0 0.0
      %560 = vmatprep.subr.mxu0 0.0
      %561 = vmatpush2.msra.mxu0 0.0
      %562 = vmatprep.subr.mxu0 0.0
      %563 = vmatpush2.msra.mxu0 0.0
      %564 = vmatprep.subr.mxu0 0.0
      %565 = vmatpush2.msra.mxu0 0.0
      %566 = vmatprep.mubr.f32.mxu0 0.0
      %567 = vmatmul.mubr.f32.gmra.mxu0 %v497
      %v568 = vpop.f32.mrf.mxu0
      %v569 = vadd.f32 0.0, %v568
      %v570 = vpop.f32.mrf.mxu0
      %571 = vmatprep.mubr.f32.mxu0 0.0
      %572 = vmatmul.mubr.f32.gmra.mxu0 %v500
      %v573 = vpop.f32.mrf.mxu0
      %v574 = vadd.f32 0.0, %v573
      %v575 = vpop.f32.mrf.mxu0
      %576 = vdwg.mxu0
      %vm577 = vcmask 130048
      %v579 = vsel %vm577, %v487, 0
      %v582 = vsel %vm577, %v488, 0
      %v585 = vsel %vm577, %v489, 0
      %v588 = vsel %vm577, %v490, 0
      %590 = vmatprep.subr.mxu0 0.0
      %591 = vmatpush1.xpose.msra.mxu0 0.0
      %592 = vmatprep.subr.mxu0 0.0
      %593 = vmatpush1.xpose.msra.mxu0 0.0
      %594 = vmatprep.subr.mxu0 0.0
      %595 = vmatpush1.xpose.msra.mxu0 0.0
      %596 = vmatprep.subr.mxu0 0.0
      %597 = vmatpush1.xpose.msra.mxu0 0.0
      %598 = vmatprep.subr.mxu0 0.0
      %599 = vmatpush1.xpose.msra.mxu0 0.0
      %600 = vmatprep.subr.mxu0 0.0
      %601 = vmatpush1.xpose.msra.mxu0 0.0
      %602 = vmatprep.subr.mxu0 0.0
      %603 = vmatpush1.xpose.msra.mxu0 0.0
      %604 = vmatprep.subr.mxu0 0.0
      %605 = vmatpush1.xpose.msra.mxu0 0.0
      %606 = vmatprep.subr.mxu0 0.0
      %607 = vmatpush1.xpose.msra.mxu0 0.0
      %608 = vmatprep.subr.mxu0 0.0
      %609 = vmatpush1.xpose.msra.mxu0 0.0
      %610 = vmatprep.subr.mxu0 0.0
      %611 = vmatpush1.xpose.msra.mxu0 0.0
      %612 = vmatprep.subr.mxu0 0.0
      %613 = vmatpush1.xpose.msra.mxu0 0.0
      %614 = vmatprep.subr.mxu0 0.0
      %615 = vmatpush1.xpose.msra.mxu0 0.0
      %616 = vmatprep.subr.mxu0 0.0
      %617 = vmatpush1.xpose.msra.mxu0 0.0
      %618 = vmatprep.subr.mxu0 0.0
      %619 = vmatpush1.xpose.msra.mxu0 %v588
      %620 = vmatprep.subr.mxu0 0.0
      %621 = vmatpush1.xpose.msra.mxu0 %v585
      %622 = vmatprep.subr.mxu0 0.0
      %623 = vmatpush2.xpose.msra.mxu0 0.0
      %624 = vmatprep.subr.mxu0 0.0
      %625 = vmatpush2.xpose.msra.mxu0 0.0
      %626 = vmatprep.subr.mxu0 0.0
      %627 = vmatpush2.xpose.msra.mxu0 0.0
      %628 = vmatprep.subr.mxu0 0.0
      %629 = vmatpush2.xpose.msra.mxu0 0.0
      %630 = vmatprep.subr.mxu0 0.0
      %631 = vmatpush2.xpose.msra.mxu0 0.0
      %632 = vmatprep.subr.mxu0 0.0
      %633 = vmatpush2.xpose.msra.mxu0 0.0
      %634 = vmatprep.subr.mxu0 0.0
      %635 = vmatpush2.xpose.msra.mxu0 0.0
      %636 = vmatprep.subr.mxu0 0.0
      %637 = vmatpush2.xpose.msra.mxu0 0.0
      %638 = vmatprep.subr.mxu0 0.0
      %639 = vmatpush2.xpose.msra.mxu0 0.0
      %640 = vmatprep.subr.mxu0 0.0
      %641 = vmatpush2.xpose.msra.mxu0 0.0
      %642 = vmatprep.subr.mxu0 0.0
      %643 = vmatpush2.xpose.msra.mxu0 0.0
      %644 = vmatprep.subr.mxu0 0.0
      %645 = vmatpush2.xpose.msra.mxu0 0.0
      %646 = vmatprep.subr.mxu0 0.0
      %647 = vmatpush2.xpose.msra.mxu0 0.0
      %648 = vmatprep.subr.mxu0 0.0
      %649 = vmatpush2.xpose.msra.mxu0 0.0
      %650 = vmatprep.subr.mxu0 0.0
      %651 = vmatpush2.xpose.msra.mxu0 0.0
      %652 = vmatprep.subr.mxu0 0.0
      %653 = vmatpush2.xpose.msra.mxu0 0.0
      %654 = vmatprep.mubr.f32.mxu0 0.0
      %655 = vmatmul.mubr.f32.gmra.mxu0 %v579
      %v656 = vpop.f32.mrf.mxu0
      %v657 = vadd.f32 %v569, %v656
      %v658 = vpop.f32.mrf.mxu0
      %659 = vmatprep.mubr.f32.mxu0 0.0
      %660 = vmatmul.mubr.f32.gmra.mxu0 %v582
      %v661 = vpop.f32.mrf.mxu0
      %v662 = vadd.f32 %v574, %v661
      %v663 = vpop.f32.mrf.mxu0
      %664 = vdwg.mxu0
      %v665 = vld [vmem:[%s472] sm:$0xff]
      %v666 = vld [vmem:[%s472 + $0x8] sm:$0xff]
      %v668 = vsel %vm495, %v665, 0
      %v671 = vsel %vm495, %v666, 0
      %673 = vmatprep.subr.mxu0 0.0
      %674 = vmatpush1.msra.mxu0 0.0
      %675 = vmatprep.subr.mxu0 0.0
      %676 = vmatpush1.msra.mxu0 0.0
      %677 = vmatprep.subr.mxu0 0.0
      %678 = vmatpush1.msra.mxu0 0.0
      %679 = vmatprep.subr.mxu0 0.0
      %680 = vmatpush1.msra.mxu0 0.0
      %681 = vmatprep.subr.mxu0 0.0
      %682 = vmatpush1.msra.mxu0 0.0
      %683 = vmatprep.subr.mxu0 0.0
      %684 = vmatpush1.msra.mxu0 0.0
      %685 = vmatprep.subr.mxu0 0.0
      %686 = vmatpush1.msra.mxu0 0.0
      %687 = vmatprep.subr.mxu0 0.0
      %688 = vmatpush1.msra.mxu0 0.0
      %689 = vmatprep.subr.mxu0 0.0
      %690 = vmatpush1.msra.mxu0 0.0
      %691 = vmatprep.subr.mxu0 0.0
      %692 = vmatpush1.msra.mxu0 0.0
      %693 = vmatprep.subr.mxu0 0.0
      %694 = vmatpush1.msra.mxu0 0.0
      %695 = vmatprep.subr.mxu0 0.0
      %696 = vmatpush1.msra.mxu0 0.0
      %697 = vmatprep.subr.mxu0 0.0
      %698 = vmatpush1.msra.mxu0 0.0
      %699 = vmatprep.subr.mxu0 0.0
      %700 = vmatpush1.msra.mxu0 0.0
      %701 = vmatprep.subr.mxu0 0.0
      %702 = vmatpush1.msra.mxu0 0.0
      %703 = vmatprep.subr.mxu0 0.0
      %704 = vmatpush1.msra.mxu0 %v486
      %705 = vmatprep.subr.mxu0 0.0
      %706 = vmatpush2.msra.mxu0 0.0
      %707 = vmatprep.subr.mxu0 0.0
      %708 = vmatpush2.msra.mxu0 0.0
      %709 = vmatprep.subr.mxu0 0.0
      %710 = vmatpush2.msra.mxu0 0.0
      %711 = vmatprep.subr.mxu0 0.0
      %712 = vmatpush2.msra.mxu0 0.0
      %713 = vmatprep.subr.mxu0 0.0
      %714 = vmatpush2.msra.mxu0 0.0
      %715 = vmatprep.subr.mxu0 0.0
      %716 = vmatpush2.msra.mxu0 0.0
      %717 = vmatprep.subr.mxu0 0.0
      %718 = vmatpush2.msra.mxu0 0.0
      %719 = vmatprep.subr.mxu0 0.0
      %720 = vmatpush2.msra.mxu0 0.0
      %721 = vmatprep.subr.mxu0 0.0
      %722 = vmatpush2.msra.mxu0 0.0
      %723 = vmatprep.subr.mxu0 0.0
      %724 = vmatpush2.msra.mxu0 0.0
      %725 = vmatprep.subr.mxu0 0.0
      %726 = vmatpush2.msra.mxu0 0.0
      %727 = vmatprep.subr.mxu0 0.0
      %728 = vmatpush2.msra.mxu0 0.0
      %729 = vmatprep.subr.mxu0 0.0
      %730 = vmatpush2.msra.mxu0 0.0
      %731 = vmatprep.subr.mxu0 0.0
      %732 = vmatpush2.msra.mxu0 0.0
      %733 = vmatprep.subr.mxu0 0.0
      %734 = vmatpush2.msra.mxu0 0.0
      %735 = vmatprep.subr.mxu0 0.0
      %736 = vmatpush2.msra.mxu0 0.0
      %737 = vmatprep.mubr.f32.mxu0 0.0
      %738 = vmatmul.mubr.f32.gmra.mxu0 %v668
      %v739 = vpop.f32.mrf.mxu0
      %v740 = vadd.f32 0.0, %v739
      %v741 = vpop.f32.mrf.mxu0
      %742 = vmatprep.mubr.f32.mxu0 0.0
      %743 = vmatmul.mubr.f32.gmra.mxu0 %v671
      %v744 = vpop.f32.mrf.mxu0
      %v745 = vadd.f32 0.0, %v744
      %v746 = vpop.f32.mrf.mxu0
      %747 = vdwg.mxu0
      %v748 = vadd.f32 %v657, %v740
      %v749 = vadd.f32 %v662, %v745
      %v750 = vsel %vm577, %v748, -inf
      %751 = vmax.xlane.f32.xlu0 %v750
      %v752 = vpop.xlane.xlu0 %751
      %v753 = vsel %vm577, %v749, -inf
      %754 = vmax.xlane.f32.xlu0 %v753
      %v755 = vpop.xlane.xlu0 %754
      %v756 = vsub.f32 %v748, %v752
      %v757 = vsub.f32 %v749, %v755
      %v758 = vmul.f32 %v756, 1.442695
      %v759 = vpow.pop %v758
      %v760 = vmul.f32 %v757, 1.442695
      %v761 = vpow.pop %v760
      %v762 = vsel %vm577, %v759, 0.0
      %763 = vadd.xlane.f32.xlu0 %v762
      %v764 = vpop.xlane.xlu0 %763
      %v765 = vsel %vm577, %v761, 0.0
      %766 = vadd.xlane.f32.xlu0 %v765
      %v767 = vpop.xlane.xlu0 %766
      %v769 = vsel %vm577, %v759, 0
      %v772 = vsel %vm577, %v761, 0
      %774 = vmatprep.subr.mxu0 0.0
      %775 = vmatpush1.msra.mxu0 0.0
      %776 = vmatprep.subr.mxu0 0.0
      %777 = vmatpush1.msra.mxu0 0.0
      %778 = vmatprep.subr.mxu0 0.0
      %779 = vmatpush1.msra.mxu0 0.0
      %780 = vmatprep.subr.mxu0 0.0
      %781 = vmatpush1.msra.mxu0 0.0
      %782 = vmatprep.subr.mxu0 0.0
      %783 = vmatpush1.msra.mxu0 0.0
      %784 = vmatprep.subr.mxu0 0.0
      %785 = vmatpush1.msra.mxu0 0.0
      %786 = vmatprep.subr.mxu0 0.0
      %787 = vmatpush1.msra.mxu0 0.0
      %788 = vmatprep.subr.mxu0 0.0
      %789 = vmatpush1.msra.mxu0 0.0
      %790 = vmatprep.subr.mxu0 0.0
      %791 = vmatpush1.msra.mxu0 0.0
      %792 = vmatprep.subr.mxu0 0.0
      %793 = vmatpush1.msra.mxu0 0.0
      %794 = vmatprep.subr.mxu0 0.0
      %795 = vmatpush1.msra.mxu0 0.0
      %796 = vmatprep.subr.mxu0 0.0
      %797 = vmatpush1.msra.mxu0 0.0
      %798 = vmatprep.subr.mxu0 0.0
      %799 = vmatpush1.msra.mxu0 0.0
      %800 = vmatprep.subr.mxu0 0.0
      %801 = vmatpush1.msra.mxu0 0.0
      %802 = vmatprep.subr.mxu0 0.0
      %803 = vmatpush1.msra.mxu0 %v492
      %804 = vmatprep.subr.mxu0 0.0
      %805 = vmatpush1.msra.mxu0 %v491
      %806 = vmatprep.subr.mxu0 0.0
      %807 = vmatpush2.msra.mxu0 0.0
      %808 = vmatprep.subr.mxu0 0.0
      %809 = vmatpush2.msra.mxu0 0.0
      %810 = vmatprep.subr.mxu0 0.0
      %811 = vmatpush2.msra.mxu0 0.0
      %812 = vmatprep.subr.mxu0 0.0
      %813 = vmatpush2.msra.mxu0 0.0
      %814 = vmatprep.subr.mxu0 0.0
      %815 = vmatpush2.msra.mxu0 0.0
      %816 = vmatprep.subr.mxu0 0.0
      %817 = vmatpush2.msra.mxu0 0.0
      %818 = vmatprep.subr.mxu0 0.0
      %819 = vmatpush2.msra.mxu0 0.0
      %820 = vmatprep.subr.mxu0 0.0
      %821 = vmatpush2.msra.mxu0 0.0
      %822 = vmatprep.subr.mxu0 0.0
      %823 = vmatpush2.msra.mxu0 0.0
      %824 = vmatprep.subr.mxu0 0.0
      %825 = vmatpush2.msra.mxu0 0.0
      %826 = vmatprep.subr.mxu0 0.0
      %827 = vmatpush2.msra.mxu0 0.0
      %828 = vmatprep.subr.mxu0 0.0
      %829 = vmatpush2.msra.mxu0 0.0
      %830 = vmatprep.subr.mxu0 0.0
      %831 = vmatpush2.msra.mxu0 0.0
      %832 = vmatprep.subr.mxu0 0.0
      %833 = vmatpush2.msra.mxu0 0.0
      %834 = vmatprep.subr.mxu0 0.0
      %835 = vmatpush2.msra.mxu0 0.0
      %836 = vmatprep.subr.mxu0 0.0
      %837 = vmatpush2.msra.mxu0 0.0
      %838 = vmatprep.mubr.f32.mxu0 0.0
      %839 = vmatmul.mubr.f32.gmra.mxu0 %v769
      %v840 = vpop.f32.mrf.mxu0
      %v841 = vadd.f32 0.0, %v840
      %v842 = vpop.f32.mrf.mxu0
      %843 = vmatprep.mubr.f32.mxu0 0.0
      %844 = vmatmul.mubr.f32.gmra.mxu0 %v772
      %v845 = vpop.f32.mrf.mxu0
      %v846 = vadd.f32 0.0, %v845
      %v847 = vpop.f32.mrf.mxu0
      %848 = vdwg.mxu0
      %v849 = vrcp.pop %v764
      %v850 = vrcp.pop %v767
      %v851 = vmul.f32 %v841, %v849
      %v852 = vmul.f32 %v846, %v850
      %853 = vst.msk [vmem:[#allocation2] sm:$0xff] %vm577, %v851
      %854 = vst.msk [vmem:[#allocation2 + $0x8] sm:$0xff] %vm577, %v852
      %s855 = scalar_lea.vmem %s442, 16
      %v856 = vld [vmem:[%s855] sm:$0xff]
      %v857 = vld [vmem:[%s855 + $0x8] sm:$0xff]
      %s858 = scalar_lea.vmem %s448, 16
      %v859 = vld [vmem:[%s858] sm:$0xff]
      %v860 = vld [vmem:[%s858 + $0x8] sm:$0xff]
      %s861 = scalar_lea.vmem %s453, 16
      %v862 = vld [vmem:[%s861] sm:$0xff]
      %v863 = vld [vmem:[%s861 + $0x8] sm:$0xff]
      %s864 = scalar_lea.vmem %s462, 16
      %v865 = vld [vmem:[%s864] sm:$0xff]
      %v866 = vld [vmem:[%s864 + $0x8] sm:$0xff]
      %v868 = vsel %vm495, %v865, 0
      %v871 = vsel %vm495, %v866, 0
      %873 = vmatprep.subr.mxu0 0.0
      %874 = vmatpush1.msra.mxu0 0.0
      %875 = vmatprep.subr.mxu0 0.0
      %876 = vmatpush1.msra.mxu0 0.0
      %877 = vmatprep.subr.mxu0 0.0
      %878 = vmatpush1.msra.mxu0 0.0
      %879 = vmatprep.subr.mxu0 0.0
      %880 = vmatpush1.msra.mxu0 0.0
      %881 = vmatprep.subr.mxu0 0.0
      %882 = vmatpush1.msra.mxu0 0.0
      %883 = vmatprep.subr.mxu0 0.0
      %884 = vmatpush1.msra.mxu0 0.0
      %885 = vmatprep.subr.mxu0 0.0
      %886 = vmatpush1.msra.mxu0 0.0
      %887 = vmatprep.subr.mxu0 0.0
      %888 = vmatpush1.msra.mxu0 0.0
      %889 = vmatprep.subr.mxu0 0.0
      %890 = vmatpush1.msra.mxu0 0.0
      %891 = vmatprep.subr.mxu0 0.0
      %892 = vmatpush1.msra.mxu0 0.0
      %893 = vmatprep.subr.mxu0 0.0
      %894 = vmatpush1.msra.mxu0 0.0
      %895 = vmatprep.subr.mxu0 0.0
      %896 = vmatpush1.msra.mxu0 0.0
      %897 = vmatprep.subr.mxu0 0.0
      %898 = vmatpush1.msra.mxu0 0.0
      %899 = vmatprep.subr.mxu0 0.0
      %900 = vmatpush1.msra.mxu0 0.0
      %901 = vmatprep.subr.mxu0 0.0
      %902 = vmatpush1.msra.mxu0 0.0
      %903 = vmatprep.subr.mxu0 0.0
      %904 = vmatpush1.msra.mxu0 %v485
      %905 = vmatprep.subr.mxu0 0.0
      %906 = vmatpush2.msra.mxu0 0.0
      %907 = vmatprep.subr.mxu0 0.0
      %908 = vmatpush2.msra.mxu0 0.0
      %909 = vmatprep.subr.mxu0 0.0
      %910 = vmatpush2.msra.mxu0 0.0
      %911 = vmatprep.subr.mxu0 0.0
      %912 = vmatpush2.msra.mxu0 0.0
      %913 = vmatprep.subr.mxu0 0.0
      %914 = vmatpush2.msra.mxu0 0.0
      %915 = vmatprep.subr.mxu0 0.0
      %916 = vmatpush2.msra.mxu0 0.0
      %917 = vmatprep.subr.mxu0 0.0
      %918 = vmatpush2.msra.mxu0 0.0
      %919 = vmatprep.subr.mxu0 0.0
      %920 = vmatpush2.msra.mxu0 0.0
      %921 = vmatprep.subr.mxu0 0.0
      %922 = vmatpush2.msra.mxu0 0.0
      %923 = vmatprep.subr.mxu0 0.0
      %924 = vmatpush2.msra.mxu0 0.0
      %925 = vmatprep.subr.mxu0 0.0
      %926 = vmatpush2.msra.mxu0 0.0
      %927 = vmatprep.subr.mxu0 0.0
      %928 = vmatpush2.msra.mxu0 0.0
      %929 = vmatprep.subr.mxu0 0.0
      %930 = vmatpush2.msra.mxu0 0.0
      %931 = vmatprep.subr.mxu0 0.0
      %932 = vmatpush2.msra.mxu0 0.0
      %933 = vmatprep.subr.mxu0 0.0
      %934 = vmatpush2.msra.mxu0 0.0
      %935 = vmatprep.subr.mxu0 0.0
      %936 = vmatpush2.msra.mxu0 0.0
      %937 = vmatprep.mubr.f32.mxu0 0.0
      %938 = vmatmul.mubr.f32.gmra.mxu0 %v868
      %v939 = vpop.f32.mrf.mxu0
      %v940 = vadd.f32 0.0, %v939
      %v941 = vpop.f32.mrf.mxu0
      %942 = vmatprep.mubr.f32.mxu0 0.0
      %943 = vmatmul.mubr.f32.gmra.mxu0 %v871
      %v944 = vpop.f32.mrf.mxu0
      %v945 = vadd.f32 0.0, %v944
      %v946 = vpop.f32.mrf.mxu0
      %947 = vdwg.mxu0
      %v949 = vsel %vm577, %v856, 0
      %v952 = vsel %vm577, %v857, 0
      %v955 = vsel %vm577, %v859, 0
      %v958 = vsel %vm577, %v860, 0
      %960 = vmatprep.subr.mxu0 0.0
      %961 = vmatpush1.xpose.msra.mxu0 0.0
      %962 = vmatprep.subr.mxu0 0.0
      %963 = vmatpush1.xpose.msra.mxu0 0.0
      %964 = vmatprep.subr.mxu0 0.0
      %965 = vmatpush1.xpose.msra.mxu0 0.0
      %966 = vmatprep.subr.mxu0 0.0
      %967 = vmatpush1.xpose.msra.mxu0 0.0
      %968 = vmatprep.subr.mxu0 0.0
      %969 = vmatpush1.xpose.msra.mxu0 0.0
      %970 = vmatprep.subr.mxu0 0.0
      %971 = vmatpush1.xpose.msra.mxu0 0.0
      %972 = vmatprep.subr.mxu0 0.0
      %973 = vmatpush1.xpose.msra.mxu0 0.0
      %974 = vmatprep.subr.mxu0 0.0
      %975 = vmatpush1.xpose.msra.mxu0 0.0
      %976 = vmatprep.subr.mxu0 0.0
      %977 = vmatpush1.xpose.msra.mxu0 0.0
      %978 = vmatprep.subr.mxu0 0.0
      %979 = vmatpush1.xpose.msra.mxu0 0.0
      %980 = vmatprep.subr.mxu0 0.0
      %981 = vmatpush1.xpose.msra.mxu0 0.0
      %982 = vmatprep.subr.mxu0 0.0
      %983 = vmatpush1.xpose.msra.mxu0 0.0
      %984 = vmatprep.subr.mxu0 0.0
      %985 = vmatpush1.xpose.msra.mxu0 0.0
      %986 = vmatprep.subr.mxu0 0.0
      %987 = vmatpush1.xpose.msra.mxu0 0.0
      %988 = vmatprep.subr.mxu0 0.0
      %989 = vmatpush1.xpose.msra.mxu0 %v958
      %990 = vmatprep.subr.mxu0 0.0
      %991 = vmatpush1.xpose.msra.mxu0 %v955
      %992 = vmatprep.subr.mxu0 0.0
      %993 = vmatpush2.xpose.msra.mxu0 0.0
      %994 = vmatprep.subr.mxu0 0.0
      %995 = vmatpush2.xpose.msra.mxu0 0.0
      %996 = vmatprep.subr.mxu0 0.0
      %997 = vmatpush2.xpose.msra.mxu0 0.0
      %998 = vmatprep.subr.mxu0 0.0
      %999 = vmatpush2.xpose.msra.mxu0 0.0
      %1000 = vmatprep.subr.mxu0 0.0
      %1001 = vmatpush2.xpose.msra.mxu0 0.0
      %1002 = vmatprep.subr.mxu0 0.0
      %1003 = vmatpush2.xpose.msra.mxu0 0.0
      %1004 = vmatprep.subr.mxu0 0.0
      %1005 = vmatpush2.xpose.msra.mxu0 0.0
      %1006 = vmatprep.subr.mxu0 0.0
      %1007 = vmatpush2.xpose.msra.mxu0 0.0
      %1008 = vmatprep.subr.mxu0 0.0
      %1009 = vmatpush2.xpose.msra.mxu0 0.0
      %1010 = vmatprep.subr.mxu0 0.0
      %1011 = vmatpush2.xpose.msra.mxu0 0.0
      %1012 = vmatprep.subr.mxu0 0.0
      %1013 = vmatpush2.xpose.msra.mxu0 0.0
      %1014 = vmatprep.subr.mxu0 0.0
      %1015 = vmatpush2.xpose.msra.mxu0 0.0
      %1016 = vmatprep.subr.mxu0 0.0
      %1017 = vmatpush2.xpose.msra.mxu0 0.0
      %1018 = vmatprep.subr.mxu0 0.0
      %1019 = vmatpush2.xpose.msra.mxu0 0.0
      %1020 = vmatprep.subr.mxu0 0.0
      %1021 = vmatpush2.xpose.msra.mxu0 0.0
      %1022 = vmatprep.subr.mxu0 0.0
      %1023 = vmatpush2.xpose.msra.mxu0 0.0
      %1024 = vmatprep.mubr.f32.mxu0 0.0
      %1025 = vmatmul.mubr.f32.gmra.mxu0 %v949
      %v1026 = vpop.f32.mrf.mxu0
      %v1027 = vadd.f32 %v940, %v1026
      %v1028 = vpop.f32.mrf.mxu0
      %1029 = vmatprep.mubr.f32.mxu0 0.0
      %1030 = vmatmul.mubr.f32.gmra.mxu0 %v952
      %v1031 = vpop.f32.mrf.mxu0
      %v1032 = vadd.f32 %v945, %v1031
      %v1033 = vpop.f32.mrf.mxu0
      %1034 = vdwg.mxu0
      %s1035 = scalar_lea.vmem %s472, 16
      %v1036 = vld [vmem:[%s1035] sm:$0xff]
      %v1037 = vld [vmem:[%s1035 + $0x8] sm:$0xff]
      %v1039 = vsel %vm495, %v1036, 0
      %v1042 = vsel %vm495, %v1037, 0
      %1044 = vmatprep.subr.mxu0 0.0
      %1045 = vmatpush1.msra.mxu0 0.0
      %1046 = vmatprep.subr.mxu0 0.0
      %1047 = vmatpush1.msra.mxu0 0.0
      %1048 = vmatprep.subr.mxu0 0.0
      %1049 = vmatpush1.msra.mxu0 0.0
      %1050 = vmatprep.subr.mxu0 0.0
      %1051 = vmatpush1.msra.mxu0 0.0
      %1052 = vmatprep.subr.mxu0 0.0
      %1053 = vmatpush1.msra.mxu0 0.0
      %1054 = vmatprep.subr.mxu0 0.0
      %1055 = vmatpush1.msra.mxu0 0.0
      %1056 = vmatprep.subr.mxu0 0.0
      %1057 = vmatpush1.msra.mxu0 0.0
      %1058 = vmatprep.subr.mxu0 0.0
      %1059 = vmatpush1.msra.mxu0 0.0
      %1060 = vmatprep.subr.mxu0 0.0
      %1061 = vmatpush1.msra.mxu0 0.0
      %1062 = vmatprep.subr.mxu0 0.0
      %1063 = vmatpush1.msra.mxu0 0.0
      %1064 = vmatprep.subr.mxu0 0.0
      %1065 = vmatpush1.msra.mxu0 0.0
      %1066 = vmatprep.subr.mxu0 0.0
      %1067 = vmatpush1.msra.mxu0 0.0
      %1068 = vmatprep.subr.mxu0 0.0
      %1069 = vmatpush1.msra.mxu0 0.0
      %1070 = vmatprep.subr.mxu0 0.0
      %1071 = vmatpush1.msra.mxu0 0.0
      %1072 = vmatprep.subr.mxu0 0.0
      %1073 = vmatpush1.msra.mxu0 0.0
      %1074 = vmatprep.subr.mxu0 0.0
      %1075 = vmatpush1.msra.mxu0 %v486
      %1076 = vmatprep.subr.mxu0 0.0
      %1077 = vmatpush2.msra.mxu0 0.0
      %1078 = vmatprep.subr.mxu0 0.0
      %1079 = vmatpush2.msra.mxu0 0.0
      %1080 = vmatprep.subr.mxu0 0.0
      %1081 = vmatpush2.msra.mxu0 0.0
      %1082 = vmatprep.subr.mxu0 0.0
      %1083 = vmatpush2.msra.mxu0 0.0
      %1084 = vmatprep.subr.mxu0 0.0
      %1085 = vmatpush2.msra.mxu0 0.0
      %1086 = vmatprep.subr.mxu0 0.0
      %1087 = vmatpush2.msra.mxu0 0.0
      %1088 = vmatprep.subr.mxu0 0.0
      %1089 = vmatpush2.msra.mxu0 0.0
      %1090 = vmatprep.subr.mxu0 0.0
      %1091 = vmatpush2.msra.mxu0 0.0
      %1092 = vmatprep.subr.mxu0 0.0
      %1093 = vmatpush2.msra.mxu0 0.0
      %1094 = vmatprep.subr.mxu0 0.0
      %1095 = vmatpush2.msra.mxu0 0.0
      %1096 = vmatprep.subr.mxu0 0.0
      %1097 = vmatpush2.msra.mxu0 0.0
      %1098 = vmatprep.subr.mxu0 0.0
      %1099 = vmatpush2.msra.mxu0 0.0
      %1100 = vmatprep.subr.mxu0 0.0
      %1101 = vmatpush2.msra.mxu0 0.0
      %1102 = vmatprep.subr.mxu0 0.0
      %1103 = vmatpush2.msra.mxu0 0.0
      %1104 = vmatprep.subr.mxu0 0.0
      %1105 = vmatpush2.msra.mxu0 0.0
      %1106 = vmatprep.subr.mxu0 0.0
      %1107 = vmatpush2.msra.mxu0 0.0
      %1108 = vmatprep.mubr.f32.mxu0 0.0
      %1109 = vmatmul.mubr.f32.gmra.mxu0 %v1039
      %v1110 = vpop.f32.mrf.mxu0
      %v1111 = vadd.f32 0.0, %v1110
      %v1112 = vpop.f32.mrf.mxu0
      %1113 = vmatprep.mubr.f32.mxu0 0.0
      %1114 = vmatmul.mubr.f32.gmra.mxu0 %v1042
      %v1115 = vpop.f32.mrf.mxu0
      %v1116 = vadd.f32 0.0, %v1115
      %v1117 = vpop.f32.mrf.mxu0
      %1118 = vdwg.mxu0
      %v1119 = vadd.f32 %v1027, %v1111
      %v1120 = vadd.f32 %v1032, %v1116
      %v1121 = vsel %vm577, %v1119, -inf
      %1122 = vmax.xlane.f32.xlu0 %v1121
      %v1123 = vpop.xlane.xlu0 %1122
      %v1124 = vsel %vm577, %v1120, -inf
      %1125 = vmax.xlane.f32.xlu0 %v1124
      %v1126 = vpop.xlane.xlu0 %1125
      %v1127 = vsub.f32 %v1119, %v1123
      %v1128 = vsub.f32 %v1120, %v1126
      %v1129 = vmul.f32 %v1127, 1.442695
      %v1130 = vpow.pop %v1129
      %v1131 = vmul.f32 %v1128, 1.442695
      %v1132 = vpow.pop %v1131
      %v1133 = vsel %vm577, %v1130, 0.0
      %1134 = vadd.xlane.f32.xlu0 %v1133
      %v1135 = vpop.xlane.xlu0 %1134
      %v1136 = vsel %vm577, %v1132, 0.0
      %1137 = vadd.xlane.f32.xlu0 %v1136
      %v1138 = vpop.xlane.xlu0 %1137
      %v1140 = vsel %vm577, %v1130, 0
      %v1143 = vsel %vm577, %v1132, 0
      %1145 = vmatprep.subr.mxu0 0.0
      %1146 = vmatpush1.msra.mxu0 0.0
      %1147 = vmatprep.subr.mxu0 0.0
      %1148 = vmatpush1.msra.mxu0 0.0
      %1149 = vmatprep.subr.mxu0 0.0
      %1150 = vmatpush1.msra.mxu0 0.0
      %1151 = vmatprep.subr.mxu0 0.0
      %1152 = vmatpush1.msra.mxu0 0.0
      %1153 = vmatprep.subr.mxu0 0.0
      %1154 = vmatpush1.msra.mxu0 0.0
      %1155 = vmatprep.subr.mxu0 0.0
      %1156 = vmatpush1.msra.mxu0 0.0
      %1157 = vmatprep.subr.mxu0 0.0
      %1158 = vmatpush1.msra.mxu0 0.0
      %1159 = vmatprep.subr.mxu0 0.0
      %1160 = vmatpush1.msra.mxu0 0.0
      %1161 = vmatprep.subr.mxu0 0.0
      %1162 = vmatpush1.msra.mxu0 0.0
      %1163 = vmatprep.subr.mxu0 0.0
      %1164 = vmatpush1.msra.mxu0 0.0
      %1165 = vmatprep.subr.mxu0 0.0
      %1166 = vmatpush1.msra.mxu0 0.0
      %1167 = vmatprep.subr.mxu0 0.0
      %1168 = vmatpush1.msra.mxu0 0.0
      %1169 = vmatprep.subr.mxu0 0.0
      %1170 = vmatpush1.msra.mxu0 0.0
      %1171 = vmatprep.subr.mxu0 0.0
      %1172 = vmatpush1.msra.mxu0 0.0
      %1173 = vmatprep.subr.mxu0 0.0
      %1174 = vmatpush1.msra.mxu0 %v863
      %1175 = vmatprep.subr.mxu0 0.0
      %1176 = vmatpush1.msra.mxu0 %v862
      %1177 = vmatprep.subr.mxu0 0.0
      %1178 = vmatpush2.msra.mxu0 0.0
      %1179 = vmatprep.subr.mxu0 0.0
      %1180 = vmatpush2.msra.mxu0 0.0
      %1181 = vmatprep.subr.mxu0 0.0
      %1182 = vmatpush2.msra.mxu0 0.0
      %1183 = vmatprep.subr.mxu0 0.0
      %1184 = vmatpush2.msra.mxu0 0.0
      %1185 = vmatprep.subr.mxu0 0.0
      %1186 = vmatpush2.msra.mxu0 0.0
      %1187 = vmatprep.subr.mxu0 0.0
      %1188 = vmatpush2.msra.mxu0 0.0
      %1189 = vmatprep.subr.mxu0 0.0
      %1190 = vmatpush2.msra.mxu0 0.0
      %1191 = vmatprep.subr.mxu0 0.0
      %1192 = vmatpush2.msra.mxu0 0.0
      %1193 = vmatprep.subr.mxu0 0.0
      %1194 = vmatpush2.msra.mxu0 0.0
      %1195 = vmatprep.subr.mxu0 0.0
      %1196 = vmatpush2.msra.mxu0 0.0
      %1197 = vmatprep.subr.mxu0 0.0
      %1198 = vmatpush2.msra.mxu0 0.0
      %1199 = vmatprep.subr.mxu0 0.0
      %1200 = vmatpush2.msra.mxu0 0.0
      %1201 = vmatprep.subr.mxu0 0.0
      %1202 = vmatpush2.msra.mxu0 0.0
      %1203 = vmatprep.subr.mxu0 0.0
      %1204 = vmatpush2.msra.mxu0 0.0
      %1205 = vmatprep.subr.mxu0 0.0
      %1206 = vmatpush2.msra.mxu0 0.0
      %1207 = vmatprep.subr.mxu0 0.0
      %1208 = vmatpush2.msra.mxu0 0.0
      %1209 = vmatprep.mubr.f32.mxu0 0.0
      %1210 = vmatmul.mubr.f32.gmra.mxu0 %v1140
      %v1211 = vpop.f32.mrf.mxu0
      %v1212 = vadd.f32 0.0, %v1211
      %v1213 = vpop.f32.mrf.mxu0
      %1214 = vmatprep.mubr.f32.mxu0 0.0
      %1215 = vmatmul.mubr.f32.gmra.mxu0 %v1143
      %v1216 = vpop.f32.mrf.mxu0
      %v1217 = vadd.f32 0.0, %v1216
      %v1218 = vpop.f32.mrf.mxu0
      %1219 = vdwg.mxu0
      %v1220 = vrcp.pop %v1135
      %v1221 = vrcp.pop %v1138
      %v1222 = vmul.f32 %v1212, %v1220
      %v1223 = vmul.f32 %v1217, %v1221
      %1226 = vrot.lane.b32.xlu0 %v1222, 16
      %v1227 = vpop.permute.xlu0 %1226
      %1228 = vrot.lane.b32.xlu0 %v1223, 16
      %v1229 = vpop.permute.xlu0 %1228
      %vm1232 = vcmask 261248
      %1233 = vst.msk [vmem:[#allocation2] sm:$0xff] %vm1232, %v1227
      %1234 = vst.msk [vmem:[#allocation2 + $0x8] sm:$0xff] %vm1232, %v1229
      %v1235 = vld [vmem:[#allocation2] sm:$0xff]
      %v1236 = vld [vmem:[#allocation2 + $0x8] sm:$0xff]
      %v1237 = vpack.c.bf16 %v1236, %v1235
      %v1238 = vld [vmem:[%s7] sm:$0xf]
      %v1239 = vld [vmem:[%s7 + $0x4] sm:$0xf]
      %v1240 = vld [vmem:[%s7 + $0x8] sm:$0xf]
      %v1241 = vld [vmem:[%s7 + $0xc] sm:$0xf]
      %v1242 = vld [vmem:[%s8] sm:$0x1]
      %v1244 = vlaneseq
      %v1245 = vshrl.u32 %v1244, 7
      %v1246 = vsub.s32 0, %v1245
      %v1247 = vrot.slane %v1242, %v1246
      %v1253 = vunpack.c.l.b16 %v1238
      %v1254 = vunpack.c.l.b16 %v1239
      %v1255 = vunpack.c.l.b16 %v1240
      %v1256 = vunpack.c.l.b16 %v1241
      %v1257 = vpack.c.b16 %v1254, %v1253
      %v1258 = vpack.c.b16 %v1256, %v1255
      %vm1261 = vcmask 261120
      %v1263 = vsel %vm1261, %v1237, 0
      %1265 = vmatprep.subr.bf16.mxu0 0
      %1266 = vmatpush1.bf16.msra.mxu0 0
      %1267 = vmatprep.subr.bf16.mxu0 0
      %1268 = vmatpush1.bf16.msra.mxu0 0
      %1269 = vmatprep.subr.bf16.mxu0 0
      %1270 = vmatpush1.bf16.msra.mxu0 0
      %1271 = vmatprep.subr.bf16.mxu0 0
      %1272 = vmatpush1.bf16.msra.mxu0 0
      %1273 = vmatprep.subr.bf16.mxu0 0
      %1274 = vmatpush1.bf16.msra.mxu0 0
      %1275 = vmatprep.subr.bf16.mxu0 0
      %1276 = vmatpush1.bf16.msra.mxu0 0
      %1277 = vmatprep.subr.bf16.mxu0 0
      %1278 = vmatpush1.bf16.msra.mxu0 %v1258
      %1279 = vmatprep.subr.bf16.mxu0 0
      %1280 = vmatpush1.bf16.msra.mxu0 %v1257
      %1281 = vmatprep.subr.bf16.mxu0 0
      %1282 = vmatpush2.bf16.msra.mxu0 0
      %1283 = vmatprep.subr.bf16.mxu0 0
      %1284 = vmatpush2.bf16.msra.mxu0 0
      %1285 = vmatprep.subr.bf16.mxu0 0
      %1286 = vmatpush2.bf16.msra.mxu0 0
      %1287 = vmatprep.subr.bf16.mxu0 0
      %1288 = vmatpush2.bf16.msra.mxu0 0
      %1289 = vmatprep.subr.bf16.mxu0 0
      %1290 = vmatpush2.bf16.msra.mxu0 0
      %1291 = vmatprep.subr.bf16.mxu0 0
      %1292 = vmatpush2.bf16.msra.mxu0 0
      %1293 = vmatprep.subr.bf16.mxu0 0
      %1294 = vmatpush2.bf16.msra.mxu0 0
      %1295 = vmatprep.subr.bf16.mxu0 0
      %1296 = vmatpush2.bf16.msra.mxu0 0
      %1297 = vmatprep.mubr.bf16.mxu0 0
      %1298 = vmatmul.mubr.bf16.gmra.mxu0 %v1263
      %v1299 = vpop.f32.mrf.mxu0
      %v1300 = vadd.f32 %v1247, %v1299
      %v1301 = vpop.f32.mrf.mxu0
      %v1302 = vpop.f32.mrf.mxu0
      %v1303 = vadd.f32 %v1247, %v1302
      %v1304 = vpop.f32.mrf.mxu0
      %1305 = vdwg.mxu0
      %1306 = vst.msk [vmem:[%s482] sm:$0xff] %vm1261, %v1300
      %1307 = vst.msk [vmem:[%s482 + $0x8] sm:$0xff] %vm1261, %v1303
      %s1308 = smul.u32 2, %s25
      %p1309 = scmp.lt.s32.totalorder %s24, 7
      %s1310 = scalar_select %p1309, %s24, 7
      %p1311 = scmp.lt.s32.totalorder %s1308, 1
      %s1312 = scalar_select %p1311, %s1308, 1
      %s1313 = smul.addr %s1310, 2
      %s1314 = sadd.s32 %s1312, %s1313
      %s1315 = smul.addr %s1314, 8
      %s1316 = scalar_lea.vmem %s9, %s1315
      // Predicated region
      $region57: #{transformer_stage_forward.7} parent=55 // pred_check
        %p1317 = pneg %p272
      $region58: #{transformer_stage_forward.7} parent=55 // pred_check_branch
        %1319 = sbr.rel (%p1317) target = $region60
      $region59: #{transformer_stage_forward.7} parent=55 // pred_region
        %s1320 = smul.u32 2, %s25
      $region60: #{transformer_stage_forward.7} parent=55 // pred_fallthru
        _
    $region56: #{transformer_stage_forward.7} parent=5 // pred_fallthru
      _
    %p1321 = scmp.le.s32.totalorder 2, %s15
    // Predicated region
    $region61: #{transformer_stage_forward.7} parent=5 // pred_check
      %p1322 = pneg %p1321
    $region62: #{transformer_stage_forward.7} parent=5 // pred_check_branch
      %1324 = sbr.rel (%p1322) target = $region64
    $region63: #{transformer_stage_forward.7} parent=5 // pred_region
      %s1325 = ssub.s32 %s15, 2
      // Predicated region
      $region65: #{transformer_stage_forward.7} parent=63 // pred_check
        %p1326 = pneg %p278
      $region66: #{transformer_stage_forward.7} parent=63 // pred_check_branch
        %1328 = sbr.rel (%p1326) target = $region68
      $region67: #{transformer_stage_forward.7} parent=63 // pred_region
        %s1329 = smul.u32 2, %s27
        %p1330 = scmp.lt.s32.totalorder %s26, 7
        %s1331 = scalar_select %p1330, %s26, 7
        %p1332 = scmp.lt.s32.totalorder %s1329, 1
        %s1333 = scalar_select %p1332, %s1329, 1
        %s1334 = smul.addr %s1331, 2
        %s1335 = sadd.s32 %s1333, %s1334
        %s1336 = smul.addr %s1335, 8
        %s1337 = scalar_lea.vmem %s9, %s1336
      $region68: #{transformer_stage_forward.7} parent=63 // pred_fallthru
        _
    $region64: #{transformer_stage_forward.7} parent=5 // pred_fallthru
      _
  $region6: #{transformer_stage_forward.7} parent=0 // loop_footer
    %s19 = sadd.s32 1, %s15
  $region7: #{transformer_stage_forward.7} parent=0 // loop_footer_branch
    %14 = sbr.rel target = $region3
  $region8: #{transformer_stage_forward.7} parent=0 // loop_exit
    _

// kernel: transformer_stage_forward.8
$region0: #{transformer_stage_forward.8}
  #allocation0 [shape = 'u32[]', space=smem, size = 0x4, offset = 0x4, fixed_abs, tag = 'smem constant byte address 0x4 - core index']
  #allocation1 [shape = 'u32[144,128]{1,0:T(1,128)}', space=vmem, size = 0x12000, scoped, tag = 'internal scratch']
  #allocation2 [shape = 'f32[128,32]{1,0:T(8,128)}', space=vmem, size = 0x10000, scoped, tag = 'scratch operand']
  #allocation3 [shape = 'bf16[128,32]{1,0:T(8,128)(2,1)}', space=vmem, size = 0x8000, scoped, tag = 'scratch operand']
  #allocation4 [shape = 'f32[128,32]{1,0:T(8,128)}', space=vmem, size = 0x10000, scoped, tag = 'scratch operand']
  %s0 = inlined_call_operand.vmem [shape: f32[128,32], index: 0, kind: input, shape index: {}]
  %s1 = inlined_call_operand.vmem [shape: f32[128,32], index: 1, kind: input, shape index: {}]
  %s2 = inlined_call_operand.vmem [shape: f32[1,32], index: 2, kind: input, shape index: {}]
  %s3 = inlined_call_operand.vmem [shape: f32[1,32], index: 3, kind: input, shape index: {}]
  %s4 = inlined_call_operand.vmem [shape: bf16[32,128], index: 4, kind: input, shape index: {}]
  %s5 = inlined_call_operand.vmem [shape: f32[1,128], index: 5, kind: input, shape index: {}]
  %s6 = inlined_call_operand.vmem [shape: bf16[128,32], index: 6, kind: input, shape index: {}]
  %s7 = inlined_call_operand.vmem [shape: f32[1,32], index: 7, kind: input, shape index: {}]
  %s8 = inlined_call_operand.vmem [shape: f32[128,32], index: 8, kind: output, shape index: {}]
  %s9 = sld [smem:[#allocation0]]
  $region50: #{transformer_stage_forward.8} parent=0
    _
  %s11 = ssub.s32 1, %s9
  %s12 = scalar_select 0, %s11, %s9
  // Predicated region
  $region2: #{transformer_stage_forward.8} parent=0 // pred_check
    _
  $region3: #{transformer_stage_forward.8} parent=0 // pred_check_branch
    %14 = sbr.rel (0) target = $region5
  $region4: #{transformer_stage_forward.8} parent=0 // pred_region
    _
  $region5: #{transformer_stage_forward.8} parent=0 // pred_fallthru
    _
  // Predicated region
  $region6: #{transformer_stage_forward.8} parent=0 // pred_check
    _
  $region7: #{transformer_stage_forward.8} parent=0 // pred_check_branch
    %16 = sbr.rel (0) target = $region9
  $region8: #{transformer_stage_forward.8} parent=0 // pred_region
    _
  $region9: #{transformer_stage_forward.8} parent=0 // pred_fallthru
    _
  // Predicated region
  $region10: #{transformer_stage_forward.8} parent=0 // pred_check
    _
  $region11: #{transformer_stage_forward.8} parent=0 // pred_check_branch
    %18 = sbr.rel (0) target = $region13
  $region12: #{transformer_stage_forward.8} parent=0 // pred_region
    _
  $region13: #{transformer_stage_forward.8} parent=0 // pred_fallthru
    _
  // Predicated region
  $region14: #{transformer_stage_forward.8} parent=0 // pred_check
    _
  $region15: #{transformer_stage_forward.8} parent=0 // pred_check_branch
    %20 = sbr.rel (0) target = $region17
  $region16: #{transformer_stage_forward.8} parent=0 // pred_region
    _
  $region17: #{transformer_stage_forward.8} parent=0 // pred_fallthru
    _
  // Predicated region
  $region18: #{transformer_stage_forward.8} parent=0 // pred_check
    _
  $region19: #{transformer_stage_forward.8} parent=0 // pred_check_branch
    %22 = sbr.rel (0) target = $region21
  $region20: #{transformer_stage_forward.8} parent=0 // pred_region
    _
  $region21: #{transformer_stage_forward.8} parent=0 // pred_fallthru
    _
  // Predicated region
  $region22: #{transformer_stage_forward.8} parent=0 // pred_check
    _
  $region23: #{transformer_stage_forward.8} parent=0 // pred_check_branch
    %24 = sbr.rel (0) target = $region25
  $region24: #{transformer_stage_forward.8} parent=0 // pred_region
    _
  $region25: #{transformer_stage_forward.8} parent=0 // pred_fallthru
    _
  // Predicated region
  $region26: #{transformer_stage_forward.8} parent=0 // pred_check
    _
  $region27: #{transformer_stage_forward.8} parent=0 // pred_check_branch
    %26 = sbr.rel (0) target = $region29
  $region28: #{transformer_stage_forward.8} parent=0 // pred_region
    _
  $region29: #{transformer_stage_forward.8} parent=0 // pred_fallthru
    _
  // Predicated region
  $region30: #{transformer_stage_forward.8} parent=0 // pred_check
    _
  $region31: #{transformer_stage_forward.8} parent=0 // pred_check_branch
    %28 = sbr.rel (0) target = $region33
  $region32: #{transformer_stage_forward.8} parent=0 // pred_region
    _
  $region33: #{transformer_stage_forward.8} parent=0 // pred_fallthru
    _
  %p30 = scmp.eq.s32.totalorder 0, 0
  // Predicated region
  $region34: #{transformer_stage_forward.8} parent=0 // pred_check
    %p31 = pneg %p30
  $region35: #{transformer_stage_forward.8} parent=0 // pred_check_branch
    %33 = sbr.rel (%p31) target = $region37
  $region36: #{transformer_stage_forward.8} parent=0 // pred_region
    %v34 = vld [vmem:[%s0] sm:$0xff]
    %v35 = vld [vmem:[%s0 + $0x8] sm:$0xff]
    %v36 = vld [vmem:[%s0 + $0x10] sm:$0xff]
    %v37 = vld [vmem:[%s0 + $0x18] sm:$0xff]
    %v38 = vld [vmem:[%s0 + $0x20] sm:$0xff]
    %v39 = vld [vmem:[%s0 + $0x28] sm:$0xff]
    %v40 = vld [vmem:[%s0 + $0x30] sm:$0xff]
    %v41 = vld [vmem:[%s0 + $0x38] sm:$0xff]
    %v42 = vld [vmem:[%s0 + $0x40] sm:$0xff]
    %v43 = vld [vmem:[%s0 + $0x48] sm:$0xff]
    %v44 = vld [vmem:[%s0 + $0x50] sm:$0xff]
    %v45 = vld [vmem:[%s0 + $0x58] sm:$0xff]
    %v46 = vld [vmem:[%s0 + $0x60] sm:$0xff]
    %v47 = vld [vmem:[%s0 + $0x68] sm:$0xff]
    %v48 = vld [vmem:[%s0 + $0x70] sm:$0xff]
    %v49 = vld [vmem:[%s0 + $0x78] sm:$0xff]
    %v50 = vld [vmem:[%s1] sm:$0xff]
    %v51 = vld [vmem:[%s1 + $0x8] sm:$0xff]
    %v52 = vld [vmem:[%s1 + $0x10] sm:$0xff]
    %v53 = vld [vmem:[%s1 + $0x18] sm:$0xff]
    %v54 = vld [vmem:[%s1 + $0x20] sm:$0xff]
    %v55 = vld [vmem:[%s1 + $0x28] sm:$0xff]
    %v56 = vld [vmem:[%s1 + $0x30] sm:$0xff]
    %v57 = vld [vmem:[%s1 + $0x38] sm:$0xff]
    %v58 = vld [vmem:[%s1 + $0x40] sm:$0xff]
    %v59 = vld [vmem:[%s1 + $0x48] sm:$0xff]
    %v60 = vld [vmem:[%s1 + $0x50] sm:$0xff]
    %v61 = vld [vmem:[%s1 + $0x58] sm:$0xff]
    %v62 = vld [vmem:[%s1 + $0x60] sm:$0xff]
    %v63 = vld [vmem:[%s1 + $0x68] sm:$0xff]
    %v64 = vld [vmem:[%s1 + $0x70] sm:$0xff]
    %v65 = vld [vmem:[%s1 + $0x78] sm:$0xff]
    %v66 = vadd.f32 %v34, %v50
    %v67 = vadd.f32 %v35, %v51
    %v68 = vadd.f32 %v36, %v52
    %v69 = vadd.f32 %v37, %v53
    %v70 = vadd.f32 %v38, %v54
    %v71 = vadd.f32 %v39, %v55
    %v72 = vadd.f32 %v40, %v56
    %v73 = vadd.f32 %v41, %v57
    %v74 = vadd.f32 %v42, %v58
    %v75 = vadd.f32 %v43, %v59
    %v76 = vadd.f32 %v44, %v60
    %v77 = vadd.f32 %v45, %v61
    %v78 = vadd.f32 %v46, %v62
    %v79 = vadd.f32 %v47, %v63
    %v80 = vadd.f32 %v48, %v64
    %v81 = vadd.f32 %v49, %v65
    %vm82 = vcmask 261120
    %v83 = vsel %vm82, %v66, 0.0
    %84 = vadd.xlane.f32.xlu0 %v83
    %v85 = vpop.xlane.xlu0 %84
    %v86 = vsel %vm82, %v67, 0.0
    %87 = vadd.xlane.f32.xlu0 %v86
    %v88 = vpop.xlane.xlu0 %87
    %v89 = vsel %vm82, %v68, 0.0
    %90 = vadd.xlane.f32.xlu0 %v89
    %v91 = vpop.xlane.xlu0 %90
    %v92 = vsel %vm82, %v69, 0.0
    %93 = vadd.xlane.f32.xlu0 %v92
    %v94 = vpop.xlane.xlu0 %93
    %v95 = vsel %vm82, %v70, 0.0
    %96 = vadd.xlane.f32.xlu0 %v95
    %v97 = vpop.xlane.xlu0 %96
    %v98 = vsel %vm82, %v71, 0.0
    %99 = vadd.xlane.f32.xlu0 %v98
    %v100 = vpop.xlane.xlu0 %99
    %v101 = vsel %vm82, %v72, 0.0
    %102 = vadd.xlane.f32.xlu0 %v101
    %v103 = vpop.xlane.xlu0 %102
    %v104 = vsel %vm82, %v73, 0.0
    %105 = vadd.xlane.f32.xlu0 %v104
    %v106 = vpop.xlane.xlu0 %105
    %v107 = vsel %vm82, %v74, 0.0
    %108 = vadd.xlane.f32.xlu0 %v107
    %v109 = vpop.xlane.xlu0 %108
    %v110 = vsel %vm82, %v75, 0.0
    %111 = vadd.xlane.f32.xlu0 %v110
    %v112 = vpop.xlane.xlu0 %111
    %v113 = vsel %vm82, %v76, 0.0
    %114 = vadd.xlane.f32.xlu0 %v113
    %v115 = vpop.xlane.xlu0 %114
    %v116 = vsel %vm82, %v77, 0.0
    %117 = vadd.xlane.f32.xlu0 %v116
    %v118 = vpop.xlane.xlu0 %117
    %v119 = vsel %vm82, %v78, 0.0
    %120 = vadd.xlane.f32.xlu0 %v119
    %v121 = vpop.xlane.xlu0 %120
    %v122 = vsel %vm82, %v79, 0.0
    %123 = vadd.xlane.f32.xlu0 %v122
    %v124 = vpop.xlane.xlu0 %123
    %v125 = vsel %vm82, %v80, 0.0
    %126 = vadd.xlane.f32.xlu0 %v125
    %v127 = vpop.xlane.xlu0 %126
    %v128 = vsel %vm82, %v81, 0.0
    %129 = vadd.xlane.f32.xlu0 %v128
    %v130 = vpop.xlane.xlu0 %129
    %v131 = vrcp.pop 32.0
    %v132 = vmul.f32 %v85, %v131
    %v133 = vmul.f32 %v88, %v131
    %v134 = vmul.f32 %v91, %v131
    %v135 = vmul.f32 %v94, %v131
    %v136 = vmul.f32 %v97, %v131
    %v137 = vmul.f32 %v100, %v131
    %v138 = vmul.f32 %v103, %v131
    %v139 = vmul.f32 %v106, %v131
    %v140 = vmul.f32 %v109, %v131
    %v141 = vmul.f32 %v112, %v131
    %v142 = vmul.f32 %v115, %v131
    %v143 = vmul.f32 %v118, %v131
    %v144 = vmul.f32 %v121, %v131
    %v145 = vmul.f32 %v124, %v131
    %v146 = vmul.f32 %v127, %v131
    %v147 = vmul.f32 %v130, %v131
    %v148 = vsub.f32 %v66, %v132
    %v149 = vsub.f32 %v67, %v133
    %v150 = vsub.f32 %v68, %v134
    %v151 = vsub.f32 %v69, %v135
    %v152 = vsub.f32 %v70, %v136
    %v153 = vsub.f32 %v71, %v137
    %v154 = vsub.f32 %v72, %v138
    %v155 = vsub.f32 %v73, %v139
    %v156 = vsub.f32 %v74, %v140
    %v157 = vsub.f32 %v75, %v141
    %v158 = vsub.f32 %v76, %v142
    %v159 = vsub.f32 %v77, %v143
    %v160 = vsub.f32 %v78, %v144
    %v161 = vsub.f32 %v79, %v145
    %v162 = vsub.f32 %v80, %v146
    %v163 = vsub.f32 %v81, %v147
    %v164 = vmul.f32 %v148, %v148
    %v165 = vmul.f32 %v149, %v149
    %v166 = vmul.f32 %v150, %v150
    %v167 = vmul.f32 %v151, %v151
    %v168 = vmul.f32 %v152, %v152
    %v169 = vmul.f32 %v153, %v153
    %v170 = vmul.f32 %v154, %v154
    %v171 = vmul.f32 %v155, %v155
    %v172 = vmul.f32 %v156, %v156
    %v173 = vmul.f32 %v157, %v157
    %v174 = vmul.f32 %v158, %v158
    %v175 = vmul.f32 %v159, %v159
    %v176 = vmul.f32 %v160, %v160
    %v177 = vmul.f32 %v161, %v161
    %v178 = vmul.f32 %v162, %v162
    %v179 = vmul.f32 %v163, %v163
    %v180 = vsel %vm82, %v164, 0.0
    %181 = vadd.xlane.f32.xlu0 %v180
    %v182 = vpop.xlane.xlu0 %181
    %v183 = vsel %vm82, %v165, 0.0
    %184 = vadd.xlane.f32.xlu0 %v183
    %v185 = vpop.xlane.xlu0 %184
    %v186 = vsel %vm82, %v166, 0.0
    %187 = vadd.xlane.f32.xlu0 %v186
    %v188 = vpop.xlane.xlu0 %187
    %v189 = vsel %vm82, %v167, 0.0
    %190 = vadd.xlane.f32.xlu0 %v189
    %v191 = vpop.xlane.xlu0 %190
    %v192 = vsel %vm82, %v168, 0.0
    %193 = vadd.xlane.f32.xlu0 %v192
    %v194 = vpop.xlane.xlu0 %193
    %v195 = vsel %vm82, %v169, 0.0
    %196 = vadd.xlane.f32.xlu0 %v195
    %v197 = vpop.xlane.xlu0 %196
    %v198 = vsel %vm82, %v170, 0.0
    %199 = vadd.xlane.f32.xlu0 %v198
    %v200 = vpop.xlane.xlu0 %199
    %v201 = vsel %vm82, %v171, 0.0
    %202 = vadd.xlane.f32.xlu0 %v201
    %v203 = vpop.xlane.xlu0 %202
    %v204 = vsel %vm82, %v172, 0.0
    %205 = vadd.xlane.f32.xlu0 %v204
    %v206 = vpop.xlane.xlu0 %205
    %v207 = vsel %vm82, %v173, 0.0
    %208 = vadd.xlane.f32.xlu0 %v207
    %v209 = vpop.xlane.xlu0 %208
    %v210 = vsel %vm82, %v174, 0.0
    %211 = vadd.xlane.f32.xlu0 %v210
    %v212 = vpop.xlane.xlu0 %211
    %v213 = vsel %vm82, %v175, 0.0
    %214 = vadd.xlane.f32.xlu0 %v213
    %v215 = vpop.xlane.xlu0 %214
    %v216 = vsel %vm82, %v176, 0.0
    %217 = vadd.xlane.f32.xlu0 %v216
    %v218 = vpop.xlane.xlu0 %217
    %v219 = vsel %vm82, %v177, 0.0
    %220 = vadd.xlane.f32.xlu0 %v219
    %v221 = vpop.xlane.xlu0 %220
    %v222 = vsel %vm82, %v178, 0.0
    %223 = vadd.xlane.f32.xlu0 %v222
    %v224 = vpop.xlane.xlu0 %223
    %v225 = vsel %vm82, %v179, 0.0
    %226 = vadd.xlane.f32.xlu0 %v225
    %v227 = vpop.xlane.xlu0 %226
    %v228 = vmul.f32 %v182, %v131
    %v229 = vmul.f32 %v185, %v131
    %v230 = vmul.f32 %v188, %v131
    %v231 = vmul.f32 %v191, %v131
    %v232 = vmul.f32 %v194, %v131
    %v233 = vmul.f32 %v197, %v131
    %v234 = vmul.f32 %v200, %v131
    %v235 = vmul.f32 %v203, %v131
    %v236 = vmul.f32 %v206, %v131
    %v237 = vmul.f32 %v209, %v131
    %v238 = vmul.f32 %v212, %v131
    %v239 = vmul.f32 %v215, %v131
    %v240 = vmul.f32 %v218, %v131
    %v241 = vmul.f32 %v221, %v131
    %v242 = vmul.f32 %v224, %v131
    %v243 = vmul.f32 %v227, %v131
    %v244 = vadd.f32 %v228, 1e-06
    %v245 = vadd.f32 %v229, 1e-06
    %v246 = vadd.f32 %v230, 1e-06
    %v247 = vadd.f32 %v231, 1e-06
    %v248 = vadd.f32 %v232, 1e-06
    %v249 = vadd.f32 %v233, 1e-06
    %v250 = vadd.f32 %v234, 1e-06
    %v251 = vadd.f32 %v235, 1e-06
    %v252 = vadd.f32 %v236, 1e-06
    %v253 = vadd.f32 %v237, 1e-06
    %v254 = vadd.f32 %v238, 1e-06
    %v255 = vadd.f32 %v239, 1e-06
    %v256 = vadd.f32 %v240, 1e-06
    %v257 = vadd.f32 %v241, 1e-06
    %v258 = vadd.f32 %v242, 1e-06
    %v259 = vadd.f32 %v243, 1e-06
    %v260 = vrsqrt.pop %v244
    %v261 = vrsqrt.pop %v245
    %v262 = vrsqrt.pop %v246
    %v263 = vrsqrt.pop %v247
    %v264 = vrsqrt.pop %v248
    %v265 = vrsqrt.pop %v249
    %v266 = vrsqrt.pop %v250
    %v267 = vrsqrt.pop %v251
    %v268 = vrsqrt.pop %v252
    %v269 = vrsqrt.pop %v253
    %v270 = vrsqrt.pop %v254
    %v271 = vrsqrt.pop %v255
    %v272 = vrsqrt.pop %v256
    %v273 = vrsqrt.pop %v257
    %v274 = vrsqrt.pop %v258
    %v275 = vrsqrt.pop %v259
    %v276 = vmul.f32 %v148, %v260
    %v277 = vmul.f32 %v149, %v261
    %v278 = vmul.f32 %v150, %v262
    %v279 = vmul.f32 %v151, %v263
    %v280 = vmul.f32 %v152, %v264
    %v281 = vmul.f32 %v153, %v265
    %v282 = vmul.f32 %v154, %v266
    %v283 = vmul.f32 %v155, %v267
    %v284 = vmul.f32 %v156, %v268
    %v285 = vmul.f32 %v157, %v269
    %v286 = vmul.f32 %v158, %v270
    %v287 = vmul.f32 %v159, %v271
    %v288 = vmul.f32 %v160, %v272
    %v289 = vmul.f32 %v161, %v273
    %v290 = vmul.f32 %v162, %v274
    %v291 = vmul.f32 %v163, %v275
    %292 = vst.msk [vmem:[#allocation2] sm:$0xff] %vm82, %v66
    %293 = vst.msk [vmem:[#allocation2 + $0x8] sm:$0xff] %vm82, %v67
    %294 = vst.msk [vmem:[#allocation2 + $0x10] sm:$0xff] %vm82, %v68
    %295 = vst.msk [vmem:[#allocation2 + $0x18] sm:$0xff] %vm82, %v69
    %296 = vst.msk [vmem:[#allocation2 + $0x20] sm:$0xff] %vm82, %v70
    %297 = vst.msk [vmem:[#allocation2 + $0x28] sm:$0xff] %vm82, %v71
    %298 = vst.msk [vmem:[#allocation2 + $0x30] sm:$0xff] %vm82, %v72
    %299 = vst.msk [vmem:[#allocation2 + $0x38] sm:$0xff] %vm82, %v73
    %300 = vst.msk [vmem:[#allocation2 + $0x40] sm:$0xff] %vm82, %v74
    %301 = vst.msk [vmem:[#allocation2 + $0x48] sm:$0xff] %vm82, %v75
    %302 = vst.msk [vmem:[#allocation2 + $0x50] sm:$0xff] %vm82, %v76
    %303 = vst.msk [vmem:[#allocation2 + $0x58] sm:$0xff] %vm82, %v77
    %304 = vst.msk [vmem:[#allocation2 + $0x60] sm:$0xff] %vm82, %v78
    %305 = vst.msk [vmem:[#allocation2 + $0x68] sm:$0xff] %vm82, %v79
    %306 = vst.msk [vmem:[#allocation2 + $0x70] sm:$0xff] %vm82, %v80
    %307 = vst.msk [vmem:[#allocation2 + $0x78] sm:$0xff] %vm82, %v81
    %v308 = vld [vmem:[%s2] sm:$0x1]
    %v310 = vlaneseq
    %v311 = vshrl.u32 %v310, 7
    %v312 = vsub.s32 0, %v311
    %v313 = vrot.slane %v308, %v312
    %v315 = vmul.f32 %v276, %v313
    %v316 = vmul.f32 %v277, %v313
    %v317 = vmul.f32 %v278, %v313
    %v318 = vmul.f32 %v279, %v313
    %v319 = vmul.f32 %v280, %v313
    %v320 = vmul.f32 %v281, %v313
    %v321 = vmul.f32 %v282, %v313
    %v322 = vmul.f32 %v283, %v313
    %v323 = vmul.f32 %v284, %v313
    %v324 = vmul.f32 %v285, %v313
    %v325 = vmul.f32 %v286, %v313
    %v326 = vmul.f32 %v287, %v313
    %v327 = vmul.f32 %v288, %v313
    %v328 = vmul.f32 %v289, %v313
    %v329 = vmul.f32 %v290, %v313
    %v330 = vmul.f32 %v291, %v313
    %v331 = vld [vmem:[%s3] sm:$0x1]
    %v333 = vlaneseq
    %v334 = vshrl.u32 %v333, 7
    %v335 = vsub.s32 0, %v334
    %v336 = vrot.slane %v331, %v335
    %v338 = vadd.f32 %v315, %v336
    %v339 = vadd.f32 %v316, %v336
    %v340 = vadd.f32 %v317, %v336
    %v341 = vadd.f32 %v318, %v336
    %v342 = vadd.f32 %v319, %v336
    %v343 = vadd.f32 %v320, %v336
    %v344 = vadd.f32 %v321, %v336
    %v345 = vadd.f32 %v322, %v336
    %v346 = vadd.f32 %v323, %v336
    %v347 = vadd.f32 %v324, %v336
    %v348 = vadd.f32 %v325, %v336
    %v349 = vadd.f32 %v326, %v336
    %v350 = vadd.f32 %v327, %v336
    %v351 = vadd.f32 %v328, %v336
    %v352 = vadd.f32 %v329, %v336
    %v353 = vadd.f32 %v330, %v336
    %v354 = vpack.c.bf16 %v339, %v338
    %v355 = vpack.c.bf16 %v341, %v340
    %v356 = vpack.c.bf16 %v343, %v342
    %v357 = vpack.c.bf16 %v345, %v344
    %v358 = vpack.c.bf16 %v347, %v346
    %v359 = vpack.c.bf16 %v349, %v348
    %v360 = vpack.c.bf16 %v351, %v350
    %v361 = vpack.c.bf16 %v353, %v352
    %v370 = vunpack.c.l.b16 %v354
    %v371 = vunpack.c.h.b16 %v354
    %v372 = vunpack.c.l.b16 %v355
    %v373 = vunpack.c.h.b16 %v355
    %v374 = vunpack.c.l.b16 %v356
    %v375 = vunpack.c.h.b16 %v356
    %v376 = vunpack.c.l.b16 %v357
    %v377 = vunpack.c.h.b16 %v357
    %v378 = vunpack.c.l.b16 %v358
    %v379 = vunpack.c.h.b16 %v358
    %v380 = vunpack.c.l.b16 %v359
    %v381 = vunpack.c.h.b16 %v359
    %v382 = vunpack.c.l.b16 %v360
    %v383 = vunpack.c.h.b16 %v360
    %v384 = vunpack.c.l.b16 %v361
    %v385 = vunpack.c.h.b16 %v361
    %v386 = vpack.c.b16 %v370, %v370
    %v387 = vpack.c.b16 %v371, %v371
    %v388 = vpack.c.b16 %v372, %v372
    %v389 = vpack.c.b16 %v373, %v373
    %v390 = vpack.c.b16 %v374, %v374
    %v391 = vpack.c.b16 %v375, %v375
    %v392 = vpack.c.b16 %v376, %v376
    %v393 = vpack.c.b16 %v377, %v377
    %v394 = vpack.c.b16 %v378, %v378
    %v395 = vpack.c.b16 %v379, %v379
    %v396 = vpack.c.b16 %v380, %v380
    %v397 = vpack.c.b16 %v381, %v381
    %v398 = vpack.c.b16 %v382, %v382
    %v399 = vpack.c.b16 %v383, %v383
    %v400 = vpack.c.b16 %v384, %v384
    %v401 = vpack.c.b16 %v385, %v385
    %vm418 = vcmask 257024
    %419 = vst.msk [vmem:[#allocation3] sm:$0xf] %vm418, %v386
    %420 = vst.msk [vmem:[#allocation3 + $0x4] sm:$0xf] %vm418, %v387
    %421 = vst.msk [vmem:[#allocation3 + $0x8] sm:$0xf] %vm418, %v388
    %422 = vst.msk [vmem:[#allocation3 + $0xc] sm:$0xf] %vm418, %v389
    %423 = vst.msk [vmem:[#allocation3 + $0x10] sm:$0xf] %vm418, %v390
    %424 = vst.msk [vmem:[#allocation3 + $0x14] sm:$0xf] %vm418, %v391
    %425 = vst.msk [vmem:[#allocation3 + $0x18] sm:$0xf] %vm418, %v392
    %426 = vst.msk [vmem:[#allocation3 + $0x1c] sm:$0xf] %vm418, %v393
    %427 = vst.msk [vmem:[#allocation3 + $0x20] sm:$0xf] %vm418, %v394
    %428 = vst.msk [vmem:[#allocation3 + $0x24] sm:$0xf] %vm418, %v395
    %429 = vst.msk [vmem:[#allocation3 + $0x28] sm:$0xf] %vm418, %v396
    %430 = vst.msk [vmem:[#allocation3 + $0x2c] sm:$0xf] %vm418, %v397
    %431 = vst.msk [vmem:[#allocation3 + $0x30] sm:$0xf] %vm418, %v398
    %432 = vst.msk [vmem:[#allocation3 + $0x34] sm:$0xf] %vm418, %v399
    %433 = vst.msk [vmem:[#allocation3 + $0x38] sm:$0xf] %vm418, %v400
    %434 = vst.msk [vmem:[#allocation3 + $0x3c] sm:$0xf] %vm418, %v401
    %435 = vst.msk [vmem:[#allocation4] sm:$0xff] %vm82, 0.0
    %436 = vst.msk [vmem:[#allocation4 + $0x8] sm:$0xff] %vm82, 0.0
    %437 = vst.msk [vmem:[#allocation4 + $0x10] sm:$0xff] %vm82, 0.0
    %438 = vst.msk [vmem:[#allocation4 + $0x18] sm:$0xff] %vm82, 0.0
    %439 = vst.msk [vmem:[#allocation4 + $0x20] sm:$0xff] %vm82, 0.0
    %440 = vst.msk [vmem:[#allocation4 + $0x28] sm:$0xff] %vm82, 0.0
    %441 = vst.msk [vmem:[#allocation4 + $0x30] sm:$0xff] %vm82, 0.0
    %442 = vst.msk [vmem:[#allocation4 + $0x38] sm:$0xff] %vm82, 0.0
    %443 = vst.msk [vmem:[#allocation4 + $0x40] sm:$0xff] %vm82, 0.0
    %444 = vst.msk [vmem:[#allocation4 + $0x48] sm:$0xff] %vm82, 0.0
    %445 = vst.msk [vmem:[#allocation4 + $0x50] sm:$0xff] %vm82, 0.0
    %446 = vst.msk [vmem:[#allocation4 + $0x58] sm:$0xff] %vm82, 0.0
    %447 = vst.msk [vmem:[#allocation4 + $0x60] sm:$0xff] %vm82, 0.0
    %448 = vst.msk [vmem:[#allocation4 + $0x68] sm:$0xff] %vm82, 0.0
    %449 = vst.msk [vmem:[#allocation4 + $0x70] sm:$0xff] %vm82, 0.0
    %450 = vst.msk [vmem:[#allocation4 + $0x78] sm:$0xff] %vm82, 0.0
  $region37: #{transformer_stage_forward.8} parent=0 // pred_fallthru
    _
  %v451 = vld [vmem:[#allocation3] sm:$0xf]
  %v452 = vld [vmem:[#allocation3 + $0x4] sm:$0xf]
  %v453 = vld [vmem:[#allocation3 + $0x8] sm:$0xf]
  %v454 = vld [vmem:[#allocation3 + $0xc] sm:$0xf]
  %v455 = vld [vmem:[#allocation3 + $0x10] sm:$0xf]
  %v456 = vld [vmem:[#allocation3 + $0x14] sm:$0xf]
  %v457 = vld [vmem:[#allocation3 + $0x18] sm:$0xf]
  %v458 = vld [vmem:[#allocation3 + $0x1c] sm:$0xf]
  %v459 = vld [vmem:[#allocation3 + $0x20] sm:$0xf]
  %v460 = vld [vmem:[#allocation3 + $0x24] sm:$0xf]
  %v461 = vld [vmem:[#allocation3 + $0x28] sm:$0xf]
  %v462 = vld [vmem:[#allocation3 + $0x2c] sm:$0xf]
  %v463 = vld [vmem:[#allocation3 + $0x30] sm:$0xf]
  %v464 = vld [vmem:[#allocation3 + $0x34] sm:$0xf]
  %v465 = vld [vmem:[#allocation3 + $0x38] sm:$0xf]
  %v466 = vld [vmem:[#allocation3 + $0x3c] sm:$0xf]
  %v467 = vld [vmem:[%s4] sm:$0xf]
  %v468 = vld [vmem:[%s4 + $0x4] sm:$0xf]
  %v469 = vld [vmem:[%s4 + $0x8] sm:$0xf]
  %v470 = vld [vmem:[%s4 + $0xc] sm:$0xf]
  %v471 = vld [vmem:[%s5] sm:$0x1]
  %v473 = vlaneseq
  %v474 = vshrl.u32 %v473, 7
  %v475 = vsub.s32 0, %v474
  %v476 = vrot.slane %v471, %v475
  %v494 = vunpack.c.l.b16 %v451
  %v495 = vunpack.c.l.b16 %v452
  %v496 = vunpack.c.l.b16 %v453
  %v497 = vunpack.c.l.b16 %v454
  %v498 = vunpack.c.l.b16 %v455
  %v499 = vunpack.c.l.b16 %v456
  %v500 = vunpack.c.l.b16 %v457
  %v501 = vunpack.c.l.b16 %v458
  %v502 = vunpack.c.l.b16 %v459
  %v503 = vunpack.c.l.b16 %v460
  %v504 = vunpack.c.l.b16 %v461
  %v505 = vunpack.c.l.b16 %v462
  %v506 = vunpack.c.l.b16 %v463
  %v507 = vunpack.c.l.b16 %v464
  %v508 = vunpack.c.l.b16 %v465
  %v509 = vunpack.c.l.b16 %v466
  %v510 = vpack.c.b16 %v495, %v494
  %v511 = vpack.c.b16 %v497, %v496
  %v512 = vpack.c.b16 %v499, %v498
  %v513 = vpack.c.b16 %v501, %v500
  %v514 = vpack.c.b16 %v503, %v502
  %v515 = vpack.c.b16 %v505, %v504
  %v516 = vpack.c.b16 %v507, %v506
  %v517 = vpack.c.b16 %v509, %v508
  %v522 = vunpack.c.l.b16 %v467
  %v523 = vunpack.c.l.b16 %v468
  %v524 = vunpack.c.l.b16 %v469
  %v525 = vunpack.c.l.b16 %v470
  %v526 = vpack.c.b16 %v523, %v522
  %v527 = vpack.c.b16 %v525, %v524
  %vm530 = vcmask 261120
  %v532 = vsel %vm530, %v510, 0
  %v535 = vsel %vm530, %v511, 0
  %v538 = vsel %vm530, %v512, 0
  %v541 = vsel %vm530, %v513, 0
  %v544 = vsel %vm530, %v514, 0
  %v547 = vsel %vm530, %v515, 0
  %v550 = vsel %vm530, %v516, 0
  %v553 = vsel %vm530, %v517, 0
  %555 = vmatprep.subr.bf16.mxu0 0
  %556 = vmatpush1.bf16.msra.mxu0 0
  %557 = vmatprep.subr.bf16.mxu0 0
  %558 = vmatpush1.bf16.msra.mxu0 0
  %559 = vmatprep.subr.bf16.mxu0 0
  %560 = vmatpush1.bf16.msra.mxu0 0
  %561 = vmatprep.subr.bf16.mxu0 0
  %562 = vmatpush1.bf16.msra.mxu0 0
  %563 = vmatprep.subr.bf16.mxu0 0
  %564 = vmatpush1.bf16.msra.mxu0 0
  %565 = vmatprep.subr.bf16.mxu0 0
  %566 = vmatpush1.bf16.msra.mxu0 0
  %567 = vmatprep.subr.bf16.mxu0 0
  %568 = vmatpush1.bf16.msra.mxu0 %v527
  %569 = vmatprep.subr.bf16.mxu0 0
  %570 = vmatpush1.bf16.msra.mxu0 %v526
  %571 = vmatprep.subr.bf16.mxu0 0
  %572 = vmatpush2.bf16.msra.mxu0 0
  %573 = vmatprep.subr.bf16.mxu0 0
  %574 = vmatpush2.bf16.msra.mxu0 0
  %575 = vmatprep.subr.bf16.mxu0 0
  %576 = vmatpush2.bf16.msra.mxu0 0
  %577 = vmatprep.subr.bf16.mxu0 0
  %578 = vmatpush2.bf16.msra.mxu0 0
  %579 = vmatprep.subr.bf16.mxu0 0
  %580 = vmatpush2.bf16.msra.mxu0 0
  %581 = vmatprep.subr.bf16.mxu0 0
  %582 = vmatpush2.bf16.msra.mxu0 0
  %583 = vmatprep.subr.bf16.mxu0 0
  %584 = vmatpush2.bf16.msra.mxu0 0
  %585 = vmatprep.subr.bf16.mxu0 0
  %586 = vmatpush2.bf16.msra.mxu0 0
  %587 = vmatprep.mubr.bf16.mxu0 0
  %588 = vmatmul.mubr.bf16.gmra.mxu0 %v532
  %v589 = vpop.f32.mrf.mxu0
  %v590 = vadd.f32 %v476, %v589
  %v591 = vpop.f32.mrf.mxu0
  %v592 = vpop.f32.mrf.mxu0
  %v593 = vadd.f32 %v476, %v592
  %v594 = vpop.f32.mrf.mxu0
  %595 = vmatprep.mubr.bf16.mxu0 0
  %596 = vmatmul.mubr.bf16.gmra.mxu0 %v535
  %v597 = vpop.f32.mrf.mxu0
  %v598 = vadd.f32 %v476, %v597
  %v599 = vpop.f32.mrf.mxu0
  %v600 = vpop.f32.mrf.mxu0
  %v601 = vadd.f32 %v476, %v600
  %v602 = vpop.f32.mrf.mxu0
  %603 = vmatprep.mubr.bf16.mxu0 0
  %604 = vmatmul.mubr.bf16.gmra.mxu0 %v538
  %v605 = vpop.f32.mrf.mxu0
  %v606 = vadd.f32 %v476, %v605
  %v607 = vpop.f32.mrf.mxu0
  %v608 = vpop.f32.mrf.mxu0
  %v609 = vadd.f32 %v476, %v608
  %v610 = vpop.f32.mrf.mxu0
  %611 = vmatprep.mubr.bf16.mxu0 0
  %612 = vmatmul.mubr.bf16.gmra.mxu0 %v541
  %v613 = vpop.f32.mrf.mxu0
  %v614 = vadd.f32 %v476, %v613
  %v615 = vpop.f32.mrf.mxu0
  %v616 = vpop.f32.mrf.mxu0
  %v617 = vadd.f32 %v476, %v616
  %v618 = vpop.f32.mrf.mxu0
  %619 = vmatprep.mubr.bf16.mxu0 0
  %620 = vmatmul.mubr.bf16.gmra.mxu0 %v544
  %v621 = vpop.f32.mrf.mxu0
  %v622 = vadd.f32 %v476, %v621
  %v623 = vpop.f32.mrf.mxu0
  %v624 = vpop.f32.mrf.mxu0
  %v625 = vadd.f32 %v476, %v624
  %v626 = vpop.f32.mrf.mxu0
  %627 = vmatprep.mubr.bf16.mxu0 0
  %628 = vmatmul.mubr.bf16.gmra.mxu0 %v547
  %v629 = vpop.f32.mrf.mxu0
  %v630 = vadd.f32 %v476, %v629
  %v631 = vpop.f32.mrf.mxu0
  %v632 = vpop.f32.mrf.mxu0
  %v633 = vadd.f32 %v476, %v632
  %v634 = vpop.f32.mrf.mxu0
  %635 = vmatprep.mubr.bf16.mxu0 0
  %636 = vmatmul.mubr.bf16.gmra.mxu0 %v550
  %v637 = vpop.f32.mrf.mxu0
  %v638 = vadd.f32 %v476, %v637
  %v639 = vpop.f32.mrf.mxu0
  %v640 = vpop.f32.mrf.mxu0
  %v641 = vadd.f32 %v476, %v640
  %v642 = vpop.f32.mrf.mxu0
  %643 = vmatprep.mubr.bf16.mxu0 0
  %644 = vmatmul.mubr.bf16.gmra.mxu0 %v553
  %v645 = vpop.f32.mrf.mxu0
  %v646 = vadd.f32 %v476, %v645
  %v647 = vpop.f32.mrf.mxu0
  %v648 = vpop.f32.mrf.mxu0
  %v649 = vadd.f32 %v476, %v648
  %v650 = vpop.f32.mrf.mxu0
  %651 = vdwg.mxu0
  %v652 = vmul.f32 %v590, %v590
  %v653 = vmul.f32 %v593, %v593
  %v654 = vmul.f32 %v598, %v598
  %v655 = vmul.f32 %v601, %v601
  %v656 = vmul.f32 %v606, %v606
  %v657 = vmul.f32 %v609, %v609
  %v658 = vmul.f32 %v614, %v614
  %v659 = vmul.f32 %v617, %v617
  %v660 = vmul.f32 %v622, %v622
  %v661 = vmul.f32 %v625, %v625
  %v662 = vmul.f32 %v630, %v630
  %v663 = vmul.f32 %v633, %v633
  %v664 = vmul.f32 %v638, %v638
  %v665 = vmul.f32 %v641, %v641
  %v666 = vmul.f32 %v646, %v646
  %v667 = vmul.f32 %v649, %v649
  %v668 = vmul.f32 %v590, %v652
  %v669 = vmul.f32 %v593, %v653
  %v670 = vmul.f32 %v598, %v654
  %v671 = vmul.f32 %v601, %v655
  %v672 = vmul.f32 %v606, %v656
  %v673 = vmul.f32 %v609, %v657
  %v674 = vmul.f32 %v614, %v658
  %v675 = vmul.f32 %v617, %v659
  %v676 = vmul.f32 %v622, %v660
  %v677 = vmul.f32 %v625, %v661
  %v678 = vmul.f32 %v630, %v662
  %v679 = vmul.f32 %v633, %v663
  %v680 = vmul.f32 %v638, %v664
  %v681 = vmul.f32 %v641, %v665
  %v682 = vmul.f32 %v646, %v666
  %v683 = vmul.f32 %v649, %v667
  %v684 = vmul.f32 %v668, 0.044715
  %v685 = vmul.f32 %v669, 0.044715
  %v686 = vmul.f32 %v670, 0.044715
  %v687 = vmul.f32 %v671, 0.044715
  %v688 = vmul.f32 %v672, 0.044715
  %v689 = vmul.f32 %v673, 0.044715
  %v690 = vmul.f32 %v674, 0.044715
  %v691 = vmul.f32 %v675, 0.044715
  %v692 = vmul.f32 %v676, 0.044715
  %v693 = vmul.f32 %v677, 0.044715
  %v694 = vmul.f32 %v678, 0.044715
  %v695 = vmul.f32 %v679, 0.044715
  %v696 = vmul.f32 %v680, 0.044715
  %v697 = vmul.f32 %v681, 0.044715
  %v698 = vmul.f32 %v682, 0.044715
  %v699 = vmul.f32 %v683, 0.044715
  %v700 = vadd.f32 %v590, %v684
  %v701 = vadd.f32 %v593, %v685
  %v702 = vadd.f32 %v598, %v686
  %v703 = vadd.f32 %v601, %v687
  %v704 = vadd.f32 %v606, %v688
  %v705 = vadd.f32 %v609, %v689
  %v706 = vadd.f32 %v614, %v690
  %v707 = vadd.f32 %v617, %v691
  %v708 = vadd.f32 %v622, %v692
  %v709 = vadd.f32 %v625, %v693
  %v710 = vadd.f32 %v630, %v694
  %v711 = vadd.f32 %v633, %v695
  %v712 = vadd.f32 %v638, %v696
  %v713 = vadd.f32 %v641, %v697
  %v714 = vadd.f32 %v646, %v698
  %v715 = vadd.f32 %v649, %v699
  %v716 = vmul.f32 %v700, 0.7978846
  %v717 = vmul.f32 %v701, 0.7978846
  %v718 = vmul.f32 %v702, 0.7978846
  %v719 = vmul.f32 %v703, 0.7978846
  %v720 = vmul.f32 %v704, 0.7978846
  %v721 = vmul.f32 %v705, 0.7978846
  %v722 = vmul.f32 %v706, 0.7978846
  %v723 = vmul.f32 %v707, 0.7978846
  %v724 = vmul.f32 %v708, 0.7978846
  %v725 = vmul.f32 %v709, 0.7978846
  %v726 = vmul.f32 %v710, 0.7978846
  %v727 = vmul.f32 %v711, 0.7978846
  %v728 = vmul.f32 %v712, 0.7978846
  %v729 = vmul.f32 %v713, 0.7978846
  %v730 = vmul.f32 %v714, 0.7978846
  %v731 = vmul.f32 %v715, 0.7978846
  %v732 = vtanh.pop %v716
  %v733 = vtanh.pop %v717
  %v734 = vtanh.pop %v718
  %v735 = vtanh.pop %v719
  %v736 = vtanh.pop %v720
  %v737 = vtanh.pop %v721
  %v738 = vtanh.pop %v722
  %v739 = vtanh.pop %v723
  %v740 = vtanh.pop %v724
  %v741 = vtanh.pop %v725
  %v742 = vtanh.pop %v726
  %v743 = vtanh.pop %v727
  %v744 = vtanh.pop %v728
  %v745 = vtanh.pop %v729
  %v746 = vtanh.pop %v730
  %v747 = vtanh.pop %v731
  %v748 = vadd.f32 %v732, 1.0
  %v749 = vadd.f32 %v733, 1.0
  %v750 = vadd.f32 %v734, 1.0
  %v751 = vadd.f32 %v735, 1.0
  %v752 = vadd.f32 %v736, 1.0
  %v753 = vadd.f32 %v737, 1.0
  %v754 = vadd.f32 %v738, 1.0
  %v755 = vadd.f32 %v739, 1.0
  %v756 = vadd.f32 %v740, 1.0
  %v757 = vadd.f32 %v741, 1.0
  %v758 = vadd.f32 %v742, 1.0
  %v759 = vadd.f32 %v743, 1.0
  %v760 = vadd.f32 %v744, 1.0
  %v761 = vadd.f32 %v745, 1.0
  %v762 = vadd.f32 %v746, 1.0
  %v763 = vadd.f32 %v747, 1.0
  %v764 = vmul.f32 %v748, 0.5
  %v765 = vmul.f32 %v749, 0.5
  %v766 = vmul.f32 %v750, 0.5
  %v767 = vmul.f32 %v751, 0.5
  %v768 = vmul.f32 %v752, 0.5
  %v769 = vmul.f32 %v753, 0.5
  %v770 = vmul.f32 %v754, 0.5
  %v771 = vmul.f32 %v755, 0.5
  %v772 = vmul.f32 %v756, 0.5
  %v773 = vmul.f32 %v757, 0.5
  %v774 = vmul.f32 %v758, 0.5
  %v775 = vmul.f32 %v759, 0.5
  %v776 = vmul.f32 %v760, 0.5
  %v777 = vmul.f32 %v761, 0.5
  %v778 = vmul.f32 %v762, 0.5
  %v779 = vmul.f32 %v763, 0.5
  %v780 = vmul.f32 %v590, %v764
  %v781 = vmul.f32 %v593, %v765
  %v782 = vmul.f32 %v598, %v766
  %v783 = vmul.f32 %v601, %v767
  %v784 = vmul.f32 %v606, %v768
  %v785 = vmul.f32 %v609, %v769
  %v786 = vmul.f32 %v614, %v770
  %v787 = vmul.f32 %v617, %v771
  %v788 = vmul.f32 %v622, %v772
  %v789 = vmul.f32 %v625, %v773
  %v790 = vmul.f32 %v630, %v774
  %v791 = vmul.f32 %v633, %v775
  %v792 = vmul.f32 %v638, %v776
  %v793 = vmul.f32 %v641, %v777
  %v794 = vmul.f32 %v646, %v778
  %v795 = vmul.f32 %v649, %v779
  %v796 = vld [vmem:[#allocation4] sm:$0xff]
  %v797 = vld [vmem:[#allocation4 + $0x8] sm:$0xff]
  %v798 = vld [vmem:[#allocation4 + $0x10] sm:$0xff]
  %v799 = vld [vmem:[#allocation4 + $0x18] sm:$0xff]
  %v800 = vld [vmem:[#allocation4 + $0x20] sm:$0xff]
  %v801 = vld [vmem:[#allocation4 + $0x28] sm:$0xff]
  %v802 = vld [vmem:[#allocation4 + $0x30] sm:$0xff]
  %v803 = vld [vmem:[#allocation4 + $0x38] sm:$0xff]
  %v804 = vld [vmem:[#allocation4 + $0x40] sm:$0xff]
  %v805 = vld [vmem:[#allocation4 + $0x48] sm:$0xff]
  %v806 = vld [vmem:[#allocation4 + $0x50] sm:$0xff]
  %v807 = vld [vmem:[#allocation4 + $0x58] sm:$0xff]
  %v808 = vld [vmem:[#allocation4 + $0x60] sm:$0xff]
  %v809 = vld [vmem:[#allocation4 + $0x68] sm:$0xff]
  %v810 = vld [vmem:[#allocation4 + $0x70] sm:$0xff]
  %v811 = vld [vmem:[#allocation4 + $0x78] sm:$0xff]
  %v812 = vpack.c.bf16 %v781, %v780
  %v813 = vpack.c.bf16 %v783, %v782
  %v814 = vpack.c.bf16 %v785, %v784
  %v815 = vpack.c.bf16 %v787, %v786
  %v816 = vpack.c.bf16 %v789, %v788
  %v817 = vpack.c.bf16 %v791, %v790
  %v818 = vpack.c.bf16 %v793, %v792
  %v819 = vpack.c.bf16 %v795, %v794
  %v820 = vld [vmem:[%s6] sm:$0xf]
  %v821 = vld [vmem:[%s6 + $0x4] sm:$0xf]
  %v822 = vld [vmem:[%s6 + $0x8] sm:$0xf]
  %v823 = vld [vmem:[%s6 + $0xc] sm:$0xf]
  %v824 = vld [vmem:[%s6 + $0x10] sm:$0xf]
  %v825 = vld [vmem:[%s6 + $0x14] sm:$0xf]
  %v826 = vld [vmem:[%s6 + $0x18] sm:$0xf]
  %v827 = vld [vmem:[%s6 + $0x1c] sm:$0xf]
  %v828 = vld [vmem:[%s6 + $0x20] sm:$0xf]
  %v829 = vld [vmem:[%s6 + $0x24] sm:$0xf]
  %v830 = vld [vmem:[%s6 + $0x28] sm:$0xf]
  %v831 = vld [vmem:[%s6 + $0x2c] sm:$0xf]
  %v832 = vld [vmem:[%s6 + $0x30] sm:$0xf]
  %v833 = vld [vmem:[%s6 + $0x34] sm:$0xf]
  %v834 = vld [vmem:[%s6 + $0x38] sm:$0xf]
  %v835 = vld [vmem:[%s6 + $0x3c] sm:$0xf]
  %v852 = vunpack.c.l.b16 %v820
  %v853 = vunpack.c.l.b16 %v821
  %v854 = vunpack.c.l.b16 %v822
  %v855 = vunpack.c.l.b16 %v823
  %v856 = vunpack.c.l.b16 %v824
  %v857 = vunpack.c.l.b16 %v825
  %v858 = vunpack.c.l.b16 %v826
  %v859 = vunpack.c.l.b16 %v827
  %v860 = vunpack.c.l.b16 %v828
  %v861 = vunpack.c.l.b16 %v829
  %v862 = vunpack.c.l.b16 %v830
  %v863 = vunpack.c.l.b16 %v831
  %v864 = vunpack.c.l.b16 %v832
  %v865 = vunpack.c.l.b16 %v833
  %v866 = vunpack.c.l.b16 %v834
  %v867 = vunpack.c.l.b16 %v835
  %v868 = vpack.c.b16 %v853, %v852
  %v869 = vpack.c.b16 %v855, %v854
  %v870 = vpack.c.b16 %v857, %v856
  %v871 = vpack.c.b16 %v859, %v858
  %v872 = vpack.c.b16 %v861, %v860
  %v873 = vpack.c.b16 %v863, %v862
  %v874 = vpack.c.b16 %v865, %v864
  %v875 = vpack.c.b16 %v867, %v866
  %884 = vmatprep.subr.bf16.mxu0 0
  %885 = vmatpush1.bf16.msra.mxu0 %v875
  %886 = vmatprep.subr.bf16.mxu0 0
  %887 = vmatpush1.bf16.msra.mxu0 %v874
  %888 = vmatprep.subr.bf16.mxu0 0
  %889 = vmatpush1.bf16.msra.mxu0 %v873
  %890 = vmatprep.subr.bf16.mxu0 0
  %891 = vmatpush1.bf16.msra.mxu0 %v872
  %892 = vmatprep.subr.bf16.mxu0 0
  %893 = vmatpush1.bf16.msra.mxu0 %v871
  %894 = vmatprep.subr.bf16.mxu0 0
  %895 = vmatpush1.bf16.msra.mxu0 %v870
  %896 = vmatprep.subr.bf16.mxu0 0
  %897 = vmatpush1.bf16.msra.mxu0 %v869
  %898 = vmatprep.subr.bf16.mxu0 0
  %899 = vmatpush1.bf16.msra.mxu0 %v868
  %900 = vmatprep.subr.bf16.mxu0 0
  %901 = vmatpush2.bf16.msra.mxu0 0
  %902 = vmatprep.subr.bf16.mxu0 0
  %903 = vmatpush2.bf16.msra.mxu0 0
  %904 = vmatprep.subr.bf16.mxu0 0
  %905 = vmatpush2.bf16.msra.mxu0 0
  %906 = vmatprep.subr.bf16.mxu0 0
  %907 = vmatpush2.bf16.msra.mxu0 0
  %908 = vmatprep.subr.bf16.mxu0 0
  %909 = vmatpush2.bf16.msra.mxu0 0
  %910 = vmatprep.subr.bf16.mxu0 0
  %911 = vmatpush2.bf16.msra.mxu0 0
  %912 = vmatprep.subr.bf16.mxu0 0
  %913 = vmatpush2.bf16.msra.mxu0 0
  %914 = vmatprep.subr.bf16.mxu0 0
  %915 = vmatpush2.bf16.msra.mxu0 0
  %916 = vmatprep.mubr.bf16.mxu0 0
  %917 = vmatmul.mubr.bf16.gmra.mxu0 %v812
  %v918 = vpop.f32.mrf.mxu0
  %v919 = vadd.f32 0.0, %v918
  %v920 = vpop.f32.mrf.mxu0
  %v921 = vpop.f32.mrf.mxu0
  %v922 = vadd.f32 0.0, %v921
  %v923 = vpop.f32.mrf.mxu0
  %924 = vmatprep.mubr.bf16.mxu0 0
  %925 = vmatmul.mubr.bf16.gmra.mxu0 %v813
  %v926 = vpop.f32.mrf.mxu0
  %v927 = vadd.f32 0.0, %v926
  %v928 = vpop.f32.mrf.mxu0
  %v929 = vpop.f32.mrf.mxu0
  %v930 = vadd.f32 0.0, %v929
  %v931 = vpop.f32.mrf.mxu0
  %932 = vmatprep.mubr.bf16.mxu0 0
  %933 = vmatmul.mubr.bf16.gmra.mxu0 %v814
  %v934 = vpop.f32.mrf.mxu0
  %v935 = vadd.f32 0.0, %v934
  %v936 = vpop.f32.mrf.mxu0
  %v937 = vpop.f32.mrf.mxu0
  %v938 = vadd.f32 0.0, %v937
  %v939 = vpop.f32.mrf.mxu0
  %940 = vmatprep.mubr.bf16.mxu0 0
  %941 = vmatmul.mubr.bf16.gmra.mxu0 %v815
  %v942 = vpop.f32.mrf.mxu0
  %v943 = vadd.f32 0.0, %v942
  %v944 = vpop.f32.mrf.mxu0
  %v945 = vpop.f32.mrf.mxu0
  %v946 = vadd.f32 0.0, %v945
  %v947 = vpop.f32.mrf.mxu0
  %948 = vmatprep.mubr.bf16.mxu0 0
  %949 = vmatmul.mubr.bf16.gmra.mxu0 %v816
  %v950 = vpop.f32.mrf.mxu0
  %v951 = vadd.f32 0.0, %v950
  %v952 = vpop.f32.mrf.mxu0
  %v953 = vpop.f32.mrf.mxu0
  %v954 = vadd.f32 0.0, %v953
  %v955 = vpop.f32.mrf.mxu0
  %956 = vmatprep.mubr.bf16.mxu0 0
  %957 = vmatmul.mubr.bf16.gmra.mxu0 %v817
  %v958 = vpop.f32.mrf.mxu0
  %v959 = vadd.f32 0.0, %v958
  %v960 = vpop.f32.mrf.mxu0
  %v961 = vpop.f32.mrf.mxu0
  %v962 = vadd.f32 0.0, %v961
  %v963 = vpop.f32.mrf.mxu0
  %964 = vmatprep.mubr.bf16.mxu0 0
  %965 = vmatmul.mubr.bf16.gmra.mxu0 %v818
  %v966 = vpop.f32.mrf.mxu0
  %v967 = vadd.f32 0.0, %v966
  %v968 = vpop.f32.mrf.mxu0
  %v969 = vpop.f32.mrf.mxu0
  %v970 = vadd.f32 0.0, %v969
  %v971 = vpop.f32.mrf.mxu0
  %972 = vmatprep.mubr.bf16.mxu0 0
  %973 = vmatmul.mubr.bf16.gmra.mxu0 %v819
  %v974 = vpop.f32.mrf.mxu0
  %v975 = vadd.f32 0.0, %v974
  %v976 = vpop.f32.mrf.mxu0
  %v977 = vpop.f32.mrf.mxu0
  %v978 = vadd.f32 0.0, %v977
  %v979 = vpop.f32.mrf.mxu0
  %980 = vdwg.mxu0
  %v981 = vadd.f32 %v796, %v919
  %v982 = vadd.f32 %v797, %v922
  %v983 = vadd.f32 %v798, %v927
  %v984 = vadd.f32 %v799, %v930
  %v985 = vadd.f32 %v800, %v935
  %v986 = vadd.f32 %v801, %v938
  %v987 = vadd.f32 %v802, %v943
  %v988 = vadd.f32 %v803, %v946
  %v989 = vadd.f32 %v804, %v951
  %v990 = vadd.f32 %v805, %v954
  %v991 = vadd.f32 %v806, %v959
  %v992 = vadd.f32 %v807, %v962
  %v993 = vadd.f32 %v808, %v967
  %v994 = vadd.f32 %v809, %v970
  %v995 = vadd.f32 %v810, %v975
  %v996 = vadd.f32 %v811, %v978
  %997 = vst.msk [vmem:[#allocation4] sm:$0xff] %vm530, %v981
  %998 = vst.msk [vmem:[#allocation4 + $0x8] sm:$0xff] %vm530, %v982
  %999 = vst.msk [vmem:[#allocation4 + $0x10] sm:$0xff] %vm530, %v983
  %1000 = vst.msk [vmem:[#allocation4 + $0x18] sm:$0xff] %vm530, %v984
  %1001 = vst.msk [vmem:[#allocation4 + $0x20] sm:$0xff] %vm530, %v985
  %1002 = vst.msk [vmem:[#allocation4 + $0x28] sm:$0xff] %vm530, %v986
  %1003 = vst.msk [vmem:[#allocation4 + $0x30] sm:$0xff] %vm530, %v987
  %1004 = vst.msk [vmem:[#allocation4 + $0x38] sm:$0xff] %vm530, %v988
  %1005 = vst.msk [vmem:[#allocation4 + $0x40] sm:$0xff] %vm530, %v989
  %1006 = vst.msk [vmem:[#allocation4 + $0x48] sm:$0xff] %vm530, %v990
  %1007 = vst.msk [vmem:[#allocation4 + $0x50] sm:$0xff] %vm530, %v991
  %1008 = vst.msk [vmem:[#allocation4 + $0x58] sm:$0xff] %vm530, %v992
  %1009 = vst.msk [vmem:[#allocation4 + $0x60] sm:$0xff] %vm530, %v993
  %1010 = vst.msk [vmem:[#allocation4 + $0x68] sm:$0xff] %vm530, %v994
  %1011 = vst.msk [vmem:[#allocation4 + $0x70] sm:$0xff] %vm530, %v995
  %1012 = vst.msk [vmem:[#allocation4 + $0x78] sm:$0xff] %vm530, %v996
  // Predicated region
  $region38: #{transformer_stage_forward.8} parent=0 // pred_check
    %p1013 = pneg %p30
  $region39: #{transformer_stage_forward.8} parent=0 // pred_check_branch
    %1015 = sbr.rel (%p1013) target = $region41
  $region40: #{transformer_stage_forward.8} parent=0 // pred_region
    %v1016 = vld [vmem:[#allocation2] sm:$0xff]
    %v1017 = vld [vmem:[#allocation2 + $0x8] sm:$0xff]
    %v1018 = vld [vmem:[#allocation2 + $0x10] sm:$0xff]
    %v1019 = vld [vmem:[#allocation2 + $0x18] sm:$0xff]
    %v1020 = vld [vmem:[#allocation2 + $0x20] sm:$0xff]
    %v1021 = vld [vmem:[#allocation2 + $0x28] sm:$0xff]
    %v1022 = vld [vmem:[#allocation2 + $0x30] sm:$0xff]
    %v1023 = vld [vmem:[#allocation2 + $0x38] sm:$0xff]
    %v1024 = vld [vmem:[#allocation2 + $0x40] sm:$0xff]
    %v1025 = vld [vmem:[#allocation2 + $0x48] sm:$0xff]
    %v1026 = vld [vmem:[#allocation2 + $0x50] sm:$0xff]
    %v1027 = vld [vmem:[#allocation2 + $0x58] sm:$0xff]
    %v1028 = vld [vmem:[#allocation2 + $0x60] sm:$0xff]
    %v1029 = vld [vmem:[#allocation2 + $0x68] sm:$0xff]
    %v1030 = vld [vmem:[#allocation2 + $0x70] sm:$0xff]
    %v1031 = vld [vmem:[#allocation2 + $0x78] sm:$0xff]
    %v1032 = vld [vmem:[#allocation4] sm:$0xff]
    %v1033 = vld [vmem:[#allocation4 + $0x8] sm:$0xff]
    %v1034 = vld [vmem:[#allocation4 + $0x10] sm:$0xff]
    %v1035 = vld [vmem:[#allocation4 + $0x18] sm:$0xff]
    %v1036 = vld [vmem:[#allocation4 + $0x20] sm:$0xff]
    %v1037 = vld [vmem:[#allocation4 + $0x28] sm:$0xff]
    %v1038 = vld [vmem:[#allocation4 + $0x30] sm:$0xff]
    %v1039 = vld [vmem:[#allocation4 + $0x38] sm:$0xff]
    %v1040 = vld [vmem:[#allocation4 + $0x40] sm:$0xff]
    %v1041 = vld [vmem:[#allocation4 + $0x48] sm:$0xff]
    %v1042 = vld [vmem:[#allocation4 + $0x50] sm:$0xff]
    %v1043 = vld [vmem:[#allocation4 + $0x58] sm:$0xff]
    %v1044 = vld [vmem:[#allocation4 + $0x60] sm:$0xff]
    %v1045 = vld [vmem:[#allocation4 + $0x68] sm:$0xff]
    %v1046 = vld [vmem:[#allocation4 + $0x70] sm:$0xff]
    %v1047 = vld [vmem:[#allocation4 + $0x78] sm:$0xff]
    %v1048 = vadd.f32 %v1016, %v1032
    %v1049 = vadd.f32 %v1017, %v1033
    %v1050 = vadd.f32 %v1018, %v1034
    %v1051 = vadd.f32 %v1019, %v1035
    %v1052 = vadd.f32 %v1020, %v1036
    %v1053 = vadd.f32 %v1021, %v1037
    %v1054 = vadd.f32 %v1022, %v1038
    %v1055 = vadd.f32 %v1023, %v1039
    %v1056 = vadd.f32 %v1024, %v1040
    %v1057 = vadd.f32 %v1025, %v1041
    %v1058 = vadd.f32 %v1026, %v1042
    %v1059 = vadd.f32 %v1027, %v1043
    %v1060 = vadd.f32 %v1028, %v1044
    %v1061 = vadd.f32 %v1029, %v1045
    %v1062 = vadd.f32 %v1030, %v1046
    %v1063 = vadd.f32 %v1031, %v1047
    %v1064 = vld [vmem:[%s7] sm:$0x1]
    %v1066 = vlaneseq
    %v1067 = vshrl.u32 %v1066, 7
    %v1068 = vsub.s32 0, %v1067
    %v1069 = vrot.slane %v1064, %v1068
    %v1071 = vadd.f32 %v1048, %v1069
    %v1072 = vadd.f32 %v1049, %v1069
    %v1073 = vadd.f32 %v1050, %v1069
    %v1074 = vadd.f32 %v1051, %v1069
    %v1075 = vadd.f32 %v1052, %v1069
    %v1076 = vadd.f32 %v1053, %v1069
    %v1077 = vadd.f32 %v1054, %v1069
    %v1078 = vadd.f32 %v1055, %v1069
    %v1079 = vadd.f32 %v1056, %v1069
    %v1080 = vadd.f32 %v1057, %v1069
    %v1081 = vadd.f32 %v1058, %v1069
    %v1082 = vadd.f32 %v1059, %v1069
    %v1083 = vadd.f32 %v1060, %v1069
    %v1084 = vadd.f32 %v1061, %v1069
    %v1085 = vadd.f32 %v1062, %v1069
    %v1086 = vadd.f32 %v1063, %v1069
    %1087 = vst.msk [vmem:[%s8] sm:$0xff] %vm530, %v1071
    %1088 = vst.msk [vmem:[%s8 + $0x8] sm:$0xff] %vm530, %v1072
    %1089 = vst.msk [vmem:[%s8 + $0x10] sm:$0xff] %vm530, %v1073
    %1090 = vst.msk [vmem:[%s8 + $0x18] sm:$0xff] %vm530, %v1074
    %1091 = vst.msk [vmem:[%s8 + $0x20] sm:$0xff] %vm530, %v1075
    %1092 = vst.msk [vmem:[%s8 + $0x28] sm:$0xff] %vm530, %v1076
    %1093 = vst.msk [vmem:[%s8 + $0x30] sm:$0xff] %vm530, %v1077
    %1094 = vst.msk [vmem:[%s8 + $0x38] sm:$0xff] %vm530, %v1078
    %1095 = vst.msk [vmem:[%s8 + $0x40] sm:$0xff] %vm530, %v1079
    %1096 = vst.msk [vmem:[%s8 + $0x48] sm:$0xff] %vm530, %v1080
    %1097 = vst.msk [vmem:[%s8 + $0x50] sm:$0xff] %vm530, %v1081
    %1098 = vst.msk [vmem:[%s8 + $0x58] sm:$0xff] %vm530, %v1082
    %1099 = vst.msk [vmem:[%s8 + $0x60] sm:$0xff] %vm530, %v1083
    %1100 = vst.msk [vmem:[%s8 + $0x68] sm:$0xff] %vm530, %v1084
    %1101 = vst.msk [vmem:[%s8 + $0x70] sm:$0xff] %vm530, %v1085
    %1102 = vst.msk [vmem:[%s8 + $0x78] sm:$0xff] %vm530, %v1086
  $region41: #{transformer_stage_forward.8} parent=0 // pred_fallthru
    _
  // Predicated region
  $region42: #{transformer_stage_forward.8} parent=0 // pred_check
    _
  $region43: #{transformer_stage_forward.8} parent=0 // pred_check_branch
    %1104 = sbr.rel (0) target = $region45
  $region44: #{transformer_stage_forward.8} parent=0 // pred_region
    _
  $region45: #{transformer_stage_forward.8} parent=0 // pred_fallthru
    _
  // Predicated region
  $region46: #{transformer_stage_forward.8} parent=0 // pred_check
    _
  $region47: #{transformer_stage_forward.8} parent=0 // pred_check_branch
    %1106 = sbr.rel (0) target = $region49
  $region48: #{transformer_stage_forward.8} parent=0 // pred_region
    _
  $region49: #{transformer_stage_forward.8} parent=0 // pred_fallthru
    _

// kernel: transformer_stage_forward.10
$region0: #{transformer_stage_forward.10}
  #allocation0 [shape = 'u32[]', space=smem, size = 0x4, offset = 0x4, fixed_abs, tag = 'smem constant byte address 0x4 - core index']
  #allocation1 [shape = 'u32[144,128]{1,0:T(1,128)}', space=vmem, size = 0x12000, scoped, tag = 'internal scratch']
  #allocation2 [shape = 'f32[32,32]{1,0:T(8,128)}', space=vmem, size = 0x4000, scoped, tag = 'scratch operand']
  %s0 = inlined_call_operand.vmem [shape: f32[2,2,64,16], index: 0, kind: input, shape index: {}]
  %s1 = inlined_call_operand.vmem [shape: f32[2,2,64,16], index: 1, kind: input, shape index: {}]
  %s2 = inlined_call_operand.vmem [shape: f32[2,2,64,16], index: 2, kind: input, shape index: {}]
  %s3 = inlined_call_operand.vmem [shape: f32[2,2,64,8], index: 3, kind: input, shape index: {}]
  %s4 = inlined_call_operand.vmem [shape: f32[2,2,64,8], index: 4, kind: input, shape index: {}]
  %s5 = inlined_call_operand.vmem [shape: f32[8,64], index: 5, kind: input, shape index: {}]
  %s6 = inlined_call_operand.vmem [shape: f32[8,64], index: 6, kind: input, shape index: {}]
  %s7 = inlined_call_operand.vmem [shape: bf16[32,32], index: 7, kind: input, shape index: {}]
  %s8 = inlined_call_operand.vmem [shape: f32[1,32], index: 8, kind: input, shape index: {}]
  %s9 = inlined_call_operand.vmem [shape: f32[2,64,32], index: 9, kind: output, shape index: {}]
  %s10 = sld [smem:[#allocation0]]
  $region183: #{transformer_stage_forward.10} parent=0
    _
  %s12 = ssub.s32 1, %s10
  %s13 = scalar_select 0, %s12, %s10
  $region1: #{transformer_stage_forward.10} parent=0
    #allocation3 [shape = 'u8[65536]{0}', space=vmem, size = 0x10000, scoped, tag = 'input window, operand 0']
    #allocation4 [shape = 'u8[65536]{0}', space=vmem, size = 0x10000, scoped, tag = 'input window, operand 3']
    #allocation5 [shape = 'u8[65536]{0}', space=vmem, size = 0x10000, scoped, tag = 'input window, operand 4']
    loop: start=0, step=1, limit=6
    $region2: #{transformer_stage_forward.10} parent=1 // loop_pre_header
      _
    $region3: #{transformer_stage_forward.10} parent=1 // loop_header
      %s15 = sphi 0, %s19
      %p16 = scmp.ge.s32.totalorder %s15, 6
      %s22 = sphi 0, %s34
      %s23 = sphi 0, %s30
      %s24 = sphi 0, %s22
      %s25 = sphi 0, %s23
      %s26 = sphi 0, %s24
      %s27 = sphi 0, %s25
      %s39 = sphi 0, %s41
      %s42 = sphi 0, %s39
      %s43 = sphi 0, %s42
      %s59 = sphi 0, %s43
      %s65 = sphi 0, %s67
      %s68 = sphi 0, %s65
      %s69 = sphi 0, %s68
      %s85 = sphi 0, %s69
      %s91 = sphi 0, %s93
      %s94 = sphi 0, %s91
      %s95 = sphi 0, %s94
      %s111 = sphi 0, %s95
      %s119 = sphi 0, %s121
      %s122 = sphi 0, %s119
      %s123 = sphi 0, %s122
      %s139 = sphi 0, %s123
      %s147 = sphi 0, %s149
      %s150 = sphi 0, %s147
      %s151 = sphi 0, %s150
      %s167 = sphi 0, %s151
      %s171 = sphi 0, %s171
      %s173 = sphi 0, %s171
      %s174 = sphi 0, %s173
      %s188 = sphi 0, %s174
      %s192 = sphi 0, %s192
      %s194 = sphi 0, %s192
      %s195 = sphi 0, %s194
      %s209 = sphi 0, %s195
      %s213 = sphi 0, %s213
      %s215 = sphi 0, %s213
      %s216 = sphi 0, %s215
      %s230 = sphi 0, %s216
      %s234 = sphi 0, %s234
      %s236 = sphi 0, %s234
      %s237 = sphi 0, %s236
      %s251 = sphi 0, %s237
      %s259 = sphi 0, %s261
      %s262 = sphi 0, %s259
      %s263 = sphi 0, %s262
      %s279 = sphi 0, %s263
    $region4: #{transformer_stage_forward.10} parent=1 // loop_header_branch
      %18 = sbr.rel (%p16) target = $region8
    $region5: #{transformer_stage_forward.10} parent=1 // loop_body
      %s20 = ssub.s32 %s15, 1
      %s21 = ssub.s32 %s15, 2
      %s28 = sadd.s32 1, %s23
      %p29 = scmp.ge.s32.totalorder %s28, 2
      %s30 = scalar_select %p29, 0, %s28
      %s31 = sadd.s32 1, %s22
      %s32 = scalar_select %p29, %s31, %s22
      %p33 = scmp.ge.s32.totalorder %s32, 2
      %s34 = scalar_select %p33, 0, %s32
      %s35 = ssub.s32 %s22, %s34
      %s36 = ssub.s32 %s23, %s30
      %s37 = sor.u32 %s35, %s36
      %p38 = scmp.eq.s32.totalorder %s37, 0
      %s40 = sadd.s32 %s39, 1
      %s41 = scalar_select %p38, %s39, %s40
      %p44 = pneg %p38
      %p45 = scmp.eq.s32.totalorder %s15, 3
      %p46 = por %p44, %p45
      %p47 = scmp.ne.s32.totalorder %s39, %s42
      %p48 = scmp.eq.s32.totalorder %s15, 0
      %p49 = por %p47, %p48
      %p50 = scmp.ne.s32.totalorder %s39, %s42
      %p51 = scmp.eq.s32.totalorder %s20, 3
      %p52 = por %p50, %p51
      %p53 = scmp.ne.s32.totalorder %s42, %s43
      %p54 = scmp.eq.s32.totalorder %s20, 0
      %p55 = por %p53, %p54
      %p56 = scmp.ne.s32.totalorder %s42, %s43
      %p57 = scmp.eq.s32.totalorder %s21, 3
      %p58 = por %p56, %p57
      %p60 = scmp.ne.s32.totalorder %s43, %s59
      %p61 = scmp.eq.s32.totalorder %s21, 0
      %p62 = por %p60, %p61
      %s63 = ssub.s32 %s22, %s34
      %p64 = scmp.eq.s32.totalorder %s63, 0
      %s66 = sadd.s32 %s65, 1
      %s67 = scalar_select %p64, %s65, %s66
      %p70 = pneg %p64
      %p71 = scmp.eq.s32.totalorder %s15, 3
      %p72 = por %p70, %p71
      %p73 = scmp.ne.s32.totalorder %s65, %s68
      %p74 = scmp.eq.s32.totalorder %s15, 0
      %p75 = por %p73, %p74
      %p76 = scmp.ne.s32.totalorder %s65, %s68
      %p77 = scmp.eq.s32.totalorder %s20, 3
      %p78 = por %p76, %p77
      %p79 = scmp.ne.s32.totalorder %s68, %s69
      %p80 = scmp.eq.s32.totalorder %s20, 0
      %p81 = por %p79, %p80
      %p82 = scmp.ne.s32.totalorder %s68, %s69
      %p83 = scmp.eq.s32.totalorder %s21, 3
      %p84 = por %p82, %p83
      %p86 = scmp.ne.s32.totalorder %s69, %s85
      %p87 = scmp.eq.s32.totalorder %s21, 0
      %p88 = por %p86, %p87
      %s89 = ssub.s32 %s22, %s34
      %p90 = scmp.eq.s32.totalorder %s89, 0
      %s92 = sadd.s32 %s91, 1
      %s93 = scalar_select %p90, %s91, %s92
      %p96 = pneg %p90
      %p97 = scmp.eq.s32.totalorder %s15, 3
      %p98 = por %p96, %p97
      %p99 = scmp.ne.s32.totalorder %s91, %s94
      %p100 = scmp.eq.s32.totalorder %s15, 0
      %p101 = por %p99, %p100
      %p102 = scmp.ne.s32.totalorder %s91, %s94
      %p103 = scmp.eq.s32.totalorder %s20, 3
      %p104 = por %p102, %p103
      %p105 = scmp.ne.s32.totalorder %s94, %s95
      %p106 = scmp.eq.s32.totalorder %s20, 0
      %p107 = por %p105, %p106
      %p108 = scmp.ne.s32.totalorder %s94, %s95
      %p109 = scmp.eq.s32.totalorder %s21, 3
      %p110 = por %p108, %p109
      %p112 = scmp.ne.s32.totalorder %s95, %s111
      %p113 = scmp.eq.s32.totalorder %s21, 0
      %p114 = por %p112, %p113
      %s115 = ssub.s32 %s22, %s34
      %s116 = ssub.s32 %s23, %s30
      %s117 = sor.u32 %s115, %s116
      %p118 = scmp.eq.s32.totalorder %s117, 0
      %s120 = sadd.s32 %s119, 1
      %s121 = scalar_select %p118, %s119, %s120
      %p124 = pneg %p118
      %p125 = scmp.eq.s32.totalorder %s15, 3
      %p126 = por %p124, %p125
      %p127 = scmp.ne.s32.totalorder %s119, %s122
      %p128 = scmp.eq.s32.totalorder %s15, 0
      %p129 = por %p127, %p128
      %p130 = scmp.ne.s32.totalorder %s119, %s122
      %p131 = scmp.eq.s32.totalorder %s20, 3
      %p132 = por %p130, %p131
      %p133 = scmp.ne.s32.totalorder %s122, %s123
      %p134 = scmp.eq.s32.totalorder %s20, 0
      %p135 = por %p133, %p134
      %p136 = scmp.ne.s32.totalorder %s122, %s123
      %p137 = scmp.eq.s32.totalorder %s21, 3
      %p138 = por %p136, %p137
      %p140 = scmp.ne.s32.totalorder %s123, %s139
      %p141 = scmp.eq.s32.totalorder %s21, 0
      %p142 = por %p140, %p141
      %s143 = ssub.s32 %s22, %s34
      %s144 = ssub.s32 %s23, %s30
      %s145 = sor.u32 %s143, %s144
      %p146 = scmp.eq.s32.totalorder %s145, 0
      %s148 = sadd.s32 %s147, 1
      %s149 = scalar_select %p146, %s147, %s148
      %p152 = pneg %p146
      %p153 = scmp.eq.s32.totalorder %s15, 3
      %p154 = por %p152, %p153
      %p155 = scmp.ne.s32.totalorder %s147, %s150
      %p156 = scmp.eq.s32.totalorder %s15, 0
      %p157 = por %p155, %p156
      %p158 = scmp.ne.s32.totalorder %s147, %s150
      %p159 = scmp.eq.s32.totalorder %s20, 3
      %p160 = por %p158, %p159
      %p161 = scmp.ne.s32.totalorder %s150, %s151
      %p162 = scmp.eq.s32.totalorder %s20, 0
      %p163 = por %p161, %p162
      %p164 = scmp.ne.s32.totalorder %s150, %s151
      %p165 = scmp.eq.s32.totalorder %s21, 3
      %p166 = por %p164, %p165
      %p168 = scmp.ne.s32.totalorder %s151, %s167
      %p169 = scmp.eq.s32.totalorder %s21, 0
      %p170 = por %p168, %p169
      %s172 = sadd.s32 %s171, 1
      %p175 = scmp.eq.s32.totalorder %s15, 3
      %p176 = scmp.ne.s32.totalorder %s171, %s173
      %p177 = scmp.eq.s32.totalorder %s15, 0
      %p178 = por %p176, %p177
      %p179 = scmp.ne.s32.totalorder %s171, %s173
      %p180 = scmp.eq.s32.totalorder %s20, 3
      %p181 = por %p179, %p180
      %p182 = scmp.ne.s32.totalorder %s173, %s174
      %p183 = scmp.eq.s32.totalorder %s20, 0
      %p184 = por %p182, %p183
      %p185 = scmp.ne.s32.totalorder %s173, %s174
      %p186 = scmp.eq.s32.totalorder %s21, 3
      %p187 = por %p185, %p186
      %p189 = scmp.ne.s32.totalorder %s174, %s188
      %p190 = scmp.eq.s32.totalorder %s21, 0
      %p191 = por %p189, %p190
      %s193 = sadd.s32 %s192, 1
      %p196 = scmp.eq.s32.totalorder %s15, 3
      %p197 = scmp.ne.s32.totalorder %s192, %s194
      %p198 = scmp.eq.s32.totalorder %s15, 0
      %p199 = por %p197, %p198
      %p200 = scmp.ne.s32.totalorder %s192, %s194
      %p201 = scmp.eq.s32.totalorder %s20, 3
      %p202 = por %p200, %p201
      %p203 = scmp.ne.s32.totalorder %s194, %s195
      %p204 = scmp.eq.s32.totalorder %s20, 0
      %p205 = por %p203, %p204
      %p206 = scmp.ne.s32.totalorder %s194, %s195
      %p207 = scmp.eq.s32.totalorder %s21, 3
      %p208 = por %p206, %p207
      %p210 = scmp.ne.s32.totalorder %s195, %s209
      %p211 = scmp.eq.s32.totalorder %s21, 0
      %p212 = por %p210, %p211
      %s214 = sadd.s32 %s213, 1
      %p217 = scmp.eq.s32.totalorder %s15, 3
      %p218 = scmp.ne.s32.totalorder %s213, %s215
      %p219 = scmp.eq.s32.totalorder %s15, 0
      %p220 = por %p218, %p219
      %p221 = scmp.ne.s32.totalorder %s213, %s215
      %p222 = scmp.eq.s32.totalorder %s20, 3
      %p223 = por %p221, %p222
      %p224 = scmp.ne.s32.totalorder %s215, %s216
      %p225 = scmp.eq.s32.totalorder %s20, 0
      %p226 = por %p224, %p225
      %p227 = scmp.ne.s32.totalorder %s215, %s216
      %p228 = scmp.eq.s32.totalorder %s21, 3
      %p229 = por %p227, %p228
      %p231 = scmp.ne.s32.totalorder %s216, %s230
      %p232 = scmp.eq.s32.totalorder %s21, 0
      %p233 = por %p231, %p232
      %s235 = sadd.s32 %s234, 1
      %p238 = scmp.eq.s32.totalorder %s15, 3
      %p239 = scmp.ne.s32.totalorder %s234, %s236
      %p240 = scmp.eq.s32.totalorder %s15, 0
      %p241 = por %p239, %p240
      %p242 = scmp.ne.s32.totalorder %s234, %s236
      %p243 = scmp.eq.s32.totalorder %s20, 3
      %p244 = por %p242, %p243
      %p245 = scmp.ne.s32.totalorder %s236, %s237
      %p246 = scmp.eq.s32.totalorder %s20, 0
      %p247 = por %p245, %p246
      %p248 = scmp.ne.s32.totalorder %s236, %s237
      %p249 = scmp.eq.s32.totalorder %s21, 3
      %p250 = por %p248, %p249
      %p252 = scmp.ne.s32.totalorder %s237, %s251
      %p253 = scmp.eq.s32.totalorder %s21, 0
      %p254 = por %p252, %p253
      %s255 = ssub.s32 %s22, %s34
      %s256 = ssub.s32 %s23, %s30
      %s257 = sor.u32 %s255, %s256
      %p258 = scmp.eq.s32.totalorder %s257, 0
      %s260 = sadd.s32 %s259, 1
      %s261 = scalar_select %p258, %s259, %s260
      %p264 = pneg %p258
      %p265 = scmp.eq.s32.totalorder %s15, 3
      %p266 = por %p264, %p265
      %p267 = scmp.ne.s32.totalorder %s259, %s262
      %p268 = scmp.eq.s32.totalorder %s15, 0
      %p269 = por %p267, %p268
      %p270 = scmp.ne.s32.totalorder %s259, %s262
      %p271 = scmp.eq.s32.totalorder %s20, 3
      %p272 = por %p270, %p271
      %p273 = scmp.ne.s32.totalorder %s262, %s263
      %p274 = scmp.eq.s32.totalorder %s20, 0
      %p275 = por %p273, %p274
      %p276 = scmp.ne.s32.totalorder %s262, %s263
      %p277 = scmp.eq.s32.totalorder %s21, 3
      %p278 = por %p276, %p277
      %p280 = scmp.ne.s32.totalorder %s263, %s279
      %p281 = scmp.eq.s32.totalorder %s21, 0
      %p282 = por %p280, %p281
      %p283 = scmp.le.s32.totalorder 1, %s15
      %p284 = scmp.lt.s32.totalorder %s15, 5
      %p285 = pnand %p283, %p284
      %p286 = pneg %p285
      // Predicated region
      $region9: #{transformer_stage_forward.10} parent=5 // pred_check
        _
      $region10: #{transformer_stage_forward.10} parent=5 // pred_check_branch
        %288 = sbr.rel (%p285) target = $region12
      $region11: #{transformer_stage_forward.10} parent=5 // pred_region
        %s289 = ssub.s32 %s15, 1
        // Predicated region
        $region13: #{transformer_stage_forward.10} parent=11 // pred_check
          %p290 = pneg %p184
        $region14: #{transformer_stage_forward.10} parent=11 // pred_check_branch
          %292 = sbr.rel (%p290) target = $region16
        $region15: #{transformer_stage_forward.10} parent=11 // pred_region
          _
        $region16: #{transformer_stage_forward.10} parent=11 // pred_fallthru
          _
        // Predicated region
        $region17: #{transformer_stage_forward.10} parent=11 // pred_check
          %p293 = pneg %p205
        $region18: #{transformer_stage_forward.10} parent=11 // pred_check_branch
          %295 = sbr.rel (%p293) target = $region20
        $region19: #{transformer_stage_forward.10} parent=11 // pred_region
          _
        $region20: #{transformer_stage_forward.10} parent=11 // pred_fallthru
          _
        // Predicated region
        $region21: #{transformer_stage_forward.10} parent=11 // pred_check
          %p296 = pneg %p226
        $region22: #{transformer_stage_forward.10} parent=11 // pred_check_branch
          %298 = sbr.rel (%p296) target = $region24
        $region23: #{transformer_stage_forward.10} parent=11 // pred_region
          _
        $region24: #{transformer_stage_forward.10} parent=11 // pred_fallthru
          _
        // Predicated region
        $region25: #{transformer_stage_forward.10} parent=11 // pred_check
          %p299 = pneg %p247
        $region26: #{transformer_stage_forward.10} parent=11 // pred_check_branch
          %301 = sbr.rel (%p299) target = $region28
        $region27: #{transformer_stage_forward.10} parent=11 // pred_region
          _
        $region28: #{transformer_stage_forward.10} parent=11 // pred_fallthru
          _
      $region12: #{transformer_stage_forward.10} parent=5 // pred_fallthru
        _
      %p302 = scmp.lt.s32.totalorder %s15, 4
      // Predicated region
      $region29: #{transformer_stage_forward.10} parent=5 // pred_check
        %p303 = pneg %p302
      $region30: #{transformer_stage_forward.10} parent=5 // pred_check_branch
        %305 = sbr.rel (%p303) target = $region32
      $region31: #{transformer_stage_forward.10} parent=5 // pred_region
        // Predicated region
        $region33: #{transformer_stage_forward.10} parent=31 // pred_check
          %p306 = pneg %p49
        $region34: #{transformer_stage_forward.10} parent=31 // pred_check_branch
          %308 = sbr.rel (%p306) target = $region36
        $region35: #{transformer_stage_forward.10} parent=31 // pred_region
          %s309 = sand.u32 %s39, 1
          %s310 = sand.u32 %s39, 1
          %s311 = smul.addr %s310, 64
          %s312 = scalar_lea.vmem [#allocation3], %s311
          %s313 = smul.u32 4, %s23
          %s314 = smul.addr %s22, 16
          %s315 = sadd.s32 %s313, %s314
          %s316 = smul.addr %s315, 8
          %s317 = scalar_lea.vmem %s0, %s316
          // Predicated region
          $region37: #{transformer_stage_forward.10} parent=35 // pred_check
            _
          $region38: #{transformer_stage_forward.10} parent=35 // pred_check_branch
            %319 = sbr.rel (0) target = $region40
          $region39: #{transformer_stage_forward.10} parent=35 // pred_region
            // Predicated region
            $region41: #{transformer_stage_forward.10} parent=39 // pred_check
              _
            $region42: #{transformer_stage_forward.10} parent=39 // pred_check_branch
              %321 = sbr.rel (0) target = $region44
            $region43: #{transformer_stage_forward.10} parent=39 // pred_region
              // Predicated region
              $region56: #{transformer_stage_forward.10} parent=43 // pred_check
                _
              $region57: #{transformer_stage_forward.10} parent=43 // pred_check_branch
                %351 = sbr.rel (0) target = $region59
              $region58: #{transformer_stage_forward.10} parent=43 // pred_region
                loop: start=0, step=1, limit=1
                $region60: #{transformer_stage_forward.10} parent=58 // loop_pre_header
                  _
                $region61: #{transformer_stage_forward.10} parent=58 // loop_header
                  %s353 = sphi 0, %s357
                  %p354 = scmp.ge.s32.totalorder %s353, 1
                  %s358 = sphi %s317, %s317
                  %s359 = sphi %s312, %s312
                $region62: #{transformer_stage_forward.10} parent=58 // loop_header_branch
                  %356 = sbr.rel (%p354) target = $region66
                $region63: #{transformer_stage_forward.10} parent=58 // loop_body
                  %v360 = vld [vmem:[%s358] sm:$0xff]
                  %361 = vst [vmem:[%s359] sm:$0xff] %v360
                  %v362 = vld [vmem:[%s358 + $0x8] sm:$0xff]
                  %363 = vst [vmem:[%s359 + $0x8] sm:$0xff] %v362
                  %v364 = vld [vmem:[%s358 + $0x10] sm:$0xff]
                  %365 = vst [vmem:[%s359 + $0x10] sm:$0xff] %v364
                  %v366 = vld [vmem:[%s358 + $0x18] sm:$0xff]
                  %367 = vst [vmem:[%s359 + $0x18] sm:$0xff] %v366
                  %v368 = vld [vmem:[%s358 + $0x40] sm:$0xff]
                  %369 = vst [vmem:[%s359 + $0x20] sm:$0xff] %v368
                  %v370 = vld [vmem:[%s358 + $0x48] sm:$0xff]
                  %371 = vst [vmem:[%s359 + $0x28] sm:$0xff] %v370
                  %v372 = vld [vmem:[%s358 + $0x50] sm:$0xff]
                  %373 = vst [vmem:[%s359 + $0x30] sm:$0xff] %v372
                  %v374 = vld [vmem:[%s358 + $0x58] sm:$0xff]
                  %375 = vst [vmem:[%s359 + $0x38] sm:$0xff] %v374
                $region64: #{transformer_stage_forward.10} parent=58 // loop_footer
                  %s357 = sadd.s32 1, %s353
                $region65: #{transformer_stage_forward.10} parent=58 // loop_footer_branch
                  %352 = sbr.rel target = $region61
                $region66: #{transformer_stage_forward.10} parent=58 // loop_exit
                  _
              $region59: #{transformer_stage_forward.10} parent=43 // pred_fallthru
                _
              // Predicated region
              $region67: #{transformer_stage_forward.10} parent=43 // pred_check
                _
              $region68: #{transformer_stage_forward.10} parent=43 // pred_check_branch
                %377 = sbr.rel target = $region70
              $region69: #{transformer_stage_forward.10} parent=43 // pred_region
                _
              $region70: #{transformer_stage_forward.10} parent=43 // pred_fallthru
                _
            $region44: #{transformer_stage_forward.10} parent=39 // pred_fallthru
              _
            // Predicated region
            $region45: #{transformer_stage_forward.10} parent=39 // pred_check
              _
            $region46: #{transformer_stage_forward.10} parent=39 // pred_check_branch
              %323 = sbr.rel target = $region48
            $region47: #{transformer_stage_forward.10} parent=39 // pred_region
              %s325 = ssub.s32 256, 1
              loop: start=0, step=1, limit=1
              $region49: #{transformer_stage_forward.10} parent=47 // loop_pre_header
                _
              $region50: #{transformer_stage_forward.10} parent=47 // loop_header
                %s327 = sphi 0, %s331
                %p328 = scmp.ge.s32.totalorder %s327, 1
                %s332 = sphi %s317, %s317
                %s333 = sphi %s312, %s312
              $region51: #{transformer_stage_forward.10} parent=47 // loop_header_branch
                %330 = sbr.rel (%p328) target = $region55
              $region52: #{transformer_stage_forward.10} parent=47 // loop_body
                %v334 = vld [vmem:[%s332] sm:%s325]
                %335 = vst [vmem:[%s333] sm:%s325] %v334
                %v336 = vld [vmem:[%s332 + $0x8] sm:%s325]
                %337 = vst [vmem:[%s333 + $0x8] sm:%s325] %v336
                %v338 = vld [vmem:[%s332 + $0x10] sm:%s325]
                %339 = vst [vmem:[%s333 + $0x10] sm:%s325] %v338
                %v340 = vld [vmem:[%s332 + $0x18] sm:%s325]
                %341 = vst [vmem:[%s333 + $0x18] sm:%s325] %v340
                %v342 = vld [vmem:[%s332 + $0x40] sm:%s325]
                %343 = vst [vmem:[%s333 + $0x20] sm:%s325] %v342
                %v344 = vld [vmem:[%s332 + $0x48] sm:%s325]
                %345 = vst [vmem:[%s333 + $0x28] sm:%s325] %v344
                %v346 = vld [vmem:[%s332 + $0x50] sm:%s325]
                %347 = vst [vmem:[%s333 + $0x30] sm:%s325] %v346
                %v348 = vld [vmem:[%s332 + $0x58] sm:%s325]
                %349 = vst [vmem:[%s333 + $0x38] sm:%s325] %v348
              $region53: #{transformer_stage_forward.10} parent=47 // loop_footer
                %s331 = sadd.s32 1, %s327
              $region54: #{transformer_stage_forward.10} parent=47 // loop_footer_branch
                %326 = sbr.rel target = $region50
              $region55: #{transformer_stage_forward.10} parent=47 // loop_exit
                _
            $region48: #{transformer_stage_forward.10} parent=39 // pred_fallthru
              _
          $region40: #{transformer_stage_forward.10} parent=35 // pred_fallthru
            _
          %378 = vnop
        $region36: #{transformer_stage_forward.10} parent=31 // pred_fallthru
          _
        // Predicated region
        $region71: #{transformer_stage_forward.10} parent=31 // pred_check
          %p379 = pneg %p75
        $region72: #{transformer_stage_forward.10} parent=31 // pred_check_branch
          %381 = sbr.rel (%p379) target = $region74
        $region73: #{transformer_stage_forward.10} parent=31 // pred_region
          %p382 = scmp.lt.s32.totalorder %s22, 1
          %s383 = scalar_select %p382, %s22, 1
          %s384 = smul.addr %s383, 16
          %s385 = smul.addr %s384, 8
          %s386 = scalar_lea.vmem %s1, %s385
        $region74: #{transformer_stage_forward.10} parent=31 // pred_fallthru
          _
        // Predicated region
        $region75: #{transformer_stage_forward.10} parent=31 // pred_check
          %p387 = pneg %p101
        $region76: #{transformer_stage_forward.10} parent=31 // pred_check_branch
          %389 = sbr.rel (%p387) target = $region78
        $region77: #{transformer_stage_forward.10} parent=31 // pred_region
          %p390 = scmp.lt.s32.totalorder %s22, 1
          %s391 = scalar_select %p390, %s22, 1
          %s392 = smul.addr %s391, 16
          %s393 = smul.addr %s392, 8
          %s394 = scalar_lea.vmem %s2, %s393
        $region78: #{transformer_stage_forward.10} parent=31 // pred_fallthru
          _
        // Predicated region
        $region79: #{transformer_stage_forward.10} parent=31 // pred_check
          %p395 = pneg %p129
        $region80: #{transformer_stage_forward.10} parent=31 // pred_check_branch
          %397 = sbr.rel (%p395) target = $region82
        $region81: #{transformer_stage_forward.10} parent=31 // pred_region
          %s398 = sand.u32 %s119, 1
          %s399 = sand.u32 %s119, 1
          %s400 = smul.addr %s399, 64
          %s401 = scalar_lea.vmem [#allocation4], %s400
          %s402 = smul.u32 4, %s23
          %s403 = smul.addr %s22, 16
          %s404 = sadd.s32 %s402, %s403
          %s405 = smul.addr %s404, 8
          %s406 = scalar_lea.vmem %s3, %s405
          // Predicated region
          $region83: #{transformer_stage_forward.10} parent=81 // pred_check
            _
          $region84: #{transformer_stage_forward.10} parent=81 // pred_check_branch
            %408 = sbr.rel (0) target = $region86
          $region85: #{transformer_stage_forward.10} parent=81 // pred_region
            // Predicated region
            $region87: #{transformer_stage_forward.10} parent=85 // pred_check
              _
            $region88: #{transformer_stage_forward.10} parent=85 // pred_check_branch
              %410 = sbr.rel (0) target = $region90
            $region89: #{transformer_stage_forward.10} parent=85 // pred_region
              // Predicated region
              $region102: #{transformer_stage_forward.10} parent=89 // pred_check
                _
              $region103: #{transformer_stage_forward.10} parent=89 // pred_check_branch
                %440 = sbr.rel (0) target = $region105
              $region104: #{transformer_stage_forward.10} parent=89 // pred_region
                loop: start=0, step=1, limit=1
                $region106: #{transformer_stage_forward.10} parent=104 // loop_pre_header
                  _
                $region107: #{transformer_stage_forward.10} parent=104 // loop_header
                  %s442 = sphi 0, %s446
                  %p443 = scmp.ge.s32.totalorder %s442, 1
                  %s447 = sphi %s406, %s406
                  %s448 = sphi %s401, %s401
                $region108: #{transformer_stage_forward.10} parent=104 // loop_header_branch
                  %445 = sbr.rel (%p443) target = $region112
                $region109: #{transformer_stage_forward.10} parent=104 // loop_body
                  %v449 = vld [vmem:[%s447] sm:$0xff]
                  %450 = vst [vmem:[%s448] sm:$0xff] %v449
                  %v451 = vld [vmem:[%s447 + $0x8] sm:$0xff]
                  %452 = vst [vmem:[%s448 + $0x8] sm:$0xff] %v451
                  %v453 = vld [vmem:[%s447 + $0x10] sm:$0xff]
                  %454 = vst [vmem:[%s448 + $0x10] sm:$0xff] %v453
                  %v455 = vld [vmem:[%s447 + $0x18] sm:$0xff]
                  %456 = vst [vmem:[%s448 + $0x18] sm:$0xff] %v455
                  %v457 = vld [vmem:[%s447 + $0x40] sm:$0xff]
                  %458 = vst [vmem:[%s448 + $0x20] sm:$0xff] %v457
                  %v459 = vld [vmem:[%s447 + $0x48] sm:$0xff]
                  %460 = vst [vmem:[%s448 + $0x28] sm:$0xff] %v459
                  %v461 = vld [vmem:[%s447 + $0x50] sm:$0xff]
                  %462 = vst [vmem:[%s448 + $0x30] sm:$0xff] %v461
                  %v463 = vld [vmem:[%s447 + $0x58] sm:$0xff]
                  %464 = vst [vmem:[%s448 + $0x38] sm:$0xff] %v463
                $region110: #{transformer_stage_forward.10} parent=104 // loop_footer
                  %s446 = sadd.s32 1, %s442
                $region111: #{transformer_stage_forward.10} parent=104 // loop_footer_branch
                  %441 = sbr.rel target = $region107
                $region112: #{transformer_stage_forward.10} parent=104 // loop_exit
                  _
              $region105: #{transformer_stage_forward.10} parent=89 // pred_fallthru
                _
              // Predicated region
              $region113: #{transformer_stage_forward.10} parent=89 // pred_check
                _
              $region114: #{transformer_stage_forward.10} parent=89 // pred_check_branch
                %466 = sbr.rel target = $region116
              $region115: #{transformer_stage_forward.10} parent=89 // pred_region
                _
              $region116: #{transformer_stage_forward.10} parent=89 // pred_fallthru
                _
            $region90: #{transformer_stage_forward.10} parent=85 // pred_fallthru
              _
            // Predicated region
            $region91: #{transformer_stage_forward.10} parent=85 // pred_check
              _
            $region92: #{transformer_stage_forward.10} parent=85 // pred_check_branch
              %412 = sbr.rel target = $region94
            $region93: #{transformer_stage_forward.10} parent=85 // pred_region
              %s414 = ssub.s32 256, 1
              loop: start=0, step=1, limit=1
              $region95: #{transformer_stage_forward.10} parent=93 // loop_pre_header
                _
              $region96: #{transformer_stage_forward.10} parent=93 // loop_header
                %s416 = sphi 0, %s420
                %p417 = scmp.ge.s32.totalorder %s416, 1
                %s421 = sphi %s406, %s406
                %s422 = sphi %s401, %s401
              $region97: #{transformer_stage_forward.10} parent=93 // loop_header_branch
                %419 = sbr.rel (%p417) target = $region101
              $region98: #{transformer_stage_forward.10} parent=93 // loop_body
                %v423 = vld [vmem:[%s421] sm:%s414]
                %424 = vst [vmem:[%s422] sm:%s414] %v423
                %v425 = vld [vmem:[%s421 + $0x8] sm:%s414]
                %426 = vst [vmem:[%s422 + $0x8] sm:%s414] %v425
                %v427 = vld [vmem:[%s421 + $0x10] sm:%s414]
                %428 = vst [vmem:[%s422 + $0x10] sm:%s414] %v427
                %v429 = vld [vmem:[%s421 + $0x18] sm:%s414]
                %430 = vst [vmem:[%s422 + $0x18] sm:%s414] %v429
                %v431 = vld [vmem:[%s421 + $0x40] sm:%s414]
                %432 = vst [vmem:[%s422 + $0x20] sm:%s414] %v431
                %v433 = vld [vmem:[%s421 + $0x48] sm:%s414]
                %434 = vst [vmem:[%s422 + $0x28] sm:%s414] %v433
                %v435 = vld [vmem:[%s421 + $0x50] sm:%s414]
                %436 = vst [vmem:[%s422 + $0x30] sm:%s414] %v435
                %v437 = vld [vmem:[%s421 + $0x58] sm:%s414]
                %438 = vst [vmem:[%s422 + $0x38] sm:%s414] %v437
              $region99: #{transformer_stage_forward.10} parent=93 // loop_footer
                %s420 = sadd.s32 1, %s416
              $region100: #{transformer_stage_forward.10} parent=93 // loop_footer_branch
                %415 = sbr.rel target = $region96
              $region101: #{transformer_stage_forward.10} parent=93 // loop_exit
                _
            $region94: #{transformer_stage_forward.10} parent=85 // pred_fallthru
              _
          $region86: #{transformer_stage_forward.10} parent=81 // pred_fallthru
            _
          %467 = vnop
        $region82: #{transformer_stage_forward.10} parent=31 // pred_fallthru
          _
        // Predicated region
        $region117: #{transformer_stage_forward.10} parent=31 // pred_check
          %p468 = pneg %p157
        $region118: #{transformer_stage_forward.10} parent=31 // pred_check_branch
          %470 = sbr.rel (%p468) target = $region120
        $region119: #{transformer_stage_forward.10} parent=31 // pred_region
          %s471 = sand.u32 %s147, 1
          %s472 = sand.u32 %s147, 1
          %s473 = smul.addr %s472, 64
          %s474 = scalar_lea.vmem [#allocation5], %s473
          %s475 = smul.u32 4, %s23
          %s476 = smul.addr %s22, 16
          %s477 = sadd.s32 %s475, %s476
          %s478 = smul.addr %s477, 8
          %s479 = scalar_lea.vmem %s4, %s478
          // Predicated region
          $region121: #{transformer_stage_forward.10} parent=119 // pred_check
            _
          $region122: #{transformer_stage_forward.10} parent=119 // pred_check_branch
            %481 = sbr.rel (0) target = $region124
          $region123: #{transformer_stage_forward.10} parent=119 // pred_region
            // Predicated region
            $region125: #{transformer_stage_forward.10} parent=123 // pred_check
              _
            $region126: #{transformer_stage_forward.10} parent=123 // pred_check_branch
              %483 = sbr.rel (0) target = $region128
            $region127: #{transformer_stage_forward.10} parent=123 // pred_region
              // Predicated region
              $region140: #{transformer_stage_forward.10} parent=127 // pred_check
                _
              $region141: #{transformer_stage_forward.10} parent=127 // pred_check_branch
                %513 = sbr.rel (0) target = $region143
              $region142: #{transformer_stage_forward.10} parent=127 // pred_region
                loop: start=0, step=1, limit=1
                $region144: #{transformer_stage_forward.10} parent=142 // loop_pre_header
                  _
                $region145: #{transformer_stage_forward.10} parent=142 // loop_header
                  %s515 = sphi 0, %s519
                  %p516 = scmp.ge.s32.totalorder %s515, 1
                  %s520 = sphi %s479, %s479
                  %s521 = sphi %s474, %s474
                $region146: #{transformer_stage_forward.10} parent=142 // loop_header_branch
                  %518 = sbr.rel (%p516) target = $region150
                $region147: #{transformer_stage_forward.10} parent=142 // loop_body
                  %v522 = vld [vmem:[%s520] sm:$0xff]
                  %523 = vst [vmem:[%s521] sm:$0xff] %v522
                  %v524 = vld [vmem:[%s520 + $0x8] sm:$0xff]
                  %525 = vst [vmem:[%s521 + $0x8] sm:$0xff] %v524
                  %v526 = vld [vmem:[%s520 + $0x10] sm:$0xff]
                  %527 = vst [vmem:[%s521 + $0x10] sm:$0xff] %v526
                  %v528 = vld [vmem:[%s520 + $0x18] sm:$0xff]
                  %529 = vst [vmem:[%s521 + $0x18] sm:$0xff] %v528
                  %v530 = vld [vmem:[%s520 + $0x40] sm:$0xff]
                  %531 = vst [vmem:[%s521 + $0x20] sm:$0xff] %v530
                  %v532 = vld [vmem:[%s520 + $0x48] sm:$0xff]
                  %533 = vst [vmem:[%s521 + $0x28] sm:$0xff] %v532
                  %v534 = vld [vmem:[%s520 + $0x50] sm:$0xff]
                  %535 = vst [vmem:[%s521 + $0x30] sm:$0xff] %v534
                  %v536 = vld [vmem:[%s520 + $0x58] sm:$0xff]
                  %537 = vst [vmem:[%s521 + $0x38] sm:$0xff] %v536
                $region148: #{transformer_stage_forward.10} parent=142 // loop_footer
                  %s519 = sadd.s32 1, %s515
                $region149: #{transformer_stage_forward.10} parent=142 // loop_footer_branch
                  %514 = sbr.rel target = $region145
                $region150: #{transformer_stage_forward.10} parent=142 // loop_exit
                  _
              $region143: #{transformer_stage_forward.10} parent=127 // pred_fallthru
                _
              // Predicated region
              $region151: #{transformer_stage_forward.10} parent=127 // pred_check
                _
              $region152: #{transformer_stage_forward.10} parent=127 // pred_check_branch
                %539 = sbr.rel target = $region154
              $region153: #{transformer_stage_forward.10} parent=127 // pred_region
                _
              $region154: #{transformer_stage_forward.10} parent=127 // pred_fallthru
                _
            $region128: #{transformer_stage_forward.10} parent=123 // pred_fallthru
              _
            // Predicated region
            $region129: #{transformer_stage_forward.10} parent=123 // pred_check
              _
            $region130: #{transformer_stage_forward.10} parent=123 // pred_check_branch
              %485 = sbr.rel target = $region132
            $region131: #{transformer_stage_forward.10} parent=123 // pred_region
              %s487 = ssub.s32 256, 1
              loop: start=0, step=1, limit=1
              $region133: #{transformer_stage_forward.10} parent=131 // loop_pre_header
                _
              $region134: #{transformer_stage_forward.10} parent=131 // loop_header
                %s489 = sphi 0, %s493
                %p490 = scmp.ge.s32.totalorder %s489, 1
                %s494 = sphi %s479, %s479
                %s495 = sphi %s474, %s474
              $region135: #{transformer_stage_forward.10} parent=131 // loop_header_branch
                %492 = sbr.rel (%p490) target = $region139
              $region136: #{transformer_stage_forward.10} parent=131 // loop_body
                %v496 = vld [vmem:[%s494] sm:%s487]
                %497 = vst [vmem:[%s495] sm:%s487] %v496
                %v498 = vld [vmem:[%s494 + $0x8] sm:%s487]
                %499 = vst [vmem:[%s495 + $0x8] sm:%s487] %v498
                %v500 = vld [vmem:[%s494 + $0x10] sm:%s487]
                %501 = vst [vmem:[%s495 + $0x10] sm:%s487] %v500
                %v502 = vld [vmem:[%s494 + $0x18] sm:%s487]
                %503 = vst [vmem:[%s495 + $0x18] sm:%s487] %v502
                %v504 = vld [vmem:[%s494 + $0x40] sm:%s487]
                %505 = vst [vmem:[%s495 + $0x20] sm:%s487] %v504
                %v506 = vld [vmem:[%s494 + $0x48] sm:%s487]
                %507 = vst [vmem:[%s495 + $0x28] sm:%s487] %v506
                %v508 = vld [vmem:[%s494 + $0x50] sm:%s487]
                %509 = vst [vmem:[%s495 + $0x30] sm:%s487] %v508
                %v510 = vld [vmem:[%s494 + $0x58] sm:%s487]
                %511 = vst [vmem:[%s495 + $0x38] sm:%s487] %v510
              $region137: #{transformer_stage_forward.10} parent=131 // loop_footer
                %s493 = sadd.s32 1, %s489
              $region138: #{transformer_stage_forward.10} parent=131 // loop_footer_branch
                %488 = sbr.rel target = $region134
              $region139: #{transformer_stage_forward.10} parent=131 // loop_exit
                _
            $region132: #{transformer_stage_forward.10} parent=123 // pred_fallthru
              _
          $region124: #{transformer_stage_forward.10} parent=119 // pred_fallthru
            _
          %540 = vnop
        $region120: #{transformer_stage_forward.10} parent=31 // pred_fallthru
          _
      $region32: #{transformer_stage_forward.10} parent=5 // pred_fallthru
        _
      %p541 = scmp.le.s32.totalorder 1, %s15
      %p542 = scmp.lt.s32.totalorder %s15, 5
      %p543 = pnand %p541, %p542
      %p544 = pneg %p543
      // Predicated region
      $region155: #{transformer_stage_forward.10} parent=5 // pred_check
        _
      $region156: #{transformer_stage_forward.10} parent=5 // pred_check_branch
        %546 = sbr.rel (%p543) target = $region158
      $region157: #{transformer_stage_forward.10} parent=5 // pred_region
        %s547 = ssub.s32 %s15, 1
        %s548 = sand.u32 %s42, 1
        %s549 = sand.u32 %s42, 1
        %s550 = smul.addr %s549, 64
        %s551 = scalar_lea.vmem [#allocation3], %s550
        // Predicated region
        $region159: #{transformer_stage_forward.10} parent=157 // pred_check
          %p552 = pneg %p55
        $region160: #{transformer_stage_forward.10} parent=157 // pred_check_branch
          %554 = sbr.rel (%p552) target = $region162
        $region161: #{transformer_stage_forward.10} parent=157 // pred_region
          _
        $region162: #{transformer_stage_forward.10} parent=157 // pred_fallthru
          _
        %s555 = sand.u32 %s122, 1
        %s556 = sand.u32 %s122, 1
        %s557 = smul.addr %s556, 64
        %s558 = scalar_lea.vmem [#allocation4], %s557
        // Predicated region
        $region163: #{transformer_stage_forward.10} parent=157 // pred_check
          %p559 = pneg %p135
        $region164: #{transformer_stage_forward.10} parent=157 // pred_check_branch
          %561 = sbr.rel (%p559) target = $region166
        $region165: #{transformer_stage_forward.10} parent=157 // pred_region
          _
        $region166: #{transformer_stage_forward.10} parent=157 // pred_fallthru
          _
        %s562 = sand.u32 %s150, 1
        %s563 = sand.u32 %s150, 1
        %s564 = smul.addr %s563, 64
        %s565 = scalar_lea.vmem [#allocation5], %s564
        // Predicated region
        $region167: #{transformer_stage_forward.10} parent=157 // pred_check
          %p566 = pneg %p163
        $region168: #{transformer_stage_forward.10} parent=157 // pred_check_branch
          %568 = sbr.rel (%p566) target = $region170
        $region169: #{transformer_stage_forward.10} parent=157 // pred_region
          _
        $region170: #{transformer_stage_forward.10} parent=157 // pred_fallthru
          _
        %s569 = sand.u32 %s42, 1
        %s570 = sand.u32 %s42, 1
        %s571 = smul.addr %s570, 64
        %s572 = scalar_lea.vmem [#allocation3], %s571
        %p573 = pneg %p55
        %p574 = pneg %p52
        %p575 = scmp.lt.s32.totalorder %s24, 1
        %s576 = scalar_select %p575, %s24, 1
        %s577 = smul.addr %s576, 16
        %s578 = smul.addr %s577, 8
        %s579 = scalar_lea.vmem %s1, %s578
        %p580 = pneg %p81
        %p581 = pneg %p78
        %p582 = scmp.lt.s32.totalorder %s24, 1
        %s583 = scalar_select %p582, %s24, 1
        %s584 = smul.addr %s583, 16
        %s585 = smul.addr %s584, 8
        %s586 = scalar_lea.vmem %s2, %s585
        %p587 = pneg %p107
        %p588 = pneg %p104
        %s589 = sand.u32 %s122, 1
        %s590 = sand.u32 %s122, 1
        %s591 = smul.addr %s590, 64
        %s592 = scalar_lea.vmem [#allocation4], %s591
        %p593 = pneg %p135
        %p594 = pneg %p132
        %s595 = sand.u32 %s150, 1
        %s596 = sand.u32 %s150, 1
        %s597 = smul.addr %s596, 64
        %s598 = scalar_lea.vmem [#allocation5], %s597
        %p599 = pneg %p163
        %p600 = pneg %p160
        %p601 = pneg %p184
        %p602 = pneg %p181
        %p603 = pneg %p205
        %p604 = pneg %p202
        %p605 = pneg %p226
        %p606 = pneg %p223
        %p607 = pneg %p247
        %p608 = pneg %p244
        %p609 = pneg %p275
        %p610 = pneg %p272
        %s611 = smul.u32 4, %s25
        %p612 = scmp.lt.s32.totalorder %s24, 1
        %s613 = scalar_select %p612, %s24, 1
        %p614 = scmp.lt.s32.totalorder %s611, 7
        %s615 = scalar_select %p614, %s611, 7
        %s616 = smul.addr %s613, 8
        %s617 = sadd.s32 %s615, %s616
        %s618 = smul.addr %s617, 8
        %s619 = scalar_lea.vmem %s9, %s618
        %s620 = smul.u32 4, %s25
        %p621 = scmp.lt.s32.totalorder %s24, 1
        %s622 = scalar_select %p621, %s24, 1
        %s623 = smul.addr %s622, 16
        %s624 = smul.addr %s623, 8
        %s625 = scalar_lea.vmem %s1, %s624
        %p626 = scmp.lt.s32.totalorder %s24, 1
        %s627 = scalar_select %p626, %s24, 1
        %s628 = smul.addr %s627, 16
        %s629 = smul.addr %s628, 8
        %s630 = scalar_lea.vmem %s2, %s629
        %s631 = smul.u32 4, %s25
        %s632 = smul.u32 4, %s25
        %s633 = smul.u32 4, %s25
        %p634 = scmp.lt.s32.totalorder %s24, 1
        %s635 = scalar_select %p634, %s24, 1
        %p636 = scmp.lt.s32.totalorder %s633, 7
        %s637 = scalar_select %p636, %s633, 7
        %s638 = smul.addr %s635, 8
        %s639 = sadd.s32 %s637, %s638
        %s640 = smul.addr %s639, 8
        %s641 = scalar_lea.vmem %s9, %s640
        %s642 = smul.u32 4, %s25
        %v644 = vld [vmem:[%s5] sm:$0xff]
        %v645 = vld [vmem:[%s6] sm:$0xff]
        %v646 = vld [vmem:[%s551] sm:$0xff]
        %v647 = vld [vmem:[%s551 + $0x8] sm:$0xff]
        %v648 = vld [vmem:[%s551 + $0x10] sm:$0xff]
        %v649 = vld [vmem:[%s551 + $0x18] sm:$0xff]
        %v650 = vld [vmem:[%s625] sm:$0xff]
        %v651 = vld [vmem:[%s625 + $0x8] sm:$0xff]
        %v652 = vld [vmem:[%s625 + $0x10] sm:$0xff]
        %v653 = vld [vmem:[%s625 + $0x18] sm:$0xff]
        %v654 = vld [vmem:[%s625 + $0x20] sm:$0xff]
        %v655 = vld [vmem:[%s625 + $0x28] sm:$0xff]
        %v656 = vld [vmem:[%s625 + $0x30] sm:$0xff]
        %v657 = vld [vmem:[%s625 + $0x38] sm:$0xff]
        %v658 = vld [vmem:[%s630] sm:$0xff]
        %v659 = vld [vmem:[%s630 + $0x8] sm:$0xff]
        %v660 = vld [vmem:[%s630 + $0x10] sm:$0xff]
        %v661 = vld [vmem:[%s630 + $0x18] sm:$0xff]
        %v662 = vld [vmem:[%s630 + $0x20] sm:$0xff]
        %v663 = vld [vmem:[%s630 + $0x28] sm:$0xff]
        %v664 = vld [vmem:[%s630 + $0x30] sm:$0xff]
        %v665 = vld [vmem:[%s630 + $0x38] sm:$0xff]
        %v666 = vld [vmem:[%s558] sm:$0xff]
        %v667 = vld [vmem:[%s558 + $0x8] sm:$0xff]
        %v668 = vld [vmem:[%s558 + $0x10] sm:$0xff]
        %v669 = vld [vmem:[%s558 + $0x18] sm:$0xff]
        %vm670 = vcmask 64512
        %v672 = vsel %vm670, %v666, 0
        %v675 = vsel %vm670, %v667, 0
        %v678 = vsel %vm670, %v668, 0
        %v681 = vsel %vm670, %v669, 0
        %683 = vmatprep.subr.mxu0 0.0
        %684 = vmatpush1.msra.mxu0 0.0
        %685 = vmatprep.subr.mxu0 0.0
        %686 = vmatpush1.msra.mxu0 0.0
        %687 = vmatprep.subr.mxu0 0.0
        %688 = vmatpush1.msra.mxu0 0.0
        %689 = vmatprep.subr.mxu0 0.0
        %690 = vmatpush1.msra.mxu0 0.0
        %691 = vmatprep.subr.mxu0 0.0
        %692 = vmatpush1.msra.mxu0 0.0
        %693 = vmatprep.subr.mxu0 0.0
        %694 = vmatpush1.msra.mxu0 0.0
        %695 = vmatprep.subr.mxu0 0.0
        %696 = vmatpush1.msra.mxu0 0.0
        %697 = vmatprep.subr.mxu0 0.0
        %698 = vmatpush1.msra.mxu0 0.0
        %699 = vmatprep.subr.mxu0 0.0
        %700 = vmatpush1.msra.mxu0 0.0
        %701 = vmatprep.subr.mxu0 0.0
        %702 = vmatpush1.msra.mxu0 0.0
        %703 = vmatprep.subr.mxu0 0.0
        %704 = vmatpush1.msra.mxu0 0.0
        %705 = vmatprep.subr.mxu0 0.0
        %706 = vmatpush1.msra.mxu0 0.0
        %707 = vmatprep.subr.mxu0 0.0
        %708 = vmatpush1.msra.mxu0 0.0
        %709 = vmatprep.subr.mxu0 0.0
        %710 = vmatpush1.msra.mxu0 0.0
        %711 = vmatprep.subr.mxu0 0.0
        %712 = vmatpush1.msra.mxu0 0.0
        %713 = vmatprep.subr.mxu0 0.0
        %714 = vmatpush1.msra.mxu0 %v644
        %715 = vmatprep.subr.mxu0 0.0
        %716 = vmatpush2.msra.mxu0 0.0
        %717 = vmatprep.subr.mxu0 0.0
        %718 = vmatpush2.msra.mxu0 0.0
        %719 = vmatprep.subr.mxu0 0.0
        %720 = vmatpush2.msra.mxu0 0.0
        %721 = vmatprep.subr.mxu0 0.0
        %722 = vmatpush2.msra.mxu0 0.0
        %723 = vmatprep.subr.mxu0 0.0
        %724 = vmatpush2.msra.mxu0 0.0
        %725 = vmatprep.subr.mxu0 0.0
        %726 = vmatpush2.msra.mxu0 0.0
        %727 = vmatprep.subr.mxu0 0.0
        %728 = vmatpush2.msra.mxu0 0.0
        %729 = vmatprep.subr.mxu0 0.0
        %730 = vmatpush2.msra.mxu0 0.0
        %731 = vmatprep.subr.mxu0 0.0
        %732 = vmatpush2.msra.mxu0 0.0
        %733 = vmatprep.subr.mxu0 0.0
        %734 = vmatpush2.msra.mxu0 0.0
        %735 = vmatprep.subr.mxu0 0.0
        %736 = vmatpush2.msra.mxu0 0.0
        %737 = vmatprep.subr.mxu0 0.0
        %738 = vmatpush2.msra.mxu0 0.0
        %739 = vmatprep.subr.mxu0 0.0
        %740 = vmatpush2.msra.mxu0 0.0
        %741 = vmatprep.subr.mxu0 0.0
        %742 = vmatpush2.msra.mxu0 0.0
        %743 = vmatprep.subr.mxu0 0.0
        %744 = vmatpush2.msra.mxu0 0.0
        %745 = vmatprep.subr.mxu0 0.0
        %746 = vmatpush2.msra.mxu0 0.0
        %747 = vmatprep.mubr.f32.mxu0 0.0
        %748 = vmatmul.mubr.f32.gmra.mxu0 %v672
        %v749 = vpop.f32.mrf.mxu0
        %v750 = vadd.f32 0.0, %v749
        %v751 = vpop.f32.mrf.mxu0
        %752 = vmatprep.mubr.f32.mxu0 0.0
        %753 = vmatmul.mubr.f32.gmra.mxu0 %v675
        %v754 = vpop.f32.mrf.mxu0
        %v755 = vadd.f32 0.0, %v754
        %v756 = vpop.f32.mrf.mxu0
        %757 = vmatprep.mubr.f32.mxu0 0.0
        %758 = vmatmul.mubr.f32.gmra.mxu0 %v678
        %v759 = vpop.f32.mrf.mxu0
        %v760 = vadd.f32 0.0, %v759
        %v761 = vpop.f32.mrf.mxu0
        %762 = vmatprep.mubr.f32.mxu0 0.0
        %763 = vmatmul.mubr.f32.gmra.mxu0 %v681
        %v764 = vpop.f32.mrf.mxu0
        %v765 = vadd.f32 0.0, %v764
        %v766 = vpop.f32.mrf.mxu0
        %767 = vdwg.mxu0
        %vm768 = vcmask 130048
        %v770 = vsel %vm768, %v646, 0
        %v773 = vsel %vm768, %v647, 0
        %v776 = vsel %vm768, %v648, 0
        %v779 = vsel %vm768, %v649, 0
        %v782 = vsel %vm768, %v650, 0
        %v785 = vsel %vm768, %v651, 0
        %v788 = vsel %vm768, %v652, 0
        %v791 = vsel %vm768, %v653, 0
        %v794 = vsel %vm768, %v654, 0
        %v797 = vsel %vm768, %v655, 0
        %v800 = vsel %vm768, %v656, 0
        %v803 = vsel %vm768, %v657, 0
        %805 = vmatprep.subr.mxu0 0.0
        %806 = vmatpush1.xpose.msra.mxu0 0.0
        %807 = vmatprep.subr.mxu0 0.0
        %808 = vmatpush1.xpose.msra.mxu0 0.0
        %809 = vmatprep.subr.mxu0 0.0
        %810 = vmatpush1.xpose.msra.mxu0 0.0
        %811 = vmatprep.subr.mxu0 0.0
        %812 = vmatpush1.xpose.msra.mxu0 0.0
        %813 = vmatprep.subr.mxu0 0.0
        %814 = vmatpush1.xpose.msra.mxu0 0.0
        %815 = vmatprep.subr.mxu0 0.0
        %816 = vmatpush1.xpose.msra.mxu0 0.0
        %817 = vmatprep.subr.mxu0 0.0
        %818 = vmatpush1.xpose.msra.mxu0 0.0
        %819 = vmatprep.subr.mxu0 0.0
        %820 = vmatpush1.xpose.msra.mxu0 0.0
        %821 = vmatprep.subr.mxu0 0.0
        %822 = vmatpush1.xpose.msra.mxu0 %v803
        %823 = vmatprep.subr.mxu0 0.0
        %824 = vmatpush1.xpose.msra.mxu0 %v800
        %825 = vmatprep.subr.mxu0 0.0
        %826 = vmatpush1.xpose.msra.mxu0 %v797
        %827 = vmatprep.subr.mxu0 0.0
        %828 = vmatpush1.xpose.msra.mxu0 %v794
        %829 = vmatprep.subr.mxu0 0.0
        %830 = vmatpush1.xpose.msra.mxu0 %v791
        %831 = vmatprep.subr.mxu0 0.0
        %832 = vmatpush1.xpose.msra.mxu0 %v788
        %833 = vmatprep.subr.mxu0 0.0
        %834 = vmatpush1.xpose.msra.mxu0 %v785
        %835 = vmatprep.subr.mxu0 0.0
        %836 = vmatpush1.xpose.msra.mxu0 %v782
        %837 = vmatprep.subr.mxu0 0.0
        %838 = vmatpush2.xpose.msra.mxu0 0.0
        %839 = vmatprep.subr.mxu0 0.0
        %840 = vmatpush2.xpose.msra.mxu0 0.0
        %841 = vmatprep.subr.mxu0 0.0
        %842 = vmatpush2.xpose.msra.mxu0 0.0
        %843 = vmatprep.subr.mxu0 0.0
        %844 = vmatpush2.xpose.msra.mxu0 0.0
        %845 = vmatprep.subr.mxu0 0.0
        %846 = vmatpush2.xpose.msra.mxu0 0.0
        %847 = vmatprep.subr.mxu0 0.0
        %848 = vmatpush2.xpose.msra.mxu0 0.0
        %849 = vmatprep.subr.mxu0 0.0
        %850 = vmatpush2.xpose.msra.mxu0 0.0
        %851 = vmatprep.subr.mxu0 0.0
        %852 = vmatpush2.xpose.msra.mxu0 0.0
        %853 = vmatprep.subr.mxu0 0.0
        %854 = vmatpush2.xpose.msra.mxu0 0.0
        %855 = vmatprep.subr.mxu0 0.0
        %856 = vmatpush2.xpose.msra.mxu0 0.0
        %857 = vmatprep.subr.mxu0 0.0
        %858 = vmatpush2.xpose.msra.mxu0 0.0
        %859 = vmatprep.subr.mxu0 0.0
        %860 = vmatpush2.xpose.msra.mxu0 0.0
        %861 = vmatprep.subr.mxu0 0.0
        %862 = vmatpush2.xpose.msra.mxu0 0.0
        %863 = vmatprep.subr.mxu0 0.0
        %864 = vmatpush2.xpose.msra.mxu0 0.0
        %865 = vmatprep.subr.mxu0 0.0
        %866 = vmatpush2.xpose.msra.mxu0 0.0
        %867 = vmatprep.subr.mxu0 0.0
        %868 = vmatpush2.xpose.msra.mxu0 0.0
        %869 = vmatprep.mubr.f32.mxu0 0.0
        %870 = vmatmul.mubr.f32.gmra.mxu0 %v770
        %v871 = vpop.f32.mrf.mxu0
        %v872 = vadd.f32 %v750, %v871
        %v873 = vpop.f32.mrf.mxu0
        %874 = vmatprep.mubr.f32.mxu0 0.0
        %875 = vmatmul.mubr.f32.gmra.mxu0 %v773
        %v876 = vpop.f32.mrf.mxu0
        %v877 = vadd.f32 %v755, %v876
        %v878 = vpop.f32.mrf.mxu0
        %879 = vmatprep.mubr.f32.mxu0 0.0
        %880 = vmatmul.mubr.f32.gmra.mxu0 %v776
        %v881 = vpop.f32.mrf.mxu0
        %v882 = vadd.f32 %v760, %v881
        %v883 = vpop.f32.mrf.mxu0
        %884 = vmatprep.mubr.f32.mxu0 0.0
        %885 = vmatmul.mubr.f32.gmra.mxu0 %v779
        %v886 = vpop.f32.mrf.mxu0
        %v887 = vadd.f32 %v765, %v886
        %v888 = vpop.f32.mrf.mxu0
        %889 = vdwg.mxu0
        %v890 = vld [vmem:[%s565] sm:$0xff]
        %v891 = vld [vmem:[%s565 + $0x8] sm:$0xff]
        %v892 = vld [vmem:[%s565 + $0x10] sm:$0xff]
        %v893 = vld [vmem:[%s565 + $0x18] sm:$0xff]
        %v895 = vsel %vm670, %v890, 0
        %v898 = vsel %vm670, %v891, 0
        %v901 = vsel %vm670, %v892, 0
        %v904 = vsel %vm670, %v893, 0
        %906 = vmatprep.subr.mxu0 0.0
        %907 = vmatpush1.msra.mxu0 0.0
        %908 = vmatprep.subr.mxu0 0.0
        %909 = vmatpush1.msra.mxu0 0.0
        %910 = vmatprep.subr.mxu0 0.0
        %911 = vmatpush1.msra.mxu0 0.0
        %912 = vmatprep.subr.mxu0 0.0
        %913 = vmatpush1.msra.mxu0 0.0
        %914 = vmatprep.subr.mxu0 0.0
        %915 = vmatpush1.msra.mxu0 0.0
        %916 = vmatprep.subr.mxu0 0.0
        %917 = vmatpush1.msra.mxu0 0.0
        %918 = vmatprep.subr.mxu0 0.0
        %919 = vmatpush1.msra.mxu0 0.0
        %920 = vmatprep.subr.mxu0 0.0
        %921 = vmatpush1.msra.mxu0 0.0
        %922 = vmatprep.subr.mxu0 0.0
        %923 = vmatpush1.msra.mxu0 0.0
        %924 = vmatprep.subr.mxu0 0.0
        %925 = vmatpush1.msra.mxu0 0.0
        %926 = vmatprep.subr.mxu0 0.0
        %927 = vmatpush1.msra.mxu0 0.0
        %928 = vmatprep.subr.mxu0 0.0
        %929 = vmatpush1.msra.mxu0 0.0
        %930 = vmatprep.subr.mxu0 0.0
        %931 = vmatpush1.msra.mxu0 0.0
        %932 = vmatprep.subr.mxu0 0.0
        %933 = vmatpush1.msra.mxu0 0.0
        %934 = vmatprep.subr.mxu0 0.0
        %935 = vmatpush1.msra.mxu0 0.0
        %936 = vmatprep.subr.mxu0 0.0
        %937 = vmatpush1.msra.mxu0 %v645
        %938 = vmatprep.subr.mxu0 0.0
        %939 = vmatpush2.msra.mxu0 0.0
        %940 = vmatprep.subr.mxu0 0.0
        %941 = vmatpush2.msra.mxu0 0.0
        %942 = vmatprep.subr.mxu0 0.0
        %943 = vmatpush2.msra.mxu0 0.0
        %944 = vmatprep.subr.mxu0 0.0
        %945 = vmatpush2.msra.mxu0 0.0
        %946 = vmatprep.subr.mxu0 0.0
        %947 = vmatpush2.msra.mxu0 0.0
        %948 = vmatprep.subr.mxu0 0.0
        %949 = vmatpush2.msra.mxu0 0.0
        %950 = vmatprep.subr.mxu0 0.0
        %951 = vmatpush2.msra.mxu0 0.0
        %952 = vmatprep.subr.mxu0 0.0
        %953 = vmatpush2.msra.mxu0 0.0
        %954 = vmatprep.subr.mxu0 0.0
        %955 = vmatpush2.msra.mxu0 0.0
        %956 = vmatprep.subr.mxu0 0.0
        %957 = vmatpush2.msra.mxu0 0.0
        %958 = vmatprep.subr.mxu0 0.0
        %959 = vmatpush2.msra.mxu0 0.0
        %960 = vmatprep.subr.mxu0 0.0
        %961 = vmatpush2.msra.mxu0 0.0
        %962 = vmatprep.subr.mxu0 0.0
        %963 = vmatpush2.msra.mxu0 0.0
        %964 = vmatprep.subr.mxu0 0.0
        %965 = vmatpush2.msra.mxu0 0.0
        %966 = vmatprep.subr.mxu0 0.0
        %967 = vmatpush2.msra.mxu0 0.0
        %968 = vmatprep.subr.mxu0 0.0
        %969 = vmatpush2.msra.mxu0 0.0
        %970 = vmatprep.mubr.f32.mxu0 0.0
        %971 = vmatmul.mubr.f32.gmra.mxu0 %v895
        %v972 = vpop.f32.mrf.mxu0
        %v973 = vadd.f32 0.0, %v972
        %v974 = vpop.f32.mrf.mxu0
        %975 = vmatprep.mubr.f32.mxu0 0.0
        %976 = vmatmul.mubr.f32.gmra.mxu0 %v898
        %v977 = vpop.f32.mrf.mxu0
        %v978 = vadd.f32 0.0, %v977
        %v979 = vpop.f32.mrf.mxu0
        %980 = vmatprep.mubr.f32.mxu0 0.0
        %981 = vmatmul.mubr.f32.gmra.mxu0 %v901
        %v982 = vpop.f32.mrf.mxu0
        %v983 = vadd.f32 0.0, %v982
        %v984 = vpop.f32.mrf.mxu0
        %985 = vmatprep.mubr.f32.mxu0 0.0
        %986 = vmatmul.mubr.f32.gmra.mxu0 %v904
        %v987 = vpop.f32.mrf.mxu0
        %v988 = vadd.f32 0.0, %v987
        %v989 = vpop.f32.mrf.mxu0
        %990 = vdwg.mxu0
        %v991 = vadd.f32 %v872, %v973
        %v992 = vadd.f32 %v877, %v978
        %v993 = vadd.f32 %v882, %v983
        %v994 = vadd.f32 %v887, %v988
        %vm995 = vcmask 523264
        %v996 = vsel %vm995, %v991, -inf
        %997 = vmax.xlane.f32.xlu0 %v996
        %v998 = vpop.xlane.xlu0 %997
        %v999 = vsel %vm995, %v992, -inf
        %1000 = vmax.xlane.f32.xlu0 %v999
        %v1001 = vpop.xlane.xlu0 %1000
        %v1002 = vsel %vm995, %v993, -inf
        %1003 = vmax.xlane.f32.xlu0 %v1002
        %v1004 = vpop.xlane.xlu0 %1003
        %v1005 = vsel %vm995, %v994, -inf
        %1006 = vmax.xlane.f32.xlu0 %v1005
        %v1007 = vpop.xlane.xlu0 %1006
        %v1008 = vsub.f32 %v991, %v998
        %v1009 = vsub.f32 %v992, %v1001
        %v1010 = vsub.f32 %v993, %v1004
        %v1011 = vsub.f32 %v994, %v1007
        %v1012 = vmul.f32 %v1008, 1.442695
        %v1013 = vpow.pop %v1012
        %v1014 = vmul.f32 %v1009, 1.442695
        %v1015 = vpow.pop %v1014
        %v1016 = vmul.f32 %v1010, 1.442695
        %v1017 = vpow.pop %v1016
        %v1018 = vmul.f32 %v1011, 1.442695
        %v1019 = vpow.pop %v1018
        %v1020 = vsel %vm995, %v1013, 0.0
        %1021 = vadd.xlane.f32.xlu0 %v1020
        %v1022 = vpop.xlane.xlu0 %1021
        %v1023 = vsel %vm995, %v1015, 0.0
        %1024 = vadd.xlane.f32.xlu0 %v1023
        %v1025 = vpop.xlane.xlu0 %1024
        %v1026 = vsel %vm995, %v1017, 0.0
        %1027 = vadd.xlane.f32.xlu0 %v1026
        %v1028 = vpop.xlane.xlu0 %1027
        %v1029 = vsel %vm995, %v1019, 0.0
        %1030 = vadd.xlane.f32.xlu0 %v1029
        %v1031 = vpop.xlane.xlu0 %1030
        %v1033 = vsel %vm995, %v1013, 0
        %v1036 = vsel %vm995, %v1015, 0
        %v1039 = vsel %vm995, %v1017, 0
        %v1042 = vsel %vm995, %v1019, 0
        %1044 = vmatprep.subr.mxu0 0.0
        %1045 = vmatpush1.msra.mxu0 0.0
        %1046 = vmatprep.subr.mxu0 0.0
        %1047 = vmatpush1.msra.mxu0 0.0
        %1048 = vmatprep.subr.mxu0 0.0
        %1049 = vmatpush1.msra.mxu0 0.0
        %1050 = vmatprep.subr.mxu0 0.0
        %1051 = vmatpush1.msra.mxu0 0.0
        %1052 = vmatprep.subr.mxu0 0.0
        %1053 = vmatpush1.msra.mxu0 0.0
        %1054 = vmatprep.subr.mxu0 0.0
        %1055 = vmatpush1.msra.mxu0 0.0
        %1056 = vmatprep.subr.mxu0 0.0
        %1057 = vmatpush1.msra.mxu0 0.0
        %1058 = vmatprep.subr.mxu0 0.0
        %1059 = vmatpush1.msra.mxu0 0.0
        %1060 = vmatprep.subr.mxu0 0.0
        %1061 = vmatpush1.msra.mxu0 %v665
        %1062 = vmatprep.subr.mxu0 0.0
        %1063 = vmatpush1.msra.mxu0 %v664
        %1064 = vmatprep.subr.mxu0 0.0
        %1065 = vmatpush1.msra.mxu0 %v663
        %1066 = vmatprep.subr.mxu0 0.0
        %1067 = vmatpush1.msra.mxu0 %v662
        %1068 = vmatprep.subr.mxu0 0.0
        %1069 = vmatpush1.msra.mxu0 %v661
        %1070 = vmatprep.subr.mxu0 0.0
        %1071 = vmatpush1.msra.mxu0 %v660
        %1072 = vmatprep.subr.mxu0 0.0
        %1073 = vmatpush1.msra.mxu0 %v659
        %1074 = vmatprep.subr.mxu0 0.0
        %1075 = vmatpush1.msra.mxu0 %v658
        %1076 = vmatprep.subr.mxu0 0.0
        %1077 = vmatpush2.msra.mxu0 0.0
        %1078 = vmatprep.subr.mxu0 0.0
        %1079 = vmatpush2.msra.mxu0 0.0
        %1080 = vmatprep.subr.mxu0 0.0
        %1081 = vmatpush2.msra.mxu0 0.0
        %1082 = vmatprep.subr.mxu0 0.0
        %1083 = vmatpush2.msra.mxu0 0.0
        %1084 = vmatprep.subr.mxu0 0.0
        %1085 = vmatpush2.msra.mxu0 0.0
        %1086 = vmatprep.subr.mxu0 0.0
        %1087 = vmatpush2.msra.mxu0 0.0
        %1088 = vmatprep.subr.mxu0 0.0
        %1089 = vmatpush2.msra.mxu0 0.0
        %1090 = vmatprep.subr.mxu0 0.0
        %1091 = vmatpush2.msra.mxu0 0.0
        %1092 = vmatprep.subr.mxu0 0.0
        %1093 = vmatpush2.msra.mxu0 0.0
        %1094 = vmatprep.subr.mxu0 0.0
        %1095 = vmatpush2.msra.mxu0 0.0
        %1096 = vmatprep.subr.mxu0 0.0
        %1097 = vmatpush2.msra.mxu0 0.0
        %1098 = vmatprep.subr.mxu0 0.0
        %1099 = vmatpush2.msra.mxu0 0.0
        %1100 = vmatprep.subr.mxu0 0.0
        %1101 = vmatpush2.msra.mxu0 0.0
        %1102 = vmatprep.subr.mxu0 0.0
        %1103 = vmatpush2.msra.mxu0 0.0
        %1104 = vmatprep.subr.mxu0 0.0
        %1105 = vmatpush2.msra.mxu0 0.0
        %1106 = vmatprep.subr.mxu0 0.0
        %1107 = vmatpush2.msra.mxu0 0.0
        %1108 = vmatprep.mubr.f32.mxu0 0.0
        %1109 = vmatmul.mubr.f32.gmra.mxu0 %v1033
        %v1110 = vpop.f32.mrf.mxu0
        %v1111 = vadd.f32 0.0, %v1110
        %v1112 = vpop.f32.mrf.mxu0
        %1113 = vmatprep.mubr.f32.mxu0 0.0
        %1114 = vmatmul.mubr.f32.gmra.mxu0 %v1036
        %v1115 = vpop.f32.mrf.mxu0
        %v1116 = vadd.f32 0.0, %v1115
        %v1117 = vpop.f32.mrf.mxu0
        %1118 = vmatprep.mubr.f32.mxu0 0.0
        %1119 = vmatmul.mubr.f32.gmra.mxu0 %v1039
        %v1120 = vpop.f32.mrf.mxu0
        %v1121 = vadd.f32 0.0, %v1120
        %v1122 = vpop.f32.mrf.mxu0
        %1123 = vmatprep.mubr.f32.mxu0 0.0
        %1124 = vmatmul.mubr.f32.gmra.mxu0 %v1042
        %v1125 = vpop.f32.mrf.mxu0
        %v1126 = vadd.f32 0.0, %v1125
        %v1127 = vpop.f32.mrf.mxu0
        %1128 = vdwg.mxu0
        %v1129 = vrcp.pop %v1022
        %v1130 = vrcp.pop %v1025
        %v1131 = vrcp.pop %v1028
        %v1132 = vrcp.pop %v1031
        %v1133 = vmul.f32 %v1111, %v1129
        %v1134 = vmul.f32 %v1116, %v1130
        %v1135 = vmul.f32 %v1121, %v1131
        %v1136 = vmul.f32 %v1126, %v1132
        %1137 = vst.msk [vmem:[#allocation2] sm:$0xff] %vm768, %v1133
        %1138 = vst.msk [vmem:[#allocation2 + $0x8] sm:$0xff] %vm768, %v1134
        %1139 = vst.msk [vmem:[#allocation2 + $0x10] sm:$0xff] %vm768, %v1135
        %1140 = vst.msk [vmem:[#allocation2 + $0x18] sm:$0xff] %vm768, %v1136
        %s1141 = scalar_lea.vmem %s551, 32 [#allocation3]
        %v1142 = vld [vmem:[%s1141] sm:$0xff]
        %v1143 = vld [vmem:[%s1141 + $0x8] sm:$0xff]
        %v1144 = vld [vmem:[%s1141 + $0x10] sm:$0xff]
        %v1145 = vld [vmem:[%s1141 + $0x18] sm:$0xff]
        %s1146 = scalar_lea.vmem %s625, 64
        %v1147 = vld [vmem:[%s1146] sm:$0xff]
        %v1148 = vld [vmem:[%s1146 + $0x8] sm:$0xff]
        %v1149 = vld [vmem:[%s1146 + $0x10] sm:$0xff]
        %v1150 = vld [vmem:[%s1146 + $0x18] sm:$0xff]
        %v1151 = vld [vmem:[%s1146 + $0x20] sm:$0xff]
        %v1152 = vld [vmem:[%s1146 + $0x28] sm:$0xff]
        %v1153 = vld [vmem:[%s1146 + $0x30] sm:$0xff]
        %v1154 = vld [vmem:[%s1146 + $0x38] sm:$0xff]
        %s1155 = scalar_lea.vmem %s630, 64
        %v1156 = vld [vmem:[%s1155] sm:$0xff]
        %v1157 = vld [vmem:[%s1155 + $0x8] sm:$0xff]
        %v1158 = vld [vmem:[%s1155 + $0x10] sm:$0xff]
        %v1159 = vld [vmem:[%s1155 + $0x18] sm:$0xff]
        %v1160 = vld [vmem:[%s1155 + $0x20] sm:$0xff]
        %v1161 = vld [vmem:[%s1155 + $0x28] sm:$0xff]
        %v1162 = vld [vmem:[%s1155 + $0x30] sm:$0xff]
        %v1163 = vld [vmem:[%s1155 + $0x38] sm:$0xff]
        %s1164 = scalar_lea.vmem %s558, 32 [#allocation4]
        %v1165 = vld [vmem:[%s1164] sm:$0xff]
        %v1166 = vld [vmem:[%s1164 + $0x8] sm:$0xff]
        %v1167 = vld [vmem:[%s1164 + $0x10] sm:$0xff]
        %v1168 = vld [vmem:[%s1164 + $0x18] sm:$0xff]
        %v1170 = vsel %vm670, %v1165, 0
        %v1173 = vsel %vm670, %v1166, 0
        %v1176 = vsel %vm670, %v1167, 0
        %v1179 = vsel %vm670, %v1168, 0
        %1181 = vmatprep.subr.mxu0 0.0
        %1182 = vmatpush1.msra.mxu0 0.0
        %1183 = vmatprep.subr.mxu0 0.0
        %1184 = vmatpush1.msra.mxu0 0.0
        %1185 = vmatprep.subr.mxu0 0.0
        %1186 = vmatpush1.msra.mxu0 0.0
        %1187 = vmatprep.subr.mxu0 0.0
        %1188 = vmatpush1.msra.mxu0 0.0
        %1189 = vmatprep.subr.mxu0 0.0
        %1190 = vmatpush1.msra.mxu0 0.0
        %1191 = vmatprep.subr.mxu0 0.0
        %1192 = vmatpush1.msra.mxu0 0.0
        %1193 = vmatprep.subr.mxu0 0.0
        %1194 = vmatpush1.msra.mxu0 0.0
        %1195 = vmatprep.subr.mxu0 0.0
        %1196 = vmatpush1.msra.mxu0 0.0
        %1197 = vmatprep.subr.mxu0 0.0
        %1198 = vmatpush1.msra.mxu0 0.0
        %1199 = vmatprep.subr.mxu0 0.0
        %1200 = vmatpush1.msra.mxu0 0.0
        %1201 = vmatprep.subr.mxu0 0.0
        %1202 = vmatpush1.msra.mxu0 0.0
        %1203 = vmatprep.subr.mxu0 0.0
        %1204 = vmatpush1.msra.mxu0 0.0
        %1205 = vmatprep.subr.mxu0 0.0
        %1206 = vmatpush1.msra.mxu0 0.0
        %1207 = vmatprep.subr.mxu0 0.0
        %1208 = vmatpush1.msra.mxu0 0.0
        %1209 = vmatprep.subr.mxu0 0.0
        %1210 = vmatpush1.msra.mxu0 0.0
        %1211 = vmatprep.subr.mxu0 0.0
        %1212 = vmatpush1.msra.mxu0 %v644
        %1213 = vmatprep.subr.mxu0 0.0
        %1214 = vmatpush2.msra.mxu0 0.0
        %1215 = vmatprep.subr.mxu0 0.0
        %1216 = vmatpush2.msra.mxu0 0.0
        %1217 = vmatprep.subr.mxu0 0.0
        %1218 = vmatpush2.msra.mxu0 0.0
        %1219 = vmatprep.subr.mxu0 0.0
        %1220 = vmatpush2.msra.mxu0 0.0
        %1221 = vmatprep.subr.mxu0 0.0
        %1222 = vmatpush2.msra.mxu0 0.0
        %1223 = vmatprep.subr.mxu0 0.0
        %1224 = vmatpush2.msra.mxu0 0.0
        %1225 = vmatprep.subr.mxu0 0.0
        %1226 = vmatpush2.msra.mxu0 0.0
        %1227 = vmatprep.subr.mxu0 0.0
        %1228 = vmatpush2.msra.mxu0 0.0
        %1229 = vmatprep.subr.mxu0 0.0
        %1230 = vmatpush2.msra.mxu0 0.0
        %1231 = vmatprep.subr.mxu0 0.0
        %1232 = vmatpush2.msra.mxu0 0.0
        %1233 = vmatprep.subr.mxu0 0.0
        %1234 = vmatpush2.msra.mxu0 0.0
        %1235 = vmatprep.subr.mxu0 0.0
        %1236 = vmatpush2.msra.mxu0 0.0
        %1237 = vmatprep.subr.mxu0 0.0
        %1238 = vmatpush2.msra.mxu0 0.0
        %1239 = vmatprep.subr.mxu0 0.0
        %1240 = vmatpush2.msra.mxu0 0.0
        %1241 = vmatprep.subr.mxu0 0.0
        %1242 = vmatpush2.msra.mxu0 0.0
        %1243 = vmatprep.subr.mxu0 0.0
        %1244 = vmatpush2.msra.mxu0 0.0
        %1245 = vmatprep.mubr.f32.mxu0 0.0
        %1246 = vmatmul.mubr.f32.gmra.mxu0 %v1170
        %v1247 = vpop.f32.mrf.mxu0
        %v1248 = vadd.f32 0.0, %v1247
        %v1249 = vpop.f32.mrf.mxu0
        %1250 = vmatprep.mubr.f32.mxu0 0.0
        %1251 = vmatmul.mubr.f32.gmra.mxu0 %v1173
        %v1252 = vpop.f32.mrf.mxu0
        %v1253 = vadd.f32 0.0, %v1252
        %v1254 = vpop.f32.mrf.mxu0
        %1255 = vmatprep.mubr.f32.mxu0 0.0
        %1256 = vmatmul.mubr.f32.gmra.mxu0 %v1176
        %v1257 = vpop.f32.mrf.mxu0
        %v1258 = vadd.f32 0.0, %v1257
        %v1259 = vpop.f32.mrf.mxu0
        %1260 = vmatprep.mubr.f32.mxu0 0.0
        %1261 = vmatmul.mubr.f32.gmra.mxu0 %v1179
        %v1262 = vpop.f32.mrf.mxu0
        %v1263 = vadd.f32 0.0, %v1262
        %v1264 = vpop.f32.mrf.mxu0
        %1265 = vdwg.mxu0
        %v1267 = vsel %vm768, %v1142, 0
        %v1270 = vsel %vm768, %v1143, 0
        %v1273 = vsel %vm768, %v1144, 0
        %v1276 = vsel %vm768, %v1145, 0
        %v1279 = vsel %vm768, %v1147, 0
        %v1282 = vsel %vm768, %v1148, 0
        %v1285 = vsel %vm768, %v1149, 0
        %v1288 = vsel %vm768, %v1150, 0
        %v1291 = vsel %vm768, %v1151, 0
        %v1294 = vsel %vm768, %v1152, 0
        %v1297 = vsel %vm768, %v1153, 0
        %v1300 = vsel %vm768, %v1154, 0
        %1302 = vmatprep.subr.mxu0 0.0
        %1303 = vmatpush1.xpose.msra.mxu0 0.0
        %1304 = vmatprep.subr.mxu0 0.0
        %1305 = vmatpush1.xpose.msra.mxu0 0.0
        %1306 = vmatprep.subr.mxu0 0.0
        %1307 = vmatpush1.xpose.msra.mxu0 0.0
        %1308 = vmatprep.subr.mxu0 0.0
        %1309 = vmatpush1.xpose.msra.mxu0 0.0
        %1310 = vmatprep.subr.mxu0 0.0
        %1311 = vmatpush1.xpose.msra.mxu0 0.0
        %1312 = vmatprep.subr.mxu0 0.0
        %1313 = vmatpush1.xpose.msra.mxu0 0.0
        %1314 = vmatprep.subr.mxu0 0.0
        %1315 = vmatpush1.xpose.msra.mxu0 0.0
        %1316 = vmatprep.subr.mxu0 0.0
        %1317 = vmatpush1.xpose.msra.mxu0 0.0
        %1318 = vmatprep.subr.mxu0 0.0
        %1319 = vmatpush1.xpose.msra.mxu0 %v1300
        %1320 = vmatprep.subr.mxu0 0.0
        %1321 = vmatpush1.xpose.msra.mxu0 %v1297
        %1322 = vmatprep.subr.mxu0 0.0
        %1323 = vmatpush1.xpose.msra.mxu0 %v1294
        %1324 = vmatprep.subr.mxu0 0.0
        %1325 = vmatpush1.xpose.msra.mxu0 %v1291
        %1326 = vmatprep.subr.mxu0 0.0
        %1327 = vmatpush1.xpose.msra.mxu0 %v1288
        %1328 = vmatprep.subr.mxu0 0.0
        %1329 = vmatpush1.xpose.msra.mxu0 %v1285
        %1330 = vmatprep.subr.mxu0 0.0
        %1331 = vmatpush1.xpose.msra.mxu0 %v1282
        %1332 = vmatprep.subr.mxu0 0.0
        %1333 = vmatpush1.xpose.msra.mxu0 %v1279
        %1334 = vmatprep.subr.mxu0 0.0
        %1335 = vmatpush2.xpose.msra.mxu0 0.0
        %1336 = vmatprep.subr.mxu0 0.0
        %1337 = vmatpush2.xpose.msra.mxu0 0.0
        %1338 = vmatprep.subr.mxu0 0.0
        %1339 = vmatpush2.xpose.msra.mxu0 0.0
        %1340 = vmatprep.subr.mxu0 0.0
        %1341 = vmatpush2.xpose.msra.mxu0 0.0
        %1342 = vmatprep.subr.mxu0 0.0
        %1343 = vmatpush2.xpose.msra.mxu0 0.0
        %1344 = vmatprep.subr.mxu0 0.0
        %1345 = vmatpush2.xpose.msra.mxu0 0.0
        %1346 = vmatprep.subr.mxu0 0.0
        %1347 = vmatpush2.xpose.msra.mxu0 0.0
        %1348 = vmatprep.subr.mxu0 0.0
        %1349 = vmatpush2.xpose.msra.mxu0 0.0
        %1350 = vmatprep.subr.mxu0 0.0
        %1351 = vmatpush2.xpose.msra.mxu0 0.0
        %1352 = vmatprep.subr.mxu0 0.0
        %1353 = vmatpush2.xpose.msra.mxu0 0.0
        %1354 = vmatprep.subr.mxu0 0.0
        %1355 = vmatpush2.xpose.msra.mxu0 0.0
        %1356 = vmatprep.subr.mxu0 0.0
        %1357 = vmatpush2.xpose.msra.mxu0 0.0
        %1358 = vmatprep.subr.mxu0 0.0
        %1359 = vmatpush2.xpose.msra.mxu0 0.0
        %1360 = vmatprep.subr.mxu0 0.0
        %1361 = vmatpush2.xpose.msra.mxu0 0.0
        %1362 = vmatprep.subr.mxu0 0.0
        %1363 = vmatpush2.xpose.msra.mxu0 0.0
        %1364 = vmatprep.subr.mxu0 0.0
        %1365 = vmatpush2.xpose.msra.mxu0 0.0
        %1366 = vmatprep.mubr.f32.mxu0 0.0
        %1367 = vmatmul.mubr.f32.gmra.mxu0 %v1267
        %v1368 = vpop.f32.mrf.mxu0
        %v1369 = vadd.f32 %v1248, %v1368
        %v1370 = vpop.f32.mrf.mxu0
        %1371 = vmatprep.mubr.f32.mxu0 0.0
        %1372 = vmatmul.mubr.f32.gmra.mxu0 %v1270
        %v1373 = vpop.f32.mrf.mxu0
        %v1374 = vadd.f32 %v1253, %v1373
        %v1375 = vpop.f32.mrf.mxu0
        %1376 = vmatprep.mubr.f32.mxu0 0.0
        %1377 = vmatmul.mubr.f32.gmra.mxu0 %v1273
        %v1378 = vpop.f32.mrf.mxu0
        %v1379 = vadd.f32 %v1258, %v1378
        %v1380 = vpop.f32.mrf.mxu0
        %1381 = vmatprep.mubr.f32.mxu0 0.0
        %1382 = vmatmul.mubr.f32.gmra.mxu0 %v1276
        %v1383 = vpop.f32.mrf.mxu0
        %v1384 = vadd.f32 %v1263, %v1383
        %v1385 = vpop.f32.mrf.mxu0
        %1386 = vdwg.mxu0
        %s1387 = scalar_lea.vmem %s565, 32 [#allocation5]
        %v1388 = vld [vmem:[%s1387] sm:$0xff]
        %v1389 = vld [vmem:[%s1387 + $0x8] sm:$0xff]
        %v1390 = vld [vmem:[%s1387 + $0x10] sm:$0xff]
        %v1391 = vld [vmem:[%s1387 + $0x18] sm:$0xff]
        %v1393 = vsel %vm670, %v1388, 0
        %v1396 = vsel %vm670, %v1389, 0
        %v1399 = vsel %vm670, %v1390, 0
        %v1402 = vsel %vm670, %v1391, 0
        %1404 = vmatprep.subr.mxu0 0.0
        %1405 = vmatpush1.msra.mxu0 0.0
        %1406 = vmatprep.subr.mxu0 0.0
        %1407 = vmatpush1.msra.mxu0 0.0
        %1408 = vmatprep.subr.mxu0 0.0
        %1409 = vmatpush1.msra.mxu0 0.0
        %1410 = vmatprep.subr.mxu0 0.0
        %1411 = vmatpush1.msra.mxu0 0.0
        %1412 = vmatprep.subr.mxu0 0.0
        %1413 = vmatpush1.msra.mxu0 0.0
        %1414 = vmatprep.subr.mxu0 0.0
        %1415 = vmatpush1.msra.mxu0 0.0
        %1416 = vmatprep.subr.mxu0 0.0
        %1417 = vmatpush1.msra.mxu0 0.0
        %1418 = vmatprep.subr.mxu0 0.0
        %1419 = vmatpush1.msra.mxu0 0.0
        %1420 = vmatprep.subr.mxu0 0.0
        %1421 = vmatpush1.msra.mxu0 0.0
        %1422 = vmatprep.subr.mxu0 0.0
        %1423 = vmatpush1.msra.mxu0 0.0
        %1424 = vmatprep.subr.mxu0 0.0
        %1425 = vmatpush1.msra.mxu0 0.0
        %1426 = vmatprep.subr.mxu0 0.0
        %1427 = vmatpush1.msra.mxu0 0.0
        %1428 = vmatprep.subr.mxu0 0.0
        %1429 = vmatpush1.msra.mxu0 0.0
        %1430 = vmatprep.subr.mxu0 0.0
        %1431 = vmatpush1.msra.mxu0 0.0
        %1432 = vmatprep.subr.mxu0 0.0
        %1433 = vmatpush1.msra.mxu0 0.0
        %1434 = vmatprep.subr.mxu0 0.0
        %1435 = vmatpush1.msra.mxu0 %v645
        %1436 = vmatprep.subr.mxu0 0.0
        %1437 = vmatpush2.msra.mxu0 0.0
        %1438 = vmatprep.subr.mxu0 0.0
        %1439 = vmatpush2.msra.mxu0 0.0
        %1440 = vmatprep.subr.mxu0 0.0
        %1441 = vmatpush2.msra.mxu0 0.0
        %1442 = vmatprep.subr.mxu0 0.0
        %1443 = vmatpush2.msra.mxu0 0.0
        %1444 = vmatprep.subr.mxu0 0.0
        %1445 = vmatpush2.msra.mxu0 0.0
        %1446 = vmatprep.subr.mxu0 0.0
        %1447 = vmatpush2.msra.mxu0 0.0
        %1448 = vmatprep.subr.mxu0 0.0
        %1449 = vmatpush2.msra.mxu0 0.0
        %1450 = vmatprep.subr.mxu0 0.0
        %1451 = vmatpush2.msra.mxu0 0.0
        %1452 = vmatprep.subr.mxu0 0.0
        %1453 = vmatpush2.msra.mxu0 0.0
        %1454 = vmatprep.subr.mxu0 0.0
        %1455 = vmatpush2.msra.mxu0 0.0
        %1456 = vmatprep.subr.mxu0 0.0
        %1457 = vmatpush2.msra.mxu0 0.0
        %1458 = vmatprep.subr.mxu0 0.0
        %1459 = vmatpush2.msra.mxu0 0.0
        %1460 = vmatprep.subr.mxu0 0.0
        %1461 = vmatpush2.msra.mxu0 0.0
        %1462 = vmatprep.subr.mxu0 0.0
        %1463 = vmatpush2.msra.mxu0 0.0
        %1464 = vmatprep.subr.mxu0 0.0
        %1465 = vmatpush2.msra.mxu0 0.0
        %1466 = vmatprep.subr.mxu0 0.0
        %1467 = vmatpush2.msra.mxu0 0.0
        %1468 = vmatprep.mubr.f32.mxu0 0.0
        %1469 = vmatmul.mubr.f32.gmra.mxu0 %v1393
        %v1470 = vpop.f32.mrf.mxu0
        %v1471 = vadd.f32 0.0, %v1470
        %v1472 = vpop.f32.mrf.mxu0
        %1473 = vmatprep.mubr.f32.mxu0 0.0
        %1474 = vmatmul.mubr.f32.gmra.mxu0 %v1396
        %v1475 = vpop.f32.mrf.mxu0
        %v1476 = vadd.f32 0.0, %v1475
        %v1477 = vpop.f32.mrf.mxu0
        %1478 = vmatprep.mubr.f32.mxu0 0.0
        %1479 = vmatmul.mubr.f32.gmra.mxu0 %v1399
        %v1480 = vpop.f32.mrf.mxu0
        %v1481 = vadd.f32 0.0, %v1480
        %v1482 = vpop.f32.mrf.mxu0
        %1483 = vmatprep.mubr.f32.mxu0 0.0
        %1484 = vmatmul.mubr.f32.gmra.mxu0 %v1402
        %v1485 = vpop.f32.mrf.mxu0
        %v1486 = vadd.f32 0.0, %v1485
        %v1487 = vpop.f32.mrf.mxu0
        %1488 = vdwg.mxu0
        %v1489 = vadd.f32 %v1369, %v1471
        %v1490 = vadd.f32 %v1374, %v1476
        %v1491 = vadd.f32 %v1379, %v1481
        %v1492 = vadd.f32 %v1384, %v1486
        %v1493 = vsel %vm995, %v1489, -inf
        %1494 = vmax.xlane.f32.xlu0 %v1493
        %v1495 = vpop.xlane.xlu0 %1494
        %v1496 = vsel %vm995, %v1490, -inf
        %1497 = vmax.xlane.f32.xlu0 %v1496
        %v1498 = vpop.xlane.xlu0 %1497
        %v1499 = vsel %vm995, %v1491, -inf
        %1500 = vmax.xlane.f32.xlu0 %v1499
        %v1501 = vpop.xlane.xlu0 %1500
        %v1502 = vsel %vm995, %v1492, -inf
        %1503 = vmax.xlane.f32.xlu0 %v1502
        %v1504 = vpop.xlane.xlu0 %1503
        %v1505 = vsub.f32 %v1489, %v1495
        %v1506 = vsub.f32 %v1490, %v1498
        %v1507 = vsub.f32 %v1491, %v1501
        %v1508 = vsub.f32 %v1492, %v1504
        %v1509 = vmul.f32 %v1505, 1.442695
        %v1510 = vpow.pop %v1509
        %v1511 = vmul.f32 %v1506, 1.442695
        %v1512 = vpow.pop %v1511
        %v1513 = vmul.f32 %v1507, 1.442695
        %v1514 = vpow.pop %v1513
        %v1515 = vmul.f32 %v1508, 1.442695
        %v1516 = vpow.pop %v1515
        %v1517 = vsel %vm995, %v1510, 0.0
        %1518 = vadd.xlane.f32.xlu0 %v1517
        %v1519 = vpop.xlane.xlu0 %1518
        %v1520 = vsel %vm995, %v1512, 0.0
        %1521 = vadd.xlane.f32.xlu0 %v1520
        %v1522 = vpop.xlane.xlu0 %1521
        %v1523 = vsel %vm995, %v1514, 0.0
        %1524 = vadd.xlane.f32.xlu0 %v1523
        %v1525 = vpop.xlane.xlu0 %1524
        %v1526 = vsel %vm995, %v1516, 0.0
        %1527 = vadd.xlane.f32.xlu0 %v1526
        %v1528 = vpop.xlane.xlu0 %1527
        %v1530 = vsel %vm995, %v1510, 0
        %v1533 = vsel %vm995, %v1512, 0
        %v1536 = vsel %vm995, %v1514, 0
        %v1539 = vsel %vm995, %v1516, 0
        %1541 = vmatprep.subr.mxu0 0.0
        %1542 = vmatpush1.msra.mxu0 0.0
        %1543 = vmatprep.subr.mxu0 0.0
        %1544 = vmatpush1.msra.mxu0 0.0
        %1545 = vmatprep.subr.mxu0 0.0
        %1546 = vmatpush1.msra.mxu0 0.0
        %1547 = vmatprep.subr.mxu0 0.0
        %1548 = vmatpush1.msra.mxu0 0.0
        %1549 = vmatprep.subr.mxu0 0.0
        %1550 = vmatpush1.msra.mxu0 0.0
        %1551 = vmatprep.subr.mxu0 0.0
        %1552 = vmatpush1.msra.mxu0 0.0
        %1553 = vmatprep.subr.mxu0 0.0
        %1554 = vmatpush1.msra.mxu0 0.0
        %1555 = vmatprep.subr.mxu0 0.0
        %1556 = vmatpush1.msra.mxu0 0.0
        %1557 = vmatprep.subr.mxu0 0.0
        %1558 = vmatpush1.msra.mxu0 %v1163
        %1559 = vmatprep.subr.mxu0 0.0
        %1560 = vmatpush1.msra.mxu0 %v1162
        %1561 = vmatprep.subr.mxu0 0.0
        %1562 = vmatpush1.msra.mxu0 %v1161
        %1563 = vmatprep.subr.mxu0 0.0
        %1564 = vmatpush1.msra.mxu0 %v1160
        %1565 = vmatprep.subr.mxu0 0.0
        %1566 = vmatpush1.msra.mxu0 %v1159
        %1567 = vmatprep.subr.mxu0 0.0
        %1568 = vmatpush1.msra.mxu0 %v1158
        %1569 = vmatprep.subr.mxu0 0.0
        %1570 = vmatpush1.msra.mxu0 %v1157
        %1571 = vmatprep.subr.mxu0 0.0
        %1572 = vmatpush1.msra.mxu0 %v1156
        %1573 = vmatprep.subr.mxu0 0.0
        %1574 = vmatpush2.msra.mxu0 0.0
        %1575 = vmatprep.subr.mxu0 0.0
        %1576 = vmatpush2.msra.mxu0 0.0
        %1577 = vmatprep.subr.mxu0 0.0
        %1578 = vmatpush2.msra.mxu0 0.0
        %1579 = vmatprep.subr.mxu0 0.0
        %1580 = vmatpush2.msra.mxu0 0.0
        %1581 = vmatprep.subr.mxu0 0.0
        %1582 = vmatpush2.msra.mxu0 0.0
        %1583 = vmatprep.subr.mxu0 0.0
        %1584 = vmatpush2.msra.mxu0 0.0
        %1585 = vmatprep.subr.mxu0 0.0
        %1586 = vmatpush2.msra.mxu0 0.0
        %1587 = vmatprep.subr.mxu0 0.0
        %1588 = vmatpush2.msra.mxu0 0.0
        %1589 = vmatprep.subr.mxu0 0.0
        %1590 = vmatpush2.msra.mxu0 0.0
        %1591 = vmatprep.subr.mxu0 0.0
        %1592 = vmatpush2.msra.mxu0 0.0
        %1593 = vmatprep.subr.mxu0 0.0
        %1594 = vmatpush2.msra.mxu0 0.0
        %1595 = vmatprep.subr.mxu0 0.0
        %1596 = vmatpush2.msra.mxu0 0.0
        %1597 = vmatprep.subr.mxu0 0.0
        %1598 = vmatpush2.msra.mxu0 0.0
        %1599 = vmatprep.subr.mxu0 0.0
        %1600 = vmatpush2.msra.mxu0 0.0
        %1601 = vmatprep.subr.mxu0 0.0
        %1602 = vmatpush2.msra.mxu0 0.0
        %1603 = vmatprep.subr.mxu0 0.0
        %1604 = vmatpush2.msra.mxu0 0.0
        %1605 = vmatprep.mubr.f32.mxu0 0.0
        %1606 = vmatmul.mubr.f32.gmra.mxu0 %v1530
        %v1607 = vpop.f32.mrf.mxu0
        %v1608 = vadd.f32 0.0, %v1607
        %v1609 = vpop.f32.mrf.mxu0
        %1610 = vmatprep.mubr.f32.mxu0 0.0
        %1611 = vmatmul.mubr.f32.gmra.mxu0 %v1533
        %v1612 = vpop.f32.mrf.mxu0
        %v1613 = vadd.f32 0.0, %v1612
        %v1614 = vpop.f32.mrf.mxu0
        %1615 = vmatprep.mubr.f32.mxu0 0.0
        %1616 = vmatmul.mubr.f32.gmra.mxu0 %v1536
        %v1617 = vpop.f32.mrf.mxu0
        %v1618 = vadd.f32 0.0, %v1617
        %v1619 = vpop.f32.mrf.mxu0
        %1620 = vmatprep.mubr.f32.mxu0 0.0
        %1621 = vmatmul.mubr.f32.gmra.mxu0 %v1539
        %v1622 = vpop.f32.mrf.mxu0
        %v1623 = vadd.f32 0.0, %v1622
        %v1624 = vpop.f32.mrf.mxu0
        %1625 = vdwg.mxu0
        %v1626 = vrcp.pop %v1519
        %v1627 = vrcp.pop %v1522
        %v1628 = vrcp.pop %v1525
        %v1629 = vrcp.pop %v1528
        %v1630 = vmul.f32 %v1608, %v1626
        %v1631 = vmul.f32 %v1613, %v1627
        %v1632 = vmul.f32 %v1618, %v1628
        %v1633 = vmul.f32 %v1623, %v1629
        %1638 = vrot.lane.b32.xlu0 %v1630, 16
        %v1639 = vpop.permute.xlu0 %1638
        %1640 = vrot.lane.b32.xlu0 %v1631, 16
        %v1641 = vpop.permute.xlu0 %1640
        %1642 = vrot.lane.b32.xlu0 %v1632, 16
        %v1643 = vpop.permute.xlu0 %1642
        %1644 = vrot.lane.b32.xlu0 %v1633, 16
        %v1645 = vpop.permute.xlu0 %1644
        %vm1650 = vcmask 261248
        %1651 = vst.msk [vmem:[#allocation2] sm:$0xff] %vm1650, %v1639
        %1652 = vst.msk [vmem:[#allocation2 + $0x8] sm:$0xff] %vm1650, %v1641
        %1653 = vst.msk [vmem:[#allocation2 + $0x10] sm:$0xff] %vm1650, %v1643
        %1654 = vst.msk [vmem:[#allocation2 + $0x18] sm:$0xff] %vm1650, %v1645
        %v1655 = vld [vmem:[#allocation2] sm:$0xff]
        %v1656 = vld [vmem:[#allocation2 + $0x8] sm:$0xff]
        %v1657 = vld [vmem:[#allocation2 + $0x10] sm:$0xff]
        %v1658 = vld [vmem:[#allocation2 + $0x18] sm:$0xff]
        %v1659 = vpack.c.bf16 %v1656, %v1655
        %v1660 = vpack.c.bf16 %v1658, %v1657
        %v1661 = vld [vmem:[%s7] sm:$0xf]
        %v1662 = vld [vmem:[%s7 + $0x4] sm:$0xf]
        %v1663 = vld [vmem:[%s7 + $0x8] sm:$0xf]
        %v1664 = vld [vmem:[%s7 + $0xc] sm:$0xf]
        %v1665 = vld [vmem:[%s8] sm:$0x1]
        %v1667 = vlaneseq
        %v1668 = vshrl.u32 %v1667, 7
        %v1669 = vsub.s32 0, %v1668
        %v1670 = vrot.slane %v1665, %v1669
        %v1676 = vunpack.c.l.b16 %v1661
        %v1677 = vunpack.c.l.b16 %v1662
        %v1678 = vunpack.c.l.b16 %v1663
        %v1679 = vunpack.c.l.b16 %v1664
        %v1680 = vpack.c.b16 %v1677, %v1676
        %v1681 = vpack.c.b16 %v1679, %v1678
        %vm1684 = vcmask 261120
        %v1686 = vsel %vm1684, %v1659, 0
        %v1689 = vsel %vm1684, %v1660, 0
        %1691 = vmatprep.subr.bf16.mxu0 0
        %1692 = vmatpush1.bf16.msra.mxu0 0
        %1693 = vmatprep.subr.bf16.mxu0 0
        %1694 = vmatpush1.bf16.msra.mxu0 0
        %1695 = vmatprep.subr.bf16.mxu0 0
        %1696 = vmatpush1.bf16.msra.mxu0 0
        %1697 = vmatprep.subr.bf16.mxu0 0
        %1698 = vmatpush1.bf16.msra.mxu0 0
        %1699 = vmatprep.subr.bf16.mxu0 0
        %1700 = vmatpush1.bf16.msra.mxu0 0
        %1701 = vmatprep.subr.bf16.mxu0 0
        %1702 = vmatpush1.bf16.msra.mxu0 0
        %1703 = vmatprep.subr.bf16.mxu0 0
        %1704 = vmatpush1.bf16.msra.mxu0 %v1681
        %1705 = vmatprep.subr.bf16.mxu0 0
        %1706 = vmatpush1.bf16.msra.mxu0 %v1680
        %1707 = vmatprep.subr.bf16.mxu0 0
        %1708 = vmatpush2.bf16.msra.mxu0 0
        %1709 = vmatprep.subr.bf16.mxu0 0
        %1710 = vmatpush2.bf16.msra.mxu0 0
        %1711 = vmatprep.subr.bf16.mxu0 0
        %1712 = vmatpush2.bf16.msra.mxu0 0
        %1713 = vmatprep.subr.bf16.mxu0 0
        %1714 = vmatpush2.bf16.msra.mxu0 0
        %1715 = vmatprep.subr.bf16.mxu0 0
        %1716 = vmatpush2.bf16.msra.mxu0 0
        %1717 = vmatprep.subr.bf16.mxu0 0
        %1718 = vmatpush2.bf16.msra.mxu0 0
        %1719 = vmatprep.subr.bf16.mxu0 0
        %1720 = vmatpush2.bf16.msra.mxu0 0
        %1721 = vmatprep.subr.bf16.mxu0 0
        %1722 = vmatpush2.bf16.msra.mxu0 0
        %1723 = vmatprep.mubr.bf16.mxu0 0
        %1724 = vmatmul.mubr.bf16.gmra.mxu0 %v1686
        %v1725 = vpop.f32.mrf.mxu0
        %v1726 = vadd.f32 %v1670, %v1725
        %v1727 = vpop.f32.mrf.mxu0
        %v1728 = vpop.f32.mrf.mxu0
        %v1729 = vadd.f32 %v1670, %v1728
        %v1730 = vpop.f32.mrf.mxu0
        %1731 = vmatprep.mubr.bf16.mxu0 0
        %1732 = vmatmul.mubr.bf16.gmra.mxu0 %v1689
        %v1733 = vpop.f32.mrf.mxu0
        %v1734 = vadd.f32 %v1670, %v1733
        %v1735 = vpop.f32.mrf.mxu0
        %v1736 = vpop.f32.mrf.mxu0
        %v1737 = vadd.f32 %v1670, %v1736
        %v1738 = vpop.f32.mrf.mxu0
        %1739 = vdwg.mxu0
        %1740 = vst.msk [vmem:[%s641] sm:$0xff] %vm1684, %v1726
        %1741 = vst.msk [vmem:[%s641 + $0x8] sm:$0xff] %vm1684, %v1729
        %1742 = vst.msk [vmem:[%s641 + $0x10] sm:$0xff] %vm1684, %v1734
        %1743 = vst.msk [vmem:[%s641 + $0x18] sm:$0xff] %vm1684, %v1737
        %s1744 = smul.u32 4, %s25
        %p1745 = scmp.lt.s32.totalorder %s24, 1
        %s1746 = scalar_select %p1745, %s24, 1
        %p1747 = scmp.lt.s32.totalorder %s1744, 7
        %s1748 = scalar_select %p1747, %s1744, 7
        %s1749 = smul.addr %s1746, 8
        %s1750 = sadd.s32 %s1748, %s1749
        %s1751 = smul.addr %s1750, 8
        %s1752 = scalar_lea.vmem %s9, %s1751
        // Predicated region
        $region171: #{transformer_stage_forward.10} parent=157 // pred_check
          %p1753 = pneg %p272
        $region172: #{transformer_stage_forward.10} parent=157 // pred_check_branch
          %1755 = sbr.rel (%p1753) target = $region174
        $region173: #{transformer_stage_forward.10} parent=157 // pred_region
          %s1756 = smul.u32 4, %s25
        $region174: #{transformer_stage_forward.10} parent=157 // pred_fallthru
          _
      $region158: #{transformer_stage_forward.10} parent=5 // pred_fallthru
        _
      %p1757 = scmp.le.s32.totalorder 2, %s15
      // Predicated region
      $region175: #{transformer_stage_forward.10} parent=5 // pred_check
        %p1758 = pneg %p1757
      $region176: #{transformer_stage_forward.10} parent=5 // pred_check_branch
        %1760 = sbr.rel (%p1758) target = $region178
      $region177: #{transformer_stage_forward.10} parent=5 // pred_region
        %s1761 = ssub.s32 %s15, 2
        // Predicated region
        $region179: #{transformer_stage_forward.10} parent=177 // pred_check
          %p1762 = pneg %p278
        $region180: #{transformer_stage_forward.10} parent=177 // pred_check_branch
          %1764 = sbr.rel (%p1762) target = $region182
        $region181: #{transformer_stage_forward.10} parent=177 // pred_region
          %s1765 = smul.u32 4, %s27
          %p1766 = scmp.lt.s32.totalorder %s26, 1
          %s1767 = scalar_select %p1766, %s26, 1
          %p1768 = scmp.lt.s32.totalorder %s1765, 7
          %s1769 = scalar_select %p1768, %s1765, 7
          %s1770 = smul.addr %s1767, 8
          %s1771 = sadd.s32 %s1769, %s1770
          %s1772 = smul.addr %s1771, 8
          %s1773 = scalar_lea.vmem %s9, %s1772
        $region182: #{transformer_stage_forward.10} parent=177 // pred_fallthru
          _
      $region178: #{transformer_stage_forward.10} parent=5 // pred_fallthru
        _
    $region6: #{transformer_stage_forward.10} parent=1 // loop_footer
      %s19 = sadd.s32 1, %s15
    $region7: #{transformer_stage_forward.10} parent=1 // loop_footer_branch
      %14 = sbr.rel target = $region3
    $region8: #{transformer_stage_forward.10} parent=1 // loop_exit
      _

// kernel: transformer_stage_forward.11
$region0: #{transformer_stage_forward.11}
  #allocation0 [shape = 'u32[]', space=smem, size = 0x4, offset = 0x4, fixed_abs, tag = 'smem constant byte address 0x4 - core index']
  #allocation1 [shape = 'u32[144,128]{1,0:T(1,128)}', space=vmem, size = 0x12000, scoped, tag = 'internal scratch']
  #allocation2 [shape = 'f32[128,32]{1,0:T(8,128)}', space=vmem, size = 0x10000, scoped, tag = 'scratch operand']
  #allocation3 [shape = 'bf16[128,32]{1,0:T(8,128)(2,1)}', space=vmem, size = 0x8000, scoped, tag = 'scratch operand']
  #allocation4 [shape = 'f32[128,32]{1,0:T(8,128)}', space=vmem, size = 0x10000, scoped, tag = 'scratch operand']
  %s0 = inlined_call_operand.vmem [shape: f32[128,32], index: 0, kind: input, shape index: {}]
  %s1 = inlined_call_operand.vmem [shape: f32[128,32], index: 1, kind: input, shape index: {}]
  %s2 = inlined_call_operand.vmem [shape: f32[1,32], index: 2, kind: input, shape index: {}]
  %s3 = inlined_call_operand.vmem [shape: f32[1,32], index: 3, kind: input, shape index: {}]
  %s4 = inlined_call_operand.vmem [shape: bf16[32,128], index: 4, kind: input, shape index: {}]
  %s5 = inlined_call_operand.vmem [shape: f32[1,128], index: 5, kind: input, shape index: {}]
  %s6 = inlined_call_operand.vmem [shape: bf16[128,32], index: 6, kind: input, shape index: {}]
  %s7 = inlined_call_operand.vmem [shape: f32[1,32], index: 7, kind: input, shape index: {}]
  %s8 = inlined_call_operand.hbm [shape: f32[128,32], index: 8, kind: output, shape index: {}]
  %s9 = sld [smem:[#allocation0]]
  $region50: #{transformer_stage_forward.11} parent=0
    _
  %s11 = ssub.s32 1, %s9
  %s12 = scalar_select 0, %s11, %s9
  $region1: #{transformer_stage_forward.11} parent=0
    #allocation5 [shape = 'u8[65536]{0}', space=vmem, size = 0x10000, scoped, tag = 'output window, operand 0, single buffered']
    #allocation6 [shape = 's32[1]{0}', space=sflag, size = 0x4, scoped, tag = 'scoped memory for transformer_stage_forward.11']
    %13 = vsyncpa [#allocation6], 0
    // Predicated region
    $region2: #{transformer_stage_forward.11} parent=1 // pred_check
      _
    $region3: #{transformer_stage_forward.11} parent=1 // pred_check_branch
      %15 = sbr.rel (0) target = $region5
    $region4: #{transformer_stage_forward.11} parent=1 // pred_region
      _
    $region5: #{transformer_stage_forward.11} parent=1 // pred_fallthru
      _
    // Predicated region
    $region6: #{transformer_stage_forward.11} parent=1 // pred_check
      _
    $region7: #{transformer_stage_forward.11} parent=1 // pred_check_branch
      %17 = sbr.rel (0) target = $region9
    $region8: #{transformer_stage_forward.11} parent=1 // pred_region
      _
    $region9: #{transformer_stage_forward.11} parent=1 // pred_fallthru
      _
    // Predicated region
    $region10: #{transformer_stage_forward.11} parent=1 // pred_check
      _
    $region11: #{transformer_stage_forward.11} parent=1 // pred_check_branch
      %19 = sbr.rel (0) target = $region13
    $region12: #{transformer_stage_forward.11} parent=1 // pred_region
      _
    $region13: #{transformer_stage_forward.11} parent=1 // pred_fallthru
      _
    // Predicated region
    $region14: #{transformer_stage_forward.11} parent=1 // pred_check
      _
    $region15: #{transformer_stage_forward.11} parent=1 // pred_check_branch
      %21 = sbr.rel (0) target = $region17
    $region16: #{transformer_stage_forward.11} parent=1 // pred_region
      _
    $region17: #{transformer_stage_forward.11} parent=1 // pred_fallthru
      _
    // Predicated region
    $region18: #{transformer_stage_forward.11} parent=1 // pred_check
      _
    $region19: #{transformer_stage_forward.11} parent=1 // pred_check_branch
      %23 = sbr.rel (0) target = $region21
    $region20: #{transformer_stage_forward.11} parent=1 // pred_region
      _
    $region21: #{transformer_stage_forward.11} parent=1 // pred_fallthru
      _
    // Predicated region
    $region22: #{transformer_stage_forward.11} parent=1 // pred_check
      _
    $region23: #{transformer_stage_forward.11} parent=1 // pred_check_branch
      %25 = sbr.rel (0) target = $region25
    $region24: #{transformer_stage_forward.11} parent=1 // pred_region
      _
    $region25: #{transformer_stage_forward.11} parent=1 // pred_fallthru
      _
    // Predicated region
    $region26: #{transformer_stage_forward.11} parent=1 // pred_check
      _
    $region27: #{transformer_stage_forward.11} parent=1 // pred_check_branch
      %27 = sbr.rel (0) target = $region29
    $region28: #{transformer_stage_forward.11} parent=1 // pred_region
      _
    $region29: #{transformer_stage_forward.11} parent=1 // pred_fallthru
      _
    // Predicated region
    $region30: #{transformer_stage_forward.11} parent=1 // pred_check
      _
    $region31: #{transformer_stage_forward.11} parent=1 // pred_check_branch
      %29 = sbr.rel (0) target = $region33
    $region32: #{transformer_stage_forward.11} parent=1 // pred_region
      _
    $region33: #{transformer_stage_forward.11} parent=1 // pred_fallthru
      _
    %p31 = scmp.eq.s32.totalorder 0, 0
    // Predicated region
    $region34: #{transformer_stage_forward.11} parent=1 // pred_check
      %p32 = pneg %p31
    $region35: #{transformer_stage_forward.11} parent=1 // pred_check_branch
      %34 = sbr.rel (%p32) target = $region37
    $region36: #{transformer_stage_forward.11} parent=1 // pred_region
      %v35 = vld [vmem:[%s0] sm:$0xff]
      %v36 = vld [vmem:[%s0 + $0x8] sm:$0xff]
      %v37 = vld [vmem:[%s0 + $0x10] sm:$0xff]
      %v38 = vld [vmem:[%s0 + $0x18] sm:$0xff]
      %v39 = vld [vmem:[%s0 + $0x20] sm:$0xff]
      %v40 = vld [vmem:[%s0 + $0x28] sm:$0xff]
      %v41 = vld [vmem:[%s0 + $0x30] sm:$0xff]
      %v42 = vld [vmem:[%s0 + $0x38] sm:$0xff]
      %v43 = vld [vmem:[%s0 + $0x40] sm:$0xff]
      %v44 = vld [vmem:[%s0 + $0x48] sm:$0xff]
      %v45 = vld [vmem:[%s0 + $0x50] sm:$0xff]
      %v46 = vld [vmem:[%s0 + $0x58] sm:$0xff]
      %v47 = vld [vmem:[%s0 + $0x60] sm:$0xff]
      %v48 = vld [vmem:[%s0 + $0x68] sm:$0xff]
      %v49 = vld [vmem:[%s0 + $0x70] sm:$0xff]
      %v50 = vld [vmem:[%s0 + $0x78] sm:$0xff]
      %v51 = vld [vmem:[%s1] sm:$0xff]
      %v52 = vld [vmem:[%s1 + $0x8] sm:$0xff]
      %v53 = vld [vmem:[%s1 + $0x10] sm:$0xff]
      %v54 = vld [vmem:[%s1 + $0x18] sm:$0xff]
      %v55 = vld [vmem:[%s1 + $0x20] sm:$0xff]
      %v56 = vld [vmem:[%s1 + $0x28] sm:$0xff]
      %v57 = vld [vmem:[%s1 + $0x30] sm:$0xff]
      %v58 = vld [vmem:[%s1 + $0x38] sm:$0xff]
      %v59 = vld [vmem:[%s1 + $0x40] sm:$0xff]
      %v60 = vld [vmem:[%s1 + $0x48] sm:$0xff]
      %v61 = vld [vmem:[%s1 + $0x50] sm:$0xff]
      %v62 = vld [vmem:[%s1 + $0x58] sm:$0xff]
      %v63 = vld [vmem:[%s1 + $0x60] sm:$0xff]
      %v64 = vld [vmem:[%s1 + $0x68] sm:$0xff]
      %v65 = vld [vmem:[%s1 + $0x70] sm:$0xff]
      %v66 = vld [vmem:[%s1 + $0x78] sm:$0xff]
      %v67 = vadd.f32 %v35, %v51
      %v68 = vadd.f32 %v36, %v52
      %v69 = vadd.f32 %v37, %v53
      %v70 = vadd.f32 %v38, %v54
      %v71 = vadd.f32 %v39, %v55
      %v72 = vadd.f32 %v40, %v56
      %v73 = vadd.f32 %v41, %v57
      %v74 = vadd.f32 %v42, %v58
      %v75 = vadd.f32 %v43, %v59
      %v76 = vadd.f32 %v44, %v60
      %v77 = vadd.f32 %v45, %v61
      %v78 = vadd.f32 %v46, %v62
      %v79 = vadd.f32 %v47, %v63
      %v80 = vadd.f32 %v48, %v64
      %v81 = vadd.f32 %v49, %v65
      %v82 = vadd.f32 %v50, %v66
      %vm83 = vcmask 261120
      %v84 = vsel %vm83, %v67, 0.0
      %85 = vadd.xlane.f32.xlu0 %v84
      %v86 = vpop.xlane.xlu0 %85
      %v87 = vsel %vm83, %v68, 0.0
      %88 = vadd.xlane.f32.xlu0 %v87
      %v89 = vpop.xlane.xlu0 %88
      %v90 = vsel %vm83, %v69, 0.0
      %91 = vadd.xlane.f32.xlu0 %v90
      %v92 = vpop.xlane.xlu0 %91
      %v93 = vsel %vm83, %v70, 0.0
      %94 = vadd.xlane.f32.xlu0 %v93
      %v95 = vpop.xlane.xlu0 %94
      %v96 = vsel %vm83, %v71, 0.0
      %97 = vadd.xlane.f32.xlu0 %v96
      %v98 = vpop.xlane.xlu0 %97
      %v99 = vsel %vm83, %v72, 0.0
      %100 = vadd.xlane.f32.xlu0 %v99
      %v101 = vpop.xlane.xlu0 %100
      %v102 = vsel %vm83, %v73, 0.0
      %103 = vadd.xlane.f32.xlu0 %v102
      %v104 = vpop.xlane.xlu0 %103
      %v105 = vsel %vm83, %v74, 0.0
      %106 = vadd.xlane.f32.xlu0 %v105
      %v107 = vpop.xlane.xlu0 %106
      %v108 = vsel %vm83, %v75, 0.0
      %109 = vadd.xlane.f32.xlu0 %v108
      %v110 = vpop.xlane.xlu0 %109
      %v111 = vsel %vm83, %v76, 0.0
      %112 = vadd.xlane.f32.xlu0 %v111
      %v113 = vpop.xlane.xlu0 %112
      %v114 = vsel %vm83, %v77, 0.0
      %115 = vadd.xlane.f32.xlu0 %v114
      %v116 = vpop.xlane.xlu0 %115
      %v117 = vsel %vm83, %v78, 0.0
      %118 = vadd.xlane.f32.xlu0 %v117
      %v119 = vpop.xlane.xlu0 %118
      %v120 = vsel %vm83, %v79, 0.0
      %121 = vadd.xlane.f32.xlu0 %v120
      %v122 = vpop.xlane.xlu0 %121
      %v123 = vsel %vm83, %v80, 0.0
      %124 = vadd.xlane.f32.xlu0 %v123
      %v125 = vpop.xlane.xlu0 %124
      %v126 = vsel %vm83, %v81, 0.0
      %127 = vadd.xlane.f32.xlu0 %v126
      %v128 = vpop.xlane.xlu0 %127
      %v129 = vsel %vm83, %v82, 0.0
      %130 = vadd.xlane.f32.xlu0 %v129
      %v131 = vpop.xlane.xlu0 %130
      %v132 = vrcp.pop 32.0
      %v133 = vmul.f32 %v86, %v132
      %v134 = vmul.f32 %v89, %v132
      %v135 = vmul.f32 %v92, %v132
      %v136 = vmul.f32 %v95, %v132
      %v137 = vmul.f32 %v98, %v132
      %v138 = vmul.f32 %v101, %v132
      %v139 = vmul.f32 %v104, %v132
      %v140 = vmul.f32 %v107, %v132
      %v141 = vmul.f32 %v110, %v132
      %v142 = vmul.f32 %v113, %v132
      %v143 = vmul.f32 %v116, %v132
      %v144 = vmul.f32 %v119, %v132
      %v145 = vmul.f32 %v122, %v132
      %v146 = vmul.f32 %v125, %v132
      %v147 = vmul.f32 %v128, %v132
      %v148 = vmul.f32 %v131, %v132
      %v149 = vsub.f32 %v67, %v133
      %v150 = vsub.f32 %v68, %v134
      %v151 = vsub.f32 %v69, %v135
      %v152 = vsub.f32 %v70, %v136
      %v153 = vsub.f32 %v71, %v137
      %v154 = vsub.f32 %v72, %v138
      %v155 = vsub.f32 %v73, %v139
      %v156 = vsub.f32 %v74, %v140
      %v157 = vsub.f32 %v75, %v141
      %v158 = vsub.f32 %v76, %v142
      %v159 = vsub.f32 %v77, %v143
      %v160 = vsub.f32 %v78, %v144
      %v161 = vsub.f32 %v79, %v145
      %v162 = vsub.f32 %v80, %v146
      %v163 = vsub.f32 %v81, %v147
      %v164 = vsub.f32 %v82, %v148
      %v165 = vmul.f32 %v149, %v149
      %v166 = vmul.f32 %v150, %v150
      %v167 = vmul.f32 %v151, %v151
      %v168 = vmul.f32 %v152, %v152
      %v169 = vmul.f32 %v153, %v153
      %v170 = vmul.f32 %v154, %v154
      %v171 = vmul.f32 %v155, %v155
      %v172 = vmul.f32 %v156, %v156
      %v173 = vmul.f32 %v157, %v157
      %v174 = vmul.f32 %v158, %v158
      %v175 = vmul.f32 %v159, %v159
      %v176 = vmul.f32 %v160, %v160
      %v177 = vmul.f32 %v161, %v161
      %v178 = vmul.f32 %v162, %v162
      %v179 = vmul.f32 %v163, %v163
      %v180 = vmul.f32 %v164, %v164
      %v181 = vsel %vm83, %v165, 0.0
      %182 = vadd.xlane.f32.xlu0 %v181
      %v183 = vpop.xlane.xlu0 %182
      %v184 = vsel %vm83, %v166, 0.0
      %185 = vadd.xlane.f32.xlu0 %v184
      %v186 = vpop.xlane.xlu0 %185
      %v187 = vsel %vm83, %v167, 0.0
      %188 = vadd.xlane.f32.xlu0 %v187
      %v189 = vpop.xlane.xlu0 %188
      %v190 = vsel %vm83, %v168, 0.0
      %191 = vadd.xlane.f32.xlu0 %v190
      %v192 = vpop.xlane.xlu0 %191
      %v193 = vsel %vm83, %v169, 0.0
      %194 = vadd.xlane.f32.xlu0 %v193
      %v195 = vpop.xlane.xlu0 %194
      %v196 = vsel %vm83, %v170, 0.0
      %197 = vadd.xlane.f32.xlu0 %v196
      %v198 = vpop.xlane.xlu0 %197
      %v199 = vsel %vm83, %v171, 0.0
      %200 = vadd.xlane.f32.xlu0 %v199
      %v201 = vpop.xlane.xlu0 %200
      %v202 = vsel %vm83, %v172, 0.0
      %203 = vadd.xlane.f32.xlu0 %v202
      %v204 = vpop.xlane.xlu0 %203
      %v205 = vsel %vm83, %v173, 0.0
      %206 = vadd.xlane.f32.xlu0 %v205
      %v207 = vpop.xlane.xlu0 %206
      %v208 = vsel %vm83, %v174, 0.0
      %209 = vadd.xlane.f32.xlu0 %v208
      %v210 = vpop.xlane.xlu0 %209
      %v211 = vsel %vm83, %v175, 0.0
      %212 = vadd.xlane.f32.xlu0 %v211
      %v213 = vpop.xlane.xlu0 %212
      %v214 = vsel %vm83, %v176, 0.0
      %215 = vadd.xlane.f32.xlu0 %v214
      %v216 = vpop.xlane.xlu0 %215
      %v217 = vsel %vm83, %v177, 0.0
      %218 = vadd.xlane.f32.xlu0 %v217
      %v219 = vpop.xlane.xlu0 %218
      %v220 = vsel %vm83, %v178, 0.0
      %221 = vadd.xlane.f32.xlu0 %v220
      %v222 = vpop.xlane.xlu0 %221
      %v223 = vsel %vm83, %v179, 0.0
      %224 = vadd.xlane.f32.xlu0 %v223
      %v225 = vpop.xlane.xlu0 %224
      %v226 = vsel %vm83, %v180, 0.0
      %227 = vadd.xlane.f32.xlu0 %v226
      %v228 = vpop.xlane.xlu0 %227
      %v229 = vmul.f32 %v183, %v132
      %v230 = vmul.f32 %v186, %v132
      %v231 = vmul.f32 %v189, %v132
      %v232 = vmul.f32 %v192, %v132
      %v233 = vmul.f32 %v195, %v132
      %v234 = vmul.f32 %v198, %v132
      %v235 = vmul.f32 %v201, %v132
      %v236 = vmul.f32 %v204, %v132
      %v237 = vmul.f32 %v207, %v132
      %v238 = vmul.f32 %v210, %v132
      %v239 = vmul.f32 %v213, %v132
      %v240 = vmul.f32 %v216, %v132
      %v241 = vmul.f32 %v219, %v132
      %v242 = vmul.f32 %v222, %v132
      %v243 = vmul.f32 %v225, %v132
      %v244 = vmul.f32 %v228, %v132
      %v245 = vadd.f32 %v229, 1e-06
      %v246 = vadd.f32 %v230, 1e-06
      %v247 = vadd.f32 %v231, 1e-06
      %v248 = vadd.f32 %v232, 1e-06
      %v249 = vadd.f32 %v233, 1e-06
      %v250 = vadd.f32 %v234, 1e-06
      %v251 = vadd.f32 %v235, 1e-06
      %v252 = vadd.f32 %v236, 1e-06
      %v253 = vadd.f32 %v237, 1e-06
      %v254 = vadd.f32 %v238, 1e-06
      %v255 = vadd.f32 %v239, 1e-06
      %v256 = vadd.f32 %v240, 1e-06
      %v257 = vadd.f32 %v241, 1e-06
      %v258 = vadd.f32 %v242, 1e-06
      %v259 = vadd.f32 %v243, 1e-06
      %v260 = vadd.f32 %v244, 1e-06
      %v261 = vrsqrt.pop %v245
      %v262 = vrsqrt.pop %v246
      %v263 = vrsqrt.pop %v247
      %v264 = vrsqrt.pop %v248
      %v265 = vrsqrt.pop %v249
      %v266 = vrsqrt.pop %v250
      %v267 = vrsqrt.pop %v251
      %v268 = vrsqrt.pop %v252
      %v269 = vrsqrt.pop %v253
      %v270 = vrsqrt.pop %v254
      %v271 = vrsqrt.pop %v255
      %v272 = vrsqrt.pop %v256
      %v273 = vrsqrt.pop %v257
      %v274 = vrsqrt.pop %v258
      %v275 = vrsqrt.pop %v259
      %v276 = vrsqrt.pop %v260
      %v277 = vmul.f32 %v149, %v261
      %v278 = vmul.f32 %v150, %v262
      %v279 = vmul.f32 %v151, %v263
      %v280 = vmul.f32 %v152, %v264
      %v281 = vmul.f32 %v153, %v265
      %v282 = vmul.f32 %v154, %v266
      %v283 = vmul.f32 %v155, %v267
      %v284 = vmul.f32 %v156, %v268
      %v285 = vmul.f32 %v157, %v269
      %v286 = vmul.f32 %v158, %v270
      %v287 = vmul.f32 %v159, %v271
      %v288 = vmul.f32 %v160, %v272
      %v289 = vmul.f32 %v161, %v273
      %v290 = vmul.f32 %v162, %v274
      %v291 = vmul.f32 %v163, %v275
      %v292 = vmul.f32 %v164, %v276
      %293 = vst.msk [vmem:[#allocation2] sm:$0xff] %vm83, %v67
      %294 = vst.msk [vmem:[#allocation2 + $0x8] sm:$0xff] %vm83, %v68
      %295 = vst.msk [vmem:[#allocation2 + $0x10] sm:$0xff] %vm83, %v69
      %296 = vst.msk [vmem:[#allocation2 + $0x18] sm:$0xff] %vm83, %v70
      %297 = vst.msk [vmem:[#allocation2 + $0x20] sm:$0xff] %vm83, %v71
      %298 = vst.msk [vmem:[#allocation2 + $0x28] sm:$0xff] %vm83, %v72
      %299 = vst.msk [vmem:[#allocation2 + $0x30] sm:$0xff] %vm83, %v73
      %300 = vst.msk [vmem:[#allocation2 + $0x38] sm:$0xff] %vm83, %v74
      %301 = vst.msk [vmem:[#allocation2 + $0x40] sm:$0xff] %vm83, %v75
      %302 = vst.msk [vmem:[#allocation2 + $0x48] sm:$0xff] %vm83, %v76
      %303 = vst.msk [vmem:[#allocation2 + $0x50] sm:$0xff] %vm83, %v77
      %304 = vst.msk [vmem:[#allocation2 + $0x58] sm:$0xff] %vm83, %v78
      %305 = vst.msk [vmem:[#allocation2 + $0x60] sm:$0xff] %vm83, %v79
      %306 = vst.msk [vmem:[#allocation2 + $0x68] sm:$0xff] %vm83, %v80
      %307 = vst.msk [vmem:[#allocation2 + $0x70] sm:$0xff] %vm83, %v81
      %308 = vst.msk [vmem:[#allocation2 + $0x78] sm:$0xff] %vm83, %v82
      %v309 = vld [vmem:[%s2] sm:$0x1]
      %v311 = vlaneseq
      %v312 = vshrl.u32 %v311, 7
      %v313 = vsub.s32 0, %v312
      %v314 = vrot.slane %v309, %v313
      %v316 = vmul.f32 %v277, %v314
      %v317 = vmul.f32 %v278, %v314
      %v318 = vmul.f32 %v279, %v314
      %v319 = vmul.f32 %v280, %v314
      %v320 = vmul.f32 %v281, %v314
      %v321 = vmul.f32 %v282, %v314
      %v322 = vmul.f32 %v283, %v314
      %v323 = vmul.f32 %v284, %v314
      %v324 = vmul.f32 %v285, %v314
      %v325 = vmul.f32 %v286, %v314
      %v326 = vmul.f32 %v287, %v314
      %v327 = vmul.f32 %v288, %v314
      %v328 = vmul.f32 %v289, %v314
      %v329 = vmul.f32 %v290, %v314
      %v330 = vmul.f32 %v291, %v314
      %v331 = vmul.f32 %v292, %v314
      %v332 = vld [vmem:[%s3] sm:$0x1]
      %v334 = vlaneseq
      %v335 = vshrl.u32 %v334, 7
      %v336 = vsub.s32 0, %v335
      %v337 = vrot.slane %v332, %v336
      %v339 = vadd.f32 %v316, %v337
      %v340 = vadd.f32 %v317, %v337
      %v341 = vadd.f32 %v318, %v337
      %v342 = vadd.f32 %v319, %v337
      %v343 = vadd.f32 %v320, %v337
      %v344 = vadd.f32 %v321, %v337
      %v345 = vadd.f32 %v322, %v337
      %v346 = vadd.f32 %v323, %v337
      %v347 = vadd.f32 %v324, %v337
      %v348 = vadd.f32 %v325, %v337
      %v349 = vadd.f32 %v326, %v337
      %v350 = vadd.f32 %v327, %v337
      %v351 = vadd.f32 %v328, %v337
      %v352 = vadd.f32 %v329, %v337
      %v353 = vadd.f32 %v330, %v337
      %v354 = vadd.f32 %v331, %v337
      %v355 = vpack.c.bf16 %v340, %v339
      %v356 = vpack.c.bf16 %v342, %v341
      %v357 = vpack.c.bf16 %v344, %v343
      %v358 = vpack.c.bf16 %v346, %v345
      %v359 = vpack.c.bf16 %v348, %v347
      %v360 = vpack.c.bf16 %v350, %v349
      %v361 = vpack.c.bf16 %v352, %v351
      %v362 = vpack.c.bf16 %v354, %v353
      %v371 = vunpack.c.l.b16 %v355
      %v372 = vunpack.c.h.b16 %v355
      %v373 = vunpack.c.l.b16 %v356
      %v374 = vunpack.c.h.b16 %v356
      %v375 = vunpack.c.l.b16 %v357
      %v376 = vunpack.c.h.b16 %v357
      %v377 = vunpack.c.l.b16 %v358
      %v378 = vunpack.c.h.b16 %v358
      %v379 = vunpack.c.l.b16 %v359
      %v380 = vunpack.c.h.b16 %v359
      %v381 = vunpack.c.l.b16 %v360
      %v382 = vunpack.c.h.b16 %v360
      %v383 = vunpack.c.l.b16 %v361
      %v384 = vunpack.c.h.b16 %v361
      %v385 = vunpack.c.l.b16 %v362
      %v386 = vunpack.c.h.b16 %v362
      %v387 = vpack.c.b16 %v371, %v371
      %v388 = vpack.c.b16 %v372, %v372
      %v389 = vpack.c.b16 %v373, %v373
      %v390 = vpack.c.b16 %v374, %v374
      %v391 = vpack.c.b16 %v375, %v375
      %v392 = vpack.c.b16 %v376, %v376
      %v393 = vpack.c.b16 %v377, %v377
      %v394 = vpack.c.b16 %v378, %v378
      %v395 = vpack.c.b16 %v379, %v379
      %v396 = vpack.c.b16 %v380, %v380
      %v397 = vpack.c.b16 %v381, %v381
      %v398 = vpack.c.b16 %v382, %v382
      %v399 = vpack.c.b16 %v383, %v383
      %v400 = vpack.c.b16 %v384, %v384
      %v401 = vpack.c.b16 %v385, %v385
      %v402 = vpack.c.b16 %v386, %v386
      %vm419 = vcmask 257024
      %420 = vst.msk [vmem:[#allocation3] sm:$0xf] %vm419, %v387
      %421 = vst.msk [vmem:[#allocation3 + $0x4] sm:$0xf] %vm419, %v388
      %422 = vst.msk [vmem:[#allocation3 + $0x8] sm:$0xf] %vm419, %v389
      %423 = vst.msk [vmem:[#allocation3 + $0xc] sm:$0xf] %vm419, %v390
      %424 = vst.msk [vmem:[#allocation3 + $0x10] sm:$0xf] %vm419, %v391
      %425 = vst.msk [vmem:[#allocation3 + $0x14] sm:$0xf] %vm419, %v392
      %426 = vst.msk [vmem:[#allocation3 + $0x18] sm:$0xf] %vm419, %v393
      %427 = vst.msk [vmem:[#allocation3 + $0x1c] sm:$0xf] %vm419, %v394
      %428 = vst.msk [vmem:[#allocation3 + $0x20] sm:$0xf] %vm419, %v395
      %429 = vst.msk [vmem:[#allocation3 + $0x24] sm:$0xf] %vm419, %v396
      %430 = vst.msk [vmem:[#allocation3 + $0x28] sm:$0xf] %vm419, %v397
      %431 = vst.msk [vmem:[#allocation3 + $0x2c] sm:$0xf] %vm419, %v398
      %432 = vst.msk [vmem:[#allocation3 + $0x30] sm:$0xf] %vm419, %v399
      %433 = vst.msk [vmem:[#allocation3 + $0x34] sm:$0xf] %vm419, %v400
      %434 = vst.msk [vmem:[#allocation3 + $0x38] sm:$0xf] %vm419, %v401
      %435 = vst.msk [vmem:[#allocation3 + $0x3c] sm:$0xf] %vm419, %v402
      %436 = vst.msk [vmem:[#allocation4] sm:$0xff] %vm83, 0.0
      %437 = vst.msk [vmem:[#allocation4 + $0x8] sm:$0xff] %vm83, 0.0
      %438 = vst.msk [vmem:[#allocation4 + $0x10] sm:$0xff] %vm83, 0.0
      %439 = vst.msk [vmem:[#allocation4 + $0x18] sm:$0xff] %vm83, 0.0
      %440 = vst.msk [vmem:[#allocation4 + $0x20] sm:$0xff] %vm83, 0.0
      %441 = vst.msk [vmem:[#allocation4 + $0x28] sm:$0xff] %vm83, 0.0
      %442 = vst.msk [vmem:[#allocation4 + $0x30] sm:$0xff] %vm83, 0.0
      %443 = vst.msk [vmem:[#allocation4 + $0x38] sm:$0xff] %vm83, 0.0
      %444 = vst.msk [vmem:[#allocation4 + $0x40] sm:$0xff] %vm83, 0.0
      %445 = vst.msk [vmem:[#allocation4 + $0x48] sm:$0xff] %vm83, 0.0
      %446 = vst.msk [vmem:[#allocation4 + $0x50] sm:$0xff] %vm83, 0.0
      %447 = vst.msk [vmem:[#allocation4 + $0x58] sm:$0xff] %vm83, 0.0
      %448 = vst.msk [vmem:[#allocation4 + $0x60] sm:$0xff] %vm83, 0.0
      %449 = vst.msk [vmem:[#allocation4 + $0x68] sm:$0xff] %vm83, 0.0
      %450 = vst.msk [vmem:[#allocation4 + $0x70] sm:$0xff] %vm83, 0.0
      %451 = vst.msk [vmem:[#allocation4 + $0x78] sm:$0xff] %vm83, 0.0
    $region37: #{transformer_stage_forward.11} parent=1 // pred_fallthru
      _
    %v452 = vld [vmem:[#allocation3] sm:$0xf]
    %v453 = vld [vmem:[#allocation3 + $0x4] sm:$0xf]
    %v454 = vld [vmem:[#allocation3 + $0x8] sm:$0xf]
    %v455 = vld [vmem:[#allocation3 + $0xc] sm:$0xf]
    %v456 = vld [vmem:[#allocation3 + $0x10] sm:$0xf]
    %v457 = vld [vmem:[#allocation3 + $0x14] sm:$0xf]
    %v458 = vld [vmem:[#allocation3 + $0x18] sm:$0xf]
    %v459 = vld [vmem:[#allocation3 + $0x1c] sm:$0xf]
    %v460 = vld [vmem:[#allocation3 + $0x20] sm:$0xf]
    %v461 = vld [vmem:[#allocation3 + $0x24] sm:$0xf]
    %v462 = vld [vmem:[#allocation3 + $0x28] sm:$0xf]
    %v463 = vld [vmem:[#allocation3 + $0x2c] sm:$0xf]
    %v464 = vld [vmem:[#allocation3 + $0x30] sm:$0xf]
    %v465 = vld [vmem:[#allocation3 + $0x34] sm:$0xf]
    %v466 = vld [vmem:[#allocation3 + $0x38] sm:$0xf]
    %v467 = vld [vmem:[#allocation3 + $0x3c] sm:$0xf]
    %v468 = vld [vmem:[%s4] sm:$0xf]
    %v469 = vld [vmem:[%s4 + $0x4] sm:$0xf]
    %v470 = vld [vmem:[%s4 + $0x8] sm:$0xf]
    %v471 = vld [vmem:[%s4 + $0xc] sm:$0xf]
    %v472 = vld [vmem:[%s5] sm:$0x1]
    %v474 = vlaneseq
    %v475 = vshrl.u32 %v474, 7
    %v476 = vsub.s32 0, %v475
    %v477 = vrot.slane %v472, %v476
    %v495 = vunpack.c.l.b16 %v452
    %v496 = vunpack.c.l.b16 %v453
    %v497 = vunpack.c.l.b16 %v454
    %v498 = vunpack.c.l.b16 %v455
    %v499 = vunpack.c.l.b16 %v456
    %v500 = vunpack.c.l.b16 %v457
    %v501 = vunpack.c.l.b16 %v458
    %v502 = vunpack.c.l.b16 %v459
    %v503 = vunpack.c.l.b16 %v460
    %v504 = vunpack.c.l.b16 %v461
    %v505 = vunpack.c.l.b16 %v462
    %v506 = vunpack.c.l.b16 %v463
    %v507 = vunpack.c.l.b16 %v464
    %v508 = vunpack.c.l.b16 %v465
    %v509 = vunpack.c.l.b16 %v466
    %v510 = vunpack.c.l.b16 %v467
    %v511 = vpack.c.b16 %v496, %v495
    %v512 = vpack.c.b16 %v498, %v497
    %v513 = vpack.c.b16 %v500, %v499
    %v514 = vpack.c.b16 %v502, %v501
    %v515 = vpack.c.b16 %v504, %v503
    %v516 = vpack.c.b16 %v506, %v505
    %v517 = vpack.c.b16 %v508, %v507
    %v518 = vpack.c.b16 %v510, %v509
    %v523 = vunpack.c.l.b16 %v468
    %v524 = vunpack.c.l.b16 %v469
    %v525 = vunpack.c.l.b16 %v470
    %v526 = vunpack.c.l.b16 %v471
    %v527 = vpack.c.b16 %v524, %v523
    %v528 = vpack.c.b16 %v526, %v525
    %vm531 = vcmask 261120
    %v533 = vsel %vm531, %v511, 0
    %v536 = vsel %vm531, %v512, 0
    %v539 = vsel %vm531, %v513, 0
    %v542 = vsel %vm531, %v514, 0
    %v545 = vsel %vm531, %v515, 0
    %v548 = vsel %vm531, %v516, 0
    %v551 = vsel %vm531, %v517, 0
    %v554 = vsel %vm531, %v518, 0
    %556 = vmatprep.subr.bf16.mxu0 0
    %557 = vmatpush1.bf16.msra.mxu0 0
    %558 = vmatprep.subr.bf16.mxu0 0
    %559 = vmatpush1.bf16.msra.mxu0 0
    %560 = vmatprep.subr.bf16.mxu0 0
    %561 = vmatpush1.bf16.msra.mxu0 0
    %562 = vmatprep.subr.bf16.mxu0 0
    %563 = vmatpush1.bf16.msra.mxu0 0
    %564 = vmatprep.subr.bf16.mxu0 0
    %565 = vmatpush1.bf16.msra.mxu0 0
    %566 = vmatprep.subr.bf16.mxu0 0
    %567 = vmatpush1.bf16.msra.mxu0 0
    %568 = vmatprep.subr.bf16.mxu0 0
    %569 = vmatpush1.bf16.msra.mxu0 %v528
    %570 = vmatprep.subr.bf16.mxu0 0
    %571 = vmatpush1.bf16.msra.mxu0 %v527
    %572 = vmatprep.subr.bf16.mxu0 0
    %573 = vmatpush2.bf16.msra.mxu0 0
    %574 = vmatprep.subr.bf16.mxu0 0
    %575 = vmatpush2.bf16.msra.mxu0 0
    %576 = vmatprep.subr.bf16.mxu0 0
    %577 = vmatpush2.bf16.msra.mxu0 0
    %578 = vmatprep.subr.bf16.mxu0 0
    %579 = vmatpush2.bf16.msra.mxu0 0
    %580 = vmatprep.subr.bf16.mxu0 0
    %581 = vmatpush2.bf16.msra.mxu0 0
    %582 = vmatprep.subr.bf16.mxu0 0
    %583 = vmatpush2.bf16.msra.mxu0 0
    %584 = vmatprep.subr.bf16.mxu0 0
    %585 = vmatpush2.bf16.msra.mxu0 0
    %586 = vmatprep.subr.bf16.mxu0 0
    %587 = vmatpush2.bf16.msra.mxu0 0
    %588 = vmatprep.mubr.bf16.mxu0 0
    %589 = vmatmul.mubr.bf16.gmra.mxu0 %v533
    %v590 = vpop.f32.mrf.mxu0
    %v591 = vadd.f32 %v477, %v590
    %v592 = vpop.f32.mrf.mxu0
    %v593 = vpop.f32.mrf.mxu0
    %v594 = vadd.f32 %v477, %v593
    %v595 = vpop.f32.mrf.mxu0
    %596 = vmatprep.mubr.bf16.mxu0 0
    %597 = vmatmul.mubr.bf16.gmra.mxu0 %v536
    %v598 = vpop.f32.mrf.mxu0
    %v599 = vadd.f32 %v477, %v598
    %v600 = vpop.f32.mrf.mxu0
    %v601 = vpop.f32.mrf.mxu0
    %v602 = vadd.f32 %v477, %v601
    %v603 = vpop.f32.mrf.mxu0
    %604 = vmatprep.mubr.bf16.mxu0 0
    %605 = vmatmul.mubr.bf16.gmra.mxu0 %v539
    %v606 = vpop.f32.mrf.mxu0
    %v607 = vadd.f32 %v477, %v606
    %v608 = vpop.f32.mrf.mxu0
    %v609 = vpop.f32.mrf.mxu0
    %v610 = vadd.f32 %v477, %v609
    %v611 = vpop.f32.mrf.mxu0
    %612 = vmatprep.mubr.bf16.mxu0 0
    %613 = vmatmul.mubr.bf16.gmra.mxu0 %v542
    %v614 = vpop.f32.mrf.mxu0
    %v615 = vadd.f32 %v477, %v614
    %v616 = vpop.f32.mrf.mxu0
    %v617 = vpop.f32.mrf.mxu0
    %v618 = vadd.f32 %v477, %v617
    %v619 = vpop.f32.mrf.mxu0
    %620 = vmatprep.mubr.bf16.mxu0 0
    %621 = vmatmul.mubr.bf16.gmra.mxu0 %v545
    %v622 = vpop.f32.mrf.mxu0
    %v623 = vadd.f32 %v477, %v622
    %v624 = vpop.f32.mrf.mxu0
    %v625 = vpop.f32.mrf.mxu0
    %v626 = vadd.f32 %v477, %v625
    %v627 = vpop.f32.mrf.mxu0
    %628 = vmatprep.mubr.bf16.mxu0 0
    %629 = vmatmul.mubr.bf16.gmra.mxu0 %v548
    %v630 = vpop.f32.mrf.mxu0
    %v631 = vadd.f32 %v477, %v630
    %v632 = vpop.f32.mrf.mxu0
    %v633 = vpop.f32.mrf.mxu0
    %v634 = vadd.f32 %v477, %v633
    %v635 = vpop.f32.mrf.mxu0
    %636 = vmatprep.mubr.bf16.mxu0 0
    %637 = vmatmul.mubr.bf16.gmra.mxu0 %v551
    %v638 = vpop.f32.mrf.mxu0
    %v639 = vadd.f32 %v477, %v638
    %v640 = vpop.f32.mrf.mxu0
    %v641 = vpop.f32.mrf.mxu0
    %v642 = vadd.f32 %v477, %v641
    %v643 = vpop.f32.mrf.mxu0
    %644 = vmatprep.mubr.bf16.mxu0 0
    %645 = vmatmul.mubr.bf16.gmra.mxu0 %v554
    %v646 = vpop.f32.mrf.mxu0
    %v647 = vadd.f32 %v477, %v646
    %v648 = vpop.f32.mrf.mxu0
    %v649 = vpop.f32.mrf.mxu0
    %v650 = vadd.f32 %v477, %v649
    %v651 = vpop.f32.mrf.mxu0
    %652 = vdwg.mxu0
    %v653 = vmul.f32 %v591, %v591
    %v654 = vmul.f32 %v594, %v594
    %v655 = vmul.f32 %v599, %v599
    %v656 = vmul.f32 %v602, %v602
    %v657 = vmul.f32 %v607, %v607
    %v658 = vmul.f32 %v610, %v610
    %v659 = vmul.f32 %v615, %v615
    %v660 = vmul.f32 %v618, %v618
    %v661 = vmul.f32 %v623, %v623
    %v662 = vmul.f32 %v626, %v626
    %v663 = vmul.f32 %v631, %v631
    %v664 = vmul.f32 %v634, %v634
    %v665 = vmul.f32 %v639, %v639
    %v666 = vmul.f32 %v642, %v642
    %v667 = vmul.f32 %v647, %v647
    %v668 = vmul.f32 %v650, %v650
    %v669 = vmul.f32 %v591, %v653
    %v670 = vmul.f32 %v594, %v654
    %v671 = vmul.f32 %v599, %v655
    %v672 = vmul.f32 %v602, %v656
    %v673 = vmul.f32 %v607, %v657
    %v674 = vmul.f32 %v610, %v658
    %v675 = vmul.f32 %v615, %v659
    %v676 = vmul.f32 %v618, %v660
    %v677 = vmul.f32 %v623, %v661
    %v678 = vmul.f32 %v626, %v662
    %v679 = vmul.f32 %v631, %v663
    %v680 = vmul.f32 %v634, %v664
    %v681 = vmul.f32 %v639, %v665
    %v682 = vmul.f32 %v642, %v666
    %v683 = vmul.f32 %v647, %v667
    %v684 = vmul.f32 %v650, %v668
    %v685 = vmul.f32 %v669, 0.044715
    %v686 = vmul.f32 %v670, 0.044715
    %v687 = vmul.f32 %v671, 0.044715
    %v688 = vmul.f32 %v672, 0.044715
    %v689 = vmul.f32 %v673, 0.044715
    %v690 = vmul.f32 %v674, 0.044715
    %v691 = vmul.f32 %v675, 0.044715
    %v692 = vmul.f32 %v676, 0.044715
    %v693 = vmul.f32 %v677, 0.044715
    %v694 = vmul.f32 %v678, 0.044715
    %v695 = vmul.f32 %v679, 0.044715
    %v696 = vmul.f32 %v680, 0.044715
    %v697 = vmul.f32 %v681, 0.044715
    %v698 = vmul.f32 %v682, 0.044715
    %v699 = vmul.f32 %v683, 0.044715
    %v700 = vmul.f32 %v684, 0.044715
    %v701 = vadd.f32 %v591, %v685
    %v702 = vadd.f32 %v594, %v686
    %v703 = vadd.f32 %v599, %v687
    %v704 = vadd.f32 %v602, %v688
    %v705 = vadd.f32 %v607, %v689
    %v706 = vadd.f32 %v610, %v690
    %v707 = vadd.f32 %v615, %v691
    %v708 = vadd.f32 %v618, %v692
    %v709 = vadd.f32 %v623, %v693
    %v710 = vadd.f32 %v626, %v694
    %v711 = vadd.f32 %v631, %v695
    %v712 = vadd.f32 %v634, %v696
    %v713 = vadd.f32 %v639, %v697
    %v714 = vadd.f32 %v642, %v698
    %v715 = vadd.f32 %v647, %v699
    %v716 = vadd.f32 %v650, %v700
    %v717 = vmul.f32 %v701, 0.7978846
    %v718 = vmul.f32 %v702, 0.7978846
    %v719 = vmul.f32 %v703, 0.7978846
    %v720 = vmul.f32 %v704, 0.7978846
    %v721 = vmul.f32 %v705, 0.7978846
    %v722 = vmul.f32 %v706, 0.7978846
    %v723 = vmul.f32 %v707, 0.7978846
    %v724 = vmul.f32 %v708, 0.7978846
    %v725 = vmul.f32 %v709, 0.7978846
    %v726 = vmul.f32 %v710, 0.7978846
    %v727 = vmul.f32 %v711, 0.7978846
    %v728 = vmul.f32 %v712, 0.7978846
    %v729 = vmul.f32 %v713, 0.7978846
    %v730 = vmul.f32 %v714, 0.7978846
    %v731 = vmul.f32 %v715, 0.7978846
    %v732 = vmul.f32 %v716, 0.7978846
    %v733 = vtanh.pop %v717
    %v734 = vtanh.pop %v718
    %v735 = vtanh.pop %v719
    %v736 = vtanh.pop %v720
    %v737 = vtanh.pop %v721
    %v738 = vtanh.pop %v722
    %v739 = vtanh.pop %v723
    %v740 = vtanh.pop %v724
    %v741 = vtanh.pop %v725
    %v742 = vtanh.pop %v726
    %v743 = vtanh.pop %v727
    %v744 = vtanh.pop %v728
    %v745 = vtanh.pop %v729
    %v746 = vtanh.pop %v730
    %v747 = vtanh.pop %v731
    %v748 = vtanh.pop %v732
    %v749 = vadd.f32 %v733, 1.0
    %v750 = vadd.f32 %v734, 1.0
    %v751 = vadd.f32 %v735, 1.0
    %v752 = vadd.f32 %v736, 1.0
    %v753 = vadd.f32 %v737, 1.0
    %v754 = vadd.f32 %v738, 1.0
    %v755 = vadd.f32 %v739, 1.0
    %v756 = vadd.f32 %v740, 1.0
    %v757 = vadd.f32 %v741, 1.0
    %v758 = vadd.f32 %v742, 1.0
    %v759 = vadd.f32 %v743, 1.0
    %v760 = vadd.f32 %v744, 1.0
    %v761 = vadd.f32 %v745, 1.0
    %v762 = vadd.f32 %v746, 1.0
    %v763 = vadd.f32 %v747, 1.0
    %v764 = vadd.f32 %v748, 1.0
    %v765 = vmul.f32 %v749, 0.5
    %v766 = vmul.f32 %v750, 0.5
    %v767 = vmul.f32 %v751, 0.5
    %v768 = vmul.f32 %v752, 0.5
    %v769 = vmul.f32 %v753, 0.5
    %v770 = vmul.f32 %v754, 0.5
    %v771 = vmul.f32 %v755, 0.5
    %v772 = vmul.f32 %v756, 0.5
    %v773 = vmul.f32 %v757, 0.5
    %v774 = vmul.f32 %v758, 0.5
    %v775 = vmul.f32 %v759, 0.5
    %v776 = vmul.f32 %v760, 0.5
    %v777 = vmul.f32 %v761, 0.5
    %v778 = vmul.f32 %v762, 0.5
    %v779 = vmul.f32 %v763, 0.5
    %v780 = vmul.f32 %v764, 0.5
    %v781 = vmul.f32 %v591, %v765
    %v782 = vmul.f32 %v594, %v766
    %v783 = vmul.f32 %v599, %v767
    %v784 = vmul.f32 %v602, %v768
    %v785 = vmul.f32 %v607, %v769
    %v786 = vmul.f32 %v610, %v770
    %v787 = vmul.f32 %v615, %v771
    %v788 = vmul.f32 %v618, %v772
    %v789 = vmul.f32 %v623, %v773
    %v790 = vmul.f32 %v626, %v774
    %v791 = vmul.f32 %v631, %v775
    %v792 = vmul.f32 %v634, %v776
    %v793 = vmul.f32 %v639, %v777
    %v794 = vmul.f32 %v642, %v778
    %v795 = vmul.f32 %v647, %v779
    %v796 = vmul.f32 %v650, %v780
    %v797 = vld [vmem:[#allocation4] sm:$0xff]
    %v798 = vld [vmem:[#allocation4 + $0x8] sm:$0xff]
    %v799 = vld [vmem:[#allocation4 + $0x10] sm:$0xff]
    %v800 = vld [vmem:[#allocation4 + $0x18] sm:$0xff]
    %v801 = vld [vmem:[#allocation4 + $0x20] sm:$0xff]
    %v802 = vld [vmem:[#allocation4 + $0x28] sm:$0xff]
    %v803 = vld [vmem:[#allocation4 + $0x30] sm:$0xff]
    %v804 = vld [vmem:[#allocation4 + $0x38] sm:$0xff]
    %v805 = vld [vmem:[#allocation4 + $0x40] sm:$0xff]
    %v806 = vld [vmem:[#allocation4 + $0x48] sm:$0xff]
    %v807 = vld [vmem:[#allocation4 + $0x50] sm:$0xff]
    %v808 = vld [vmem:[#allocation4 + $0x58] sm:$0xff]
    %v809 = vld [vmem:[#allocation4 + $0x60] sm:$0xff]
    %v810 = vld [vmem:[#allocation4 + $0x68] sm:$0xff]
    %v811 = vld [vmem:[#allocation4 + $0x70] sm:$0xff]
    %v812 = vld [vmem:[#allocation4 + $0x78] sm:$0xff]
    %v813 = vpack.c.bf16 %v782, %v781
    %v814 = vpack.c.bf16 %v784, %v783
    %v815 = vpack.c.bf16 %v786, %v785
    %v816 = vpack.c.bf16 %v788, %v787
    %v817 = vpack.c.bf16 %v790, %v789
    %v818 = vpack.c.bf16 %v792, %v791
    %v819 = vpack.c.bf16 %v794, %v793
    %v820 = vpack.c.bf16 %v796, %v795
    %v821 = vld [vmem:[%s6] sm:$0xf]
    %v822 = vld [vmem:[%s6 + $0x4] sm:$0xf]
    %v823 = vld [vmem:[%s6 + $0x8] sm:$0xf]
    %v824 = vld [vmem:[%s6 + $0xc] sm:$0xf]
    %v825 = vld [vmem:[%s6 + $0x10] sm:$0xf]
    %v826 = vld [vmem:[%s6 + $0x14] sm:$0xf]
    %v827 = vld [vmem:[%s6 + $0x18] sm:$0xf]
    %v828 = vld [vmem:[%s6 + $0x1c] sm:$0xf]
    %v829 = vld [vmem:[%s6 + $0x20] sm:$0xf]
    %v830 = vld [vmem:[%s6 + $0x24] sm:$0xf]
    %v831 = vld [vmem:[%s6 + $0x28] sm:$0xf]
    %v832 = vld [vmem:[%s6 + $0x2c] sm:$0xf]
    %v833 = vld [vmem:[%s6 + $0x30] sm:$0xf]
    %v834 = vld [vmem:[%s6 + $0x34] sm:$0xf]
    %v835 = vld [vmem:[%s6 + $0x38] sm:$0xf]
    %v836 = vld [vmem:[%s6 + $0x3c] sm:$0xf]
    %v853 = vunpack.c.l.b16 %v821
    %v854 = vunpack.c.l.b16 %v822
    %v855 = vunpack.c.l.b16 %v823
    %v856 = vunpack.c.l.b16 %v824
    %v857 = vunpack.c.l.b16 %v825
    %v858 = vunpack.c.l.b16 %v826
    %v859 = vunpack.c.l.b16 %v827
    %v860 = vunpack.c.l.b16 %v828
    %v861 = vunpack.c.l.b16 %v829
    %v862 = vunpack.c.l.b16 %v830
    %v863 = vunpack.c.l.b16 %v831
    %v864 = vunpack.c.l.b16 %v832
    %v865 = vunpack.c.l.b16 %v833
    %v866 = vunpack.c.l.b16 %v834
    %v867 = vunpack.c.l.b16 %v835
    %v868 = vunpack.c.l.b16 %v836
    %v869 = vpack.c.b16 %v854, %v853
    %v870 = vpack.c.b16 %v856, %v855
    %v871 = vpack.c.b16 %v858, %v857
    %v872 = vpack.c.b16 %v860, %v859
    %v873 = vpack.c.b16 %v862, %v861
    %v874 = vpack.c.b16 %v864, %v863
    %v875 = vpack.c.b16 %v866, %v865
    %v876 = vpack.c.b16 %v868, %v867
    %885 = vmatprep.subr.bf16.mxu0 0
    %886 = vmatpush1.bf16.msra.mxu0 %v876
    %887 = vmatprep.subr.bf16.mxu0 0
    %888 = vmatpush1.bf16.msra.mxu0 %v875
    %889 = vmatprep.subr.bf16.mxu0 0
    %890 = vmatpush1.bf16.msra.mxu0 %v874
    %891 = vmatprep.subr.bf16.mxu0 0
    %892 = vmatpush1.bf16.msra.mxu0 %v873
    %893 = vmatprep.subr.bf16.mxu0 0
    %894 = vmatpush1.bf16.msra.mxu0 %v872
    %895 = vmatprep.subr.bf16.mxu0 0
    %896 = vmatpush1.bf16.msra.mxu0 %v871
    %897 = vmatprep.subr.bf16.mxu0 0
    %898 = vmatpush1.bf16.msra.mxu0 %v870
    %899 = vmatprep.subr.bf16.mxu0 0
    %900 = vmatpush1.bf16.msra.mxu0 %v869
    %901 = vmatprep.subr.bf16.mxu0 0
    %902 = vmatpush2.bf16.msra.mxu0 0
    %903 = vmatprep.subr.bf16.mxu0 0
    %904 = vmatpush2.bf16.msra.mxu0 0
    %905 = vmatprep.subr.bf16.mxu0 0
    %906 = vmatpush2.bf16.msra.mxu0 0
    %907 = vmatprep.subr.bf16.mxu0 0
    %908 = vmatpush2.bf16.msra.mxu0 0
    %909 = vmatprep.subr.bf16.mxu0 0
    %910 = vmatpush2.bf16.msra.mxu0 0
    %911 = vmatprep.subr.bf16.mxu0 0
    %912 = vmatpush2.bf16.msra.mxu0 0
    %913 = vmatprep.subr.bf16.mxu0 0
    %914 = vmatpush2.bf16.msra.mxu0 0
    %915 = vmatprep.subr.bf16.mxu0 0
    %916 = vmatpush2.bf16.msra.mxu0 0
    %917 = vmatprep.mubr.bf16.mxu0 0
    %918 = vmatmul.mubr.bf16.gmra.mxu0 %v813
    %v919 = vpop.f32.mrf.mxu0
    %v920 = vadd.f32 0.0, %v919
    %v921 = vpop.f32.mrf.mxu0
    %v922 = vpop.f32.mrf.mxu0
    %v923 = vadd.f32 0.0, %v922
    %v924 = vpop.f32.mrf.mxu0
    %925 = vmatprep.mubr.bf16.mxu0 0
    %926 = vmatmul.mubr.bf16.gmra.mxu0 %v814
    %v927 = vpop.f32.mrf.mxu0
    %v928 = vadd.f32 0.0, %v927
    %v929 = vpop.f32.mrf.mxu0
    %v930 = vpop.f32.mrf.mxu0
    %v931 = vadd.f32 0.0, %v930
    %v932 = vpop.f32.mrf.mxu0
    %933 = vmatprep.mubr.bf16.mxu0 0
    %934 = vmatmul.mubr.bf16.gmra.mxu0 %v815
    %v935 = vpop.f32.mrf.mxu0
    %v936 = vadd.f32 0.0, %v935
    %v937 = vpop.f32.mrf.mxu0
    %v938 = vpop.f32.mrf.mxu0
    %v939 = vadd.f32 0.0, %v938
    %v940 = vpop.f32.mrf.mxu0
    %941 = vmatprep.mubr.bf16.mxu0 0
    %942 = vmatmul.mubr.bf16.gmra.mxu0 %v816
    %v943 = vpop.f32.mrf.mxu0
    %v944 = vadd.f32 0.0, %v943
    %v945 = vpop.f32.mrf.mxu0
    %v946 = vpop.f32.mrf.mxu0
    %v947 = vadd.f32 0.0, %v946
    %v948 = vpop.f32.mrf.mxu0
    %949 = vmatprep.mubr.bf16.mxu0 0
    %950 = vmatmul.mubr.bf16.gmra.mxu0 %v817
    %v951 = vpop.f32.mrf.mxu0
    %v952 = vadd.f32 0.0, %v951
    %v953 = vpop.f32.mrf.mxu0
    %v954 = vpop.f32.mrf.mxu0
    %v955 = vadd.f32 0.0, %v954
    %v956 = vpop.f32.mrf.mxu0
    %957 = vmatprep.mubr.bf16.mxu0 0
    %958 = vmatmul.mubr.bf16.gmra.mxu0 %v818
    %v959 = vpop.f32.mrf.mxu0
    %v960 = vadd.f32 0.0, %v959
    %v961 = vpop.f32.mrf.mxu0
    %v962 = vpop.f32.mrf.mxu0
    %v963 = vadd.f32 0.0, %v962
    %v964 = vpop.f32.mrf.mxu0
    %965 = vmatprep.mubr.bf16.mxu0 0
    %966 = vmatmul.mubr.bf16.gmra.mxu0 %v819
    %v967 = vpop.f32.mrf.mxu0
    %v968 = vadd.f32 0.0, %v967
    %v969 = vpop.f32.mrf.mxu0
    %v970 = vpop.f32.mrf.mxu0
    %v971 = vadd.f32 0.0, %v970
    %v972 = vpop.f32.mrf.mxu0
    %973 = vmatprep.mubr.bf16.mxu0 0
    %974 = vmatmul.mubr.bf16.gmra.mxu0 %v820
    %v975 = vpop.f32.mrf.mxu0
    %v976 = vadd.f32 0.0, %v975
    %v977 = vpop.f32.mrf.mxu0
    %v978 = vpop.f32.mrf.mxu0
    %v979 = vadd.f32 0.0, %v978
    %v980 = vpop.f32.mrf.mxu0
    %981 = vdwg.mxu0
    %v982 = vadd.f32 %v797, %v920
    %v983 = vadd.f32 %v798, %v923
    %v984 = vadd.f32 %v799, %v928
    %v985 = vadd.f32 %v800, %v931
    %v986 = vadd.f32 %v801, %v936
    %v987 = vadd.f32 %v802, %v939
    %v988 = vadd.f32 %v803, %v944
    %v989 = vadd.f32 %v804, %v947
    %v990 = vadd.f32 %v805, %v952
    %v991 = vadd.f32 %v806, %v955
    %v992 = vadd.f32 %v807, %v960
    %v993 = vadd.f32 %v808, %v963
    %v994 = vadd.f32 %v809, %v968
    %v995 = vadd.f32 %v810, %v971
    %v996 = vadd.f32 %v811, %v976
    %v997 = vadd.f32 %v812, %v979
    %998 = vst.msk [vmem:[#allocation4] sm:$0xff] %vm531, %v982
    %999 = vst.msk [vmem:[#allocation4 + $0x8] sm:$0xff] %vm531, %v983
    %1000 = vst.msk [vmem:[#allocation4 + $0x10] sm:$0xff] %vm531, %v984
    %1001 = vst.msk [vmem:[#allocation4 + $0x18] sm:$0xff] %vm531, %v985
    %1002 = vst.msk [vmem:[#allocation4 + $0x20] sm:$0xff] %vm531, %v986
    %1003 = vst.msk [vmem:[#allocation4 + $0x28] sm:$0xff] %vm531, %v987
    %1004 = vst.msk [vmem:[#allocation4 + $0x30] sm:$0xff] %vm531, %v988
    %1005 = vst.msk [vmem:[#allocation4 + $0x38] sm:$0xff] %vm531, %v989
    %1006 = vst.msk [vmem:[#allocation4 + $0x40] sm:$0xff] %vm531, %v990
    %1007 = vst.msk [vmem:[#allocation4 + $0x48] sm:$0xff] %vm531, %v991
    %1008 = vst.msk [vmem:[#allocation4 + $0x50] sm:$0xff] %vm531, %v992
    %1009 = vst.msk [vmem:[#allocation4 + $0x58] sm:$0xff] %vm531, %v993
    %1010 = vst.msk [vmem:[#allocation4 + $0x60] sm:$0xff] %vm531, %v994
    %1011 = vst.msk [vmem:[#allocation4 + $0x68] sm:$0xff] %vm531, %v995
    %1012 = vst.msk [vmem:[#allocation4 + $0x70] sm:$0xff] %vm531, %v996
    %1013 = vst.msk [vmem:[#allocation4 + $0x78] sm:$0xff] %vm531, %v997
    // Predicated region
    $region38: #{transformer_stage_forward.11} parent=1 // pred_check
      %p1014 = pneg %p31
    $region39: #{transformer_stage_forward.11} parent=1 // pred_check_branch
      %1016 = sbr.rel (%p1014) target = $region41
    $region40: #{transformer_stage_forward.11} parent=1 // pred_region
      %v1017 = vld [vmem:[#allocation2] sm:$0xff]
      %v1018 = vld [vmem:[#allocation2 + $0x8] sm:$0xff]
      %v1019 = vld [vmem:[#allocation2 + $0x10] sm:$0xff]
      %v1020 = vld [vmem:[#allocation2 + $0x18] sm:$0xff]
      %v1021 = vld [vmem:[#allocation2 + $0x20] sm:$0xff]
      %v1022 = vld [vmem:[#allocation2 + $0x28] sm:$0xff]
      %v1023 = vld [vmem:[#allocation2 + $0x30] sm:$0xff]
      %v1024 = vld [vmem:[#allocation2 + $0x38] sm:$0xff]
      %v1025 = vld [vmem:[#allocation2 + $0x40] sm:$0xff]
      %v1026 = vld [vmem:[#allocation2 + $0x48] sm:$0xff]
      %v1027 = vld [vmem:[#allocation2 + $0x50] sm:$0xff]
      %v1028 = vld [vmem:[#allocation2 + $0x58] sm:$0xff]
      %v1029 = vld [vmem:[#allocation2 + $0x60] sm:$0xff]
      %v1030 = vld [vmem:[#allocation2 + $0x68] sm:$0xff]
      %v1031 = vld [vmem:[#allocation2 + $0x70] sm:$0xff]
      %v1032 = vld [vmem:[#allocation2 + $0x78] sm:$0xff]
      %v1033 = vld [vmem:[#allocation4] sm:$0xff]
      %v1034 = vld [vmem:[#allocation4 + $0x8] sm:$0xff]
      %v1035 = vld [vmem:[#allocation4 + $0x10] sm:$0xff]
      %v1036 = vld [vmem:[#allocation4 + $0x18] sm:$0xff]
      %v1037 = vld [vmem:[#allocation4 + $0x20] sm:$0xff]
      %v1038 = vld [vmem:[#allocation4 + $0x28] sm:$0xff]
      %v1039 = vld [vmem:[#allocation4 + $0x30] sm:$0xff]
      %v1040 = vld [vmem:[#allocation4 + $0x38] sm:$0xff]
      %v1041 = vld [vmem:[#allocation4 + $0x40] sm:$0xff]
      %v1042 = vld [vmem:[#allocation4 + $0x48] sm:$0xff]
      %v1043 = vld [vmem:[#allocation4 + $0x50] sm:$0xff]
      %v1044 = vld [vmem:[#allocation4 + $0x58] sm:$0xff]
      %v1045 = vld [vmem:[#allocation4 + $0x60] sm:$0xff]
      %v1046 = vld [vmem:[#allocation4 + $0x68] sm:$0xff]
      %v1047 = vld [vmem:[#allocation4 + $0x70] sm:$0xff]
      %v1048 = vld [vmem:[#allocation4 + $0x78] sm:$0xff]
      %v1049 = vadd.f32 %v1017, %v1033
      %v1050 = vadd.f32 %v1018, %v1034
      %v1051 = vadd.f32 %v1019, %v1035
      %v1052 = vadd.f32 %v1020, %v1036
      %v1053 = vadd.f32 %v1021, %v1037
      %v1054 = vadd.f32 %v1022, %v1038
      %v1055 = vadd.f32 %v1023, %v1039
      %v1056 = vadd.f32 %v1024, %v1040
      %v1057 = vadd.f32 %v1025, %v1041
      %v1058 = vadd.f32 %v1026, %v1042
      %v1059 = vadd.f32 %v1027, %v1043
      %v1060 = vadd.f32 %v1028, %v1044
      %v1061 = vadd.f32 %v1029, %v1045
      %v1062 = vadd.f32 %v1030, %v1046
      %v1063 = vadd.f32 %v1031, %v1047
      %v1064 = vadd.f32 %v1032, %v1048
      %v1065 = vld [vmem:[%s7] sm:$0x1]
      %v1067 = vlaneseq
      %v1068 = vshrl.u32 %v1067, 7
      %v1069 = vsub.s32 0, %v1068
      %v1070 = vrot.slane %v1065, %v1069
      %v1072 = vadd.f32 %v1049, %v1070
      %v1073 = vadd.f32 %v1050, %v1070
      %v1074 = vadd.f32 %v1051, %v1070
      %v1075 = vadd.f32 %v1052, %v1070
      %v1076 = vadd.f32 %v1053, %v1070
      %v1077 = vadd.f32 %v1054, %v1070
      %v1078 = vadd.f32 %v1055, %v1070
      %v1079 = vadd.f32 %v1056, %v1070
      %v1080 = vadd.f32 %v1057, %v1070
      %v1081 = vadd.f32 %v1058, %v1070
      %v1082 = vadd.f32 %v1059, %v1070
      %v1083 = vadd.f32 %v1060, %v1070
      %v1084 = vadd.f32 %v1061, %v1070
      %v1085 = vadd.f32 %v1062, %v1070
      %v1086 = vadd.f32 %v1063, %v1070
      %v1087 = vadd.f32 %v1064, %v1070
      %1088 = vst.msk [vmem:[#allocation5] sm:$0xff] %vm531, %v1072
      %1089 = vst.msk [vmem:[#allocation5 + $0x8] sm:$0xff] %vm531, %v1073
      %1090 = vst.msk [vmem:[#allocation5 + $0x10] sm:$0xff] %vm531, %v1074
      %1091 = vst.msk [vmem:[#allocation5 + $0x18] sm:$0xff] %vm531, %v1075
      %1092 = vst.msk [vmem:[#allocation5 + $0x20] sm:$0xff] %vm531, %v1076
      %1093 = vst.msk [vmem:[#allocation5 + $0x28] sm:$0xff] %vm531, %v1077
      %1094 = vst.msk [vmem:[#allocation5 + $0x30] sm:$0xff] %vm531, %v1078
      %1095 = vst.msk [vmem:[#allocation5 + $0x38] sm:$0xff] %vm531, %v1079
      %1096 = vst.msk [vmem:[#allocation5 + $0x40] sm:$0xff] %vm531, %v1080
      %1097 = vst.msk [vmem:[#allocation5 + $0x48] sm:$0xff] %vm531, %v1081
      %1098 = vst.msk [vmem:[#allocation5 + $0x50] sm:$0xff] %vm531, %v1082
      %1099 = vst.msk [vmem:[#allocation5 + $0x58] sm:$0xff] %vm531, %v1083
      %1100 = vst.msk [vmem:[#allocation5 + $0x60] sm:$0xff] %vm531, %v1084
      %1101 = vst.msk [vmem:[#allocation5 + $0x68] sm:$0xff] %vm531, %v1085
      %1102 = vst.msk [vmem:[#allocation5 + $0x70] sm:$0xff] %vm531, %v1086
      %1103 = vst.msk [vmem:[#allocation5 + $0x78] sm:$0xff] %vm531, %v1087
    $region41: #{transformer_stage_forward.11} parent=1 // pred_fallthru
      _
    // Predicated region
    $region42: #{transformer_stage_forward.11} parent=1 // pred_check
      _
    $region43: #{transformer_stage_forward.11} parent=1 // pred_check_branch
      %1105 = sbr.rel (0) target = $region45
    $region44: #{transformer_stage_forward.11} parent=1 // pred_region
      %s1107 = ssub.s32 2048, 2048
      %1108 = vsyncadd [#allocation6], %s1107
      %s1109 = sshll.u32 [#allocation5], 4
      %s1110 = int_to_ptr.vmem [resolvable:$true] %s1109
      %1115 = dma.vmem_to_hbm [thread:$0]  %s1110, 2048, %s8, [#allocation6], 128, 128, 8
    $region45: #{transformer_stage_forward.11} parent=1 // pred_fallthru
      _
    // Predicated region
    $region46: #{transformer_stage_forward.11} parent=1 // pred_check
      _
    $region47: #{transformer_stage_forward.11} parent=1 // pred_check_branch
      %1117 = sbr.rel (0) target = $region49
    $region48: #{transformer_stage_forward.11} parent=1 // pred_region
      %1118 = dma.done [#allocation6], 2048
    $region49: #{transformer_stage_forward.11} parent=1 // pred_fallthru
      _
    %1119 = vsyncpa [#allocation6], 1

</llo_original>
